<compile_context>
chip_gen: v7x
topology: tpu7x:2x2x1
jax: 0.10.0
libtpu: 0.0.40
codegen_flags: <defaults>
</compile_context>

<pallas_src>
import numpy as np
import jax
import jax.numpy as jnp
from jax.experimental import pallas as pl
from jax.experimental.pallas import tpu as pltpu

# ----------------------------- config ----------------------------------------
PATCH_NUM_ROW = 8          # small synthetic patch grid (module default is 16)
KERNEL_SIZE = 5            # module default
N = PATCH_NUM_ROW * PATCH_NUM_ROW + 1   # 65 tokens (extra prefix token)
N_PAD = ((N + 127) // 128) * 128        # 128: lane/MXU aligned token dim
DIM = 64                   # model dim of q/k/v inputs and output
HEADS = 8                  # module default
DIM_HEAD = 64              # module default
INNER = HEADS * DIM_HEAD   # 512
SCALE = DIM_HEAD ** -0.5
BATCH = 2

_NEG = -float(np.finfo(np.float32).max)   # PyTorch max_neg_value(float32)


# ----------------------------- nearby mask -----------------------------------
def build_nearby_mask(patch_num_row, kernel_size):
    """bool (N, N), True = masked (disallowed). Matches generate_nearby_mask()
    followed by F.pad(mask, (1, 0, 1, 0), value=False)."""
    pad = kernel_size // 2
    P = patch_num_row
    m = np.ones((P * P, P + 2 * pad, P + 2 * pad), dtype=bool)
    for i in range(P):
        for j in range(P):
            m[i * P + j, i:i + kernel_size, j:j + kernel_size] = False
    m = m[:, pad:-pad, pad:-pad].reshape(P * P, P * P)
    full = np.zeros((P * P + 1, P * P + 1), dtype=bool)
    full[1:, 1:] = m
    return full


def build_additive_bias(blocked, n_pad):
    """(n_pad, n_pad) f32 additive mask: 0 where allowed, -f32max where masked.
    Padded key columns are always masked; padded query rows are discarded
    after the call (they still see the real, never-fully-masked keys -> no NaN)."""
    n = blocked.shape[0]
    bias = np.zeros((n_pad, n_pad), np.float32)
    bias[:n, :n][blocked] = _NEG
    bias[:, n:] = _NEG
    return bias


# ----------------------------- kernel -----------------------------------------
def nearby_attention_kernel(bias_ref, q_ref, k_ref, v_ref,
                            wq_ref, wk_ref, wv_ref, wo_ref, bo_ref,
                            o_ref, qh_ref, kh_ref, vh_ref, ctx_ref):
    bb, n_pad, dim = q_ref.shape
    rows = bb * n_pad

    # ---- fused, lane-dense QKV projections: (bb*N_pad, 64) @ (64, 512) ------
    q2 = q_ref[...].reshape(rows, dim)            # bf16
    k2 = k_ref[...].reshape(rows, dim)
    v2 = v_ref[...].reshape(rows, dim)
    qh_ref[...] = ((jnp.dot(q2, wq_ref[...], preferred_element_type=jnp.float32)
                    * SCALE).astype(jnp.bfloat16).reshape(bb, n_pad, INNER))
    kh_ref[...] = (jnp.dot(k2, wk_ref[...], preferred_element_type=jnp.float32)
                   .astype(jnp.bfloat16).reshape(bb, n_pad, INNER))
    vh_ref[...] = (jnp.dot(v2, wv_ref[...], preferred_element_type=jnp.float32)
                   .astype(jnp.bfloat16).reshape(bb, n_pad, INNER))

    bias = bias_ref[...]                          # (N_pad, N_pad) f32 additive

    # ---- per (batch, head) attention; scratch-staged -> bounded live ranges -
    for bi in range(bb):
        for h in range(HEADS):
            c0 = h * DIM_HEAD
            qh = qh_ref[bi, :, c0:c0 + DIM_HEAD]  # (N_pad, HD) bf16
            kh = kh_ref[bi, :, c0:c0 + DIM_HEAD]
            vh = vh_ref[bi, :, c0:c0 + DIM_HEAD]

            # bf16 x bf16 score matmul, f32 accumulate; contracts kh's minor
            # dim directly (no explicit transpose of the activation tile).
            s = jax.lax.dot_general(
                qh, kh, (((1,), (1,)), ((), ())),
                preferred_element_type=jnp.float32) + bias     # (N_pad, N_pad)

            # numerically-safe softmax (f32), EUP reciprocal
            s = s - jnp.max(s, axis=-1, keepdims=True)
            e = jnp.exp(s)
            p = e * pl.reciprocal(jnp.sum(e, axis=-1, keepdims=True),
                                  approx=True)

            ctx = jnp.dot(p.astype(jnp.bfloat16), vh,
                          preferred_element_type=jnp.float32)   # (N_pad, HD)
            ctx_ref[bi, :, c0:c0 + DIM_HEAD] = ctx.astype(jnp.bfloat16)

    # ---- single lane-dense output projection: (bb*N_pad, 512) @ (512, 64) ---
    out = jnp.dot(ctx_ref[...].reshape(rows, INNER), wo_ref[...],
                  preferred_element_type=jnp.float32) + bo_ref[...]
    o_ref[...] = out.reshape(bb, n_pad, dim)


# ----------------------------- wrapper ----------------------------------------
def _batch_on_grid():
    """Keep batch on a 2-way parallel grid axis only on 2-TC chips (v7x);
    collapse to a single grid step on single-TC v5e/v6e."""
    try:
        kind = jax.devices()[0].device_kind.lower()
    except Exception:
        return False
    return ("v7" in kind) or ("7x" in kind)


def nearby_attention(q, k, v, bias, wq, wk, wv, wo, bo, *, batch_on_grid):
    B, n_pad, d = q.shape
    bb = 1 if batch_on_grid else B               # block batch size per step
    grid = (B // bb,)

    def const_spec(arr):
        nz = (0,) * arr.ndim
        return pl.BlockSpec(arr.shape, lambda g, _z=nz: _z)

    act_spec = pl.BlockSpec((bb, n_pad, d), lambda g: (g, 0, 0))

    return pl.pallas_call(
        nearby_attention_kernel,
        out_shape=jax.ShapeDtypeStruct((B, n_pad, d), jnp.float32),
        grid=grid,
        in_specs=[const_spec(bias),
                  act_spec, act_spec, act_spec,
                  const_spec(wq), const_spec(wk), const_spec(wv),
                  const_spec(wo), const_spec(bo)],
        out_specs=act_spec,
        scratch_shapes=[pltpu.VMEM((bb, n_pad, INNER), jnp.bfloat16),  # qh
                        pltpu.VMEM((bb, n_pad, INNER), jnp.bfloat16),  # kh
                        pltpu.VMEM((bb, n_pad, INNER), jnp.bfloat16),  # vh
                        pltpu.VMEM((bb, n_pad, INNER), jnp.bfloat16)], # ctx
        compiler_params=pltpu.CompilerParams(
            dimension_semantics=("parallel",)),
    )(bias, q, k, v, wq, wk, wv, wo, bo)


# ----------------------------- pure-JAX reference -----------------------------
def reference_forward(q, k, v, blocked, wq, wk, wv, wo, bo):
    def split_in(w):   # (DIM, INNER) -> (H, DIM, HD), head-major columns
        return jnp.transpose(
            w.astype(jnp.float32).reshape(DIM, HEADS, DIM_HEAD), (1, 0, 2))
    wo32 = wo.astype(jnp.float32).reshape(HEADS, DIM_HEAD, DIM)
    qh = jnp.einsum('bnd,hdk->bhnk', q, split_in(wq))
    kh = jnp.einsum('bnd,hdk->bhnk', k, split_in(wk))
    vh = jnp.einsum('bnd,hdk->bhnk', v, split_in(wv))
    dots = jnp.einsum('bhid,bhjd->bhij', qh, kh) * SCALE
    dots = jnp.where(blocked[None, None], _NEG, dots)
    attn = jax.nn.softmax(dots, axis=-1)
    ctx = jnp.einsum('bhij,bhjd->bhid', attn, vh)
    return jnp.einsum('bhnd,hdo->bno', ctx, wo32) + bo[0]


# ----------------------------- main --------------------------------------------
if __name__ == "__main__":
    key = jax.random.PRNGKey(0)
    kq, kk, kv, k1, k2, k3, k4, k5 = jax.random.split(key, 8)

    q = jax.random.normal(kq, (BATCH, N, DIM), dtype=jnp.float32)
    k = jax.random.normal(kk, (BATCH, N, DIM), dtype=jnp.float32)
    v = jax.random.normal(kv, (BATCH, N, DIM), dtype=jnp.float32)

    def w_init(rng, shape):
        return (0.02 * jax.random.normal(rng, shape)).astype(jnp.bfloat16)

    wq = w_init(k1, (DIM, INNER))      # fused q_linear weight (no bias)
    wk = w_init(k2, (DIM, INNER))      # fused k_linear weight (no bias)
    wv = w_init(k3, (DIM, INNER))      # fused v_linear weight (no bias)
    wo = w_init(k4, (INNER, DIM))      # to_out weight
    bo = (0.02 * jax.random.normal(k5, (1, DIM))).astype(jnp.float32)

    blocked_np = build_nearby_mask(PATCH_NUM_ROW, KERNEL_SIZE)   # (N, N) bool
    bias = jnp.asarray(build_additive_bias(blocked_np, N_PAD))   # (128, 128) f32

    def pad_tokens(x):   # (B, N, DIM) f32 -> (B, N_PAD, DIM) bf16
        return jnp.pad(x, ((0, 0), (0, N_PAD - N), (0, 0))).astype(jnp.bfloat16)

    out_pad = nearby_attention(pad_tokens(q), pad_tokens(k), pad_tokens(v),
                               bias, wq, wk, wv, wo, bo,
                               batch_on_grid=_batch_on_grid())
    out_pad = jax.block_until_ready(out_pad)

    out = out_pad[:, :N, :]            # drop padded query rows
    assert out.shape == (BATCH, N, DIM), out.shape
    assert out.dtype == jnp.float32

    ref = reference_forward(q, k, v, jnp.asarray(blocked_np), wq, wk, wv, wo, bo)
    err = float(jnp.max(jnp.abs(out - ref)))
    # loose tolerance: bf16 activations/scores/probs on the MXU (f32 accumulate)
    # plus the approximate EUP reciprocal in the softmax
    assert err < 1e-2, f"max abs err vs reference: {err}"

    print("KERNEL_OK")
</pallas_src>

<mosaic_0001>
module attributes {stable_mosaic.version = 11 : i64} {
  func.func @nearby_attention_kernel(%arg0: i32, %arg1: memref<128x128xf32, #tpu.memory_space<vmem>>, %arg2: memref<2x128x64xbf16, #tpu.memory_space<vmem>>, %arg3: memref<2x128x64xbf16, #tpu.memory_space<vmem>>, %arg4: memref<2x128x64xbf16, #tpu.memory_space<vmem>>, %arg5: memref<64x512xbf16, #tpu.memory_space<vmem>>, %arg6: memref<64x512xbf16, #tpu.memory_space<vmem>>, %arg7: memref<64x512xbf16, #tpu.memory_space<vmem>>, %arg8: memref<512x64xbf16, #tpu.memory_space<vmem>>, %arg9: memref<1x64xf32, #tpu.memory_space<vmem>>, %arg10: memref<2x128x64xf32, #tpu.memory_space<vmem>>, %arg11: memref<2x128x512xbf16, #tpu.memory_space<vmem>>, %arg12: memref<2x128x512xbf16, #tpu.memory_space<vmem>>, %arg13: memref<2x128x512xbf16, #tpu.memory_space<vmem>>, %arg14: memref<2x128x512xbf16, #tpu.memory_space<vmem>>) attributes {dimension_semantics = [#tpu.dimension_semantics<parallel>], iteration_bounds = array<i64: 1>, scalar_prefetch = 0 : i64, scratch_operands = 4 : i64, tpu.core_type = #tpu.core_type<tc>, window_params = [{pipeline_mode = #tpu.pipeline_mode<synchronous>, transform_indices = @transform_0, window_bounds = array<i64: 128, 128>}, {transform_indices = @transform_1, window_bounds = array<i64: 2, 128, 64>}, {transform_indices = @transform_2, window_bounds = array<i64: 2, 128, 64>}, {transform_indices = @transform_3, window_bounds = array<i64: 2, 128, 64>}, {pipeline_mode = #tpu.pipeline_mode<synchronous>, transform_indices = @transform_4, window_bounds = array<i64: 64, 512>}, {pipeline_mode = #tpu.pipeline_mode<synchronous>, transform_indices = @transform_5, window_bounds = array<i64: 64, 512>}, {pipeline_mode = #tpu.pipeline_mode<synchronous>, transform_indices = @transform_6, window_bounds = array<i64: 64, 512>}, {pipeline_mode = #tpu.pipeline_mode<synchronous>, transform_indices = @transform_7, window_bounds = array<i64: 512, 64>}, {pipeline_mode = #tpu.pipeline_mode<synchronous>, transform_indices = @transform_8, window_bounds = array<i64: 1, 64>}, {transform_indices = @transform_9, window_bounds = array<i64: 2, 128, 64>}]} {
    %c0 = arith.constant 0 : index
    %c0_0 = arith.constant 0 : index
    %c0_1 = arith.constant 0 : index
    %0 = vector.load %arg2[%c0, %c0_0, %c0_1] : memref<2x128x64xbf16, #tpu.memory_space<vmem>>, vector<2x128x64xbf16>
    %1 = vector.shape_cast %0 : vector<2x128x64xbf16> to vector<256x64xbf16>
    %c0_2 = arith.constant 0 : index
    %c0_3 = arith.constant 0 : index
    %c0_4 = arith.constant 0 : index
    %2 = vector.load %arg3[%c0_2, %c0_3, %c0_4] : memref<2x128x64xbf16, #tpu.memory_space<vmem>>, vector<2x128x64xbf16>
    %3 = vector.shape_cast %2 : vector<2x128x64xbf16> to vector<256x64xbf16>
    %c0_5 = arith.constant 0 : index
    %c0_6 = arith.constant 0 : index
    %c0_7 = arith.constant 0 : index
    %4 = vector.load %arg4[%c0_5, %c0_6, %c0_7] : memref<2x128x64xbf16, #tpu.memory_space<vmem>>, vector<2x128x64xbf16>
    %5 = vector.shape_cast %4 : vector<2x128x64xbf16> to vector<256x64xbf16>
    %c0_8 = arith.constant 0 : index
    %c0_9 = arith.constant 0 : index
    %6 = vector.load %arg5[%c0_8, %c0_9] : memref<64x512xbf16, #tpu.memory_space<vmem>>, vector<64x512xbf16>
    %cst = arith.constant dense<0.000000e+00> : vector<256x512xf32>
    %7 = tpu.matmul %1, %6, %cst {dimension_numbers = #tpu.dot_dimension_numbers<[1], [0], [0], [1], [0, 0, 1, 1], [], []>} : vector<256x64xbf16>, vector<64x512xbf16>, vector<256x512xf32> -> vector<256x512xf32>
    %cst_10 = arith.constant 1.250000e-01 : f32
    %8 = vector.broadcast %cst_10 : f32 to vector<256x512xf32>
    %9 = arith.mulf %7, %8 : vector<256x512xf32>
    %10 = arith.truncf %9 : vector<256x512xf32> to vector<256x512xbf16>
    %11 = vector.shape_cast %10 : vector<256x512xbf16> to vector<2x128x512xbf16>
    %c0_11 = arith.constant 0 : index
    %c0_12 = arith.constant 0 : index
    %c0_13 = arith.constant 0 : index
    %12 = vector.load %arg11[%c0_11, %c0_12, %c0_13] : memref<2x128x512xbf16, #tpu.memory_space<vmem>>, vector<2x128x512xbf16>
    tpu.vector_store %arg11[%c0_11, %c0_12, %c0_13], %11 {strides = array<i32>} : memref<2x128x512xbf16, #tpu.memory_space<vmem>>, vector<2x128x512xbf16>,
    %c0_14 = arith.constant 0 : index
    %c0_15 = arith.constant 0 : index
    %13 = vector.load %arg6[%c0_14, %c0_15] : memref<64x512xbf16, #tpu.memory_space<vmem>>, vector<64x512xbf16>
    %cst_16 = arith.constant dense<0.000000e+00> : vector<256x512xf32>
    %14 = tpu.matmul %3, %13, %cst_16 {dimension_numbers = #tpu.dot_dimension_numbers<[1], [0], [0], [1], [0, 0, 1, 1], [], []>} : vector<256x64xbf16>, vector<64x512xbf16>, vector<256x512xf32> -> vector<256x512xf32>
    %15 = arith.truncf %14 : vector<256x512xf32> to vector<256x512xbf16>
    %16 = vector.shape_cast %15 : vector<256x512xbf16> to vector<2x128x512xbf16>
    %c0_17 = arith.constant 0 : index
    %c0_18 = arith.constant 0 : index
    %c0_19 = arith.constant 0 : index
    %17 = vector.load %arg12[%c0_17, %c0_18, %c0_19] : memref<2x128x512xbf16, #tpu.memory_space<vmem>>, vector<2x128x512xbf16>
    tpu.vector_store %arg12[%c0_17, %c0_18, %c0_19], %16 {strides = array<i32>} : memref<2x128x512xbf16, #tpu.memory_space<vmem>>, vector<2x128x512xbf16>,
    %c0_20 = arith.constant 0 : index
    %c0_21 = arith.constant 0 : index
    %18 = vector.load %arg7[%c0_20, %c0_21] : memref<64x512xbf16, #tpu.memory_space<vmem>>, vector<64x512xbf16>
    %cst_22 = arith.constant dense<0.000000e+00> : vector<256x512xf32>
    %19 = tpu.matmul %5, %18, %cst_22 {dimension_numbers = #tpu.dot_dimension_numbers<[1], [0], [0], [1], [0, 0, 1, 1], [], []>} : vector<256x64xbf16>, vector<64x512xbf16>, vector<256x512xf32> -> vector<256x512xf32>
    %20 = arith.truncf %19 : vector<256x512xf32> to vector<256x512xbf16>
    %21 = vector.shape_cast %20 : vector<256x512xbf16> to vector<2x128x512xbf16>
    %c0_23 = arith.constant 0 : index
    %c0_24 = arith.constant 0 : index
    %c0_25 = arith.constant 0 : index
    %22 = vector.load %arg13[%c0_23, %c0_24, %c0_25] : memref<2x128x512xbf16, #tpu.memory_space<vmem>>, vector<2x128x512xbf16>
    tpu.vector_store %arg13[%c0_23, %c0_24, %c0_25], %21 {strides = array<i32>} : memref<2x128x512xbf16, #tpu.memory_space<vmem>>, vector<2x128x512xbf16>,
    %c0_26 = arith.constant 0 : index
    %c0_27 = arith.constant 0 : index
    %23 = vector.load %arg1[%c0_26, %c0_27] : memref<128x128xf32, #tpu.memory_space<vmem>>, vector<128x128xf32>
    %c0_28 = arith.constant 0 : index
    %c0_29 = arith.constant 0 : index
    %c0_30 = arith.constant 0 : index
    %24 = vector.load %arg11[%c0_28, %c0_29, %c0_30] : memref<2x128x512xbf16, #tpu.memory_space<vmem>>, vector<1x128x64xbf16>
    %25 = vector.shape_cast %24 : vector<1x128x64xbf16> to vector<128x64xbf16>
    %c0_31 = arith.constant 0 : index
    %c0_32 = arith.constant 0 : index
    %c0_33 = arith.constant 0 : index
    %26 = vector.load %arg12[%c0_31, %c0_32, %c0_33] : memref<2x128x512xbf16, #tpu.memory_space<vmem>>, vector<1x128x64xbf16>
    %27 = vector.shape_cast %26 : vector<1x128x64xbf16> to vector<128x64xbf16>
    %c0_34 = arith.constant 0 : index
    %c0_35 = arith.constant 0 : index
    %c0_36 = arith.constant 0 : index
    %28 = vector.load %arg13[%c0_34, %c0_35, %c0_36] : memref<2x128x512xbf16, #tpu.memory_space<vmem>>, vector<1x128x64xbf16>
    %29 = vector.shape_cast %28 : vector<1x128x64xbf16> to vector<128x64xbf16>
    %cst_37 = arith.constant dense<0.000000e+00> : vector<128x128xf32>
    %30 = tpu.matmul %25, %27, %cst_37 {dimension_numbers = #tpu.dot_dimension_numbers<[1], [1], [0], [0], [0, 0, 1, 0], [], []>} : vector<128x64xbf16>, vector<128x64xbf16>, vector<128x128xf32> -> vector<128x128xf32>
    %31 = arith.addf %30, %23 : vector<128x128xf32>
    %cst_38 = arith.constant dense<0xFF800000> : vector<128xf32>
    %32 = vector.multi_reduction <maximumf>, %31, %cst_38 [1] : vector<128x128xf32> to vector<128xf32>
    %33 = vector.shape_cast %32 : vector<128xf32> to vector<128x1xf32>
    %34 = vector.broadcast %33 : vector<128x1xf32> to vector<128x128xf32>
    %35 = arith.subf %31, %34 : vector<128x128xf32>
    %36 = math.exp %35 : vector<128x128xf32>
    %cst_39 = arith.constant dense<0.000000e+00> : vector<128xf32>
    %37 = vector.multi_reduction <add>, %36, %cst_39 [1] : vector<128x128xf32> to vector<128xf32>
    %38 = vector.shape_cast %37 : vector<128xf32> to vector<128x1xf32>
    %39 = tpu.reciprocal %38 {approx = true} : vector<128x1xf32> -> vector<128x1xf32>
    %40 = vector.broadcast %39 : vector<128x1xf32> to vector<128x128xf32>
    %41 = arith.mulf %36, %40 : vector<128x128xf32>
    %42 = arith.truncf %41 : vector<128x128xf32> to vector<128x128xbf16>
    %cst_40 = arith.constant dense<0.000000e+00> : vector<128x64xf32>
    %43 = tpu.matmul %42, %29, %cst_40 {dimension_numbers = #tpu.dot_dimension_numbers<[1], [0], [0], [1], [0, 0, 1, 1], [], []>} : vector<128x128xbf16>, vector<128x64xbf16>, vector<128x64xf32> -> vector<128x64xf32>
    %44 = arith.truncf %43 : vector<128x64xf32> to vector<128x64xbf16>
    %c0_41 = arith.constant 0 : index
    %c0_42 = arith.constant 0 : index
    %c0_43 = arith.constant 0 : index
    %45 = vector.load %arg14[%c0_41, %c0_42, %c0_43] : memref<2x128x512xbf16, #tpu.memory_space<vmem>>, vector<1x128x64xbf16>
    %46 = vector.shape_cast %45 : vector<1x128x64xbf16> to vector<128x64xbf16>
    %47 = vector.shape_cast %44 : vector<128x64xbf16> to vector<1x128x64xbf16>
    tpu.vector_store %arg14[%c0_41, %c0_42, %c0_43], %47 {strides = array<i32>} : memref<2x128x512xbf16, #tpu.memory_space<vmem>>, vector<1x128x64xbf16>,
    %c0_44 = arith.constant 0 : index
    %c0_45 = arith.constant 0 : index
    %c64 = arith.constant 64 : index
    %48 = vector.load %arg11[%c0_44, %c0_45, %c64] : memref<2x128x512xbf16, #tpu.memory_space<vmem>>, vector<1x128x64xbf16>
    %49 = vector.shape_cast %48 : vector<1x128x64xbf16> to vector<128x64xbf16>
    %c0_46 = arith.constant 0 : index
    %c0_47 = arith.constant 0 : index
    %c64_48 = arith.constant 64 : index
    %50 = vector.load %arg12[%c0_46, %c0_47, %c64_48] : memref<2x128x512xbf16, #tpu.memory_space<vmem>>, vector<1x128x64xbf16>
    %51 = vector.shape_cast %50 : vector<1x128x64xbf16> to vector<128x64xbf16>
    %c0_49 = arith.constant 0 : index
    %c0_50 = arith.constant 0 : index
    %c64_51 = arith.constant 64 : index
    %52 = vector.load %arg13[%c0_49, %c0_50, %c64_51] : memref<2x128x512xbf16, #tpu.memory_space<vmem>>, vector<1x128x64xbf16>
    %53 = vector.shape_cast %52 : vector<1x128x64xbf16> to vector<128x64xbf16>
    %cst_52 = arith.constant dense<0.000000e+00> : vector<128x128xf32>
    %54 = tpu.matmul %49, %51, %cst_52 {dimension_numbers = #tpu.dot_dimension_numbers<[1], [1], [0], [0], [0, 0, 1, 0], [], []>} : vector<128x64xbf16>, vector<128x64xbf16>, vector<128x128xf32> -> vector<128x128xf32>
    %55 = arith.addf %54, %23 : vector<128x128xf32>
    %cst_53 = arith.constant dense<0xFF800000> : vector<128xf32>
    %56 = vector.multi_reduction <maximumf>, %55, %cst_53 [1] : vector<128x128xf32> to vector<128xf32>
    %57 = vector.shape_cast %56 : vector<128xf32> to vector<128x1xf32>
    %58 = vector.broadcast %57 : vector<128x1xf32> to vector<128x128xf32>
    %59 = arith.subf %55, %58 : vector<128x128xf32>
    %60 = math.exp %59 : vector<128x128xf32>
    %cst_54 = arith.constant dense<0.000000e+00> : vector<128xf32>
    %61 = vector.multi_reduction <add>, %60, %cst_54 [1] : vector<128x128xf32> to vector<128xf32>
    %62 = vector.shape_cast %61 : vector<128xf32> to vector<128x1xf32>
    %63 = tpu.reciprocal %62 {approx = true} : vector<128x1xf32> -> vector<128x1xf32>
    %64 = vector.broadcast %63 : vector<128x1xf32> to vector<128x128xf32>
    %65 = arith.mulf %60, %64 : vector<128x128xf32>
    %66 = arith.truncf %65 : vector<128x128xf32> to vector<128x128xbf16>
    %cst_55 = arith.constant dense<0.000000e+00> : vector<128x64xf32>
    %67 = tpu.matmul %66, %53, %cst_55 {dimension_numbers = #tpu.dot_dimension_numbers<[1], [0], [0], [1], [0, 0, 1, 1], [], []>} : vector<128x128xbf16>, vector<128x64xbf16>, vector<128x64xf32> -> vector<128x64xf32>
    %68 = arith.truncf %67 : vector<128x64xf32> to vector<128x64xbf16>
    %c0_56 = arith.constant 0 : index
    %c0_57 = arith.constant 0 : index
    %c64_58 = arith.constant 64 : index
    %69 = vector.load %arg14[%c0_56, %c0_57, %c64_58] : memref<2x128x512xbf16, #tpu.memory_space<vmem>>, vector<1x128x64xbf16>
    %70 = vector.shape_cast %69 : vector<1x128x64xbf16> to vector<128x64xbf16>
    %71 = vector.shape_cast %68 : vector<128x64xbf16> to vector<1x128x64xbf16>
    tpu.vector_store %arg14[%c0_56, %c0_57, %c64_58], %71 {strides = array<i32>} : memref<2x128x512xbf16, #tpu.memory_space<vmem>>, vector<1x128x64xbf16>,
    %c0_59 = arith.constant 0 : index
    %c0_60 = arith.constant 0 : index
    %c128 = arith.constant 128 : index
    %72 = vector.load %arg11[%c0_59, %c0_60, %c128] : memref<2x128x512xbf16, #tpu.memory_space<vmem>>, vector<1x128x64xbf16>
    %73 = vector.shape_cast %72 : vector<1x128x64xbf16> to vector<128x64xbf16>
    %c0_61 = arith.constant 0 : index
    %c0_62 = arith.constant 0 : index
    %c128_63 = arith.constant 128 : index
    %74 = vector.load %arg12[%c0_61, %c0_62, %c128_63] : memref<2x128x512xbf16, #tpu.memory_space<vmem>>, vector<1x128x64xbf16>
    %75 = vector.shape_cast %74 : vector<1x128x64xbf16> to vector<128x64xbf16>
    %c0_64 = arith.constant 0 : index
    %c0_65 = arith.constant 0 : index
    %c128_66 = arith.constant 128 : index
    %76 = vector.load %arg13[%c0_64, %c0_65, %c128_66] : memref<2x128x512xbf16, #tpu.memory_space<vmem>>, vector<1x128x64xbf16>
    %77 = vector.shape_cast %76 : vector<1x128x64xbf16> to vector<128x64xbf16>
    %cst_67 = arith.constant dense<0.000000e+00> : vector<128x128xf32>
    %78 = tpu.matmul %73, %75, %cst_67 {dimension_numbers = #tpu.dot_dimension_numbers<[1], [1], [0], [0], [0, 0, 1, 0], [], []>} : vector<128x64xbf16>, vector<128x64xbf16>, vector<128x128xf32> -> vector<128x128xf32>
    %79 = arith.addf %78, %23 : vector<128x128xf32>
    %cst_68 = arith.constant dense<0xFF800000> : vector<128xf32>
    %80 = vector.multi_reduction <maximumf>, %79, %cst_68 [1] : vector<128x128xf32> to vector<128xf32>
    %81 = vector.shape_cast %80 : vector<128xf32> to vector<128x1xf32>
    %82 = vector.broadcast %81 : vector<128x1xf32> to vector<128x128xf32>
    %83 = arith.subf %79, %82 : vector<128x128xf32>
    %84 = math.exp %83 : vector<128x128xf32>
    %cst_69 = arith.constant dense<0.000000e+00> : vector<128xf32>
    %85 = vector.multi_reduction <add>, %84, %cst_69 [1] : vector<128x128xf32> to vector<128xf32>
    %86 = vector.shape_cast %85 : vector<128xf32> to vector<128x1xf32>
    %87 = tpu.reciprocal %86 {approx = true} : vector<128x1xf32> -> vector<128x1xf32>
    %88 = vector.broadcast %87 : vector<128x1xf32> to vector<128x128xf32>
    %89 = arith.mulf %84, %88 : vector<128x128xf32>
    %90 = arith.truncf %89 : vector<128x128xf32> to vector<128x128xbf16>
    %cst_70 = arith.constant dense<0.000000e+00> : vector<128x64xf32>
    %91 = tpu.matmul %90, %77, %cst_70 {dimension_numbers = #tpu.dot_dimension_numbers<[1], [0], [0], [1], [0, 0, 1, 1], [], []>} : vector<128x128xbf16>, vector<128x64xbf16>, vector<128x64xf32> -> vector<128x64xf32>
    %92 = arith.truncf %91 : vector<128x64xf32> to vector<128x64xbf16>
    %c0_71 = arith.constant 0 : index
    %c0_72 = arith.constant 0 : index
    %c128_73 = arith.constant 128 : index
    %93 = vector.load %arg14[%c0_71, %c0_72, %c128_73] : memref<2x128x512xbf16, #tpu.memory_space<vmem>>, vector<1x128x64xbf16>
    %94 = vector.shape_cast %93 : vector<1x128x64xbf16> to vector<128x64xbf16>
    %95 = vector.shape_cast %92 : vector<128x64xbf16> to vector<1x128x64xbf16>
    tpu.vector_store %arg14[%c0_71, %c0_72, %c128_73], %95 {strides = array<i32>} : memref<2x128x512xbf16, #tpu.memory_space<vmem>>, vector<1x128x64xbf16>,
    %c0_74 = arith.constant 0 : index
    %c0_75 = arith.constant 0 : index
    %c192 = arith.constant 192 : index
    %96 = vector.load %arg11[%c0_74, %c0_75, %c192] : memref<2x128x512xbf16, #tpu.memory_space<vmem>>, vector<1x128x64xbf16>
    %97 = vector.shape_cast %96 : vector<1x128x64xbf16> to vector<128x64xbf16>
    %c0_76 = arith.constant 0 : index
    %c0_77 = arith.constant 0 : index
    %c192_78 = arith.constant 192 : index
    %98 = vector.load %arg12[%c0_76, %c0_77, %c192_78] : memref<2x128x512xbf16, #tpu.memory_space<vmem>>, vector<1x128x64xbf16>
    %99 = vector.shape_cast %98 : vector<1x128x64xbf16> to vector<128x64xbf16>
    %c0_79 = arith.constant 0 : index
    %c0_80 = arith.constant 0 : index
    %c192_81 = arith.constant 192 : index
    %100 = vector.load %arg13[%c0_79, %c0_80, %c192_81] : memref<2x128x512xbf16, #tpu.memory_space<vmem>>, vector<1x128x64xbf16>
    %101 = vector.shape_cast %100 : vector<1x128x64xbf16> to vector<128x64xbf16>
    %cst_82 = arith.constant dense<0.000000e+00> : vector<128x128xf32>
    %102 = tpu.matmul %97, %99, %cst_82 {dimension_numbers = #tpu.dot_dimension_numbers<[1], [1], [0], [0], [0, 0, 1, 0], [], []>} : vector<128x64xbf16>, vector<128x64xbf16>, vector<128x128xf32> -> vector<128x128xf32>
    %103 = arith.addf %102, %23 : vector<128x128xf32>
    %cst_83 = arith.constant dense<0xFF800000> : vector<128xf32>
    %104 = vector.multi_reduction <maximumf>, %103, %cst_83 [1] : vector<128x128xf32> to vector<128xf32>
    %105 = vector.shape_cast %104 : vector<128xf32> to vector<128x1xf32>
    %106 = vector.broadcast %105 : vector<128x1xf32> to vector<128x128xf32>
    %107 = arith.subf %103, %106 : vector<128x128xf32>
    %108 = math.exp %107 : vector<128x128xf32>
    %cst_84 = arith.constant dense<0.000000e+00> : vector<128xf32>
    %109 = vector.multi_reduction <add>, %108, %cst_84 [1] : vector<128x128xf32> to vector<128xf32>
    %110 = vector.shape_cast %109 : vector<128xf32> to vector<128x1xf32>
    %111 = tpu.reciprocal %110 {approx = true} : vector<128x1xf32> -> vector<128x1xf32>
    %112 = vector.broadcast %111 : vector<128x1xf32> to vector<128x128xf32>
    %113 = arith.mulf %108, %112 : vector<128x128xf32>
    %114 = arith.truncf %113 : vector<128x128xf32> to vector<128x128xbf16>
    %cst_85 = arith.constant dense<0.000000e+00> : vector<128x64xf32>
    %115 = tpu.matmul %114, %101, %cst_85 {dimension_numbers = #tpu.dot_dimension_numbers<[1], [0], [0], [1], [0, 0, 1, 1], [], []>} : vector<128x128xbf16>, vector<128x64xbf16>, vector<128x64xf32> -> vector<128x64xf32>
    %116 = arith.truncf %115 : vector<128x64xf32> to vector<128x64xbf16>
    %c0_86 = arith.constant 0 : index
    %c0_87 = arith.constant 0 : index
    %c192_88 = arith.constant 192 : index
    %117 = vector.load %arg14[%c0_86, %c0_87, %c192_88] : memref<2x128x512xbf16, #tpu.memory_space<vmem>>, vector<1x128x64xbf16>
    %118 = vector.shape_cast %117 : vector<1x128x64xbf16> to vector<128x64xbf16>
    %119 = vector.shape_cast %116 : vector<128x64xbf16> to vector<1x128x64xbf16>
    tpu.vector_store %arg14[%c0_86, %c0_87, %c192_88], %119 {strides = array<i32>} : memref<2x128x512xbf16, #tpu.memory_space<vmem>>, vector<1x128x64xbf16>,
    %c0_89 = arith.constant 0 : index
    %c0_90 = arith.constant 0 : index
    %c256 = arith.constant 256 : index
    %120 = vector.load %arg11[%c0_89, %c0_90, %c256] : memref<2x128x512xbf16, #tpu.memory_space<vmem>>, vector<1x128x64xbf16>
    %121 = vector.shape_cast %120 : vector<1x128x64xbf16> to vector<128x64xbf16>
    %c0_91 = arith.constant 0 : index
    %c0_92 = arith.constant 0 : index
    %c256_93 = arith.constant 256 : index
    %122 = vector.load %arg12[%c0_91, %c0_92, %c256_93] : memref<2x128x512xbf16, #tpu.memory_space<vmem>>, vector<1x128x64xbf16>
    %123 = vector.shape_cast %122 : vector<1x128x64xbf16> to vector<128x64xbf16>
    %c0_94 = arith.constant 0 : index
    %c0_95 = arith.constant 0 : index
    %c256_96 = arith.constant 256 : index
    %124 = vector.load %arg13[%c0_94, %c0_95, %c256_96] : memref<2x128x512xbf16, #tpu.memory_space<vmem>>, vector<1x128x64xbf16>
    %125 = vector.shape_cast %124 : vector<1x128x64xbf16> to vector<128x64xbf16>
    %cst_97 = arith.constant dense<0.000000e+00> : vector<128x128xf32>
    %126 = tpu.matmul %121, %123, %cst_97 {dimension_numbers = #tpu.dot_dimension_numbers<[1], [1], [0], [0], [0, 0, 1, 0], [], []>} : vector<128x64xbf16>, vector<128x64xbf16>, vector<128x128xf32> -> vector<128x128xf32>
    %127 = arith.addf %126, %23 : vector<128x128xf32>
    %cst_98 = arith.constant dense<0xFF800000> : vector<128xf32>
    %128 = vector.multi_reduction <maximumf>, %127, %cst_98 [1] : vector<128x128xf32> to vector<128xf32>
    %129 = vector.shape_cast %128 : vector<128xf32> to vector<128x1xf32>
    %130 = vector.broadcast %129 : vector<128x1xf32> to vector<128x128xf32>
    %131 = arith.subf %127, %130 : vector<128x128xf32>
    %132 = math.exp %131 : vector<128x128xf32>
    %cst_99 = arith.constant dense<0.000000e+00> : vector<128xf32>
    %133 = vector.multi_reduction <add>, %132, %cst_99 [1] : vector<128x128xf32> to vector<128xf32>
    %134 = vector.shape_cast %133 : vector<128xf32> to vector<128x1xf32>
    %135 = tpu.reciprocal %134 {approx = true} : vector<128x1xf32> -> vector<128x1xf32>
    %136 = vector.broadcast %135 : vector<128x1xf32> to vector<128x128xf32>
    %137 = arith.mulf %132, %136 : vector<128x128xf32>
    %138 = arith.truncf %137 : vector<128x128xf32> to vector<128x128xbf16>
    %cst_100 = arith.constant dense<0.000000e+00> : vector<128x64xf32>
    %139 = tpu.matmul %138, %125, %cst_100 {dimension_numbers = #tpu.dot_dimension_numbers<[1], [0], [0], [1], [0, 0, 1, 1], [], []>} : vector<128x128xbf16>, vector<128x64xbf16>, vector<128x64xf32> -> vector<128x64xf32>
    %140 = arith.truncf %139 : vector<128x64xf32> to vector<128x64xbf16>
    %c0_101 = arith.constant 0 : index
    %c0_102 = arith.constant 0 : index
    %c256_103 = arith.constant 256 : index
    %141 = vector.load %arg14[%c0_101, %c0_102, %c256_103] : memref<2x128x512xbf16, #tpu.memory_space<vmem>>, vector<1x128x64xbf16>
    %142 = vector.shape_cast %141 : vector<1x128x64xbf16> to vector<128x64xbf16>
    %143 = vector.shape_cast %140 : vector<128x64xbf16> to vector<1x128x64xbf16>
    tpu.vector_store %arg14[%c0_101, %c0_102, %c256_103], %143 {strides = array<i32>} : memref<2x128x512xbf16, #tpu.memory_space<vmem>>, vector<1x128x64xbf16>,
    %c0_104 = arith.constant 0 : index
    %c0_105 = arith.constant 0 : index
    %c320 = arith.constant 320 : index
    %144 = vector.load %arg11[%c0_104, %c0_105, %c320] : memref<2x128x512xbf16, #tpu.memory_space<vmem>>, vector<1x128x64xbf16>
    %145 = vector.shape_cast %144 : vector<1x128x64xbf16> to vector<128x64xbf16>
    %c0_106 = arith.constant 0 : index
    %c0_107 = arith.constant 0 : index
    %c320_108 = arith.constant 320 : index
    %146 = vector.load %arg12[%c0_106, %c0_107, %c320_108] : memref<2x128x512xbf16, #tpu.memory_space<vmem>>, vector<1x128x64xbf16>
    %147 = vector.shape_cast %146 : vector<1x128x64xbf16> to vector<128x64xbf16>
    %c0_109 = arith.constant 0 : index
    %c0_110 = arith.constant 0 : index
    %c320_111 = arith.constant 320 : index
    %148 = vector.load %arg13[%c0_109, %c0_110, %c320_111] : memref<2x128x512xbf16, #tpu.memory_space<vmem>>, vector<1x128x64xbf16>
    %149 = vector.shape_cast %148 : vector<1x128x64xbf16> to vector<128x64xbf16>
    %cst_112 = arith.constant dense<0.000000e+00> : vector<128x128xf32>
    %150 = tpu.matmul %145, %147, %cst_112 {dimension_numbers = #tpu.dot_dimension_numbers<[1], [1], [0], [0], [0, 0, 1, 0], [], []>} : vector<128x64xbf16>, vector<128x64xbf16>, vector<128x128xf32> -> vector<128x128xf32>
    %151 = arith.addf %150, %23 : vector<128x128xf32>
    %cst_113 = arith.constant dense<0xFF800000> : vector<128xf32>
    %152 = vector.multi_reduction <maximumf>, %151, %cst_113 [1] : vector<128x128xf32> to vector<128xf32>
    %153 = vector.shape_cast %152 : vector<128xf32> to vector<128x1xf32>
    %154 = vector.broadcast %153 : vector<128x1xf32> to vector<128x128xf32>
    %155 = arith.subf %151, %154 : vector<128x128xf32>
    %156 = math.exp %155 : vector<128x128xf32>
    %cst_114 = arith.constant dense<0.000000e+00> : vector<128xf32>
    %157 = vector.multi_reduction <add>, %156, %cst_114 [1] : vector<128x128xf32> to vector<128xf32>
    %158 = vector.shape_cast %157 : vector<128xf32> to vector<128x1xf32>
    %159 = tpu.reciprocal %158 {approx = true} : vector<128x1xf32> -> vector<128x1xf32>
    %160 = vector.broadcast %159 : vector<128x1xf32> to vector<128x128xf32>
    %161 = arith.mulf %156, %160 : vector<128x128xf32>
    %162 = arith.truncf %161 : vector<128x128xf32> to vector<128x128xbf16>
    %cst_115 = arith.constant dense<0.000000e+00> : vector<128x64xf32>
    %163 = tpu.matmul %162, %149, %cst_115 {dimension_numbers = #tpu.dot_dimension_numbers<[1], [0], [0], [1], [0, 0, 1, 1], [], []>} : vector<128x128xbf16>, vector<128x64xbf16>, vector<128x64xf32> -> vector<128x64xf32>
    %164 = arith.truncf %163 : vector<128x64xf32> to vector<128x64xbf16>
    %c0_116 = arith.constant 0 : index
    %c0_117 = arith.constant 0 : index
    %c320_118 = arith.constant 320 : index
    %165 = vector.load %arg14[%c0_116, %c0_117, %c320_118] : memref<2x128x512xbf16, #tpu.memory_space<vmem>>, vector<1x128x64xbf16>
    %166 = vector.shape_cast %165 : vector<1x128x64xbf16> to vector<128x64xbf16>
    %167 = vector.shape_cast %164 : vector<128x64xbf16> to vector<1x128x64xbf16>
    tpu.vector_store %arg14[%c0_116, %c0_117, %c320_118], %167 {strides = array<i32>} : memref<2x128x512xbf16, #tpu.memory_space<vmem>>, vector<1x128x64xbf16>,
    %c0_119 = arith.constant 0 : index
    %c0_120 = arith.constant 0 : index
    %c384 = arith.constant 384 : index
    %168 = vector.load %arg11[%c0_119, %c0_120, %c384] : memref<2x128x512xbf16, #tpu.memory_space<vmem>>, vector<1x128x64xbf16>
    %169 = vector.shape_cast %168 : vector<1x128x64xbf16> to vector<128x64xbf16>
    %c0_121 = arith.constant 0 : index
    %c0_122 = arith.constant 0 : index
    %c384_123 = arith.constant 384 : index
    %170 = vector.load %arg12[%c0_121, %c0_122, %c384_123] : memref<2x128x512xbf16, #tpu.memory_space<vmem>>, vector<1x128x64xbf16>
    %171 = vector.shape_cast %170 : vector<1x128x64xbf16> to vector<128x64xbf16>
    %c0_124 = arith.constant 0 : index
    %c0_125 = arith.constant 0 : index
    %c384_126 = arith.constant 384 : index
    %172 = vector.load %arg13[%c0_124, %c0_125, %c384_126] : memref<2x128x512xbf16, #tpu.memory_space<vmem>>, vector<1x128x64xbf16>
    %173 = vector.shape_cast %172 : vector<1x128x64xbf16> to vector<128x64xbf16>
    %cst_127 = arith.constant dense<0.000000e+00> : vector<128x128xf32>
    %174 = tpu.matmul %169, %171, %cst_127 {dimension_numbers = #tpu.dot_dimension_numbers<[1], [1], [0], [0], [0, 0, 1, 0], [], []>} : vector<128x64xbf16>, vector<128x64xbf16>, vector<128x128xf32> -> vector<128x128xf32>
    %175 = arith.addf %174, %23 : vector<128x128xf32>
    %cst_128 = arith.constant dense<0xFF800000> : vector<128xf32>
    %176 = vector.multi_reduction <maximumf>, %175, %cst_128 [1] : vector<128x128xf32> to vector<128xf32>
    %177 = vector.shape_cast %176 : vector<128xf32> to vector<128x1xf32>
    %178 = vector.broadcast %177 : vector<128x1xf32> to vector<128x128xf32>
    %179 = arith.subf %175, %178 : vector<128x128xf32>
    %180 = math.exp %179 : vector<128x128xf32>
    %cst_129 = arith.constant dense<0.000000e+00> : vector<128xf32>
    %181 = vector.multi_reduction <add>, %180, %cst_129 [1] : vector<128x128xf32> to vector<128xf32>
    %182 = vector.shape_cast %181 : vector<128xf32> to vector<128x1xf32>
    %183 = tpu.reciprocal %182 {approx = true} : vector<128x1xf32> -> vector<128x1xf32>
    %184 = vector.broadcast %183 : vector<128x1xf32> to vector<128x128xf32>
    %185 = arith.mulf %180, %184 : vector<128x128xf32>
    %186 = arith.truncf %185 : vector<128x128xf32> to vector<128x128xbf16>
    %cst_130 = arith.constant dense<0.000000e+00> : vector<128x64xf32>
    %187 = tpu.matmul %186, %173, %cst_130 {dimension_numbers = #tpu.dot_dimension_numbers<[1], [0], [0], [1], [0, 0, 1, 1], [], []>} : vector<128x128xbf16>, vector<128x64xbf16>, vector<128x64xf32> -> vector<128x64xf32>
    %188 = arith.truncf %187 : vector<128x64xf32> to vector<128x64xbf16>
    %c0_131 = arith.constant 0 : index
    %c0_132 = arith.constant 0 : index
    %c384_133 = arith.constant 384 : index
    %189 = vector.load %arg14[%c0_131, %c0_132, %c384_133] : memref<2x128x512xbf16, #tpu.memory_space<vmem>>, vector<1x128x64xbf16>
    %190 = vector.shape_cast %189 : vector<1x128x64xbf16> to vector<128x64xbf16>
    %191 = vector.shape_cast %188 : vector<128x64xbf16> to vector<1x128x64xbf16>
    tpu.vector_store %arg14[%c0_131, %c0_132, %c384_133], %191 {strides = array<i32>} : memref<2x128x512xbf16, #tpu.memory_space<vmem>>, vector<1x128x64xbf16>,
    %c0_134 = arith.constant 0 : index
    %c0_135 = arith.constant 0 : index
    %c448 = arith.constant 448 : index
    %192 = vector.load %arg11[%c0_134, %c0_135, %c448] : memref<2x128x512xbf16, #tpu.memory_space<vmem>>, vector<1x128x64xbf16>
    %193 = vector.shape_cast %192 : vector<1x128x64xbf16> to vector<128x64xbf16>
    %c0_136 = arith.constant 0 : index
    %c0_137 = arith.constant 0 : index
    %c448_138 = arith.constant 448 : index
    %194 = vector.load %arg12[%c0_136, %c0_137, %c448_138] : memref<2x128x512xbf16, #tpu.memory_space<vmem>>, vector<1x128x64xbf16>
    %195 = vector.shape_cast %194 : vector<1x128x64xbf16> to vector<128x64xbf16>
    %c0_139 = arith.constant 0 : index
    %c0_140 = arith.constant 0 : index
    %c448_141 = arith.constant 448 : index
    %196 = vector.load %arg13[%c0_139, %c0_140, %c448_141] : memref<2x128x512xbf16, #tpu.memory_space<vmem>>, vector<1x128x64xbf16>
    %197 = vector.shape_cast %196 : vector<1x128x64xbf16> to vector<128x64xbf16>
    %cst_142 = arith.constant dense<0.000000e+00> : vector<128x128xf32>
    %198 = tpu.matmul %193, %195, %cst_142 {dimension_numbers = #tpu.dot_dimension_numbers<[1], [1], [0], [0], [0, 0, 1, 0], [], []>} : vector<128x64xbf16>, vector<128x64xbf16>, vector<128x128xf32> -> vector<128x128xf32>
    %199 = arith.addf %198, %23 : vector<128x128xf32>
    %cst_143 = arith.constant dense<0xFF800000> : vector<128xf32>
    %200 = vector.multi_reduction <maximumf>, %199, %cst_143 [1] : vector<128x128xf32> to vector<128xf32>
    %201 = vector.shape_cast %200 : vector<128xf32> to vector<128x1xf32>
    %202 = vector.broadcast %201 : vector<128x1xf32> to vector<128x128xf32>
    %203 = arith.subf %199, %202 : vector<128x128xf32>
    %204 = math.exp %203 : vector<128x128xf32>
    %cst_144 = arith.constant dense<0.000000e+00> : vector<128xf32>
    %205 = vector.multi_reduction <add>, %204, %cst_144 [1] : vector<128x128xf32> to vector<128xf32>
    %206 = vector.shape_cast %205 : vector<128xf32> to vector<128x1xf32>
    %207 = tpu.reciprocal %206 {approx = true} : vector<128x1xf32> -> vector<128x1xf32>
    %208 = vector.broadcast %207 : vector<128x1xf32> to vector<128x128xf32>
    %209 = arith.mulf %204, %208 : vector<128x128xf32>
    %210 = arith.truncf %209 : vector<128x128xf32> to vector<128x128xbf16>
    %cst_145 = arith.constant dense<0.000000e+00> : vector<128x64xf32>
    %211 = tpu.matmul %210, %197, %cst_145 {dimension_numbers = #tpu.dot_dimension_numbers<[1], [0], [0], [1], [0, 0, 1, 1], [], []>} : vector<128x128xbf16>, vector<128x64xbf16>, vector<128x64xf32> -> vector<128x64xf32>
    %212 = arith.truncf %211 : vector<128x64xf32> to vector<128x64xbf16>
    %c0_146 = arith.constant 0 : index
    %c0_147 = arith.constant 0 : index
    %c448_148 = arith.constant 448 : index
    %213 = vector.load %arg14[%c0_146, %c0_147, %c448_148] : memref<2x128x512xbf16, #tpu.memory_space<vmem>>, vector<1x128x64xbf16>
    %214 = vector.shape_cast %213 : vector<1x128x64xbf16> to vector<128x64xbf16>
    %215 = vector.shape_cast %212 : vector<128x64xbf16> to vector<1x128x64xbf16>
    tpu.vector_store %arg14[%c0_146, %c0_147, %c448_148], %215 {strides = array<i32>} : memref<2x128x512xbf16, #tpu.memory_space<vmem>>, vector<1x128x64xbf16>,
    %c1 = arith.constant 1 : index
    %c0_149 = arith.constant 0 : index
    %c0_150 = arith.constant 0 : index
    %216 = vector.load %arg11[%c1, %c0_149, %c0_150] : memref<2x128x512xbf16, #tpu.memory_space<vmem>>, vector<1x128x64xbf16>
    %217 = vector.shape_cast %216 : vector<1x128x64xbf16> to vector<128x64xbf16>
    %c1_151 = arith.constant 1 : index
    %c0_152 = arith.constant 0 : index
    %c0_153 = arith.constant 0 : index
    %218 = vector.load %arg12[%c1_151, %c0_152, %c0_153] : memref<2x128x512xbf16, #tpu.memory_space<vmem>>, vector<1x128x64xbf16>
    %219 = vector.shape_cast %218 : vector<1x128x64xbf16> to vector<128x64xbf16>
    %c1_154 = arith.constant 1 : index
    %c0_155 = arith.constant 0 : index
    %c0_156 = arith.constant 0 : index
    %220 = vector.load %arg13[%c1_154, %c0_155, %c0_156] : memref<2x128x512xbf16, #tpu.memory_space<vmem>>, vector<1x128x64xbf16>
    %221 = vector.shape_cast %220 : vector<1x128x64xbf16> to vector<128x64xbf16>
    %cst_157 = arith.constant dense<0.000000e+00> : vector<128x128xf32>
    %222 = tpu.matmul %217, %219, %cst_157 {dimension_numbers = #tpu.dot_dimension_numbers<[1], [1], [0], [0], [0, 0, 1, 0], [], []>} : vector<128x64xbf16>, vector<128x64xbf16>, vector<128x128xf32> -> vector<128x128xf32>
    %223 = arith.addf %222, %23 : vector<128x128xf32>
    %cst_158 = arith.constant dense<0xFF800000> : vector<128xf32>
    %224 = vector.multi_reduction <maximumf>, %223, %cst_158 [1] : vector<128x128xf32> to vector<128xf32>
    %225 = vector.shape_cast %224 : vector<128xf32> to vector<128x1xf32>
    %226 = vector.broadcast %225 : vector<128x1xf32> to vector<128x128xf32>
    %227 = arith.subf %223, %226 : vector<128x128xf32>
    %228 = math.exp %227 : vector<128x128xf32>
    %cst_159 = arith.constant dense<0.000000e+00> : vector<128xf32>
    %229 = vector.multi_reduction <add>, %228, %cst_159 [1] : vector<128x128xf32> to vector<128xf32>
    %230 = vector.shape_cast %229 : vector<128xf32> to vector<128x1xf32>
    %231 = tpu.reciprocal %230 {approx = true} : vector<128x1xf32> -> vector<128x1xf32>
    %232 = vector.broadcast %231 : vector<128x1xf32> to vector<128x128xf32>
    %233 = arith.mulf %228, %232 : vector<128x128xf32>
    %234 = arith.truncf %233 : vector<128x128xf32> to vector<128x128xbf16>
    %cst_160 = arith.constant dense<0.000000e+00> : vector<128x64xf32>
    %235 = tpu.matmul %234, %221, %cst_160 {dimension_numbers = #tpu.dot_dimension_numbers<[1], [0], [0], [1], [0, 0, 1, 1], [], []>} : vector<128x128xbf16>, vector<128x64xbf16>, vector<128x64xf32> -> vector<128x64xf32>
    %236 = arith.truncf %235 : vector<128x64xf32> to vector<128x64xbf16>
    %c1_161 = arith.constant 1 : index
    %c0_162 = arith.constant 0 : index
    %c0_163 = arith.constant 0 : index
    %237 = vector.load %arg14[%c1_161, %c0_162, %c0_163] : memref<2x128x512xbf16, #tpu.memory_space<vmem>>, vector<1x128x64xbf16>
    %238 = vector.shape_cast %237 : vector<1x128x64xbf16> to vector<128x64xbf16>
    %239 = vector.shape_cast %236 : vector<128x64xbf16> to vector<1x128x64xbf16>
    tpu.vector_store %arg14[%c1_161, %c0_162, %c0_163], %239 {strides = array<i32>} : memref<2x128x512xbf16, #tpu.memory_space<vmem>>, vector<1x128x64xbf16>,
    %c1_164 = arith.constant 1 : index
    %c0_165 = arith.constant 0 : index
    %c64_166 = arith.constant 64 : index
    %240 = vector.load %arg11[%c1_164, %c0_165, %c64_166] : memref<2x128x512xbf16, #tpu.memory_space<vmem>>, vector<1x128x64xbf16>
    %241 = vector.shape_cast %240 : vector<1x128x64xbf16> to vector<128x64xbf16>
    %c1_167 = arith.constant 1 : index
    %c0_168 = arith.constant 0 : index
    %c64_169 = arith.constant 64 : index
    %242 = vector.load %arg12[%c1_167, %c0_168, %c64_169] : memref<2x128x512xbf16, #tpu.memory_space<vmem>>, vector<1x128x64xbf16>
    %243 = vector.shape_cast %242 : vector<1x128x64xbf16> to vector<128x64xbf16>
    %c1_170 = arith.constant 1 : index
    %c0_171 = arith.constant 0 : index
    %c64_172 = arith.constant 64 : index
    %244 = vector.load %arg13[%c1_170, %c0_171, %c64_172] : memref<2x128x512xbf16, #tpu.memory_space<vmem>>, vector<1x128x64xbf16>
    %245 = vector.shape_cast %244 : vector<1x128x64xbf16> to vector<128x64xbf16>
    %cst_173 = arith.constant dense<0.000000e+00> : vector<128x128xf32>
    %246 = tpu.matmul %241, %243, %cst_173 {dimension_numbers = #tpu.dot_dimension_numbers<[1], [1], [0], [0], [0, 0, 1, 0], [], []>} : vector<128x64xbf16>, vector<128x64xbf16>, vector<128x128xf32> -> vector<128x128xf32>
    %247 = arith.addf %246, %23 : vector<128x128xf32>
    %cst_174 = arith.constant dense<0xFF800000> : vector<128xf32>
    %248 = vector.multi_reduction <maximumf>, %247, %cst_174 [1] : vector<128x128xf32> to vector<128xf32>
    %249 = vector.shape_cast %248 : vector<128xf32> to vector<128x1xf32>
    %250 = vector.broadcast %249 : vector<128x1xf32> to vector<128x128xf32>
    %251 = arith.subf %247, %250 : vector<128x128xf32>
    %252 = math.exp %251 : vector<128x128xf32>
    %cst_175 = arith.constant dense<0.000000e+00> : vector<128xf32>
    %253 = vector.multi_reduction <add>, %252, %cst_175 [1] : vector<128x128xf32> to vector<128xf32>
    %254 = vector.shape_cast %253 : vector<128xf32> to vector<128x1xf32>
    %255 = tpu.reciprocal %254 {approx = true} : vector<128x1xf32> -> vector<128x1xf32>
    %256 = vector.broadcast %255 : vector<128x1xf32> to vector<128x128xf32>
    %257 = arith.mulf %252, %256 : vector<128x128xf32>
    %258 = arith.truncf %257 : vector<128x128xf32> to vector<128x128xbf16>
    %cst_176 = arith.constant dense<0.000000e+00> : vector<128x64xf32>
    %259 = tpu.matmul %258, %245, %cst_176 {dimension_numbers = #tpu.dot_dimension_numbers<[1], [0], [0], [1], [0, 0, 1, 1], [], []>} : vector<128x128xbf16>, vector<128x64xbf16>, vector<128x64xf32> -> vector<128x64xf32>
    %260 = arith.truncf %259 : vector<128x64xf32> to vector<128x64xbf16>
    %c1_177 = arith.constant 1 : index
    %c0_178 = arith.constant 0 : index
    %c64_179 = arith.constant 64 : index
    %261 = vector.load %arg14[%c1_177, %c0_178, %c64_179] : memref<2x128x512xbf16, #tpu.memory_space<vmem>>, vector<1x128x64xbf16>
    %262 = vector.shape_cast %261 : vector<1x128x64xbf16> to vector<128x64xbf16>
    %263 = vector.shape_cast %260 : vector<128x64xbf16> to vector<1x128x64xbf16>
    tpu.vector_store %arg14[%c1_177, %c0_178, %c64_179], %263 {strides = array<i32>} : memref<2x128x512xbf16, #tpu.memory_space<vmem>>, vector<1x128x64xbf16>,
    %c1_180 = arith.constant 1 : index
    %c0_181 = arith.constant 0 : index
    %c128_182 = arith.constant 128 : index
    %264 = vector.load %arg11[%c1_180, %c0_181, %c128_182] : memref<2x128x512xbf16, #tpu.memory_space<vmem>>, vector<1x128x64xbf16>
    %265 = vector.shape_cast %264 : vector<1x128x64xbf16> to vector<128x64xbf16>
    %c1_183 = arith.constant 1 : index
    %c0_184 = arith.constant 0 : index
    %c128_185 = arith.constant 128 : index
    %266 = vector.load %arg12[%c1_183, %c0_184, %c128_185] : memref<2x128x512xbf16, #tpu.memory_space<vmem>>, vector<1x128x64xbf16>
    %267 = vector.shape_cast %266 : vector<1x128x64xbf16> to vector<128x64xbf16>
    %c1_186 = arith.constant 1 : index
    %c0_187 = arith.constant 0 : index
    %c128_188 = arith.constant 128 : index
    %268 = vector.load %arg13[%c1_186, %c0_187, %c128_188] : memref<2x128x512xbf16, #tpu.memory_space<vmem>>, vector<1x128x64xbf16>
    %269 = vector.shape_cast %268 : vector<1x128x64xbf16> to vector<128x64xbf16>
    %cst_189 = arith.constant dense<0.000000e+00> : vector<128x128xf32>
    %270 = tpu.matmul %265, %267, %cst_189 {dimension_numbers = #tpu.dot_dimension_numbers<[1], [1], [0], [0], [0, 0, 1, 0], [], []>} : vector<128x64xbf16>, vector<128x64xbf16>, vector<128x128xf32> -> vector<128x128xf32>
    %271 = arith.addf %270, %23 : vector<128x128xf32>
    %cst_190 = arith.constant dense<0xFF800000> : vector<128xf32>
    %272 = vector.multi_reduction <maximumf>, %271, %cst_190 [1] : vector<128x128xf32> to vector<128xf32>
    %273 = vector.shape_cast %272 : vector<128xf32> to vector<128x1xf32>
    %274 = vector.broadcast %273 : vector<128x1xf32> to vector<128x128xf32>
    %275 = arith.subf %271, %274 : vector<128x128xf32>
    %276 = math.exp %275 : vector<128x128xf32>
    %cst_191 = arith.constant dense<0.000000e+00> : vector<128xf32>
    %277 = vector.multi_reduction <add>, %276, %cst_191 [1] : vector<128x128xf32> to vector<128xf32>
    %278 = vector.shape_cast %277 : vector<128xf32> to vector<128x1xf32>
    %279 = tpu.reciprocal %278 {approx = true} : vector<128x1xf32> -> vector<128x1xf32>
    %280 = vector.broadcast %279 : vector<128x1xf32> to vector<128x128xf32>
    %281 = arith.mulf %276, %280 : vector<128x128xf32>
    %282 = arith.truncf %281 : vector<128x128xf32> to vector<128x128xbf16>
    %cst_192 = arith.constant dense<0.000000e+00> : vector<128x64xf32>
    %283 = tpu.matmul %282, %269, %cst_192 {dimension_numbers = #tpu.dot_dimension_numbers<[1], [0], [0], [1], [0, 0, 1, 1], [], []>} : vector<128x128xbf16>, vector<128x64xbf16>, vector<128x64xf32> -> vector<128x64xf32>
    %284 = arith.truncf %283 : vector<128x64xf32> to vector<128x64xbf16>
    %c1_193 = arith.constant 1 : index
    %c0_194 = arith.constant 0 : index
    %c128_195 = arith.constant 128 : index
    %285 = vector.load %arg14[%c1_193, %c0_194, %c128_195] : memref<2x128x512xbf16, #tpu.memory_space<vmem>>, vector<1x128x64xbf16>
    %286 = vector.shape_cast %285 : vector<1x128x64xbf16> to vector<128x64xbf16>
    %287 = vector.shape_cast %284 : vector<128x64xbf16> to vector<1x128x64xbf16>
    tpu.vector_store %arg14[%c1_193, %c0_194, %c128_195], %287 {strides = array<i32>} : memref<2x128x512xbf16, #tpu.memory_space<vmem>>, vector<1x128x64xbf16>,
    %c1_196 = arith.constant 1 : index
    %c0_197 = arith.constant 0 : index
    %c192_198 = arith.constant 192 : index
    %288 = vector.load %arg11[%c1_196, %c0_197, %c192_198] : memref<2x128x512xbf16, #tpu.memory_space<vmem>>, vector<1x128x64xbf16>
    %289 = vector.shape_cast %288 : vector<1x128x64xbf16> to vector<128x64xbf16>
    %c1_199 = arith.constant 1 : index
    %c0_200 = arith.constant 0 : index
    %c192_201 = arith.constant 192 : index
    %290 = vector.load %arg12[%c1_199, %c0_200, %c192_201] : memref<2x128x512xbf16, #tpu.memory_space<vmem>>, vector<1x128x64xbf16>
    %291 = vector.shape_cast %290 : vector<1x128x64xbf16> to vector<128x64xbf16>
    %c1_202 = arith.constant 1 : index
    %c0_203 = arith.constant 0 : index
    %c192_204 = arith.constant 192 : index
    %292 = vector.load %arg13[%c1_202, %c0_203, %c192_204] : memref<2x128x512xbf16, #tpu.memory_space<vmem>>, vector<1x128x64xbf16>
    %293 = vector.shape_cast %292 : vector<1x128x64xbf16> to vector<128x64xbf16>
    %cst_205 = arith.constant dense<0.000000e+00> : vector<128x128xf32>
    %294 = tpu.matmul %289, %291, %cst_205 {dimension_numbers = #tpu.dot_dimension_numbers<[1], [1], [0], [0], [0, 0, 1, 0], [], []>} : vector<128x64xbf16>, vector<128x64xbf16>, vector<128x128xf32> -> vector<128x128xf32>
    %295 = arith.addf %294, %23 : vector<128x128xf32>
    %cst_206 = arith.constant dense<0xFF800000> : vector<128xf32>
    %296 = vector.multi_reduction <maximumf>, %295, %cst_206 [1] : vector<128x128xf32> to vector<128xf32>
    %297 = vector.shape_cast %296 : vector<128xf32> to vector<128x1xf32>
    %298 = vector.broadcast %297 : vector<128x1xf32> to vector<128x128xf32>
    %299 = arith.subf %295, %298 : vector<128x128xf32>
    %300 = math.exp %299 : vector<128x128xf32>
    %cst_207 = arith.constant dense<0.000000e+00> : vector<128xf32>
    %301 = vector.multi_reduction <add>, %300, %cst_207 [1] : vector<128x128xf32> to vector<128xf32>
    %302 = vector.shape_cast %301 : vector<128xf32> to vector<128x1xf32>
    %303 = tpu.reciprocal %302 {approx = true} : vector<128x1xf32> -> vector<128x1xf32>
    %304 = vector.broadcast %303 : vector<128x1xf32> to vector<128x128xf32>
    %305 = arith.mulf %300, %304 : vector<128x128xf32>
    %306 = arith.truncf %305 : vector<128x128xf32> to vector<128x128xbf16>
    %cst_208 = arith.constant dense<0.000000e+00> : vector<128x64xf32>
    %307 = tpu.matmul %306, %293, %cst_208 {dimension_numbers = #tpu.dot_dimension_numbers<[1], [0], [0], [1], [0, 0, 1, 1], [], []>} : vector<128x128xbf16>, vector<128x64xbf16>, vector<128x64xf32> -> vector<128x64xf32>
    %308 = arith.truncf %307 : vector<128x64xf32> to vector<128x64xbf16>
    %c1_209 = arith.constant 1 : index
    %c0_210 = arith.constant 0 : index
    %c192_211 = arith.constant 192 : index
    %309 = vector.load %arg14[%c1_209, %c0_210, %c192_211] : memref<2x128x512xbf16, #tpu.memory_space<vmem>>, vector<1x128x64xbf16>
    %310 = vector.shape_cast %309 : vector<1x128x64xbf16> to vector<128x64xbf16>
    %311 = vector.shape_cast %308 : vector<128x64xbf16> to vector<1x128x64xbf16>
    tpu.vector_store %arg14[%c1_209, %c0_210, %c192_211], %311 {strides = array<i32>} : memref<2x128x512xbf16, #tpu.memory_space<vmem>>, vector<1x128x64xbf16>,
    %c1_212 = arith.constant 1 : index
    %c0_213 = arith.constant 0 : index
    %c256_214 = arith.constant 256 : index
    %312 = vector.load %arg11[%c1_212, %c0_213, %c256_214] : memref<2x128x512xbf16, #tpu.memory_space<vmem>>, vector<1x128x64xbf16>
    %313 = vector.shape_cast %312 : vector<1x128x64xbf16> to vector<128x64xbf16>
    %c1_215 = arith.constant 1 : index
    %c0_216 = arith.constant 0 : index
    %c256_217 = arith.constant 256 : index
    %314 = vector.load %arg12[%c1_215, %c0_216, %c256_217] : memref<2x128x512xbf16, #tpu.memory_space<vmem>>, vector<1x128x64xbf16>
    %315 = vector.shape_cast %314 : vector<1x128x64xbf16> to vector<128x64xbf16>
    %c1_218 = arith.constant 1 : index
    %c0_219 = arith.constant 0 : index
    %c256_220 = arith.constant 256 : index
    %316 = vector.load %arg13[%c1_218, %c0_219, %c256_220] : memref<2x128x512xbf16, #tpu.memory_space<vmem>>, vector<1x128x64xbf16>
    %317 = vector.shape_cast %316 : vector<1x128x64xbf16> to vector<128x64xbf16>
    %cst_221 = arith.constant dense<0.000000e+00> : vector<128x128xf32>
    %318 = tpu.matmul %313, %315, %cst_221 {dimension_numbers = #tpu.dot_dimension_numbers<[1], [1], [0], [0], [0, 0, 1, 0], [], []>} : vector<128x64xbf16>, vector<128x64xbf16>, vector<128x128xf32> -> vector<128x128xf32>
    %319 = arith.addf %318, %23 : vector<128x128xf32>
    %cst_222 = arith.constant dense<0xFF800000> : vector<128xf32>
    %320 = vector.multi_reduction <maximumf>, %319, %cst_222 [1] : vector<128x128xf32> to vector<128xf32>
    %321 = vector.shape_cast %320 : vector<128xf32> to vector<128x1xf32>
    %322 = vector.broadcast %321 : vector<128x1xf32> to vector<128x128xf32>
    %323 = arith.subf %319, %322 : vector<128x128xf32>
    %324 = math.exp %323 : vector<128x128xf32>
    %cst_223 = arith.constant dense<0.000000e+00> : vector<128xf32>
    %325 = vector.multi_reduction <add>, %324, %cst_223 [1] : vector<128x128xf32> to vector<128xf32>
    %326 = vector.shape_cast %325 : vector<128xf32> to vector<128x1xf32>
    %327 = tpu.reciprocal %326 {approx = true} : vector<128x1xf32> -> vector<128x1xf32>
    %328 = vector.broadcast %327 : vector<128x1xf32> to vector<128x128xf32>
    %329 = arith.mulf %324, %328 : vector<128x128xf32>
    %330 = arith.truncf %329 : vector<128x128xf32> to vector<128x128xbf16>
    %cst_224 = arith.constant dense<0.000000e+00> : vector<128x64xf32>
    %331 = tpu.matmul %330, %317, %cst_224 {dimension_numbers = #tpu.dot_dimension_numbers<[1], [0], [0], [1], [0, 0, 1, 1], [], []>} : vector<128x128xbf16>, vector<128x64xbf16>, vector<128x64xf32> -> vector<128x64xf32>
    %332 = arith.truncf %331 : vector<128x64xf32> to vector<128x64xbf16>
    %c1_225 = arith.constant 1 : index
    %c0_226 = arith.constant 0 : index
    %c256_227 = arith.constant 256 : index
    %333 = vector.load %arg14[%c1_225, %c0_226, %c256_227] : memref<2x128x512xbf16, #tpu.memory_space<vmem>>, vector<1x128x64xbf16>
    %334 = vector.shape_cast %333 : vector<1x128x64xbf16> to vector<128x64xbf16>
    %335 = vector.shape_cast %332 : vector<128x64xbf16> to vector<1x128x64xbf16>
    tpu.vector_store %arg14[%c1_225, %c0_226, %c256_227], %335 {strides = array<i32>} : memref<2x128x512xbf16, #tpu.memory_space<vmem>>, vector<1x128x64xbf16>,
    %c1_228 = arith.constant 1 : index
    %c0_229 = arith.constant 0 : index
    %c320_230 = arith.constant 320 : index
    %336 = vector.load %arg11[%c1_228, %c0_229, %c320_230] : memref<2x128x512xbf16, #tpu.memory_space<vmem>>, vector<1x128x64xbf16>
    %337 = vector.shape_cast %336 : vector<1x128x64xbf16> to vector<128x64xbf16>
    %c1_231 = arith.constant 1 : index
    %c0_232 = arith.constant 0 : index
    %c320_233 = arith.constant 320 : index
    %338 = vector.load %arg12[%c1_231, %c0_232, %c320_233] : memref<2x128x512xbf16, #tpu.memory_space<vmem>>, vector<1x128x64xbf16>
    %339 = vector.shape_cast %338 : vector<1x128x64xbf16> to vector<128x64xbf16>
    %c1_234 = arith.constant 1 : index
    %c0_235 = arith.constant 0 : index
    %c320_236 = arith.constant 320 : index
    %340 = vector.load %arg13[%c1_234, %c0_235, %c320_236] : memref<2x128x512xbf16, #tpu.memory_space<vmem>>, vector<1x128x64xbf16>
    %341 = vector.shape_cast %340 : vector<1x128x64xbf16> to vector<128x64xbf16>
    %cst_237 = arith.constant dense<0.000000e+00> : vector<128x128xf32>
    %342 = tpu.matmul %337, %339, %cst_237 {dimension_numbers = #tpu.dot_dimension_numbers<[1], [1], [0], [0], [0, 0, 1, 0], [], []>} : vector<128x64xbf16>, vector<128x64xbf16>, vector<128x128xf32> -> vector<128x128xf32>
    %343 = arith.addf %342, %23 : vector<128x128xf32>
    %cst_238 = arith.constant dense<0xFF800000> : vector<128xf32>
    %344 = vector.multi_reduction <maximumf>, %343, %cst_238 [1] : vector<128x128xf32> to vector<128xf32>
    %345 = vector.shape_cast %344 : vector<128xf32> to vector<128x1xf32>
    %346 = vector.broadcast %345 : vector<128x1xf32> to vector<128x128xf32>
    %347 = arith.subf %343, %346 : vector<128x128xf32>
    %348 = math.exp %347 : vector<128x128xf32>
    %cst_239 = arith.constant dense<0.000000e+00> : vector<128xf32>
    %349 = vector.multi_reduction <add>, %348, %cst_239 [1] : vector<128x128xf32> to vector<128xf32>
    %350 = vector.shape_cast %349 : vector<128xf32> to vector<128x1xf32>
    %351 = tpu.reciprocal %350 {approx = true} : vector<128x1xf32> -> vector<128x1xf32>
    %352 = vector.broadcast %351 : vector<128x1xf32> to vector<128x128xf32>
    %353 = arith.mulf %348, %352 : vector<128x128xf32>
    %354 = arith.truncf %353 : vector<128x128xf32> to vector<128x128xbf16>
    %cst_240 = arith.constant dense<0.000000e+00> : vector<128x64xf32>
    %355 = tpu.matmul %354, %341, %cst_240 {dimension_numbers = #tpu.dot_dimension_numbers<[1], [0], [0], [1], [0, 0, 1, 1], [], []>} : vector<128x128xbf16>, vector<128x64xbf16>, vector<128x64xf32> -> vector<128x64xf32>
    %356 = arith.truncf %355 : vector<128x64xf32> to vector<128x64xbf16>
    %c1_241 = arith.constant 1 : index
    %c0_242 = arith.constant 0 : index
    %c320_243 = arith.constant 320 : index
    %357 = vector.load %arg14[%c1_241, %c0_242, %c320_243] : memref<2x128x512xbf16, #tpu.memory_space<vmem>>, vector<1x128x64xbf16>
    %358 = vector.shape_cast %357 : vector<1x128x64xbf16> to vector<128x64xbf16>
    %359 = vector.shape_cast %356 : vector<128x64xbf16> to vector<1x128x64xbf16>
    tpu.vector_store %arg14[%c1_241, %c0_242, %c320_243], %359 {strides = array<i32>} : memref<2x128x512xbf16, #tpu.memory_space<vmem>>, vector<1x128x64xbf16>,
    %c1_244 = arith.constant 1 : index
    %c0_245 = arith.constant 0 : index
    %c384_246 = arith.constant 384 : index
    %360 = vector.load %arg11[%c1_244, %c0_245, %c384_246] : memref<2x128x512xbf16, #tpu.memory_space<vmem>>, vector<1x128x64xbf16>
    %361 = vector.shape_cast %360 : vector<1x128x64xbf16> to vector<128x64xbf16>
    %c1_247 = arith.constant 1 : index
    %c0_248 = arith.constant 0 : index
    %c384_249 = arith.constant 384 : index
    %362 = vector.load %arg12[%c1_247, %c0_248, %c384_249] : memref<2x128x512xbf16, #tpu.memory_space<vmem>>, vector<1x128x64xbf16>
    %363 = vector.shape_cast %362 : vector<1x128x64xbf16> to vector<128x64xbf16>
    %c1_250 = arith.constant 1 : index
    %c0_251 = arith.constant 0 : index
    %c384_252 = arith.constant 384 : index
    %364 = vector.load %arg13[%c1_250, %c0_251, %c384_252] : memref<2x128x512xbf16, #tpu.memory_space<vmem>>, vector<1x128x64xbf16>
    %365 = vector.shape_cast %364 : vector<1x128x64xbf16> to vector<128x64xbf16>
    %cst_253 = arith.constant dense<0.000000e+00> : vector<128x128xf32>
    %366 = tpu.matmul %361, %363, %cst_253 {dimension_numbers = #tpu.dot_dimension_numbers<[1], [1], [0], [0], [0, 0, 1, 0], [], []>} : vector<128x64xbf16>, vector<128x64xbf16>, vector<128x128xf32> -> vector<128x128xf32>
    %367 = arith.addf %366, %23 : vector<128x128xf32>
    %cst_254 = arith.constant dense<0xFF800000> : vector<128xf32>
    %368 = vector.multi_reduction <maximumf>, %367, %cst_254 [1] : vector<128x128xf32> to vector<128xf32>
    %369 = vector.shape_cast %368 : vector<128xf32> to vector<128x1xf32>
    %370 = vector.broadcast %369 : vector<128x1xf32> to vector<128x128xf32>
    %371 = arith.subf %367, %370 : vector<128x128xf32>
    %372 = math.exp %371 : vector<128x128xf32>
    %cst_255 = arith.constant dense<0.000000e+00> : vector<128xf32>
    %373 = vector.multi_reduction <add>, %372, %cst_255 [1] : vector<128x128xf32> to vector<128xf32>
    %374 = vector.shape_cast %373 : vector<128xf32> to vector<128x1xf32>
    %375 = tpu.reciprocal %374 {approx = true} : vector<128x1xf32> -> vector<128x1xf32>
    %376 = vector.broadcast %375 : vector<128x1xf32> to vector<128x128xf32>
    %377 = arith.mulf %372, %376 : vector<128x128xf32>
    %378 = arith.truncf %377 : vector<128x128xf32> to vector<128x128xbf16>
    %cst_256 = arith.constant dense<0.000000e+00> : vector<128x64xf32>
    %379 = tpu.matmul %378, %365, %cst_256 {dimension_numbers = #tpu.dot_dimension_numbers<[1], [0], [0], [1], [0, 0, 1, 1], [], []>} : vector<128x128xbf16>, vector<128x64xbf16>, vector<128x64xf32> -> vector<128x64xf32>
    %380 = arith.truncf %379 : vector<128x64xf32> to vector<128x64xbf16>
    %c1_257 = arith.constant 1 : index
    %c0_258 = arith.constant 0 : index
    %c384_259 = arith.constant 384 : index
    %381 = vector.load %arg14[%c1_257, %c0_258, %c384_259] : memref<2x128x512xbf16, #tpu.memory_space<vmem>>, vector<1x128x64xbf16>
    %382 = vector.shape_cast %381 : vector<1x128x64xbf16> to vector<128x64xbf16>
    %383 = vector.shape_cast %380 : vector<128x64xbf16> to vector<1x128x64xbf16>
    tpu.vector_store %arg14[%c1_257, %c0_258, %c384_259], %383 {strides = array<i32>} : memref<2x128x512xbf16, #tpu.memory_space<vmem>>, vector<1x128x64xbf16>,
    %c1_260 = arith.constant 1 : index
    %c0_261 = arith.constant 0 : index
    %c448_262 = arith.constant 448 : index
    %384 = vector.load %arg11[%c1_260, %c0_261, %c448_262] : memref<2x128x512xbf16, #tpu.memory_space<vmem>>, vector<1x128x64xbf16>
    %385 = vector.shape_cast %384 : vector<1x128x64xbf16> to vector<128x64xbf16>
    %c1_263 = arith.constant 1 : index
    %c0_264 = arith.constant 0 : index
    %c448_265 = arith.constant 448 : index
    %386 = vector.load %arg12[%c1_263, %c0_264, %c448_265] : memref<2x128x512xbf16, #tpu.memory_space<vmem>>, vector<1x128x64xbf16>
    %387 = vector.shape_cast %386 : vector<1x128x64xbf16> to vector<128x64xbf16>
    %c1_266 = arith.constant 1 : index
    %c0_267 = arith.constant 0 : index
    %c448_268 = arith.constant 448 : index
    %388 = vector.load %arg13[%c1_266, %c0_267, %c448_268] : memref<2x128x512xbf16, #tpu.memory_space<vmem>>, vector<1x128x64xbf16>
    %389 = vector.shape_cast %388 : vector<1x128x64xbf16> to vector<128x64xbf16>
    %cst_269 = arith.constant dense<0.000000e+00> : vector<128x128xf32>
    %390 = tpu.matmul %385, %387, %cst_269 {dimension_numbers = #tpu.dot_dimension_numbers<[1], [1], [0], [0], [0, 0, 1, 0], [], []>} : vector<128x64xbf16>, vector<128x64xbf16>, vector<128x128xf32> -> vector<128x128xf32>
    %391 = arith.addf %390, %23 : vector<128x128xf32>
    %cst_270 = arith.constant dense<0xFF800000> : vector<128xf32>
    %392 = vector.multi_reduction <maximumf>, %391, %cst_270 [1] : vector<128x128xf32> to vector<128xf32>
    %393 = vector.shape_cast %392 : vector<128xf32> to vector<128x1xf32>
    %394 = vector.broadcast %393 : vector<128x1xf32> to vector<128x128xf32>
    %395 = arith.subf %391, %394 : vector<128x128xf32>
    %396 = math.exp %395 : vector<128x128xf32>
    %cst_271 = arith.constant dense<0.000000e+00> : vector<128xf32>
    %397 = vector.multi_reduction <add>, %396, %cst_271 [1] : vector<128x128xf32> to vector<128xf32>
    %398 = vector.shape_cast %397 : vector<128xf32> to vector<128x1xf32>
    %399 = tpu.reciprocal %398 {approx = true} : vector<128x1xf32> -> vector<128x1xf32>
    %400 = vector.broadcast %399 : vector<128x1xf32> to vector<128x128xf32>
    %401 = arith.mulf %396, %400 : vector<128x128xf32>
    %402 = arith.truncf %401 : vector<128x128xf32> to vector<128x128xbf16>
    %cst_272 = arith.constant dense<0.000000e+00> : vector<128x64xf32>
    %403 = tpu.matmul %402, %389, %cst_272 {dimension_numbers = #tpu.dot_dimension_numbers<[1], [0], [0], [1], [0, 0, 1, 1], [], []>} : vector<128x128xbf16>, vector<128x64xbf16>, vector<128x64xf32> -> vector<128x64xf32>
    %404 = arith.truncf %403 : vector<128x64xf32> to vector<128x64xbf16>
    %c1_273 = arith.constant 1 : index
    %c0_274 = arith.constant 0 : index
    %c448_275 = arith.constant 448 : index
    %405 = vector.load %arg14[%c1_273, %c0_274, %c448_275] : memref<2x128x512xbf16, #tpu.memory_space<vmem>>, vector<1x128x64xbf16>
    %406 = vector.shape_cast %405 : vector<1x128x64xbf16> to vector<128x64xbf16>
    %407 = vector.shape_cast %404 : vector<128x64xbf16> to vector<1x128x64xbf16>
    tpu.vector_store %arg14[%c1_273, %c0_274, %c448_275], %407 {strides = array<i32>} : memref<2x128x512xbf16, #tpu.memory_space<vmem>>, vector<1x128x64xbf16>,
    %c0_276 = arith.constant 0 : index
    %c0_277 = arith.constant 0 : index
    %c0_278 = arith.constant 0 : index
    %408 = vector.load %arg14[%c0_276, %c0_277, %c0_278] : memref<2x128x512xbf16, #tpu.memory_space<vmem>>, vector<2x128x512xbf16>
    %409 = vector.shape_cast %408 : vector<2x128x512xbf16> to vector<256x512xbf16>
    %c0_279 = arith.constant 0 : index
    %c0_280 = arith.constant 0 : index
    %410 = vector.load %arg8[%c0_279, %c0_280] : memref<512x64xbf16, #tpu.memory_space<vmem>>, vector<512x64xbf16>
    %cst_281 = arith.constant dense<0.000000e+00> : vector<256x64xf32>
    %411 = tpu.matmul %409, %410, %cst_281 {dimension_numbers = #tpu.dot_dimension_numbers<[1], [0], [0], [1], [0, 0, 1, 1], [], []>} : vector<256x512xbf16>, vector<512x64xbf16>, vector<256x64xf32> -> vector<256x64xf32>
    %c0_282 = arith.constant 0 : index
    %c0_283 = arith.constant 0 : index
    %412 = vector.load %arg9[%c0_282, %c0_283] : memref<1x64xf32, #tpu.memory_space<vmem>>, vector<1x64xf32>
    %413 = vector.broadcast %412 : vector<1x64xf32> to vector<256x64xf32>
    %414 = arith.addf %411, %413 : vector<256x64xf32>
    %415 = vector.shape_cast %414 : vector<256x64xf32> to vector<2x128x64xf32>
    %c0_284 = arith.constant 0 : index
    %c0_285 = arith.constant 0 : index
    %c0_286 = arith.constant 0 : index
    %416 = vector.load %arg10[%c0_284, %c0_285, %c0_286] : memref<2x128x64xf32, #tpu.memory_space<vmem>>, vector<2x128x64xf32>
    tpu.vector_store %arg10[%c0_284, %c0_285, %c0_286], %415 {strides = array<i32>} : memref<2x128x64xf32, #tpu.memory_space<vmem>>, vector<2x128x64xf32>,
    return
  }
  func.func @transform_0(%arg0: i32) -> (i32, i32) {
    %c0_i32 = arith.constant 0 : i32
    %c0_i32_0 = arith.constant 0 : i32
    %c0_i32_1 = arith.constant 0 : i32
    return %c0_i32, %c0_i32_0 : i32, i32
  }
  func.func @transform_1(%arg0: i32) -> (i32, i32, i32) {
    %c0_i32 = arith.constant 0 : i32
    %c0_i32_0 = arith.constant 0 : i32
    %c0_i32_1 = arith.constant 0 : i32
    return %arg0, %c0_i32, %c0_i32_0 : i32, i32, i32
  }
  func.func @transform_2(%arg0: i32) -> (i32, i32, i32) {
    %c0_i32 = arith.constant 0 : i32
    %c0_i32_0 = arith.constant 0 : i32
    %c0_i32_1 = arith.constant 0 : i32
    return %arg0, %c0_i32, %c0_i32_0 : i32, i32, i32
  }
  func.func @transform_3(%arg0: i32) -> (i32, i32, i32) {
    %c0_i32 = arith.constant 0 : i32
    %c0_i32_0 = arith.constant 0 : i32
    %c0_i32_1 = arith.constant 0 : i32
    return %arg0, %c0_i32, %c0_i32_0 : i32, i32, i32
  }
  func.func @transform_4(%arg0: i32) -> (i32, i32) {
    %c0_i32 = arith.constant 0 : i32
    %c0_i32_0 = arith.constant 0 : i32
    %c0_i32_1 = arith.constant 0 : i32
    return %c0_i32, %c0_i32_0 : i32, i32
  }
  func.func @transform_5(%arg0: i32) -> (i32, i32) {
    %c0_i32 = arith.constant 0 : i32
    %c0_i32_0 = arith.constant 0 : i32
    %c0_i32_1 = arith.constant 0 : i32
    return %c0_i32, %c0_i32_0 : i32, i32
  }
  func.func @transform_6(%arg0: i32) -> (i32, i32) {
    %c0_i32 = arith.constant 0 : i32
    %c0_i32_0 = arith.constant 0 : i32
    %c0_i32_1 = arith.constant 0 : i32
    return %c0_i32, %c0_i32_0 : i32, i32
  }
  func.func @transform_7(%arg0: i32) -> (i32, i32) {
    %c0_i32 = arith.constant 0 : i32
    %c0_i32_0 = arith.constant 0 : i32
    %c0_i32_1 = arith.constant 0 : i32
    return %c0_i32, %c0_i32_0 : i32, i32
  }
  func.func @transform_8(%arg0: i32) -> (i32, i32) {
    %c0_i32 = arith.constant 0 : i32
    %c0_i32_0 = arith.constant 0 : i32
    %c0_i32_1 = arith.constant 0 : i32
    return %c0_i32, %c0_i32_0 : i32, i32
  }
  func.func @transform_9(%arg0: i32) -> (i32, i32, i32) {
    %c0_i32 = arith.constant 0 : i32
    %c0_i32_0 = arith.constant 0 : i32
    %c0_i32_1 = arith.constant 0 : i32
    return %arg0, %c0_i32, %c0_i32_0 : i32, i32, i32
  }
}

</mosaic_0001>

<llo_original>
// kernel: tpu_custom_call.1
$region0: #{tpu_custom_call.1}
  #allocation0 [shape = 'u32[]', space=smem, size = 0x4, offset = 0x4, fixed_abs, tag = 'smem constant byte address 0x4 - core index']
  #allocation1 [shape = 'u32[144,128]{1,0:T(1,128)}', space=vmem, size = 0x12000, scoped, tag = 'internal scratch']
  #allocation2 [shape = 'bf16[2,128,512]{2,1,0:T(16,128)(2,1)}', space=vmem, size = 0x40000, scoped, tag = 'scratch operand']
  #allocation3 [shape = 'bf16[2,128,512]{2,1,0:T(16,128)(2,1)}', space=vmem, size = 0x40000, scoped, tag = 'scratch operand']
  #allocation4 [shape = 'bf16[2,128,512]{2,1,0:T(16,128)(2,1)}', space=vmem, size = 0x40000, scoped, tag = 'scratch operand']
  #allocation5 [shape = 'bf16[2,128,512]{2,1,0:T(16,128)(2,1)}', space=vmem, size = 0x40000, scoped, tag = 'scratch operand']
  %s0 = inlined_call_operand.vmem [shape: f32[128,128], index: 0, kind: input, shape index: {}]
  %s1 = inlined_call_operand.vmem [shape: bf16[2,128,64], index: 1, kind: input, shape index: {}]
  %s2 = inlined_call_operand.vmem [shape: bf16[2,128,64], index: 2, kind: input, shape index: {}]
  %s3 = inlined_call_operand.vmem [shape: bf16[2,128,64], index: 3, kind: input, shape index: {}]
  %s4 = inlined_call_operand.vmem [shape: bf16[64,512], index: 4, kind: input, shape index: {}]
  %s5 = inlined_call_operand.vmem [shape: bf16[64,512], index: 5, kind: input, shape index: {}]
  %s6 = inlined_call_operand.vmem [shape: bf16[64,512], index: 6, kind: input, shape index: {}]
  %s7 = inlined_call_operand.vmem [shape: bf16[512,64], index: 7, kind: input, shape index: {}]
  %s8 = inlined_call_operand.vmem [shape: f32[1,64], index: 8, kind: input, shape index: {}]
  %s9 = inlined_call_operand.vmem [shape: f32[2,128,64], index: 9, kind: output, shape index: {}]
  %s10 = sld [smem:[#allocation0]]
  $region46: #{tpu_custom_call.1} parent=0
    _
  %s12 = ssub.s32 1, %s10
  %s13 = scalar_select 0, %s12, %s10
  // Predicated region
  $region2: #{tpu_custom_call.1} parent=0 // pred_check
    _
  $region3: #{tpu_custom_call.1} parent=0 // pred_check_branch
    %15 = sbr.rel (0) target = $region5
  $region4: #{tpu_custom_call.1} parent=0 // pred_region
    _
  $region5: #{tpu_custom_call.1} parent=0 // pred_fallthru
    _
  // Predicated region
  $region6: #{tpu_custom_call.1} parent=0 // pred_check
    _
  $region7: #{tpu_custom_call.1} parent=0 // pred_check_branch
    %17 = sbr.rel (0) target = $region9
  $region8: #{tpu_custom_call.1} parent=0 // pred_region
    _
  $region9: #{tpu_custom_call.1} parent=0 // pred_fallthru
    _
  // Predicated region
  $region10: #{tpu_custom_call.1} parent=0 // pred_check
    _
  $region11: #{tpu_custom_call.1} parent=0 // pred_check_branch
    %19 = sbr.rel (0) target = $region13
  $region12: #{tpu_custom_call.1} parent=0 // pred_region
    _
  $region13: #{tpu_custom_call.1} parent=0 // pred_fallthru
    _
  // Predicated region
  $region14: #{tpu_custom_call.1} parent=0 // pred_check
    _
  $region15: #{tpu_custom_call.1} parent=0 // pred_check_branch
    %21 = sbr.rel (0) target = $region17
  $region16: #{tpu_custom_call.1} parent=0 // pred_region
    _
  $region17: #{tpu_custom_call.1} parent=0 // pred_fallthru
    _
  // Predicated region
  $region18: #{tpu_custom_call.1} parent=0 // pred_check
    _
  $region19: #{tpu_custom_call.1} parent=0 // pred_check_branch
    %23 = sbr.rel (0) target = $region21
  $region20: #{tpu_custom_call.1} parent=0 // pred_region
    _
  $region21: #{tpu_custom_call.1} parent=0 // pred_fallthru
    _
  // Predicated region
  $region22: #{tpu_custom_call.1} parent=0 // pred_check
    _
  $region23: #{tpu_custom_call.1} parent=0 // pred_check_branch
    %25 = sbr.rel (0) target = $region25
  $region24: #{tpu_custom_call.1} parent=0 // pred_region
    _
  $region25: #{tpu_custom_call.1} parent=0 // pred_fallthru
    _
  // Predicated region
  $region26: #{tpu_custom_call.1} parent=0 // pred_check
    _
  $region27: #{tpu_custom_call.1} parent=0 // pred_check_branch
    %27 = sbr.rel (0) target = $region29
  $region28: #{tpu_custom_call.1} parent=0 // pred_region
    _
  $region29: #{tpu_custom_call.1} parent=0 // pred_fallthru
    _
  // Predicated region
  $region30: #{tpu_custom_call.1} parent=0 // pred_check
    _
  $region31: #{tpu_custom_call.1} parent=0 // pred_check_branch
    %29 = sbr.rel (0) target = $region33
  $region32: #{tpu_custom_call.1} parent=0 // pred_region
    _
  $region33: #{tpu_custom_call.1} parent=0 // pred_fallthru
    _
  // Predicated region
  $region34: #{tpu_custom_call.1} parent=0 // pred_check
    _
  $region35: #{tpu_custom_call.1} parent=0 // pred_check_branch
    %31 = sbr.rel (0) target = $region37
  $region36: #{tpu_custom_call.1} parent=0 // pred_region
    _
  $region37: #{tpu_custom_call.1} parent=0 // pred_fallthru
    _
  %v33 = vld [vmem:[%s1] sm:$0xf]
  %v34 = vld [vmem:[%s1 + $0x4] sm:$0xf]
  %v35 = vld [vmem:[%s1 + $0x8] sm:$0xf]
  %v36 = vld [vmem:[%s1 + $0xc] sm:$0xf]
  %v37 = vld [vmem:[%s1 + $0x10] sm:$0xf]
  %v38 = vld [vmem:[%s1 + $0x14] sm:$0xf]
  %v39 = vld [vmem:[%s1 + $0x18] sm:$0xf]
  %v40 = vld [vmem:[%s1 + $0x1c] sm:$0xf]
  %v41 = vld [vmem:[%s1 + $0x20] sm:$0xf]
  %v42 = vld [vmem:[%s1 + $0x24] sm:$0xf]
  %v43 = vld [vmem:[%s1 + $0x28] sm:$0xf]
  %v44 = vld [vmem:[%s1 + $0x2c] sm:$0xf]
  %v45 = vld [vmem:[%s1 + $0x30] sm:$0xf]
  %v46 = vld [vmem:[%s1 + $0x34] sm:$0xf]
  %v47 = vld [vmem:[%s1 + $0x38] sm:$0xf]
  %v48 = vld [vmem:[%s1 + $0x3c] sm:$0xf]
  %v49 = vld [vmem:[%s1 + $0x40] sm:$0xf]
  %v50 = vld [vmem:[%s1 + $0x44] sm:$0xf]
  %v51 = vld [vmem:[%s1 + $0x48] sm:$0xf]
  %v52 = vld [vmem:[%s1 + $0x4c] sm:$0xf]
  %v53 = vld [vmem:[%s1 + $0x50] sm:$0xf]
  %v54 = vld [vmem:[%s1 + $0x54] sm:$0xf]
  %v55 = vld [vmem:[%s1 + $0x58] sm:$0xf]
  %v56 = vld [vmem:[%s1 + $0x5c] sm:$0xf]
  %v57 = vld [vmem:[%s1 + $0x60] sm:$0xf]
  %v58 = vld [vmem:[%s1 + $0x64] sm:$0xf]
  %v59 = vld [vmem:[%s1 + $0x68] sm:$0xf]
  %v60 = vld [vmem:[%s1 + $0x6c] sm:$0xf]
  %v61 = vld [vmem:[%s1 + $0x70] sm:$0xf]
  %v62 = vld [vmem:[%s1 + $0x74] sm:$0xf]
  %v63 = vld [vmem:[%s1 + $0x78] sm:$0xf]
  %v64 = vld [vmem:[%s1 + $0x7c] sm:$0xf]
  %v65 = vld [vmem:[%s2] sm:$0xf]
  %v66 = vld [vmem:[%s2 + $0x4] sm:$0xf]
  %v67 = vld [vmem:[%s2 + $0x8] sm:$0xf]
  %v68 = vld [vmem:[%s2 + $0xc] sm:$0xf]
  %v69 = vld [vmem:[%s2 + $0x10] sm:$0xf]
  %v70 = vld [vmem:[%s2 + $0x14] sm:$0xf]
  %v71 = vld [vmem:[%s2 + $0x18] sm:$0xf]
  %v72 = vld [vmem:[%s2 + $0x1c] sm:$0xf]
  %v73 = vld [vmem:[%s2 + $0x20] sm:$0xf]
  %v74 = vld [vmem:[%s2 + $0x24] sm:$0xf]
  %v75 = vld [vmem:[%s2 + $0x28] sm:$0xf]
  %v76 = vld [vmem:[%s2 + $0x2c] sm:$0xf]
  %v77 = vld [vmem:[%s2 + $0x30] sm:$0xf]
  %v78 = vld [vmem:[%s2 + $0x34] sm:$0xf]
  %v79 = vld [vmem:[%s2 + $0x38] sm:$0xf]
  %v80 = vld [vmem:[%s2 + $0x3c] sm:$0xf]
  %v81 = vld [vmem:[%s2 + $0x40] sm:$0xf]
  %v82 = vld [vmem:[%s2 + $0x44] sm:$0xf]
  %v83 = vld [vmem:[%s2 + $0x48] sm:$0xf]
  %v84 = vld [vmem:[%s2 + $0x4c] sm:$0xf]
  %v85 = vld [vmem:[%s2 + $0x50] sm:$0xf]
  %v86 = vld [vmem:[%s2 + $0x54] sm:$0xf]
  %v87 = vld [vmem:[%s2 + $0x58] sm:$0xf]
  %v88 = vld [vmem:[%s2 + $0x5c] sm:$0xf]
  %v89 = vld [vmem:[%s2 + $0x60] sm:$0xf]
  %v90 = vld [vmem:[%s2 + $0x64] sm:$0xf]
  %v91 = vld [vmem:[%s2 + $0x68] sm:$0xf]
  %v92 = vld [vmem:[%s2 + $0x6c] sm:$0xf]
  %v93 = vld [vmem:[%s2 + $0x70] sm:$0xf]
  %v94 = vld [vmem:[%s2 + $0x74] sm:$0xf]
  %v95 = vld [vmem:[%s2 + $0x78] sm:$0xf]
  %v96 = vld [vmem:[%s2 + $0x7c] sm:$0xf]
  %v97 = vld [vmem:[%s3] sm:$0xf]
  %v98 = vld [vmem:[%s3 + $0x4] sm:$0xf]
  %v99 = vld [vmem:[%s3 + $0x8] sm:$0xf]
  %v100 = vld [vmem:[%s3 + $0xc] sm:$0xf]
  %v101 = vld [vmem:[%s3 + $0x10] sm:$0xf]
  %v102 = vld [vmem:[%s3 + $0x14] sm:$0xf]
  %v103 = vld [vmem:[%s3 + $0x18] sm:$0xf]
  %v104 = vld [vmem:[%s3 + $0x1c] sm:$0xf]
  %v105 = vld [vmem:[%s3 + $0x20] sm:$0xf]
  %v106 = vld [vmem:[%s3 + $0x24] sm:$0xf]
  %v107 = vld [vmem:[%s3 + $0x28] sm:$0xf]
  %v108 = vld [vmem:[%s3 + $0x2c] sm:$0xf]
  %v109 = vld [vmem:[%s3 + $0x30] sm:$0xf]
  %v110 = vld [vmem:[%s3 + $0x34] sm:$0xf]
  %v111 = vld [vmem:[%s3 + $0x38] sm:$0xf]
  %v112 = vld [vmem:[%s3 + $0x3c] sm:$0xf]
  %v113 = vld [vmem:[%s3 + $0x40] sm:$0xf]
  %v114 = vld [vmem:[%s3 + $0x44] sm:$0xf]
  %v115 = vld [vmem:[%s3 + $0x48] sm:$0xf]
  %v116 = vld [vmem:[%s3 + $0x4c] sm:$0xf]
  %v117 = vld [vmem:[%s3 + $0x50] sm:$0xf]
  %v118 = vld [vmem:[%s3 + $0x54] sm:$0xf]
  %v119 = vld [vmem:[%s3 + $0x58] sm:$0xf]
  %v120 = vld [vmem:[%s3 + $0x5c] sm:$0xf]
  %v121 = vld [vmem:[%s3 + $0x60] sm:$0xf]
  %v122 = vld [vmem:[%s3 + $0x64] sm:$0xf]
  %v123 = vld [vmem:[%s3 + $0x68] sm:$0xf]
  %v124 = vld [vmem:[%s3 + $0x6c] sm:$0xf]
  %v125 = vld [vmem:[%s3 + $0x70] sm:$0xf]
  %v126 = vld [vmem:[%s3 + $0x74] sm:$0xf]
  %v127 = vld [vmem:[%s3 + $0x78] sm:$0xf]
  %v128 = vld [vmem:[%s3 + $0x7c] sm:$0xf]
  %v129 = vld [vmem:[%s4] sm:$0xff]
  %v130 = vld [vmem:[%s4 + $0x8] sm:$0xff]
  %v131 = vld [vmem:[%s4 + $0x10] sm:$0xff]
  %v132 = vld [vmem:[%s4 + $0x18] sm:$0xff]
  %v133 = vld [vmem:[%s4 + $0x20] sm:$0xff]
  %v134 = vld [vmem:[%s4 + $0x28] sm:$0xff]
  %v135 = vld [vmem:[%s4 + $0x30] sm:$0xff]
  %v136 = vld [vmem:[%s4 + $0x38] sm:$0xff]
  %v137 = vld [vmem:[%s4 + $0x40] sm:$0xff]
  %v138 = vld [vmem:[%s4 + $0x48] sm:$0xff]
  %v139 = vld [vmem:[%s4 + $0x50] sm:$0xff]
  %v140 = vld [vmem:[%s4 + $0x58] sm:$0xff]
  %v141 = vld [vmem:[%s4 + $0x60] sm:$0xff]
  %v142 = vld [vmem:[%s4 + $0x68] sm:$0xff]
  %v143 = vld [vmem:[%s4 + $0x70] sm:$0xff]
  %v144 = vld [vmem:[%s4 + $0x78] sm:$0xff]
  %v177 = vunpack.c.l.b16 %v33
  %v178 = vunpack.c.l.b16 %v34
  %v179 = vunpack.c.l.b16 %v35
  %v180 = vunpack.c.l.b16 %v36
  %v181 = vunpack.c.l.b16 %v37
  %v182 = vunpack.c.l.b16 %v38
  %v183 = vunpack.c.l.b16 %v39
  %v184 = vunpack.c.l.b16 %v40
  %v185 = vunpack.c.l.b16 %v41
  %v186 = vunpack.c.l.b16 %v42
  %v187 = vunpack.c.l.b16 %v43
  %v188 = vunpack.c.l.b16 %v44
  %v189 = vunpack.c.l.b16 %v45
  %v190 = vunpack.c.l.b16 %v46
  %v191 = vunpack.c.l.b16 %v47
  %v192 = vunpack.c.l.b16 %v48
  %v193 = vunpack.c.l.b16 %v49
  %v194 = vunpack.c.l.b16 %v50
  %v195 = vunpack.c.l.b16 %v51
  %v196 = vunpack.c.l.b16 %v52
  %v197 = vunpack.c.l.b16 %v53
  %v198 = vunpack.c.l.b16 %v54
  %v199 = vunpack.c.l.b16 %v55
  %v200 = vunpack.c.l.b16 %v56
  %v201 = vunpack.c.l.b16 %v57
  %v202 = vunpack.c.l.b16 %v58
  %v203 = vunpack.c.l.b16 %v59
  %v204 = vunpack.c.l.b16 %v60
  %v205 = vunpack.c.l.b16 %v61
  %v206 = vunpack.c.l.b16 %v62
  %v207 = vunpack.c.l.b16 %v63
  %v208 = vunpack.c.l.b16 %v64
  %v209 = vpack.c.b16 %v178, %v177
  %v210 = vpack.c.b16 %v180, %v179
  %v211 = vpack.c.b16 %v182, %v181
  %v212 = vpack.c.b16 %v184, %v183
  %v213 = vpack.c.b16 %v186, %v185
  %v214 = vpack.c.b16 %v188, %v187
  %v215 = vpack.c.b16 %v190, %v189
  %v216 = vpack.c.b16 %v192, %v191
  %v217 = vpack.c.b16 %v194, %v193
  %v218 = vpack.c.b16 %v196, %v195
  %v219 = vpack.c.b16 %v198, %v197
  %v220 = vpack.c.b16 %v200, %v199
  %v221 = vpack.c.b16 %v202, %v201
  %v222 = vpack.c.b16 %v204, %v203
  %v223 = vpack.c.b16 %v206, %v205
  %v224 = vpack.c.b16 %v208, %v207
  %v241 = vunpack.c.l.b16 %v129
  %v242 = vunpack.c.h.b16 %v129
  %v243 = vunpack.c.l.b16 %v130
  %v244 = vunpack.c.h.b16 %v130
  %v245 = vunpack.c.l.b16 %v131
  %v246 = vunpack.c.h.b16 %v131
  %v247 = vunpack.c.l.b16 %v132
  %v248 = vunpack.c.h.b16 %v132
  %v249 = vunpack.c.l.b16 %v133
  %v250 = vunpack.c.h.b16 %v133
  %v251 = vunpack.c.l.b16 %v134
  %v252 = vunpack.c.h.b16 %v134
  %v253 = vunpack.c.l.b16 %v135
  %v254 = vunpack.c.h.b16 %v135
  %v255 = vunpack.c.l.b16 %v136
  %v256 = vunpack.c.h.b16 %v136
  %v257 = vunpack.c.l.b16 %v137
  %v258 = vunpack.c.h.b16 %v137
  %v259 = vunpack.c.l.b16 %v138
  %v260 = vunpack.c.h.b16 %v138
  %v261 = vunpack.c.l.b16 %v139
  %v262 = vunpack.c.h.b16 %v139
  %v263 = vunpack.c.l.b16 %v140
  %v264 = vunpack.c.h.b16 %v140
  %v265 = vunpack.c.l.b16 %v141
  %v266 = vunpack.c.h.b16 %v141
  %v267 = vunpack.c.l.b16 %v142
  %v268 = vunpack.c.h.b16 %v142
  %v269 = vunpack.c.l.b16 %v143
  %v270 = vunpack.c.h.b16 %v143
  %v271 = vunpack.c.l.b16 %v144
  %v272 = vunpack.c.h.b16 %v144
  %v273 = vpack.c.b16 %v245, %v241
  %v274 = vpack.c.b16 %v246, %v242
  %v275 = vpack.c.b16 %v247, %v243
  %v276 = vpack.c.b16 %v248, %v244
  %v277 = vpack.c.b16 %v253, %v249
  %v278 = vpack.c.b16 %v254, %v250
  %v279 = vpack.c.b16 %v255, %v251
  %v280 = vpack.c.b16 %v256, %v252
  %v281 = vpack.c.b16 %v261, %v257
  %v282 = vpack.c.b16 %v262, %v258
  %v283 = vpack.c.b16 %v263, %v259
  %v284 = vpack.c.b16 %v264, %v260
  %v285 = vpack.c.b16 %v269, %v265
  %v286 = vpack.c.b16 %v270, %v266
  %v287 = vpack.c.b16 %v271, %v267
  %v288 = vpack.c.b16 %v272, %v268
  %vm305 = vcmask 523264
  %v307 = vsel %vm305, %v209, 0
  %v310 = vsel %vm305, %v210, 0
  %v313 = vsel %vm305, %v211, 0
  %v316 = vsel %vm305, %v212, 0
  %v319 = vsel %vm305, %v213, 0
  %v322 = vsel %vm305, %v214, 0
  %v325 = vsel %vm305, %v215, 0
  %v328 = vsel %vm305, %v216, 0
  %v331 = vsel %vm305, %v217, 0
  %v334 = vsel %vm305, %v218, 0
  %v337 = vsel %vm305, %v219, 0
  %v340 = vsel %vm305, %v220, 0
  %v343 = vsel %vm305, %v221, 0
  %v346 = vsel %vm305, %v222, 0
  %v349 = vsel %vm305, %v223, 0
  %v352 = vsel %vm305, %v224, 0
  %354 = vmatprep.subr.bf16.mxu0 %v274
  %355 = vmatpush1.bf16.msra.mxu0 %v273
  %356 = vmatprep.subr.bf16.mxu0 %v278
  %357 = vmatpush1.bf16.msra.mxu0 %v277
  %358 = vmatprep.subr.bf16.mxu0 %v282
  %359 = vmatpush1.bf16.msra.mxu0 %v281
  %360 = vmatprep.subr.bf16.mxu0 %v286
  %361 = vmatpush1.bf16.msra.mxu0 %v285
  %362 = vmatprep.subr.bf16.mxu0 0
  %363 = vmatpush1.bf16.msra.mxu0 0
  %364 = vmatprep.subr.bf16.mxu0 0
  %365 = vmatpush1.bf16.msra.mxu0 0
  %366 = vmatprep.subr.bf16.mxu0 0
  %367 = vmatpush1.bf16.msra.mxu0 0
  %368 = vmatprep.subr.bf16.mxu0 0
  %369 = vmatpush1.bf16.msra.mxu0 0
  %370 = vmatprep.subr.bf16.mxu0 0
  %371 = vmatpush1.bf16.msra.mxu0 0
  %372 = vmatprep.subr.bf16.mxu0 0
  %373 = vmatpush1.bf16.msra.mxu0 0
  %374 = vmatprep.subr.bf16.mxu0 0
  %375 = vmatpush1.bf16.msra.mxu0 0
  %376 = vmatprep.subr.bf16.mxu0 0
  %377 = vmatpush1.bf16.msra.mxu0 0
  %378 = vmatprep.subr.bf16.mxu0 0
  %379 = vmatpush1.bf16.msra.mxu0 0
  %380 = vmatprep.subr.bf16.mxu0 0
  %381 = vmatpush1.bf16.msra.mxu0 0
  %382 = vmatprep.subr.bf16.mxu0 0
  %383 = vmatpush1.bf16.msra.mxu0 0
  %384 = vmatprep.subr.bf16.mxu0 0
  %385 = vmatpush1.bf16.msra.mxu0 0
  %386 = vmatprep.mubr.bf16.mxu0 0
  %387 = vmatmul.mubr.bf16.gmra.mrb[0].mxu0 %v307
  %v388 = vpop.f32.mrb[0].mxu0
  %v389 = vadd.f32 0.0, %v388
  %v390 = vpop.f32.mrb[0].mxu0
  %v391 = vadd.f32 0.0, %v390
  %v392 = vpop.f32.mrb[0].mxu0
  %v393 = vadd.f32 0.0, %v392
  %v394 = vpop.f32.mrb[0].mxu0
  %v395 = vadd.f32 0.0, %v394
  %396 = vmatprep.mubr.bf16.mxu0 0
  %397 = vmatmul.mubr.bf16.gmra.mrb[0].mxu0 %v310
  %v398 = vpop.f32.mrb[0].mxu0
  %v399 = vadd.f32 0.0, %v398
  %v400 = vpop.f32.mrb[0].mxu0
  %v401 = vadd.f32 0.0, %v400
  %v402 = vpop.f32.mrb[0].mxu0
  %v403 = vadd.f32 0.0, %v402
  %v404 = vpop.f32.mrb[0].mxu0
  %v405 = vadd.f32 0.0, %v404
  %406 = vmatprep.mubr.bf16.mxu0 0
  %407 = vmatmul.mubr.bf16.gmra.mrb[0].mxu0 %v313
  %v408 = vpop.f32.mrb[0].mxu0
  %v409 = vadd.f32 0.0, %v408
  %v410 = vpop.f32.mrb[0].mxu0
  %v411 = vadd.f32 0.0, %v410
  %v412 = vpop.f32.mrb[0].mxu0
  %v413 = vadd.f32 0.0, %v412
  %v414 = vpop.f32.mrb[0].mxu0
  %v415 = vadd.f32 0.0, %v414
  %416 = vmatprep.mubr.bf16.mxu0 0
  %417 = vmatmul.mubr.bf16.gmra.mrb[0].mxu0 %v316
  %v418 = vpop.f32.mrb[0].mxu0
  %v419 = vadd.f32 0.0, %v418
  %v420 = vpop.f32.mrb[0].mxu0
  %v421 = vadd.f32 0.0, %v420
  %v422 = vpop.f32.mrb[0].mxu0
  %v423 = vadd.f32 0.0, %v422
  %v424 = vpop.f32.mrb[0].mxu0
  %v425 = vadd.f32 0.0, %v424
  %426 = vmatprep.mubr.bf16.mxu0 0
  %427 = vmatmul.mubr.bf16.gmra.mrb[0].mxu0 %v319
  %v428 = vpop.f32.mrb[0].mxu0
  %v429 = vadd.f32 0.0, %v428
  %v430 = vpop.f32.mrb[0].mxu0
  %v431 = vadd.f32 0.0, %v430
  %v432 = vpop.f32.mrb[0].mxu0
  %v433 = vadd.f32 0.0, %v432
  %v434 = vpop.f32.mrb[0].mxu0
  %v435 = vadd.f32 0.0, %v434
  %436 = vmatprep.mubr.bf16.mxu0 0
  %437 = vmatmul.mubr.bf16.gmra.mrb[0].mxu0 %v322
  %v438 = vpop.f32.mrb[0].mxu0
  %v439 = vadd.f32 0.0, %v438
  %v440 = vpop.f32.mrb[0].mxu0
  %v441 = vadd.f32 0.0, %v440
  %v442 = vpop.f32.mrb[0].mxu0
  %v443 = vadd.f32 0.0, %v442
  %v444 = vpop.f32.mrb[0].mxu0
  %v445 = vadd.f32 0.0, %v444
  %446 = vmatprep.mubr.bf16.mxu0 0
  %447 = vmatmul.mubr.bf16.gmra.mrb[0].mxu0 %v325
  %v448 = vpop.f32.mrb[0].mxu0
  %v449 = vadd.f32 0.0, %v448
  %v450 = vpop.f32.mrb[0].mxu0
  %v451 = vadd.f32 0.0, %v450
  %v452 = vpop.f32.mrb[0].mxu0
  %v453 = vadd.f32 0.0, %v452
  %v454 = vpop.f32.mrb[0].mxu0
  %v455 = vadd.f32 0.0, %v454
  %456 = vmatprep.mubr.bf16.mxu0 0
  %457 = vmatmul.mubr.bf16.gmra.mrb[0].mxu0 %v328
  %v458 = vpop.f32.mrb[0].mxu0
  %v459 = vadd.f32 0.0, %v458
  %v460 = vpop.f32.mrb[0].mxu0
  %v461 = vadd.f32 0.0, %v460
  %v462 = vpop.f32.mrb[0].mxu0
  %v463 = vadd.f32 0.0, %v462
  %v464 = vpop.f32.mrb[0].mxu0
  %v465 = vadd.f32 0.0, %v464
  %466 = vmatprep.mubr.bf16.mxu0 0
  %467 = vmatmul.mubr.bf16.gmra.mrb[0].mxu0 %v331
  %v468 = vpop.f32.mrb[0].mxu0
  %v469 = vadd.f32 0.0, %v468
  %v470 = vpop.f32.mrb[0].mxu0
  %v471 = vadd.f32 0.0, %v470
  %v472 = vpop.f32.mrb[0].mxu0
  %v473 = vadd.f32 0.0, %v472
  %v474 = vpop.f32.mrb[0].mxu0
  %v475 = vadd.f32 0.0, %v474
  %476 = vmatprep.mubr.bf16.mxu0 0
  %477 = vmatmul.mubr.bf16.gmra.mrb[0].mxu0 %v334
  %v478 = vpop.f32.mrb[0].mxu0
  %v479 = vadd.f32 0.0, %v478
  %v480 = vpop.f32.mrb[0].mxu0
  %v481 = vadd.f32 0.0, %v480
  %v482 = vpop.f32.mrb[0].mxu0
  %v483 = vadd.f32 0.0, %v482
  %v484 = vpop.f32.mrb[0].mxu0
  %v485 = vadd.f32 0.0, %v484
  %486 = vmatprep.mubr.bf16.mxu0 0
  %487 = vmatmul.mubr.bf16.gmra.mrb[0].mxu0 %v337
  %v488 = vpop.f32.mrb[0].mxu0
  %v489 = vadd.f32 0.0, %v488
  %v490 = vpop.f32.mrb[0].mxu0
  %v491 = vadd.f32 0.0, %v490
  %v492 = vpop.f32.mrb[0].mxu0
  %v493 = vadd.f32 0.0, %v492
  %v494 = vpop.f32.mrb[0].mxu0
  %v495 = vadd.f32 0.0, %v494
  %496 = vmatprep.mubr.bf16.mxu0 0
  %497 = vmatmul.mubr.bf16.gmra.mrb[0].mxu0 %v340
  %v498 = vpop.f32.mrb[0].mxu0
  %v499 = vadd.f32 0.0, %v498
  %v500 = vpop.f32.mrb[0].mxu0
  %v501 = vadd.f32 0.0, %v500
  %v502 = vpop.f32.mrb[0].mxu0
  %v503 = vadd.f32 0.0, %v502
  %v504 = vpop.f32.mrb[0].mxu0
  %v505 = vadd.f32 0.0, %v504
  %506 = vmatprep.mubr.bf16.mxu0 0
  %507 = vmatmul.mubr.bf16.gmra.mrb[0].mxu0 %v343
  %v508 = vpop.f32.mrb[0].mxu0
  %v509 = vadd.f32 0.0, %v508
  %v510 = vpop.f32.mrb[0].mxu0
  %v511 = vadd.f32 0.0, %v510
  %v512 = vpop.f32.mrb[0].mxu0
  %v513 = vadd.f32 0.0, %v512
  %v514 = vpop.f32.mrb[0].mxu0
  %v515 = vadd.f32 0.0, %v514
  %516 = vmatprep.mubr.bf16.mxu0 0
  %517 = vmatmul.mubr.bf16.gmra.mrb[0].mxu0 %v346
  %v518 = vpop.f32.mrb[0].mxu0
  %v519 = vadd.f32 0.0, %v518
  %v520 = vpop.f32.mrb[0].mxu0
  %v521 = vadd.f32 0.0, %v520
  %v522 = vpop.f32.mrb[0].mxu0
  %v523 = vadd.f32 0.0, %v522
  %v524 = vpop.f32.mrb[0].mxu0
  %v525 = vadd.f32 0.0, %v524
  %526 = vmatprep.mubr.bf16.mxu0 0
  %527 = vmatmul.mubr.bf16.gmra.mrb[0].mxu0 %v349
  %v528 = vpop.f32.mrb[0].mxu0
  %v529 = vadd.f32 0.0, %v528
  %v530 = vpop.f32.mrb[0].mxu0
  %v531 = vadd.f32 0.0, %v530
  %v532 = vpop.f32.mrb[0].mxu0
  %v533 = vadd.f32 0.0, %v532
  %v534 = vpop.f32.mrb[0].mxu0
  %v535 = vadd.f32 0.0, %v534
  %536 = vmatprep.mubr.bf16.mxu0 0
  %537 = vmatmul.mubr.bf16.gmra.mrb[0].mxu0 %v352
  %v538 = vpop.f32.mrb[0].mxu0
  %v539 = vadd.f32 0.0, %v538
  %v540 = vpop.f32.mrb[0].mxu0
  %v541 = vadd.f32 0.0, %v540
  %v542 = vpop.f32.mrb[0].mxu0
  %v543 = vadd.f32 0.0, %v542
  %v544 = vpop.f32.mrb[0].mxu0
  %v545 = vadd.f32 0.0, %v544
  %546 = vdwg.mxu0
  %547 = vmatprep.subr.bf16.mxu0 %v276
  %548 = vmatpush1.bf16.msra.mxu0 %v275
  %549 = vmatprep.subr.bf16.mxu0 %v280
  %550 = vmatpush1.bf16.msra.mxu0 %v279
  %551 = vmatprep.subr.bf16.mxu0 %v284
  %552 = vmatpush1.bf16.msra.mxu0 %v283
  %553 = vmatprep.subr.bf16.mxu0 %v288
  %554 = vmatpush1.bf16.msra.mxu0 %v287
  %555 = vmatprep.subr.bf16.mxu0 0
  %556 = vmatpush1.bf16.msra.mxu0 0
  %557 = vmatprep.subr.bf16.mxu0 0
  %558 = vmatpush1.bf16.msra.mxu0 0
  %559 = vmatprep.subr.bf16.mxu0 0
  %560 = vmatpush1.bf16.msra.mxu0 0
  %561 = vmatprep.subr.bf16.mxu0 0
  %562 = vmatpush1.bf16.msra.mxu0 0
  %563 = vmatprep.subr.bf16.mxu0 0
  %564 = vmatpush1.bf16.msra.mxu0 0
  %565 = vmatprep.subr.bf16.mxu0 0
  %566 = vmatpush1.bf16.msra.mxu0 0
  %567 = vmatprep.subr.bf16.mxu0 0
  %568 = vmatpush1.bf16.msra.mxu0 0
  %569 = vmatprep.subr.bf16.mxu0 0
  %570 = vmatpush1.bf16.msra.mxu0 0
  %571 = vmatprep.subr.bf16.mxu0 0
  %572 = vmatpush1.bf16.msra.mxu0 0
  %573 = vmatprep.subr.bf16.mxu0 0
  %574 = vmatpush1.bf16.msra.mxu0 0
  %575 = vmatprep.subr.bf16.mxu0 0
  %576 = vmatpush1.bf16.msra.mxu0 0
  %577 = vmatprep.subr.bf16.mxu0 0
  %578 = vmatpush1.bf16.msra.mxu0 0
  %579 = vmatprep.mubr.bf16.mxu0 0
  %580 = vmatmul.mubr.bf16.gmra.mrb[0].mxu0 %v307
  %v581 = vpop.f32.mrb[0].mxu0
  %v582 = vadd.f32 0.0, %v581
  %v583 = vpop.f32.mrb[0].mxu0
  %v584 = vadd.f32 0.0, %v583
  %v585 = vpop.f32.mrb[0].mxu0
  %v586 = vadd.f32 0.0, %v585
  %v587 = vpop.f32.mrb[0].mxu0
  %v588 = vadd.f32 0.0, %v587
  %589 = vmatprep.mubr.bf16.mxu0 0
  %590 = vmatmul.mubr.bf16.gmra.mrb[0].mxu0 %v310
  %v591 = vpop.f32.mrb[0].mxu0
  %v592 = vadd.f32 0.0, %v591
  %v593 = vpop.f32.mrb[0].mxu0
  %v594 = vadd.f32 0.0, %v593
  %v595 = vpop.f32.mrb[0].mxu0
  %v596 = vadd.f32 0.0, %v595
  %v597 = vpop.f32.mrb[0].mxu0
  %v598 = vadd.f32 0.0, %v597
  %599 = vmatprep.mubr.bf16.mxu0 0
  %600 = vmatmul.mubr.bf16.gmra.mrb[0].mxu0 %v313
  %v601 = vpop.f32.mrb[0].mxu0
  %v602 = vadd.f32 0.0, %v601
  %v603 = vpop.f32.mrb[0].mxu0
  %v604 = vadd.f32 0.0, %v603
  %v605 = vpop.f32.mrb[0].mxu0
  %v606 = vadd.f32 0.0, %v605
  %v607 = vpop.f32.mrb[0].mxu0
  %v608 = vadd.f32 0.0, %v607
  %609 = vmatprep.mubr.bf16.mxu0 0
  %610 = vmatmul.mubr.bf16.gmra.mrb[0].mxu0 %v316
  %v611 = vpop.f32.mrb[0].mxu0
  %v612 = vadd.f32 0.0, %v611
  %v613 = vpop.f32.mrb[0].mxu0
  %v614 = vadd.f32 0.0, %v613
  %v615 = vpop.f32.mrb[0].mxu0
  %v616 = vadd.f32 0.0, %v615
  %v617 = vpop.f32.mrb[0].mxu0
  %v618 = vadd.f32 0.0, %v617
  %619 = vmatprep.mubr.bf16.mxu0 0
  %620 = vmatmul.mubr.bf16.gmra.mrb[0].mxu0 %v319
  %v621 = vpop.f32.mrb[0].mxu0
  %v622 = vadd.f32 0.0, %v621
  %v623 = vpop.f32.mrb[0].mxu0
  %v624 = vadd.f32 0.0, %v623
  %v625 = vpop.f32.mrb[0].mxu0
  %v626 = vadd.f32 0.0, %v625
  %v627 = vpop.f32.mrb[0].mxu0
  %v628 = vadd.f32 0.0, %v627
  %629 = vmatprep.mubr.bf16.mxu0 0
  %630 = vmatmul.mubr.bf16.gmra.mrb[0].mxu0 %v322
  %v631 = vpop.f32.mrb[0].mxu0
  %v632 = vadd.f32 0.0, %v631
  %v633 = vpop.f32.mrb[0].mxu0
  %v634 = vadd.f32 0.0, %v633
  %v635 = vpop.f32.mrb[0].mxu0
  %v636 = vadd.f32 0.0, %v635
  %v637 = vpop.f32.mrb[0].mxu0
  %v638 = vadd.f32 0.0, %v637
  %639 = vmatprep.mubr.bf16.mxu0 0
  %640 = vmatmul.mubr.bf16.gmra.mrb[0].mxu0 %v325
  %v641 = vpop.f32.mrb[0].mxu0
  %v642 = vadd.f32 0.0, %v641
  %v643 = vpop.f32.mrb[0].mxu0
  %v644 = vadd.f32 0.0, %v643
  %v645 = vpop.f32.mrb[0].mxu0
  %v646 = vadd.f32 0.0, %v645
  %v647 = vpop.f32.mrb[0].mxu0
  %v648 = vadd.f32 0.0, %v647
  %649 = vmatprep.mubr.bf16.mxu0 0
  %650 = vmatmul.mubr.bf16.gmra.mrb[0].mxu0 %v328
  %v651 = vpop.f32.mrb[0].mxu0
  %v652 = vadd.f32 0.0, %v651
  %v653 = vpop.f32.mrb[0].mxu0
  %v654 = vadd.f32 0.0, %v653
  %v655 = vpop.f32.mrb[0].mxu0
  %v656 = vadd.f32 0.0, %v655
  %v657 = vpop.f32.mrb[0].mxu0
  %v658 = vadd.f32 0.0, %v657
  %659 = vmatprep.mubr.bf16.mxu0 0
  %660 = vmatmul.mubr.bf16.gmra.mrb[0].mxu0 %v331
  %v661 = vpop.f32.mrb[0].mxu0
  %v662 = vadd.f32 0.0, %v661
  %v663 = vpop.f32.mrb[0].mxu0
  %v664 = vadd.f32 0.0, %v663
  %v665 = vpop.f32.mrb[0].mxu0
  %v666 = vadd.f32 0.0, %v665
  %v667 = vpop.f32.mrb[0].mxu0
  %v668 = vadd.f32 0.0, %v667
  %669 = vmatprep.mubr.bf16.mxu0 0
  %670 = vmatmul.mubr.bf16.gmra.mrb[0].mxu0 %v334
  %v671 = vpop.f32.mrb[0].mxu0
  %v672 = vadd.f32 0.0, %v671
  %v673 = vpop.f32.mrb[0].mxu0
  %v674 = vadd.f32 0.0, %v673
  %v675 = vpop.f32.mrb[0].mxu0
  %v676 = vadd.f32 0.0, %v675
  %v677 = vpop.f32.mrb[0].mxu0
  %v678 = vadd.f32 0.0, %v677
  %679 = vmatprep.mubr.bf16.mxu0 0
  %680 = vmatmul.mubr.bf16.gmra.mrb[0].mxu0 %v337
  %v681 = vpop.f32.mrb[0].mxu0
  %v682 = vadd.f32 0.0, %v681
  %v683 = vpop.f32.mrb[0].mxu0
  %v684 = vadd.f32 0.0, %v683
  %v685 = vpop.f32.mrb[0].mxu0
  %v686 = vadd.f32 0.0, %v685
  %v687 = vpop.f32.mrb[0].mxu0
  %v688 = vadd.f32 0.0, %v687
  %689 = vmatprep.mubr.bf16.mxu0 0
  %690 = vmatmul.mubr.bf16.gmra.mrb[0].mxu0 %v340
  %v691 = vpop.f32.mrb[0].mxu0
  %v692 = vadd.f32 0.0, %v691
  %v693 = vpop.f32.mrb[0].mxu0
  %v694 = vadd.f32 0.0, %v693
  %v695 = vpop.f32.mrb[0].mxu0
  %v696 = vadd.f32 0.0, %v695
  %v697 = vpop.f32.mrb[0].mxu0
  %v698 = vadd.f32 0.0, %v697
  %699 = vmatprep.mubr.bf16.mxu0 0
  %700 = vmatmul.mubr.bf16.gmra.mrb[0].mxu0 %v343
  %v701 = vpop.f32.mrb[0].mxu0
  %v702 = vadd.f32 0.0, %v701
  %v703 = vpop.f32.mrb[0].mxu0
  %v704 = vadd.f32 0.0, %v703
  %v705 = vpop.f32.mrb[0].mxu0
  %v706 = vadd.f32 0.0, %v705
  %v707 = vpop.f32.mrb[0].mxu0
  %v708 = vadd.f32 0.0, %v707
  %709 = vmatprep.mubr.bf16.mxu0 0
  %710 = vmatmul.mubr.bf16.gmra.mrb[0].mxu0 %v346
  %v711 = vpop.f32.mrb[0].mxu0
  %v712 = vadd.f32 0.0, %v711
  %v713 = vpop.f32.mrb[0].mxu0
  %v714 = vadd.f32 0.0, %v713
  %v715 = vpop.f32.mrb[0].mxu0
  %v716 = vadd.f32 0.0, %v715
  %v717 = vpop.f32.mrb[0].mxu0
  %v718 = vadd.f32 0.0, %v717
  %719 = vmatprep.mubr.bf16.mxu0 0
  %720 = vmatmul.mubr.bf16.gmra.mrb[0].mxu0 %v349
  %v721 = vpop.f32.mrb[0].mxu0
  %v722 = vadd.f32 0.0, %v721
  %v723 = vpop.f32.mrb[0].mxu0
  %v724 = vadd.f32 0.0, %v723
  %v725 = vpop.f32.mrb[0].mxu0
  %v726 = vadd.f32 0.0, %v725
  %v727 = vpop.f32.mrb[0].mxu0
  %v728 = vadd.f32 0.0, %v727
  %729 = vmatprep.mubr.bf16.mxu0 0
  %730 = vmatmul.mubr.bf16.gmra.mrb[0].mxu0 %v352
  %v731 = vpop.f32.mrb[0].mxu0
  %v732 = vadd.f32 0.0, %v731
  %v733 = vpop.f32.mrb[0].mxu0
  %v734 = vadd.f32 0.0, %v733
  %v735 = vpop.f32.mrb[0].mxu0
  %v736 = vadd.f32 0.0, %v735
  %v737 = vpop.f32.mrb[0].mxu0
  %v738 = vadd.f32 0.0, %v737
  %739 = vdwg.mxu0
  %v740 = vmul.f32 %v389, 0.125
  %v741 = vmul.f32 %v391, 0.125
  %v742 = vmul.f32 %v582, 0.125
  %v743 = vmul.f32 %v584, 0.125
  %v744 = vmul.f32 %v393, 0.125
  %v745 = vmul.f32 %v395, 0.125
  %v746 = vmul.f32 %v586, 0.125
  %v747 = vmul.f32 %v588, 0.125
  %v748 = vmul.f32 %v399, 0.125
  %v749 = vmul.f32 %v401, 0.125
  %v750 = vmul.f32 %v592, 0.125
  %v751 = vmul.f32 %v594, 0.125
  %v752 = vmul.f32 %v403, 0.125
  %v753 = vmul.f32 %v405, 0.125
  %v754 = vmul.f32 %v596, 0.125
  %v755 = vmul.f32 %v598, 0.125
  %v756 = vmul.f32 %v409, 0.125
  %v757 = vmul.f32 %v411, 0.125
  %v758 = vmul.f32 %v602, 0.125
  %v759 = vmul.f32 %v604, 0.125
  %v760 = vmul.f32 %v413, 0.125
  %v761 = vmul.f32 %v415, 0.125
  %v762 = vmul.f32 %v606, 0.125
  %v763 = vmul.f32 %v608, 0.125
  %v764 = vmul.f32 %v419, 0.125
  %v765 = vmul.f32 %v421, 0.125
  %v766 = vmul.f32 %v612, 0.125
  %v767 = vmul.f32 %v614, 0.125
  %v768 = vmul.f32 %v423, 0.125
  %v769 = vmul.f32 %v425, 0.125
  %v770 = vmul.f32 %v616, 0.125
  %v771 = vmul.f32 %v618, 0.125
  %v772 = vmul.f32 %v429, 0.125
  %v773 = vmul.f32 %v431, 0.125
  %v774 = vmul.f32 %v622, 0.125
  %v775 = vmul.f32 %v624, 0.125
  %v776 = vmul.f32 %v433, 0.125
  %v777 = vmul.f32 %v435, 0.125
  %v778 = vmul.f32 %v626, 0.125
  %v779 = vmul.f32 %v628, 0.125
  %v780 = vmul.f32 %v439, 0.125
  %v781 = vmul.f32 %v441, 0.125
  %v782 = vmul.f32 %v632, 0.125
  %v783 = vmul.f32 %v634, 0.125
  %v784 = vmul.f32 %v443, 0.125
  %v785 = vmul.f32 %v445, 0.125
  %v786 = vmul.f32 %v636, 0.125
  %v787 = vmul.f32 %v638, 0.125
  %v788 = vmul.f32 %v449, 0.125
  %v789 = vmul.f32 %v451, 0.125
  %v790 = vmul.f32 %v642, 0.125
  %v791 = vmul.f32 %v644, 0.125
  %v792 = vmul.f32 %v453, 0.125
  %v793 = vmul.f32 %v455, 0.125
  %v794 = vmul.f32 %v646, 0.125
  %v795 = vmul.f32 %v648, 0.125
  %v796 = vmul.f32 %v459, 0.125
  %v797 = vmul.f32 %v461, 0.125
  %v798 = vmul.f32 %v652, 0.125
  %v799 = vmul.f32 %v654, 0.125
  %v800 = vmul.f32 %v463, 0.125
  %v801 = vmul.f32 %v465, 0.125
  %v802 = vmul.f32 %v656, 0.125
  %v803 = vmul.f32 %v658, 0.125
  %v804 = vmul.f32 %v469, 0.125
  %v805 = vmul.f32 %v471, 0.125
  %v806 = vmul.f32 %v662, 0.125
  %v807 = vmul.f32 %v664, 0.125
  %v808 = vmul.f32 %v473, 0.125
  %v809 = vmul.f32 %v475, 0.125
  %v810 = vmul.f32 %v666, 0.125
  %v811 = vmul.f32 %v668, 0.125
  %v812 = vmul.f32 %v479, 0.125
  %v813 = vmul.f32 %v481, 0.125
  %v814 = vmul.f32 %v672, 0.125
  %v815 = vmul.f32 %v674, 0.125
  %v816 = vmul.f32 %v483, 0.125
  %v817 = vmul.f32 %v485, 0.125
  %v818 = vmul.f32 %v676, 0.125
  %v819 = vmul.f32 %v678, 0.125
  %v820 = vmul.f32 %v489, 0.125
  %v821 = vmul.f32 %v491, 0.125
  %v822 = vmul.f32 %v682, 0.125
  %v823 = vmul.f32 %v684, 0.125
  %v824 = vmul.f32 %v493, 0.125
  %v825 = vmul.f32 %v495, 0.125
  %v826 = vmul.f32 %v686, 0.125
  %v827 = vmul.f32 %v688, 0.125
  %v828 = vmul.f32 %v499, 0.125
  %v829 = vmul.f32 %v501, 0.125
  %v830 = vmul.f32 %v692, 0.125
  %v831 = vmul.f32 %v694, 0.125
  %v832 = vmul.f32 %v503, 0.125
  %v833 = vmul.f32 %v505, 0.125
  %v834 = vmul.f32 %v696, 0.125
  %v835 = vmul.f32 %v698, 0.125
  %v836 = vmul.f32 %v509, 0.125
  %v837 = vmul.f32 %v511, 0.125
  %v838 = vmul.f32 %v702, 0.125
  %v839 = vmul.f32 %v704, 0.125
  %v840 = vmul.f32 %v513, 0.125
  %v841 = vmul.f32 %v515, 0.125
  %v842 = vmul.f32 %v706, 0.125
  %v843 = vmul.f32 %v708, 0.125
  %v844 = vmul.f32 %v519, 0.125
  %v845 = vmul.f32 %v521, 0.125
  %v846 = vmul.f32 %v712, 0.125
  %v847 = vmul.f32 %v714, 0.125
  %v848 = vmul.f32 %v523, 0.125
  %v849 = vmul.f32 %v525, 0.125
  %v850 = vmul.f32 %v716, 0.125
  %v851 = vmul.f32 %v718, 0.125
  %v852 = vmul.f32 %v529, 0.125
  %v853 = vmul.f32 %v531, 0.125
  %v854 = vmul.f32 %v722, 0.125
  %v855 = vmul.f32 %v724, 0.125
  %v856 = vmul.f32 %v533, 0.125
  %v857 = vmul.f32 %v535, 0.125
  %v858 = vmul.f32 %v726, 0.125
  %v859 = vmul.f32 %v728, 0.125
  %v860 = vmul.f32 %v539, 0.125
  %v861 = vmul.f32 %v541, 0.125
  %v862 = vmul.f32 %v732, 0.125
  %v863 = vmul.f32 %v734, 0.125
  %v864 = vmul.f32 %v543, 0.125
  %v865 = vmul.f32 %v545, 0.125
  %v866 = vmul.f32 %v736, 0.125
  %v867 = vmul.f32 %v738, 0.125
  %v868 = vpack.c.bf16 %v744, %v740
  %v869 = vpack.c.bf16 %v745, %v741
  %v870 = vpack.c.bf16 %v746, %v742
  %v871 = vpack.c.bf16 %v747, %v743
  %v872 = vpack.c.bf16 %v752, %v748
  %v873 = vpack.c.bf16 %v753, %v749
  %v874 = vpack.c.bf16 %v754, %v750
  %v875 = vpack.c.bf16 %v755, %v751
  %v876 = vpack.c.bf16 %v760, %v756
  %v877 = vpack.c.bf16 %v761, %v757
  %v878 = vpack.c.bf16 %v762, %v758
  %v879 = vpack.c.bf16 %v763, %v759
  %v880 = vpack.c.bf16 %v768, %v764
  %v881 = vpack.c.bf16 %v769, %v765
  %v882 = vpack.c.bf16 %v770, %v766
  %v883 = vpack.c.bf16 %v771, %v767
  %v884 = vpack.c.bf16 %v776, %v772
  %v885 = vpack.c.bf16 %v777, %v773
  %v886 = vpack.c.bf16 %v778, %v774
  %v887 = vpack.c.bf16 %v779, %v775
  %v888 = vpack.c.bf16 %v784, %v780
  %v889 = vpack.c.bf16 %v785, %v781
  %v890 = vpack.c.bf16 %v786, %v782
  %v891 = vpack.c.bf16 %v787, %v783
  %v892 = vpack.c.bf16 %v792, %v788
  %v893 = vpack.c.bf16 %v793, %v789
  %v894 = vpack.c.bf16 %v794, %v790
  %v895 = vpack.c.bf16 %v795, %v791
  %v896 = vpack.c.bf16 %v800, %v796
  %v897 = vpack.c.bf16 %v801, %v797
  %v898 = vpack.c.bf16 %v802, %v798
  %v899 = vpack.c.bf16 %v803, %v799
  %v900 = vpack.c.bf16 %v808, %v804
  %v901 = vpack.c.bf16 %v809, %v805
  %v902 = vpack.c.bf16 %v810, %v806
  %v903 = vpack.c.bf16 %v811, %v807
  %v904 = vpack.c.bf16 %v816, %v812
  %v905 = vpack.c.bf16 %v817, %v813
  %v906 = vpack.c.bf16 %v818, %v814
  %v907 = vpack.c.bf16 %v819, %v815
  %v908 = vpack.c.bf16 %v824, %v820
  %v909 = vpack.c.bf16 %v825, %v821
  %v910 = vpack.c.bf16 %v826, %v822
  %v911 = vpack.c.bf16 %v827, %v823
  %v912 = vpack.c.bf16 %v832, %v828
  %v913 = vpack.c.bf16 %v833, %v829
  %v914 = vpack.c.bf16 %v834, %v830
  %v915 = vpack.c.bf16 %v835, %v831
  %v916 = vpack.c.bf16 %v840, %v836
  %v917 = vpack.c.bf16 %v841, %v837
  %v918 = vpack.c.bf16 %v842, %v838
  %v919 = vpack.c.bf16 %v843, %v839
  %v920 = vpack.c.bf16 %v848, %v844
  %v921 = vpack.c.bf16 %v849, %v845
  %v922 = vpack.c.bf16 %v850, %v846
  %v923 = vpack.c.bf16 %v851, %v847
  %v924 = vpack.c.bf16 %v856, %v852
  %v925 = vpack.c.bf16 %v857, %v853
  %v926 = vpack.c.bf16 %v858, %v854
  %v927 = vpack.c.bf16 %v859, %v855
  %v928 = vpack.c.bf16 %v864, %v860
  %v929 = vpack.c.bf16 %v865, %v861
  %v930 = vpack.c.bf16 %v866, %v862
  %v931 = vpack.c.bf16 %v867, %v863
  %932 = vst [vmem:[#allocation2] sm:$0xff] %v868
  %933 = vst [vmem:[#allocation2 + $0x8] sm:$0xff] %v869
  %934 = vst [vmem:[#allocation2 + $0x10] sm:$0xff] %v870
  %935 = vst [vmem:[#allocation2 + $0x18] sm:$0xff] %v871
  %936 = vst [vmem:[#allocation2 + $0x20] sm:$0xff] %v872
  %937 = vst [vmem:[#allocation2 + $0x28] sm:$0xff] %v873
  %938 = vst [vmem:[#allocation2 + $0x30] sm:$0xff] %v874
  %939 = vst [vmem:[#allocation2 + $0x38] sm:$0xff] %v875
  %940 = vst [vmem:[#allocation2 + $0x40] sm:$0xff] %v876
  %941 = vst [vmem:[#allocation2 + $0x48] sm:$0xff] %v877
  %942 = vst [vmem:[#allocation2 + $0x50] sm:$0xff] %v878
  %943 = vst [vmem:[#allocation2 + $0x58] sm:$0xff] %v879
  %944 = vst [vmem:[#allocation2 + $0x60] sm:$0xff] %v880
  %945 = vst [vmem:[#allocation2 + $0x68] sm:$0xff] %v881
  %946 = vst [vmem:[#allocation2 + $0x70] sm:$0xff] %v882
  %947 = vst [vmem:[#allocation2 + $0x78] sm:$0xff] %v883
  %948 = vst [vmem:[#allocation2 + $0x80] sm:$0xff] %v884
  %949 = vst [vmem:[#allocation2 + $0x88] sm:$0xff] %v885
  %950 = vst [vmem:[#allocation2 + $0x90] sm:$0xff] %v886
  %951 = vst [vmem:[#allocation2 + $0x98] sm:$0xff] %v887
  %952 = vst [vmem:[#allocation2 + $0xa0] sm:$0xff] %v888
  %953 = vst [vmem:[#allocation2 + $0xa8] sm:$0xff] %v889
  %954 = vst [vmem:[#allocation2 + $0xb0] sm:$0xff] %v890
  %955 = vst [vmem:[#allocation2 + $0xb8] sm:$0xff] %v891
  %956 = vst [vmem:[#allocation2 + $0xc0] sm:$0xff] %v892
  %957 = vst [vmem:[#allocation2 + $0xc8] sm:$0xff] %v893
  %958 = vst [vmem:[#allocation2 + $0xd0] sm:$0xff] %v894
  %959 = vst [vmem:[#allocation2 + $0xd8] sm:$0xff] %v895
  %960 = vst [vmem:[#allocation2 + $0xe0] sm:$0xff] %v896
  %961 = vst [vmem:[#allocation2 + $0xe8] sm:$0xff] %v897
  %962 = vst [vmem:[#allocation2 + $0xf0] sm:$0xff] %v898
  %963 = vst [vmem:[#allocation2 + $0xf8] sm:$0xff] %v899
  %964 = vst [vmem:[#allocation2 + $0x100] sm:$0xff] %v900
  %965 = vst [vmem:[#allocation2 + $0x108] sm:$0xff] %v901
  %966 = vst [vmem:[#allocation2 + $0x110] sm:$0xff] %v902
  %967 = vst [vmem:[#allocation2 + $0x118] sm:$0xff] %v903
  %968 = vst [vmem:[#allocation2 + $0x120] sm:$0xff] %v904
  %969 = vst [vmem:[#allocation2 + $0x128] sm:$0xff] %v905
  %970 = vst [vmem:[#allocation2 + $0x130] sm:$0xff] %v906
  %971 = vst [vmem:[#allocation2 + $0x138] sm:$0xff] %v907
  %972 = vst [vmem:[#allocation2 + $0x140] sm:$0xff] %v908
  %973 = vst [vmem:[#allocation2 + $0x148] sm:$0xff] %v909
  %974 = vst [vmem:[#allocation2 + $0x150] sm:$0xff] %v910
  %975 = vst [vmem:[#allocation2 + $0x158] sm:$0xff] %v911
  %976 = vst [vmem:[#allocation2 + $0x160] sm:$0xff] %v912
  %977 = vst [vmem:[#allocation2 + $0x168] sm:$0xff] %v913
  %978 = vst [vmem:[#allocation2 + $0x170] sm:$0xff] %v914
  %979 = vst [vmem:[#allocation2 + $0x178] sm:$0xff] %v915
  %980 = vst [vmem:[#allocation2 + $0x180] sm:$0xff] %v916
  %981 = vst [vmem:[#allocation2 + $0x188] sm:$0xff] %v917
  %982 = vst [vmem:[#allocation2 + $0x190] sm:$0xff] %v918
  %983 = vst [vmem:[#allocation2 + $0x198] sm:$0xff] %v919
  %984 = vst [vmem:[#allocation2 + $0x1a0] sm:$0xff] %v920
  %985 = vst [vmem:[#allocation2 + $0x1a8] sm:$0xff] %v921
  %986 = vst [vmem:[#allocation2 + $0x1b0] sm:$0xff] %v922
  %987 = vst [vmem:[#allocation2 + $0x1b8] sm:$0xff] %v923
  %988 = vst [vmem:[#allocation2 + $0x1c0] sm:$0xff] %v924
  %989 = vst [vmem:[#allocation2 + $0x1c8] sm:$0xff] %v925
  %990 = vst [vmem:[#allocation2 + $0x1d0] sm:$0xff] %v926
  %991 = vst [vmem:[#allocation2 + $0x1d8] sm:$0xff] %v927
  %992 = vst [vmem:[#allocation2 + $0x1e0] sm:$0xff] %v928
  %993 = vst [vmem:[#allocation2 + $0x1e8] sm:$0xff] %v929
  %994 = vst [vmem:[#allocation2 + $0x1f0] sm:$0xff] %v930
  %995 = vst [vmem:[#allocation2 + $0x1f8] sm:$0xff] %v931
  %v996 = vld [vmem:[%s5] sm:$0xff]
  %v997 = vld [vmem:[%s5 + $0x8] sm:$0xff]
  %v998 = vld [vmem:[%s5 + $0x10] sm:$0xff]
  %v999 = vld [vmem:[%s5 + $0x18] sm:$0xff]
  %v1000 = vld [vmem:[%s5 + $0x20] sm:$0xff]
  %v1001 = vld [vmem:[%s5 + $0x28] sm:$0xff]
  %v1002 = vld [vmem:[%s5 + $0x30] sm:$0xff]
  %v1003 = vld [vmem:[%s5 + $0x38] sm:$0xff]
  %v1004 = vld [vmem:[%s5 + $0x40] sm:$0xff]
  %v1005 = vld [vmem:[%s5 + $0x48] sm:$0xff]
  %v1006 = vld [vmem:[%s5 + $0x50] sm:$0xff]
  %v1007 = vld [vmem:[%s5 + $0x58] sm:$0xff]
  %v1008 = vld [vmem:[%s5 + $0x60] sm:$0xff]
  %v1009 = vld [vmem:[%s5 + $0x68] sm:$0xff]
  %v1010 = vld [vmem:[%s5 + $0x70] sm:$0xff]
  %v1011 = vld [vmem:[%s5 + $0x78] sm:$0xff]
  %v1044 = vunpack.c.l.b16 %v65
  %v1045 = vunpack.c.l.b16 %v66
  %v1046 = vunpack.c.l.b16 %v67
  %v1047 = vunpack.c.l.b16 %v68
  %v1048 = vunpack.c.l.b16 %v69
  %v1049 = vunpack.c.l.b16 %v70
  %v1050 = vunpack.c.l.b16 %v71
  %v1051 = vunpack.c.l.b16 %v72
  %v1052 = vunpack.c.l.b16 %v73
  %v1053 = vunpack.c.l.b16 %v74
  %v1054 = vunpack.c.l.b16 %v75
  %v1055 = vunpack.c.l.b16 %v76
  %v1056 = vunpack.c.l.b16 %v77
  %v1057 = vunpack.c.l.b16 %v78
  %v1058 = vunpack.c.l.b16 %v79
  %v1059 = vunpack.c.l.b16 %v80
  %v1060 = vunpack.c.l.b16 %v81
  %v1061 = vunpack.c.l.b16 %v82
  %v1062 = vunpack.c.l.b16 %v83
  %v1063 = vunpack.c.l.b16 %v84
  %v1064 = vunpack.c.l.b16 %v85
  %v1065 = vunpack.c.l.b16 %v86
  %v1066 = vunpack.c.l.b16 %v87
  %v1067 = vunpack.c.l.b16 %v88
  %v1068 = vunpack.c.l.b16 %v89
  %v1069 = vunpack.c.l.b16 %v90
  %v1070 = vunpack.c.l.b16 %v91
  %v1071 = vunpack.c.l.b16 %v92
  %v1072 = vunpack.c.l.b16 %v93
  %v1073 = vunpack.c.l.b16 %v94
  %v1074 = vunpack.c.l.b16 %v95
  %v1075 = vunpack.c.l.b16 %v96
  %v1076 = vpack.c.b16 %v1045, %v1044
  %v1077 = vpack.c.b16 %v1047, %v1046
  %v1078 = vpack.c.b16 %v1049, %v1048
  %v1079 = vpack.c.b16 %v1051, %v1050
  %v1080 = vpack.c.b16 %v1053, %v1052
  %v1081 = vpack.c.b16 %v1055, %v1054
  %v1082 = vpack.c.b16 %v1057, %v1056
  %v1083 = vpack.c.b16 %v1059, %v1058
  %v1084 = vpack.c.b16 %v1061, %v1060
  %v1085 = vpack.c.b16 %v1063, %v1062
  %v1086 = vpack.c.b16 %v1065, %v1064
  %v1087 = vpack.c.b16 %v1067, %v1066
  %v1088 = vpack.c.b16 %v1069, %v1068
  %v1089 = vpack.c.b16 %v1071, %v1070
  %v1090 = vpack.c.b16 %v1073, %v1072
  %v1091 = vpack.c.b16 %v1075, %v1074
  %v1108 = vunpack.c.l.b16 %v996
  %v1109 = vunpack.c.h.b16 %v996
  %v1110 = vunpack.c.l.b16 %v997
  %v1111 = vunpack.c.h.b16 %v997
  %v1112 = vunpack.c.l.b16 %v998
  %v1113 = vunpack.c.h.b16 %v998
  %v1114 = vunpack.c.l.b16 %v999
  %v1115 = vunpack.c.h.b16 %v999
  %v1116 = vunpack.c.l.b16 %v1000
  %v1117 = vunpack.c.h.b16 %v1000
  %v1118 = vunpack.c.l.b16 %v1001
  %v1119 = vunpack.c.h.b16 %v1001
  %v1120 = vunpack.c.l.b16 %v1002
  %v1121 = vunpack.c.h.b16 %v1002
  %v1122 = vunpack.c.l.b16 %v1003
  %v1123 = vunpack.c.h.b16 %v1003
  %v1124 = vunpack.c.l.b16 %v1004
  %v1125 = vunpack.c.h.b16 %v1004
  %v1126 = vunpack.c.l.b16 %v1005
  %v1127 = vunpack.c.h.b16 %v1005
  %v1128 = vunpack.c.l.b16 %v1006
  %v1129 = vunpack.c.h.b16 %v1006
  %v1130 = vunpack.c.l.b16 %v1007
  %v1131 = vunpack.c.h.b16 %v1007
  %v1132 = vunpack.c.l.b16 %v1008
  %v1133 = vunpack.c.h.b16 %v1008
  %v1134 = vunpack.c.l.b16 %v1009
  %v1135 = vunpack.c.h.b16 %v1009
  %v1136 = vunpack.c.l.b16 %v1010
  %v1137 = vunpack.c.h.b16 %v1010
  %v1138 = vunpack.c.l.b16 %v1011
  %v1139 = vunpack.c.h.b16 %v1011
  %v1140 = vpack.c.b16 %v1112, %v1108
  %v1141 = vpack.c.b16 %v1113, %v1109
  %v1142 = vpack.c.b16 %v1114, %v1110
  %v1143 = vpack.c.b16 %v1115, %v1111
  %v1144 = vpack.c.b16 %v1120, %v1116
  %v1145 = vpack.c.b16 %v1121, %v1117
  %v1146 = vpack.c.b16 %v1122, %v1118
  %v1147 = vpack.c.b16 %v1123, %v1119
  %v1148 = vpack.c.b16 %v1128, %v1124
  %v1149 = vpack.c.b16 %v1129, %v1125
  %v1150 = vpack.c.b16 %v1130, %v1126
  %v1151 = vpack.c.b16 %v1131, %v1127
  %v1152 = vpack.c.b16 %v1136, %v1132
  %v1153 = vpack.c.b16 %v1137, %v1133
  %v1154 = vpack.c.b16 %v1138, %v1134
  %v1155 = vpack.c.b16 %v1139, %v1135
  %v1173 = vsel %vm305, %v1076, 0
  %v1176 = vsel %vm305, %v1077, 0
  %v1179 = vsel %vm305, %v1078, 0
  %v1182 = vsel %vm305, %v1079, 0
  %v1185 = vsel %vm305, %v1080, 0
  %v1188 = vsel %vm305, %v1081, 0
  %v1191 = vsel %vm305, %v1082, 0
  %v1194 = vsel %vm305, %v1083, 0
  %v1197 = vsel %vm305, %v1084, 0
  %v1200 = vsel %vm305, %v1085, 0
  %v1203 = vsel %vm305, %v1086, 0
  %v1206 = vsel %vm305, %v1087, 0
  %v1209 = vsel %vm305, %v1088, 0
  %v1212 = vsel %vm305, %v1089, 0
  %v1215 = vsel %vm305, %v1090, 0
  %v1218 = vsel %vm305, %v1091, 0
  %1220 = vmatprep.subr.bf16.mxu0 %v1141
  %1221 = vmatpush1.bf16.msra.mxu0 %v1140
  %1222 = vmatprep.subr.bf16.mxu0 %v1145
  %1223 = vmatpush1.bf16.msra.mxu0 %v1144
  %1224 = vmatprep.subr.bf16.mxu0 %v1149
  %1225 = vmatpush1.bf16.msra.mxu0 %v1148
  %1226 = vmatprep.subr.bf16.mxu0 %v1153
  %1227 = vmatpush1.bf16.msra.mxu0 %v1152
  %1228 = vmatprep.subr.bf16.mxu0 0
  %1229 = vmatpush1.bf16.msra.mxu0 0
  %1230 = vmatprep.subr.bf16.mxu0 0
  %1231 = vmatpush1.bf16.msra.mxu0 0
  %1232 = vmatprep.subr.bf16.mxu0 0
  %1233 = vmatpush1.bf16.msra.mxu0 0
  %1234 = vmatprep.subr.bf16.mxu0 0
  %1235 = vmatpush1.bf16.msra.mxu0 0
  %1236 = vmatprep.subr.bf16.mxu0 0
  %1237 = vmatpush1.bf16.msra.mxu0 0
  %1238 = vmatprep.subr.bf16.mxu0 0
  %1239 = vmatpush1.bf16.msra.mxu0 0
  %1240 = vmatprep.subr.bf16.mxu0 0
  %1241 = vmatpush1.bf16.msra.mxu0 0
  %1242 = vmatprep.subr.bf16.mxu0 0
  %1243 = vmatpush1.bf16.msra.mxu0 0
  %1244 = vmatprep.subr.bf16.mxu0 0
  %1245 = vmatpush1.bf16.msra.mxu0 0
  %1246 = vmatprep.subr.bf16.mxu0 0
  %1247 = vmatpush1.bf16.msra.mxu0 0
  %1248 = vmatprep.subr.bf16.mxu0 0
  %1249 = vmatpush1.bf16.msra.mxu0 0
  %1250 = vmatprep.subr.bf16.mxu0 0
  %1251 = vmatpush1.bf16.msra.mxu0 0
  %1252 = vmatprep.mubr.bf16.mxu0 0
  %1253 = vmatmul.mubr.bf16.gmra.mrb[0].mxu0 %v1173
  %v1254 = vpop.f32.mrb[0].mxu0
  %v1255 = vadd.f32 0.0, %v1254
  %v1256 = vpop.f32.mrb[0].mxu0
  %v1257 = vadd.f32 0.0, %v1256
  %v1258 = vpop.f32.mrb[0].mxu0
  %v1259 = vadd.f32 0.0, %v1258
  %v1260 = vpop.f32.mrb[0].mxu0
  %v1261 = vadd.f32 0.0, %v1260
  %1262 = vmatprep.mubr.bf16.mxu0 0
  %1263 = vmatmul.mubr.bf16.gmra.mrb[0].mxu0 %v1176
  %v1264 = vpop.f32.mrb[0].mxu0
  %v1265 = vadd.f32 0.0, %v1264
  %v1266 = vpop.f32.mrb[0].mxu0
  %v1267 = vadd.f32 0.0, %v1266
  %v1268 = vpop.f32.mrb[0].mxu0
  %v1269 = vadd.f32 0.0, %v1268
  %v1270 = vpop.f32.mrb[0].mxu0
  %v1271 = vadd.f32 0.0, %v1270
  %1272 = vmatprep.mubr.bf16.mxu0 0
  %1273 = vmatmul.mubr.bf16.gmra.mrb[0].mxu0 %v1179
  %v1274 = vpop.f32.mrb[0].mxu0
  %v1275 = vadd.f32 0.0, %v1274
  %v1276 = vpop.f32.mrb[0].mxu0
  %v1277 = vadd.f32 0.0, %v1276
  %v1278 = vpop.f32.mrb[0].mxu0
  %v1279 = vadd.f32 0.0, %v1278
  %v1280 = vpop.f32.mrb[0].mxu0
  %v1281 = vadd.f32 0.0, %v1280
  %1282 = vmatprep.mubr.bf16.mxu0 0
  %1283 = vmatmul.mubr.bf16.gmra.mrb[0].mxu0 %v1182
  %v1284 = vpop.f32.mrb[0].mxu0
  %v1285 = vadd.f32 0.0, %v1284
  %v1286 = vpop.f32.mrb[0].mxu0
  %v1287 = vadd.f32 0.0, %v1286
  %v1288 = vpop.f32.mrb[0].mxu0
  %v1289 = vadd.f32 0.0, %v1288
  %v1290 = vpop.f32.mrb[0].mxu0
  %v1291 = vadd.f32 0.0, %v1290
  %1292 = vmatprep.mubr.bf16.mxu0 0
  %1293 = vmatmul.mubr.bf16.gmra.mrb[0].mxu0 %v1185
  %v1294 = vpop.f32.mrb[0].mxu0
  %v1295 = vadd.f32 0.0, %v1294
  %v1296 = vpop.f32.mrb[0].mxu0
  %v1297 = vadd.f32 0.0, %v1296
  %v1298 = vpop.f32.mrb[0].mxu0
  %v1299 = vadd.f32 0.0, %v1298
  %v1300 = vpop.f32.mrb[0].mxu0
  %v1301 = vadd.f32 0.0, %v1300
  %1302 = vmatprep.mubr.bf16.mxu0 0
  %1303 = vmatmul.mubr.bf16.gmra.mrb[0].mxu0 %v1188
  %v1304 = vpop.f32.mrb[0].mxu0
  %v1305 = vadd.f32 0.0, %v1304
  %v1306 = vpop.f32.mrb[0].mxu0
  %v1307 = vadd.f32 0.0, %v1306
  %v1308 = vpop.f32.mrb[0].mxu0
  %v1309 = vadd.f32 0.0, %v1308
  %v1310 = vpop.f32.mrb[0].mxu0
  %v1311 = vadd.f32 0.0, %v1310
  %1312 = vmatprep.mubr.bf16.mxu0 0
  %1313 = vmatmul.mubr.bf16.gmra.mrb[0].mxu0 %v1191
  %v1314 = vpop.f32.mrb[0].mxu0
  %v1315 = vadd.f32 0.0, %v1314
  %v1316 = vpop.f32.mrb[0].mxu0
  %v1317 = vadd.f32 0.0, %v1316
  %v1318 = vpop.f32.mrb[0].mxu0
  %v1319 = vadd.f32 0.0, %v1318
  %v1320 = vpop.f32.mrb[0].mxu0
  %v1321 = vadd.f32 0.0, %v1320
  %1322 = vmatprep.mubr.bf16.mxu0 0
  %1323 = vmatmul.mubr.bf16.gmra.mrb[0].mxu0 %v1194
  %v1324 = vpop.f32.mrb[0].mxu0
  %v1325 = vadd.f32 0.0, %v1324
  %v1326 = vpop.f32.mrb[0].mxu0
  %v1327 = vadd.f32 0.0, %v1326
  %v1328 = vpop.f32.mrb[0].mxu0
  %v1329 = vadd.f32 0.0, %v1328
  %v1330 = vpop.f32.mrb[0].mxu0
  %v1331 = vadd.f32 0.0, %v1330
  %1332 = vmatprep.mubr.bf16.mxu0 0
  %1333 = vmatmul.mubr.bf16.gmra.mrb[0].mxu0 %v1197
  %v1334 = vpop.f32.mrb[0].mxu0
  %v1335 = vadd.f32 0.0, %v1334
  %v1336 = vpop.f32.mrb[0].mxu0
  %v1337 = vadd.f32 0.0, %v1336
  %v1338 = vpop.f32.mrb[0].mxu0
  %v1339 = vadd.f32 0.0, %v1338
  %v1340 = vpop.f32.mrb[0].mxu0
  %v1341 = vadd.f32 0.0, %v1340
  %1342 = vmatprep.mubr.bf16.mxu0 0
  %1343 = vmatmul.mubr.bf16.gmra.mrb[0].mxu0 %v1200
  %v1344 = vpop.f32.mrb[0].mxu0
  %v1345 = vadd.f32 0.0, %v1344
  %v1346 = vpop.f32.mrb[0].mxu0
  %v1347 = vadd.f32 0.0, %v1346
  %v1348 = vpop.f32.mrb[0].mxu0
  %v1349 = vadd.f32 0.0, %v1348
  %v1350 = vpop.f32.mrb[0].mxu0
  %v1351 = vadd.f32 0.0, %v1350
  %1352 = vmatprep.mubr.bf16.mxu0 0
  %1353 = vmatmul.mubr.bf16.gmra.mrb[0].mxu0 %v1203
  %v1354 = vpop.f32.mrb[0].mxu0
  %v1355 = vadd.f32 0.0, %v1354
  %v1356 = vpop.f32.mrb[0].mxu0
  %v1357 = vadd.f32 0.0, %v1356
  %v1358 = vpop.f32.mrb[0].mxu0
  %v1359 = vadd.f32 0.0, %v1358
  %v1360 = vpop.f32.mrb[0].mxu0
  %v1361 = vadd.f32 0.0, %v1360
  %1362 = vmatprep.mubr.bf16.mxu0 0
  %1363 = vmatmul.mubr.bf16.gmra.mrb[0].mxu0 %v1206
  %v1364 = vpop.f32.mrb[0].mxu0
  %v1365 = vadd.f32 0.0, %v1364
  %v1366 = vpop.f32.mrb[0].mxu0
  %v1367 = vadd.f32 0.0, %v1366
  %v1368 = vpop.f32.mrb[0].mxu0
  %v1369 = vadd.f32 0.0, %v1368
  %v1370 = vpop.f32.mrb[0].mxu0
  %v1371 = vadd.f32 0.0, %v1370
  %1372 = vmatprep.mubr.bf16.mxu0 0
  %1373 = vmatmul.mubr.bf16.gmra.mrb[0].mxu0 %v1209
  %v1374 = vpop.f32.mrb[0].mxu0
  %v1375 = vadd.f32 0.0, %v1374
  %v1376 = vpop.f32.mrb[0].mxu0
  %v1377 = vadd.f32 0.0, %v1376
  %v1378 = vpop.f32.mrb[0].mxu0
  %v1379 = vadd.f32 0.0, %v1378
  %v1380 = vpop.f32.mrb[0].mxu0
  %v1381 = vadd.f32 0.0, %v1380
  %1382 = vmatprep.mubr.bf16.mxu0 0
  %1383 = vmatmul.mubr.bf16.gmra.mrb[0].mxu0 %v1212
  %v1384 = vpop.f32.mrb[0].mxu0
  %v1385 = vadd.f32 0.0, %v1384
  %v1386 = vpop.f32.mrb[0].mxu0
  %v1387 = vadd.f32 0.0, %v1386
  %v1388 = vpop.f32.mrb[0].mxu0
  %v1389 = vadd.f32 0.0, %v1388
  %v1390 = vpop.f32.mrb[0].mxu0
  %v1391 = vadd.f32 0.0, %v1390
  %1392 = vmatprep.mubr.bf16.mxu0 0
  %1393 = vmatmul.mubr.bf16.gmra.mrb[0].mxu0 %v1215
  %v1394 = vpop.f32.mrb[0].mxu0
  %v1395 = vadd.f32 0.0, %v1394
  %v1396 = vpop.f32.mrb[0].mxu0
  %v1397 = vadd.f32 0.0, %v1396
  %v1398 = vpop.f32.mrb[0].mxu0
  %v1399 = vadd.f32 0.0, %v1398
  %v1400 = vpop.f32.mrb[0].mxu0
  %v1401 = vadd.f32 0.0, %v1400
  %1402 = vmatprep.mubr.bf16.mxu0 0
  %1403 = vmatmul.mubr.bf16.gmra.mrb[0].mxu0 %v1218
  %v1404 = vpop.f32.mrb[0].mxu0
  %v1405 = vadd.f32 0.0, %v1404
  %v1406 = vpop.f32.mrb[0].mxu0
  %v1407 = vadd.f32 0.0, %v1406
  %v1408 = vpop.f32.mrb[0].mxu0
  %v1409 = vadd.f32 0.0, %v1408
  %v1410 = vpop.f32.mrb[0].mxu0
  %v1411 = vadd.f32 0.0, %v1410
  %1412 = vdwg.mxu0
  %1413 = vmatprep.subr.bf16.mxu0 %v1143
  %1414 = vmatpush1.bf16.msra.mxu0 %v1142
  %1415 = vmatprep.subr.bf16.mxu0 %v1147
  %1416 = vmatpush1.bf16.msra.mxu0 %v1146
  %1417 = vmatprep.subr.bf16.mxu0 %v1151
  %1418 = vmatpush1.bf16.msra.mxu0 %v1150
  %1419 = vmatprep.subr.bf16.mxu0 %v1155
  %1420 = vmatpush1.bf16.msra.mxu0 %v1154
  %1421 = vmatprep.subr.bf16.mxu0 0
  %1422 = vmatpush1.bf16.msra.mxu0 0
  %1423 = vmatprep.subr.bf16.mxu0 0
  %1424 = vmatpush1.bf16.msra.mxu0 0
  %1425 = vmatprep.subr.bf16.mxu0 0
  %1426 = vmatpush1.bf16.msra.mxu0 0
  %1427 = vmatprep.subr.bf16.mxu0 0
  %1428 = vmatpush1.bf16.msra.mxu0 0
  %1429 = vmatprep.subr.bf16.mxu0 0
  %1430 = vmatpush1.bf16.msra.mxu0 0
  %1431 = vmatprep.subr.bf16.mxu0 0
  %1432 = vmatpush1.bf16.msra.mxu0 0
  %1433 = vmatprep.subr.bf16.mxu0 0
  %1434 = vmatpush1.bf16.msra.mxu0 0
  %1435 = vmatprep.subr.bf16.mxu0 0
  %1436 = vmatpush1.bf16.msra.mxu0 0
  %1437 = vmatprep.subr.bf16.mxu0 0
  %1438 = vmatpush1.bf16.msra.mxu0 0
  %1439 = vmatprep.subr.bf16.mxu0 0
  %1440 = vmatpush1.bf16.msra.mxu0 0
  %1441 = vmatprep.subr.bf16.mxu0 0
  %1442 = vmatpush1.bf16.msra.mxu0 0
  %1443 = vmatprep.subr.bf16.mxu0 0
  %1444 = vmatpush1.bf16.msra.mxu0 0
  %1445 = vmatprep.mubr.bf16.mxu0 0
  %1446 = vmatmul.mubr.bf16.gmra.mrb[0].mxu0 %v1173
  %v1447 = vpop.f32.mrb[0].mxu0
  %v1448 = vadd.f32 0.0, %v1447
  %v1449 = vpop.f32.mrb[0].mxu0
  %v1450 = vadd.f32 0.0, %v1449
  %v1451 = vpop.f32.mrb[0].mxu0
  %v1452 = vadd.f32 0.0, %v1451
  %v1453 = vpop.f32.mrb[0].mxu0
  %v1454 = vadd.f32 0.0, %v1453
  %1455 = vmatprep.mubr.bf16.mxu0 0
  %1456 = vmatmul.mubr.bf16.gmra.mrb[0].mxu0 %v1176
  %v1457 = vpop.f32.mrb[0].mxu0
  %v1458 = vadd.f32 0.0, %v1457
  %v1459 = vpop.f32.mrb[0].mxu0
  %v1460 = vadd.f32 0.0, %v1459
  %v1461 = vpop.f32.mrb[0].mxu0
  %v1462 = vadd.f32 0.0, %v1461
  %v1463 = vpop.f32.mrb[0].mxu0
  %v1464 = vadd.f32 0.0, %v1463
  %1465 = vmatprep.mubr.bf16.mxu0 0
  %1466 = vmatmul.mubr.bf16.gmra.mrb[0].mxu0 %v1179
  %v1467 = vpop.f32.mrb[0].mxu0
  %v1468 = vadd.f32 0.0, %v1467
  %v1469 = vpop.f32.mrb[0].mxu0
  %v1470 = vadd.f32 0.0, %v1469
  %v1471 = vpop.f32.mrb[0].mxu0
  %v1472 = vadd.f32 0.0, %v1471
  %v1473 = vpop.f32.mrb[0].mxu0
  %v1474 = vadd.f32 0.0, %v1473
  %1475 = vmatprep.mubr.bf16.mxu0 0
  %1476 = vmatmul.mubr.bf16.gmra.mrb[0].mxu0 %v1182
  %v1477 = vpop.f32.mrb[0].mxu0
  %v1478 = vadd.f32 0.0, %v1477
  %v1479 = vpop.f32.mrb[0].mxu0
  %v1480 = vadd.f32 0.0, %v1479
  %v1481 = vpop.f32.mrb[0].mxu0
  %v1482 = vadd.f32 0.0, %v1481
  %v1483 = vpop.f32.mrb[0].mxu0
  %v1484 = vadd.f32 0.0, %v1483
  %1485 = vmatprep.mubr.bf16.mxu0 0
  %1486 = vmatmul.mubr.bf16.gmra.mrb[0].mxu0 %v1185
  %v1487 = vpop.f32.mrb[0].mxu0
  %v1488 = vadd.f32 0.0, %v1487
  %v1489 = vpop.f32.mrb[0].mxu0
  %v1490 = vadd.f32 0.0, %v1489
  %v1491 = vpop.f32.mrb[0].mxu0
  %v1492 = vadd.f32 0.0, %v1491
  %v1493 = vpop.f32.mrb[0].mxu0
  %v1494 = vadd.f32 0.0, %v1493
  %1495 = vmatprep.mubr.bf16.mxu0 0
  %1496 = vmatmul.mubr.bf16.gmra.mrb[0].mxu0 %v1188
  %v1497 = vpop.f32.mrb[0].mxu0
  %v1498 = vadd.f32 0.0, %v1497
  %v1499 = vpop.f32.mrb[0].mxu0
  %v1500 = vadd.f32 0.0, %v1499
  %v1501 = vpop.f32.mrb[0].mxu0
  %v1502 = vadd.f32 0.0, %v1501
  %v1503 = vpop.f32.mrb[0].mxu0
  %v1504 = vadd.f32 0.0, %v1503
  %1505 = vmatprep.mubr.bf16.mxu0 0
  %1506 = vmatmul.mubr.bf16.gmra.mrb[0].mxu0 %v1191
  %v1507 = vpop.f32.mrb[0].mxu0
  %v1508 = vadd.f32 0.0, %v1507
  %v1509 = vpop.f32.mrb[0].mxu0
  %v1510 = vadd.f32 0.0, %v1509
  %v1511 = vpop.f32.mrb[0].mxu0
  %v1512 = vadd.f32 0.0, %v1511
  %v1513 = vpop.f32.mrb[0].mxu0
  %v1514 = vadd.f32 0.0, %v1513
  %1515 = vmatprep.mubr.bf16.mxu0 0
  %1516 = vmatmul.mubr.bf16.gmra.mrb[0].mxu0 %v1194
  %v1517 = vpop.f32.mrb[0].mxu0
  %v1518 = vadd.f32 0.0, %v1517
  %v1519 = vpop.f32.mrb[0].mxu0
  %v1520 = vadd.f32 0.0, %v1519
  %v1521 = vpop.f32.mrb[0].mxu0
  %v1522 = vadd.f32 0.0, %v1521
  %v1523 = vpop.f32.mrb[0].mxu0
  %v1524 = vadd.f32 0.0, %v1523
  %1525 = vmatprep.mubr.bf16.mxu0 0
  %1526 = vmatmul.mubr.bf16.gmra.mrb[0].mxu0 %v1197
  %v1527 = vpop.f32.mrb[0].mxu0
  %v1528 = vadd.f32 0.0, %v1527
  %v1529 = vpop.f32.mrb[0].mxu0
  %v1530 = vadd.f32 0.0, %v1529
  %v1531 = vpop.f32.mrb[0].mxu0
  %v1532 = vadd.f32 0.0, %v1531
  %v1533 = vpop.f32.mrb[0].mxu0
  %v1534 = vadd.f32 0.0, %v1533
  %1535 = vmatprep.mubr.bf16.mxu0 0
  %1536 = vmatmul.mubr.bf16.gmra.mrb[0].mxu0 %v1200
  %v1537 = vpop.f32.mrb[0].mxu0
  %v1538 = vadd.f32 0.0, %v1537
  %v1539 = vpop.f32.mrb[0].mxu0
  %v1540 = vadd.f32 0.0, %v1539
  %v1541 = vpop.f32.mrb[0].mxu0
  %v1542 = vadd.f32 0.0, %v1541
  %v1543 = vpop.f32.mrb[0].mxu0
  %v1544 = vadd.f32 0.0, %v1543
  %1545 = vmatprep.mubr.bf16.mxu0 0
  %1546 = vmatmul.mubr.bf16.gmra.mrb[0].mxu0 %v1203
  %v1547 = vpop.f32.mrb[0].mxu0
  %v1548 = vadd.f32 0.0, %v1547
  %v1549 = vpop.f32.mrb[0].mxu0
  %v1550 = vadd.f32 0.0, %v1549
  %v1551 = vpop.f32.mrb[0].mxu0
  %v1552 = vadd.f32 0.0, %v1551
  %v1553 = vpop.f32.mrb[0].mxu0
  %v1554 = vadd.f32 0.0, %v1553
  %1555 = vmatprep.mubr.bf16.mxu0 0
  %1556 = vmatmul.mubr.bf16.gmra.mrb[0].mxu0 %v1206
  %v1557 = vpop.f32.mrb[0].mxu0
  %v1558 = vadd.f32 0.0, %v1557
  %v1559 = vpop.f32.mrb[0].mxu0
  %v1560 = vadd.f32 0.0, %v1559
  %v1561 = vpop.f32.mrb[0].mxu0
  %v1562 = vadd.f32 0.0, %v1561
  %v1563 = vpop.f32.mrb[0].mxu0
  %v1564 = vadd.f32 0.0, %v1563
  %1565 = vmatprep.mubr.bf16.mxu0 0
  %1566 = vmatmul.mubr.bf16.gmra.mrb[0].mxu0 %v1209
  %v1567 = vpop.f32.mrb[0].mxu0
  %v1568 = vadd.f32 0.0, %v1567
  %v1569 = vpop.f32.mrb[0].mxu0
  %v1570 = vadd.f32 0.0, %v1569
  %v1571 = vpop.f32.mrb[0].mxu0
  %v1572 = vadd.f32 0.0, %v1571
  %v1573 = vpop.f32.mrb[0].mxu0
  %v1574 = vadd.f32 0.0, %v1573
  %1575 = vmatprep.mubr.bf16.mxu0 0
  %1576 = vmatmul.mubr.bf16.gmra.mrb[0].mxu0 %v1212
  %v1577 = vpop.f32.mrb[0].mxu0
  %v1578 = vadd.f32 0.0, %v1577
  %v1579 = vpop.f32.mrb[0].mxu0
  %v1580 = vadd.f32 0.0, %v1579
  %v1581 = vpop.f32.mrb[0].mxu0
  %v1582 = vadd.f32 0.0, %v1581
  %v1583 = vpop.f32.mrb[0].mxu0
  %v1584 = vadd.f32 0.0, %v1583
  %1585 = vmatprep.mubr.bf16.mxu0 0
  %1586 = vmatmul.mubr.bf16.gmra.mrb[0].mxu0 %v1215
  %v1587 = vpop.f32.mrb[0].mxu0
  %v1588 = vadd.f32 0.0, %v1587
  %v1589 = vpop.f32.mrb[0].mxu0
  %v1590 = vadd.f32 0.0, %v1589
  %v1591 = vpop.f32.mrb[0].mxu0
  %v1592 = vadd.f32 0.0, %v1591
  %v1593 = vpop.f32.mrb[0].mxu0
  %v1594 = vadd.f32 0.0, %v1593
  %1595 = vmatprep.mubr.bf16.mxu0 0
  %1596 = vmatmul.mubr.bf16.gmra.mrb[0].mxu0 %v1218
  %v1597 = vpop.f32.mrb[0].mxu0
  %v1598 = vadd.f32 0.0, %v1597
  %v1599 = vpop.f32.mrb[0].mxu0
  %v1600 = vadd.f32 0.0, %v1599
  %v1601 = vpop.f32.mrb[0].mxu0
  %v1602 = vadd.f32 0.0, %v1601
  %v1603 = vpop.f32.mrb[0].mxu0
  %v1604 = vadd.f32 0.0, %v1603
  %1605 = vdwg.mxu0
  %v1606 = vpack.c.bf16 %v1259, %v1255
  %v1607 = vpack.c.bf16 %v1261, %v1257
  %v1608 = vpack.c.bf16 %v1452, %v1448
  %v1609 = vpack.c.bf16 %v1454, %v1450
  %v1610 = vpack.c.bf16 %v1269, %v1265
  %v1611 = vpack.c.bf16 %v1271, %v1267
  %v1612 = vpack.c.bf16 %v1462, %v1458
  %v1613 = vpack.c.bf16 %v1464, %v1460
  %v1614 = vpack.c.bf16 %v1279, %v1275
  %v1615 = vpack.c.bf16 %v1281, %v1277
  %v1616 = vpack.c.bf16 %v1472, %v1468
  %v1617 = vpack.c.bf16 %v1474, %v1470
  %v1618 = vpack.c.bf16 %v1289, %v1285
  %v1619 = vpack.c.bf16 %v1291, %v1287
  %v1620 = vpack.c.bf16 %v1482, %v1478
  %v1621 = vpack.c.bf16 %v1484, %v1480
  %v1622 = vpack.c.bf16 %v1299, %v1295
  %v1623 = vpack.c.bf16 %v1301, %v1297
  %v1624 = vpack.c.bf16 %v1492, %v1488
  %v1625 = vpack.c.bf16 %v1494, %v1490
  %v1626 = vpack.c.bf16 %v1309, %v1305
  %v1627 = vpack.c.bf16 %v1311, %v1307
  %v1628 = vpack.c.bf16 %v1502, %v1498
  %v1629 = vpack.c.bf16 %v1504, %v1500
  %v1630 = vpack.c.bf16 %v1319, %v1315
  %v1631 = vpack.c.bf16 %v1321, %v1317
  %v1632 = vpack.c.bf16 %v1512, %v1508
  %v1633 = vpack.c.bf16 %v1514, %v1510
  %v1634 = vpack.c.bf16 %v1329, %v1325
  %v1635 = vpack.c.bf16 %v1331, %v1327
  %v1636 = vpack.c.bf16 %v1522, %v1518
  %v1637 = vpack.c.bf16 %v1524, %v1520
  %v1638 = vpack.c.bf16 %v1339, %v1335
  %v1639 = vpack.c.bf16 %v1341, %v1337
  %v1640 = vpack.c.bf16 %v1532, %v1528
  %v1641 = vpack.c.bf16 %v1534, %v1530
  %v1642 = vpack.c.bf16 %v1349, %v1345
  %v1643 = vpack.c.bf16 %v1351, %v1347
  %v1644 = vpack.c.bf16 %v1542, %v1538
  %v1645 = vpack.c.bf16 %v1544, %v1540
  %v1646 = vpack.c.bf16 %v1359, %v1355
  %v1647 = vpack.c.bf16 %v1361, %v1357
  %v1648 = vpack.c.bf16 %v1552, %v1548
  %v1649 = vpack.c.bf16 %v1554, %v1550
  %v1650 = vpack.c.bf16 %v1369, %v1365
  %v1651 = vpack.c.bf16 %v1371, %v1367
  %v1652 = vpack.c.bf16 %v1562, %v1558
  %v1653 = vpack.c.bf16 %v1564, %v1560
  %v1654 = vpack.c.bf16 %v1379, %v1375
  %v1655 = vpack.c.bf16 %v1381, %v1377
  %v1656 = vpack.c.bf16 %v1572, %v1568
  %v1657 = vpack.c.bf16 %v1574, %v1570
  %v1658 = vpack.c.bf16 %v1389, %v1385
  %v1659 = vpack.c.bf16 %v1391, %v1387
  %v1660 = vpack.c.bf16 %v1582, %v1578
  %v1661 = vpack.c.bf16 %v1584, %v1580
  %v1662 = vpack.c.bf16 %v1399, %v1395
  %v1663 = vpack.c.bf16 %v1401, %v1397
  %v1664 = vpack.c.bf16 %v1592, %v1588
  %v1665 = vpack.c.bf16 %v1594, %v1590
  %v1666 = vpack.c.bf16 %v1409, %v1405
  %v1667 = vpack.c.bf16 %v1411, %v1407
  %v1668 = vpack.c.bf16 %v1602, %v1598
  %v1669 = vpack.c.bf16 %v1604, %v1600
  %1670 = vst [vmem:[#allocation3] sm:$0xff] %v1606
  %1671 = vst [vmem:[#allocation3 + $0x8] sm:$0xff] %v1607
  %1672 = vst [vmem:[#allocation3 + $0x10] sm:$0xff] %v1608
  %1673 = vst [vmem:[#allocation3 + $0x18] sm:$0xff] %v1609
  %1674 = vst [vmem:[#allocation3 + $0x20] sm:$0xff] %v1610
  %1675 = vst [vmem:[#allocation3 + $0x28] sm:$0xff] %v1611
  %1676 = vst [vmem:[#allocation3 + $0x30] sm:$0xff] %v1612
  %1677 = vst [vmem:[#allocation3 + $0x38] sm:$0xff] %v1613
  %1678 = vst [vmem:[#allocation3 + $0x40] sm:$0xff] %v1614
  %1679 = vst [vmem:[#allocation3 + $0x48] sm:$0xff] %v1615
  %1680 = vst [vmem:[#allocation3 + $0x50] sm:$0xff] %v1616
  %1681 = vst [vmem:[#allocation3 + $0x58] sm:$0xff] %v1617
  %1682 = vst [vmem:[#allocation3 + $0x60] sm:$0xff] %v1618
  %1683 = vst [vmem:[#allocation3 + $0x68] sm:$0xff] %v1619
  %1684 = vst [vmem:[#allocation3 + $0x70] sm:$0xff] %v1620
  %1685 = vst [vmem:[#allocation3 + $0x78] sm:$0xff] %v1621
  %1686 = vst [vmem:[#allocation3 + $0x80] sm:$0xff] %v1622
  %1687 = vst [vmem:[#allocation3 + $0x88] sm:$0xff] %v1623
  %1688 = vst [vmem:[#allocation3 + $0x90] sm:$0xff] %v1624
  %1689 = vst [vmem:[#allocation3 + $0x98] sm:$0xff] %v1625
  %1690 = vst [vmem:[#allocation3 + $0xa0] sm:$0xff] %v1626
  %1691 = vst [vmem:[#allocation3 + $0xa8] sm:$0xff] %v1627
  %1692 = vst [vmem:[#allocation3 + $0xb0] sm:$0xff] %v1628
  %1693 = vst [vmem:[#allocation3 + $0xb8] sm:$0xff] %v1629
  %1694 = vst [vmem:[#allocation3 + $0xc0] sm:$0xff] %v1630
  %1695 = vst [vmem:[#allocation3 + $0xc8] sm:$0xff] %v1631
  %1696 = vst [vmem:[#allocation3 + $0xd0] sm:$0xff] %v1632
  %1697 = vst [vmem:[#allocation3 + $0xd8] sm:$0xff] %v1633
  %1698 = vst [vmem:[#allocation3 + $0xe0] sm:$0xff] %v1634
  %1699 = vst [vmem:[#allocation3 + $0xe8] sm:$0xff] %v1635
  %1700 = vst [vmem:[#allocation3 + $0xf0] sm:$0xff] %v1636
  %1701 = vst [vmem:[#allocation3 + $0xf8] sm:$0xff] %v1637
  %1702 = vst [vmem:[#allocation3 + $0x100] sm:$0xff] %v1638
  %1703 = vst [vmem:[#allocation3 + $0x108] sm:$0xff] %v1639
  %1704 = vst [vmem:[#allocation3 + $0x110] sm:$0xff] %v1640
  %1705 = vst [vmem:[#allocation3 + $0x118] sm:$0xff] %v1641
  %1706 = vst [vmem:[#allocation3 + $0x120] sm:$0xff] %v1642
  %1707 = vst [vmem:[#allocation3 + $0x128] sm:$0xff] %v1643
  %1708 = vst [vmem:[#allocation3 + $0x130] sm:$0xff] %v1644
  %1709 = vst [vmem:[#allocation3 + $0x138] sm:$0xff] %v1645
  %1710 = vst [vmem:[#allocation3 + $0x140] sm:$0xff] %v1646
  %1711 = vst [vmem:[#allocation3 + $0x148] sm:$0xff] %v1647
  %1712 = vst [vmem:[#allocation3 + $0x150] sm:$0xff] %v1648
  %1713 = vst [vmem:[#allocation3 + $0x158] sm:$0xff] %v1649
  %1714 = vst [vmem:[#allocation3 + $0x160] sm:$0xff] %v1650
  %1715 = vst [vmem:[#allocation3 + $0x168] sm:$0xff] %v1651
  %1716 = vst [vmem:[#allocation3 + $0x170] sm:$0xff] %v1652
  %1717 = vst [vmem:[#allocation3 + $0x178] sm:$0xff] %v1653
  %1718 = vst [vmem:[#allocation3 + $0x180] sm:$0xff] %v1654
  %1719 = vst [vmem:[#allocation3 + $0x188] sm:$0xff] %v1655
  %1720 = vst [vmem:[#allocation3 + $0x190] sm:$0xff] %v1656
  %1721 = vst [vmem:[#allocation3 + $0x198] sm:$0xff] %v1657
  %1722 = vst [vmem:[#allocation3 + $0x1a0] sm:$0xff] %v1658
  %1723 = vst [vmem:[#allocation3 + $0x1a8] sm:$0xff] %v1659
  %1724 = vst [vmem:[#allocation3 + $0x1b0] sm:$0xff] %v1660
  %1725 = vst [vmem:[#allocation3 + $0x1b8] sm:$0xff] %v1661
  %1726 = vst [vmem:[#allocation3 + $0x1c0] sm:$0xff] %v1662
  %1727 = vst [vmem:[#allocation3 + $0x1c8] sm:$0xff] %v1663
  %1728 = vst [vmem:[#allocation3 + $0x1d0] sm:$0xff] %v1664
  %1729 = vst [vmem:[#allocation3 + $0x1d8] sm:$0xff] %v1665
  %1730 = vst [vmem:[#allocation3 + $0x1e0] sm:$0xff] %v1666
  %1731 = vst [vmem:[#allocation3 + $0x1e8] sm:$0xff] %v1667
  %1732 = vst [vmem:[#allocation3 + $0x1f0] sm:$0xff] %v1668
  %1733 = vst [vmem:[#allocation3 + $0x1f8] sm:$0xff] %v1669
  %v1734 = vld [vmem:[%s6] sm:$0xff]
  %v1735 = vld [vmem:[%s6 + $0x8] sm:$0xff]
  %v1736 = vld [vmem:[%s6 + $0x10] sm:$0xff]
  %v1737 = vld [vmem:[%s6 + $0x18] sm:$0xff]
  %v1738 = vld [vmem:[%s6 + $0x20] sm:$0xff]
  %v1739 = vld [vmem:[%s6 + $0x28] sm:$0xff]
  %v1740 = vld [vmem:[%s6 + $0x30] sm:$0xff]
  %v1741 = vld [vmem:[%s6 + $0x38] sm:$0xff]
  %v1742 = vld [vmem:[%s6 + $0x40] sm:$0xff]
  %v1743 = vld [vmem:[%s6 + $0x48] sm:$0xff]
  %v1744 = vld [vmem:[%s6 + $0x50] sm:$0xff]
  %v1745 = vld [vmem:[%s6 + $0x58] sm:$0xff]
  %v1746 = vld [vmem:[%s6 + $0x60] sm:$0xff]
  %v1747 = vld [vmem:[%s6 + $0x68] sm:$0xff]
  %v1748 = vld [vmem:[%s6 + $0x70] sm:$0xff]
  %v1749 = vld [vmem:[%s6 + $0x78] sm:$0xff]
  %v1782 = vunpack.c.l.b16 %v97
  %v1783 = vunpack.c.l.b16 %v98
  %v1784 = vunpack.c.l.b16 %v99
  %v1785 = vunpack.c.l.b16 %v100
  %v1786 = vunpack.c.l.b16 %v101
  %v1787 = vunpack.c.l.b16 %v102
  %v1788 = vunpack.c.l.b16 %v103
  %v1789 = vunpack.c.l.b16 %v104
  %v1790 = vunpack.c.l.b16 %v105
  %v1791 = vunpack.c.l.b16 %v106
  %v1792 = vunpack.c.l.b16 %v107
  %v1793 = vunpack.c.l.b16 %v108
  %v1794 = vunpack.c.l.b16 %v109
  %v1795 = vunpack.c.l.b16 %v110
  %v1796 = vunpack.c.l.b16 %v111
  %v1797 = vunpack.c.l.b16 %v112
  %v1798 = vunpack.c.l.b16 %v113
  %v1799 = vunpack.c.l.b16 %v114
  %v1800 = vunpack.c.l.b16 %v115
  %v1801 = vunpack.c.l.b16 %v116
  %v1802 = vunpack.c.l.b16 %v117
  %v1803 = vunpack.c.l.b16 %v118
  %v1804 = vunpack.c.l.b16 %v119
  %v1805 = vunpack.c.l.b16 %v120
  %v1806 = vunpack.c.l.b16 %v121
  %v1807 = vunpack.c.l.b16 %v122
  %v1808 = vunpack.c.l.b16 %v123
  %v1809 = vunpack.c.l.b16 %v124
  %v1810 = vunpack.c.l.b16 %v125
  %v1811 = vunpack.c.l.b16 %v126
  %v1812 = vunpack.c.l.b16 %v127
  %v1813 = vunpack.c.l.b16 %v128
  %v1814 = vpack.c.b16 %v1783, %v1782
  %v1815 = vpack.c.b16 %v1785, %v1784
  %v1816 = vpack.c.b16 %v1787, %v1786
  %v1817 = vpack.c.b16 %v1789, %v1788
  %v1818 = vpack.c.b16 %v1791, %v1790
  %v1819 = vpack.c.b16 %v1793, %v1792
  %v1820 = vpack.c.b16 %v1795, %v1794
  %v1821 = vpack.c.b16 %v1797, %v1796
  %v1822 = vpack.c.b16 %v1799, %v1798
  %v1823 = vpack.c.b16 %v1801, %v1800
  %v1824 = vpack.c.b16 %v1803, %v1802
  %v1825 = vpack.c.b16 %v1805, %v1804
  %v1826 = vpack.c.b16 %v1807, %v1806
  %v1827 = vpack.c.b16 %v1809, %v1808
  %v1828 = vpack.c.b16 %v1811, %v1810
  %v1829 = vpack.c.b16 %v1813, %v1812
  %v1846 = vunpack.c.l.b16 %v1734
  %v1847 = vunpack.c.h.b16 %v1734
  %v1848 = vunpack.c.l.b16 %v1735
  %v1849 = vunpack.c.h.b16 %v1735
  %v1850 = vunpack.c.l.b16 %v1736
  %v1851 = vunpack.c.h.b16 %v1736
  %v1852 = vunpack.c.l.b16 %v1737
  %v1853 = vunpack.c.h.b16 %v1737
  %v1854 = vunpack.c.l.b16 %v1738
  %v1855 = vunpack.c.h.b16 %v1738
  %v1856 = vunpack.c.l.b16 %v1739
  %v1857 = vunpack.c.h.b16 %v1739
  %v1858 = vunpack.c.l.b16 %v1740
  %v1859 = vunpack.c.h.b16 %v1740
  %v1860 = vunpack.c.l.b16 %v1741
  %v1861 = vunpack.c.h.b16 %v1741
  %v1862 = vunpack.c.l.b16 %v1742
  %v1863 = vunpack.c.h.b16 %v1742
  %v1864 = vunpack.c.l.b16 %v1743
  %v1865 = vunpack.c.h.b16 %v1743
  %v1866 = vunpack.c.l.b16 %v1744
  %v1867 = vunpack.c.h.b16 %v1744
  %v1868 = vunpack.c.l.b16 %v1745
  %v1869 = vunpack.c.h.b16 %v1745
  %v1870 = vunpack.c.l.b16 %v1746
  %v1871 = vunpack.c.h.b16 %v1746
  %v1872 = vunpack.c.l.b16 %v1747
  %v1873 = vunpack.c.h.b16 %v1747
  %v1874 = vunpack.c.l.b16 %v1748
  %v1875 = vunpack.c.h.b16 %v1748
  %v1876 = vunpack.c.l.b16 %v1749
  %v1877 = vunpack.c.h.b16 %v1749
  %v1878 = vpack.c.b16 %v1850, %v1846
  %v1879 = vpack.c.b16 %v1851, %v1847
  %v1880 = vpack.c.b16 %v1852, %v1848
  %v1881 = vpack.c.b16 %v1853, %v1849
  %v1882 = vpack.c.b16 %v1858, %v1854
  %v1883 = vpack.c.b16 %v1859, %v1855
  %v1884 = vpack.c.b16 %v1860, %v1856
  %v1885 = vpack.c.b16 %v1861, %v1857
  %v1886 = vpack.c.b16 %v1866, %v1862
  %v1887 = vpack.c.b16 %v1867, %v1863
  %v1888 = vpack.c.b16 %v1868, %v1864
  %v1889 = vpack.c.b16 %v1869, %v1865
  %v1890 = vpack.c.b16 %v1874, %v1870
  %v1891 = vpack.c.b16 %v1875, %v1871
  %v1892 = vpack.c.b16 %v1876, %v1872
  %v1893 = vpack.c.b16 %v1877, %v1873
  %v1911 = vsel %vm305, %v1814, 0
  %v1914 = vsel %vm305, %v1815, 0
  %v1917 = vsel %vm305, %v1816, 0
  %v1920 = vsel %vm305, %v1817, 0
  %v1923 = vsel %vm305, %v1818, 0
  %v1926 = vsel %vm305, %v1819, 0
  %v1929 = vsel %vm305, %v1820, 0
  %v1932 = vsel %vm305, %v1821, 0
  %v1935 = vsel %vm305, %v1822, 0
  %v1938 = vsel %vm305, %v1823, 0
  %v1941 = vsel %vm305, %v1824, 0
  %v1944 = vsel %vm305, %v1825, 0
  %v1947 = vsel %vm305, %v1826, 0
  %v1950 = vsel %vm305, %v1827, 0
  %v1953 = vsel %vm305, %v1828, 0
  %v1956 = vsel %vm305, %v1829, 0
  %1958 = vmatprep.subr.bf16.mxu0 %v1879
  %1959 = vmatpush1.bf16.msra.mxu0 %v1878
  %1960 = vmatprep.subr.bf16.mxu0 %v1883
  %1961 = vmatpush1.bf16.msra.mxu0 %v1882
  %1962 = vmatprep.subr.bf16.mxu0 %v1887
  %1963 = vmatpush1.bf16.msra.mxu0 %v1886
  %1964 = vmatprep.subr.bf16.mxu0 %v1891
  %1965 = vmatpush1.bf16.msra.mxu0 %v1890
  %1966 = vmatprep.subr.bf16.mxu0 0
  %1967 = vmatpush1.bf16.msra.mxu0 0
  %1968 = vmatprep.subr.bf16.mxu0 0
  %1969 = vmatpush1.bf16.msra.mxu0 0
  %1970 = vmatprep.subr.bf16.mxu0 0
  %1971 = vmatpush1.bf16.msra.mxu0 0
  %1972 = vmatprep.subr.bf16.mxu0 0
  %1973 = vmatpush1.bf16.msra.mxu0 0
  %1974 = vmatprep.subr.bf16.mxu0 0
  %1975 = vmatpush1.bf16.msra.mxu0 0
  %1976 = vmatprep.subr.bf16.mxu0 0
  %1977 = vmatpush1.bf16.msra.mxu0 0
  %1978 = vmatprep.subr.bf16.mxu0 0
  %1979 = vmatpush1.bf16.msra.mxu0 0
  %1980 = vmatprep.subr.bf16.mxu0 0
  %1981 = vmatpush1.bf16.msra.mxu0 0
  %1982 = vmatprep.subr.bf16.mxu0 0
  %1983 = vmatpush1.bf16.msra.mxu0 0
  %1984 = vmatprep.subr.bf16.mxu0 0
  %1985 = vmatpush1.bf16.msra.mxu0 0
  %1986 = vmatprep.subr.bf16.mxu0 0
  %1987 = vmatpush1.bf16.msra.mxu0 0
  %1988 = vmatprep.subr.bf16.mxu0 0
  %1989 = vmatpush1.bf16.msra.mxu0 0
  %1990 = vmatprep.mubr.bf16.mxu0 0
  %1991 = vmatmul.mubr.bf16.gmra.mrb[0].mxu0 %v1911
  %v1992 = vpop.f32.mrb[0].mxu0
  %v1993 = vadd.f32 0.0, %v1992
  %v1994 = vpop.f32.mrb[0].mxu0
  %v1995 = vadd.f32 0.0, %v1994
  %v1996 = vpop.f32.mrb[0].mxu0
  %v1997 = vadd.f32 0.0, %v1996
  %v1998 = vpop.f32.mrb[0].mxu0
  %v1999 = vadd.f32 0.0, %v1998
  %2000 = vmatprep.mubr.bf16.mxu0 0
  %2001 = vmatmul.mubr.bf16.gmra.mrb[0].mxu0 %v1914
  %v2002 = vpop.f32.mrb[0].mxu0
  %v2003 = vadd.f32 0.0, %v2002
  %v2004 = vpop.f32.mrb[0].mxu0
  %v2005 = vadd.f32 0.0, %v2004
  %v2006 = vpop.f32.mrb[0].mxu0
  %v2007 = vadd.f32 0.0, %v2006
  %v2008 = vpop.f32.mrb[0].mxu0
  %v2009 = vadd.f32 0.0, %v2008
  %2010 = vmatprep.mubr.bf16.mxu0 0
  %2011 = vmatmul.mubr.bf16.gmra.mrb[0].mxu0 %v1917
  %v2012 = vpop.f32.mrb[0].mxu0
  %v2013 = vadd.f32 0.0, %v2012
  %v2014 = vpop.f32.mrb[0].mxu0
  %v2015 = vadd.f32 0.0, %v2014
  %v2016 = vpop.f32.mrb[0].mxu0
  %v2017 = vadd.f32 0.0, %v2016
  %v2018 = vpop.f32.mrb[0].mxu0
  %v2019 = vadd.f32 0.0, %v2018
  %2020 = vmatprep.mubr.bf16.mxu0 0
  %2021 = vmatmul.mubr.bf16.gmra.mrb[0].mxu0 %v1920
  %v2022 = vpop.f32.mrb[0].mxu0
  %v2023 = vadd.f32 0.0, %v2022
  %v2024 = vpop.f32.mrb[0].mxu0
  %v2025 = vadd.f32 0.0, %v2024
  %v2026 = vpop.f32.mrb[0].mxu0
  %v2027 = vadd.f32 0.0, %v2026
  %v2028 = vpop.f32.mrb[0].mxu0
  %v2029 = vadd.f32 0.0, %v2028
  %2030 = vmatprep.mubr.bf16.mxu0 0
  %2031 = vmatmul.mubr.bf16.gmra.mrb[0].mxu0 %v1923
  %v2032 = vpop.f32.mrb[0].mxu0
  %v2033 = vadd.f32 0.0, %v2032
  %v2034 = vpop.f32.mrb[0].mxu0
  %v2035 = vadd.f32 0.0, %v2034
  %v2036 = vpop.f32.mrb[0].mxu0
  %v2037 = vadd.f32 0.0, %v2036
  %v2038 = vpop.f32.mrb[0].mxu0
  %v2039 = vadd.f32 0.0, %v2038
  %2040 = vmatprep.mubr.bf16.mxu0 0
  %2041 = vmatmul.mubr.bf16.gmra.mrb[0].mxu0 %v1926
  %v2042 = vpop.f32.mrb[0].mxu0
  %v2043 = vadd.f32 0.0, %v2042
  %v2044 = vpop.f32.mrb[0].mxu0
  %v2045 = vadd.f32 0.0, %v2044
  %v2046 = vpop.f32.mrb[0].mxu0
  %v2047 = vadd.f32 0.0, %v2046
  %v2048 = vpop.f32.mrb[0].mxu0
  %v2049 = vadd.f32 0.0, %v2048
  %2050 = vmatprep.mubr.bf16.mxu0 0
  %2051 = vmatmul.mubr.bf16.gmra.mrb[0].mxu0 %v1929
  %v2052 = vpop.f32.mrb[0].mxu0
  %v2053 = vadd.f32 0.0, %v2052
  %v2054 = vpop.f32.mrb[0].mxu0
  %v2055 = vadd.f32 0.0, %v2054
  %v2056 = vpop.f32.mrb[0].mxu0
  %v2057 = vadd.f32 0.0, %v2056
  %v2058 = vpop.f32.mrb[0].mxu0
  %v2059 = vadd.f32 0.0, %v2058
  %2060 = vmatprep.mubr.bf16.mxu0 0
  %2061 = vmatmul.mubr.bf16.gmra.mrb[0].mxu0 %v1932
  %v2062 = vpop.f32.mrb[0].mxu0
  %v2063 = vadd.f32 0.0, %v2062
  %v2064 = vpop.f32.mrb[0].mxu0
  %v2065 = vadd.f32 0.0, %v2064
  %v2066 = vpop.f32.mrb[0].mxu0
  %v2067 = vadd.f32 0.0, %v2066
  %v2068 = vpop.f32.mrb[0].mxu0
  %v2069 = vadd.f32 0.0, %v2068
  %2070 = vmatprep.mubr.bf16.mxu0 0
  %2071 = vmatmul.mubr.bf16.gmra.mrb[0].mxu0 %v1935
  %v2072 = vpop.f32.mrb[0].mxu0
  %v2073 = vadd.f32 0.0, %v2072
  %v2074 = vpop.f32.mrb[0].mxu0
  %v2075 = vadd.f32 0.0, %v2074
  %v2076 = vpop.f32.mrb[0].mxu0
  %v2077 = vadd.f32 0.0, %v2076
  %v2078 = vpop.f32.mrb[0].mxu0
  %v2079 = vadd.f32 0.0, %v2078
  %2080 = vmatprep.mubr.bf16.mxu0 0
  %2081 = vmatmul.mubr.bf16.gmra.mrb[0].mxu0 %v1938
  %v2082 = vpop.f32.mrb[0].mxu0
  %v2083 = vadd.f32 0.0, %v2082
  %v2084 = vpop.f32.mrb[0].mxu0
  %v2085 = vadd.f32 0.0, %v2084
  %v2086 = vpop.f32.mrb[0].mxu0
  %v2087 = vadd.f32 0.0, %v2086
  %v2088 = vpop.f32.mrb[0].mxu0
  %v2089 = vadd.f32 0.0, %v2088
  %2090 = vmatprep.mubr.bf16.mxu0 0
  %2091 = vmatmul.mubr.bf16.gmra.mrb[0].mxu0 %v1941
  %v2092 = vpop.f32.mrb[0].mxu0
  %v2093 = vadd.f32 0.0, %v2092
  %v2094 = vpop.f32.mrb[0].mxu0
  %v2095 = vadd.f32 0.0, %v2094
  %v2096 = vpop.f32.mrb[0].mxu0
  %v2097 = vadd.f32 0.0, %v2096
  %v2098 = vpop.f32.mrb[0].mxu0
  %v2099 = vadd.f32 0.0, %v2098
  %2100 = vmatprep.mubr.bf16.mxu0 0
  %2101 = vmatmul.mubr.bf16.gmra.mrb[0].mxu0 %v1944
  %v2102 = vpop.f32.mrb[0].mxu0
  %v2103 = vadd.f32 0.0, %v2102
  %v2104 = vpop.f32.mrb[0].mxu0
  %v2105 = vadd.f32 0.0, %v2104
  %v2106 = vpop.f32.mrb[0].mxu0
  %v2107 = vadd.f32 0.0, %v2106
  %v2108 = vpop.f32.mrb[0].mxu0
  %v2109 = vadd.f32 0.0, %v2108
  %2110 = vmatprep.mubr.bf16.mxu0 0
  %2111 = vmatmul.mubr.bf16.gmra.mrb[0].mxu0 %v1947
  %v2112 = vpop.f32.mrb[0].mxu0
  %v2113 = vadd.f32 0.0, %v2112
  %v2114 = vpop.f32.mrb[0].mxu0
  %v2115 = vadd.f32 0.0, %v2114
  %v2116 = vpop.f32.mrb[0].mxu0
  %v2117 = vadd.f32 0.0, %v2116
  %v2118 = vpop.f32.mrb[0].mxu0
  %v2119 = vadd.f32 0.0, %v2118
  %2120 = vmatprep.mubr.bf16.mxu0 0
  %2121 = vmatmul.mubr.bf16.gmra.mrb[0].mxu0 %v1950
  %v2122 = vpop.f32.mrb[0].mxu0
  %v2123 = vadd.f32 0.0, %v2122
  %v2124 = vpop.f32.mrb[0].mxu0
  %v2125 = vadd.f32 0.0, %v2124
  %v2126 = vpop.f32.mrb[0].mxu0
  %v2127 = vadd.f32 0.0, %v2126
  %v2128 = vpop.f32.mrb[0].mxu0
  %v2129 = vadd.f32 0.0, %v2128
  %2130 = vmatprep.mubr.bf16.mxu0 0
  %2131 = vmatmul.mubr.bf16.gmra.mrb[0].mxu0 %v1953
  %v2132 = vpop.f32.mrb[0].mxu0
  %v2133 = vadd.f32 0.0, %v2132
  %v2134 = vpop.f32.mrb[0].mxu0
  %v2135 = vadd.f32 0.0, %v2134
  %v2136 = vpop.f32.mrb[0].mxu0
  %v2137 = vadd.f32 0.0, %v2136
  %v2138 = vpop.f32.mrb[0].mxu0
  %v2139 = vadd.f32 0.0, %v2138
  %2140 = vmatprep.mubr.bf16.mxu0 0
  %2141 = vmatmul.mubr.bf16.gmra.mrb[0].mxu0 %v1956
  %v2142 = vpop.f32.mrb[0].mxu0
  %v2143 = vadd.f32 0.0, %v2142
  %v2144 = vpop.f32.mrb[0].mxu0
  %v2145 = vadd.f32 0.0, %v2144
  %v2146 = vpop.f32.mrb[0].mxu0
  %v2147 = vadd.f32 0.0, %v2146
  %v2148 = vpop.f32.mrb[0].mxu0
  %v2149 = vadd.f32 0.0, %v2148
  %2150 = vdwg.mxu0
  %2151 = vmatprep.subr.bf16.mxu0 %v1881
  %2152 = vmatpush1.bf16.msra.mxu0 %v1880
  %2153 = vmatprep.subr.bf16.mxu0 %v1885
  %2154 = vmatpush1.bf16.msra.mxu0 %v1884
  %2155 = vmatprep.subr.bf16.mxu0 %v1889
  %2156 = vmatpush1.bf16.msra.mxu0 %v1888
  %2157 = vmatprep.subr.bf16.mxu0 %v1893
  %2158 = vmatpush1.bf16.msra.mxu0 %v1892
  %2159 = vmatprep.subr.bf16.mxu0 0
  %2160 = vmatpush1.bf16.msra.mxu0 0
  %2161 = vmatprep.subr.bf16.mxu0 0
  %2162 = vmatpush1.bf16.msra.mxu0 0
  %2163 = vmatprep.subr.bf16.mxu0 0
  %2164 = vmatpush1.bf16.msra.mxu0 0
  %2165 = vmatprep.subr.bf16.mxu0 0
  %2166 = vmatpush1.bf16.msra.mxu0 0
  %2167 = vmatprep.subr.bf16.mxu0 0
  %2168 = vmatpush1.bf16.msra.mxu0 0
  %2169 = vmatprep.subr.bf16.mxu0 0
  %2170 = vmatpush1.bf16.msra.mxu0 0
  %2171 = vmatprep.subr.bf16.mxu0 0
  %2172 = vmatpush1.bf16.msra.mxu0 0
  %2173 = vmatprep.subr.bf16.mxu0 0
  %2174 = vmatpush1.bf16.msra.mxu0 0
  %2175 = vmatprep.subr.bf16.mxu0 0
  %2176 = vmatpush1.bf16.msra.mxu0 0
  %2177 = vmatprep.subr.bf16.mxu0 0
  %2178 = vmatpush1.bf16.msra.mxu0 0
  %2179 = vmatprep.subr.bf16.mxu0 0
  %2180 = vmatpush1.bf16.msra.mxu0 0
  %2181 = vmatprep.subr.bf16.mxu0 0
  %2182 = vmatpush1.bf16.msra.mxu0 0
  %2183 = vmatprep.mubr.bf16.mxu0 0
  %2184 = vmatmul.mubr.bf16.gmra.mrb[0].mxu0 %v1911
  %v2185 = vpop.f32.mrb[0].mxu0
  %v2186 = vadd.f32 0.0, %v2185
  %v2187 = vpop.f32.mrb[0].mxu0
  %v2188 = vadd.f32 0.0, %v2187
  %v2189 = vpop.f32.mrb[0].mxu0
  %v2190 = vadd.f32 0.0, %v2189
  %v2191 = vpop.f32.mrb[0].mxu0
  %v2192 = vadd.f32 0.0, %v2191
  %2193 = vmatprep.mubr.bf16.mxu0 0
  %2194 = vmatmul.mubr.bf16.gmra.mrb[0].mxu0 %v1914
  %v2195 = vpop.f32.mrb[0].mxu0
  %v2196 = vadd.f32 0.0, %v2195
  %v2197 = vpop.f32.mrb[0].mxu0
  %v2198 = vadd.f32 0.0, %v2197
  %v2199 = vpop.f32.mrb[0].mxu0
  %v2200 = vadd.f32 0.0, %v2199
  %v2201 = vpop.f32.mrb[0].mxu0
  %v2202 = vadd.f32 0.0, %v2201
  %2203 = vmatprep.mubr.bf16.mxu0 0
  %2204 = vmatmul.mubr.bf16.gmra.mrb[0].mxu0 %v1917
  %v2205 = vpop.f32.mrb[0].mxu0
  %v2206 = vadd.f32 0.0, %v2205
  %v2207 = vpop.f32.mrb[0].mxu0
  %v2208 = vadd.f32 0.0, %v2207
  %v2209 = vpop.f32.mrb[0].mxu0
  %v2210 = vadd.f32 0.0, %v2209
  %v2211 = vpop.f32.mrb[0].mxu0
  %v2212 = vadd.f32 0.0, %v2211
  %2213 = vmatprep.mubr.bf16.mxu0 0
  %2214 = vmatmul.mubr.bf16.gmra.mrb[0].mxu0 %v1920
  %v2215 = vpop.f32.mrb[0].mxu0
  %v2216 = vadd.f32 0.0, %v2215
  %v2217 = vpop.f32.mrb[0].mxu0
  %v2218 = vadd.f32 0.0, %v2217
  %v2219 = vpop.f32.mrb[0].mxu0
  %v2220 = vadd.f32 0.0, %v2219
  %v2221 = vpop.f32.mrb[0].mxu0
  %v2222 = vadd.f32 0.0, %v2221
  %2223 = vmatprep.mubr.bf16.mxu0 0
  %2224 = vmatmul.mubr.bf16.gmra.mrb[0].mxu0 %v1923
  %v2225 = vpop.f32.mrb[0].mxu0
  %v2226 = vadd.f32 0.0, %v2225
  %v2227 = vpop.f32.mrb[0].mxu0
  %v2228 = vadd.f32 0.0, %v2227
  %v2229 = vpop.f32.mrb[0].mxu0
  %v2230 = vadd.f32 0.0, %v2229
  %v2231 = vpop.f32.mrb[0].mxu0
  %v2232 = vadd.f32 0.0, %v2231
  %2233 = vmatprep.mubr.bf16.mxu0 0
  %2234 = vmatmul.mubr.bf16.gmra.mrb[0].mxu0 %v1926
  %v2235 = vpop.f32.mrb[0].mxu0
  %v2236 = vadd.f32 0.0, %v2235
  %v2237 = vpop.f32.mrb[0].mxu0
  %v2238 = vadd.f32 0.0, %v2237
  %v2239 = vpop.f32.mrb[0].mxu0
  %v2240 = vadd.f32 0.0, %v2239
  %v2241 = vpop.f32.mrb[0].mxu0
  %v2242 = vadd.f32 0.0, %v2241
  %2243 = vmatprep.mubr.bf16.mxu0 0
  %2244 = vmatmul.mubr.bf16.gmra.mrb[0].mxu0 %v1929
  %v2245 = vpop.f32.mrb[0].mxu0
  %v2246 = vadd.f32 0.0, %v2245
  %v2247 = vpop.f32.mrb[0].mxu0
  %v2248 = vadd.f32 0.0, %v2247
  %v2249 = vpop.f32.mrb[0].mxu0
  %v2250 = vadd.f32 0.0, %v2249
  %v2251 = vpop.f32.mrb[0].mxu0
  %v2252 = vadd.f32 0.0, %v2251
  %2253 = vmatprep.mubr.bf16.mxu0 0
  %2254 = vmatmul.mubr.bf16.gmra.mrb[0].mxu0 %v1932
  %v2255 = vpop.f32.mrb[0].mxu0
  %v2256 = vadd.f32 0.0, %v2255
  %v2257 = vpop.f32.mrb[0].mxu0
  %v2258 = vadd.f32 0.0, %v2257
  %v2259 = vpop.f32.mrb[0].mxu0
  %v2260 = vadd.f32 0.0, %v2259
  %v2261 = vpop.f32.mrb[0].mxu0
  %v2262 = vadd.f32 0.0, %v2261
  %2263 = vmatprep.mubr.bf16.mxu0 0
  %2264 = vmatmul.mubr.bf16.gmra.mrb[0].mxu0 %v1935
  %v2265 = vpop.f32.mrb[0].mxu0
  %v2266 = vadd.f32 0.0, %v2265
  %v2267 = vpop.f32.mrb[0].mxu0
  %v2268 = vadd.f32 0.0, %v2267
  %v2269 = vpop.f32.mrb[0].mxu0
  %v2270 = vadd.f32 0.0, %v2269
  %v2271 = vpop.f32.mrb[0].mxu0
  %v2272 = vadd.f32 0.0, %v2271
  %2273 = vmatprep.mubr.bf16.mxu0 0
  %2274 = vmatmul.mubr.bf16.gmra.mrb[0].mxu0 %v1938
  %v2275 = vpop.f32.mrb[0].mxu0
  %v2276 = vadd.f32 0.0, %v2275
  %v2277 = vpop.f32.mrb[0].mxu0
  %v2278 = vadd.f32 0.0, %v2277
  %v2279 = vpop.f32.mrb[0].mxu0
  %v2280 = vadd.f32 0.0, %v2279
  %v2281 = vpop.f32.mrb[0].mxu0
  %v2282 = vadd.f32 0.0, %v2281
  %2283 = vmatprep.mubr.bf16.mxu0 0
  %2284 = vmatmul.mubr.bf16.gmra.mrb[0].mxu0 %v1941
  %v2285 = vpop.f32.mrb[0].mxu0
  %v2286 = vadd.f32 0.0, %v2285
  %v2287 = vpop.f32.mrb[0].mxu0
  %v2288 = vadd.f32 0.0, %v2287
  %v2289 = vpop.f32.mrb[0].mxu0
  %v2290 = vadd.f32 0.0, %v2289
  %v2291 = vpop.f32.mrb[0].mxu0
  %v2292 = vadd.f32 0.0, %v2291
  %2293 = vmatprep.mubr.bf16.mxu0 0
  %2294 = vmatmul.mubr.bf16.gmra.mrb[0].mxu0 %v1944
  %v2295 = vpop.f32.mrb[0].mxu0
  %v2296 = vadd.f32 0.0, %v2295
  %v2297 = vpop.f32.mrb[0].mxu0
  %v2298 = vadd.f32 0.0, %v2297
  %v2299 = vpop.f32.mrb[0].mxu0
  %v2300 = vadd.f32 0.0, %v2299
  %v2301 = vpop.f32.mrb[0].mxu0
  %v2302 = vadd.f32 0.0, %v2301
  %2303 = vmatprep.mubr.bf16.mxu0 0
  %2304 = vmatmul.mubr.bf16.gmra.mrb[0].mxu0 %v1947
  %v2305 = vpop.f32.mrb[0].mxu0
  %v2306 = vadd.f32 0.0, %v2305
  %v2307 = vpop.f32.mrb[0].mxu0
  %v2308 = vadd.f32 0.0, %v2307
  %v2309 = vpop.f32.mrb[0].mxu0
  %v2310 = vadd.f32 0.0, %v2309
  %v2311 = vpop.f32.mrb[0].mxu0
  %v2312 = vadd.f32 0.0, %v2311
  %2313 = vmatprep.mubr.bf16.mxu0 0
  %2314 = vmatmul.mubr.bf16.gmra.mrb[0].mxu0 %v1950
  %v2315 = vpop.f32.mrb[0].mxu0
  %v2316 = vadd.f32 0.0, %v2315
  %v2317 = vpop.f32.mrb[0].mxu0
  %v2318 = vadd.f32 0.0, %v2317
  %v2319 = vpop.f32.mrb[0].mxu0
  %v2320 = vadd.f32 0.0, %v2319
  %v2321 = vpop.f32.mrb[0].mxu0
  %v2322 = vadd.f32 0.0, %v2321
  %2323 = vmatprep.mubr.bf16.mxu0 0
  %2324 = vmatmul.mubr.bf16.gmra.mrb[0].mxu0 %v1953
  %v2325 = vpop.f32.mrb[0].mxu0
  %v2326 = vadd.f32 0.0, %v2325
  %v2327 = vpop.f32.mrb[0].mxu0
  %v2328 = vadd.f32 0.0, %v2327
  %v2329 = vpop.f32.mrb[0].mxu0
  %v2330 = vadd.f32 0.0, %v2329
  %v2331 = vpop.f32.mrb[0].mxu0
  %v2332 = vadd.f32 0.0, %v2331
  %2333 = vmatprep.mubr.bf16.mxu0 0
  %2334 = vmatmul.mubr.bf16.gmra.mrb[0].mxu0 %v1956
  %v2335 = vpop.f32.mrb[0].mxu0
  %v2336 = vadd.f32 0.0, %v2335
  %v2337 = vpop.f32.mrb[0].mxu0
  %v2338 = vadd.f32 0.0, %v2337
  %v2339 = vpop.f32.mrb[0].mxu0
  %v2340 = vadd.f32 0.0, %v2339
  %v2341 = vpop.f32.mrb[0].mxu0
  %v2342 = vadd.f32 0.0, %v2341
  %2343 = vdwg.mxu0
  %v2344 = vpack.c.bf16 %v1997, %v1993
  %v2345 = vpack.c.bf16 %v1999, %v1995
  %v2346 = vpack.c.bf16 %v2190, %v2186
  %v2347 = vpack.c.bf16 %v2192, %v2188
  %v2348 = vpack.c.bf16 %v2007, %v2003
  %v2349 = vpack.c.bf16 %v2009, %v2005
  %v2350 = vpack.c.bf16 %v2200, %v2196
  %v2351 = vpack.c.bf16 %v2202, %v2198
  %v2352 = vpack.c.bf16 %v2017, %v2013
  %v2353 = vpack.c.bf16 %v2019, %v2015
  %v2354 = vpack.c.bf16 %v2210, %v2206
  %v2355 = vpack.c.bf16 %v2212, %v2208
  %v2356 = vpack.c.bf16 %v2027, %v2023
  %v2357 = vpack.c.bf16 %v2029, %v2025
  %v2358 = vpack.c.bf16 %v2220, %v2216
  %v2359 = vpack.c.bf16 %v2222, %v2218
  %v2360 = vpack.c.bf16 %v2037, %v2033
  %v2361 = vpack.c.bf16 %v2039, %v2035
  %v2362 = vpack.c.bf16 %v2230, %v2226
  %v2363 = vpack.c.bf16 %v2232, %v2228
  %v2364 = vpack.c.bf16 %v2047, %v2043
  %v2365 = vpack.c.bf16 %v2049, %v2045
  %v2366 = vpack.c.bf16 %v2240, %v2236
  %v2367 = vpack.c.bf16 %v2242, %v2238
  %v2368 = vpack.c.bf16 %v2057, %v2053
  %v2369 = vpack.c.bf16 %v2059, %v2055
  %v2370 = vpack.c.bf16 %v2250, %v2246
  %v2371 = vpack.c.bf16 %v2252, %v2248
  %v2372 = vpack.c.bf16 %v2067, %v2063
  %v2373 = vpack.c.bf16 %v2069, %v2065
  %v2374 = vpack.c.bf16 %v2260, %v2256
  %v2375 = vpack.c.bf16 %v2262, %v2258
  %v2376 = vpack.c.bf16 %v2077, %v2073
  %v2377 = vpack.c.bf16 %v2079, %v2075
  %v2378 = vpack.c.bf16 %v2270, %v2266
  %v2379 = vpack.c.bf16 %v2272, %v2268
  %v2380 = vpack.c.bf16 %v2087, %v2083
  %v2381 = vpack.c.bf16 %v2089, %v2085
  %v2382 = vpack.c.bf16 %v2280, %v2276
  %v2383 = vpack.c.bf16 %v2282, %v2278
  %v2384 = vpack.c.bf16 %v2097, %v2093
  %v2385 = vpack.c.bf16 %v2099, %v2095
  %v2386 = vpack.c.bf16 %v2290, %v2286
  %v2387 = vpack.c.bf16 %v2292, %v2288
  %v2388 = vpack.c.bf16 %v2107, %v2103
  %v2389 = vpack.c.bf16 %v2109, %v2105
  %v2390 = vpack.c.bf16 %v2300, %v2296
  %v2391 = vpack.c.bf16 %v2302, %v2298
  %v2392 = vpack.c.bf16 %v2117, %v2113
  %v2393 = vpack.c.bf16 %v2119, %v2115
  %v2394 = vpack.c.bf16 %v2310, %v2306
  %v2395 = vpack.c.bf16 %v2312, %v2308
  %v2396 = vpack.c.bf16 %v2127, %v2123
  %v2397 = vpack.c.bf16 %v2129, %v2125
  %v2398 = vpack.c.bf16 %v2320, %v2316
  %v2399 = vpack.c.bf16 %v2322, %v2318
  %v2400 = vpack.c.bf16 %v2137, %v2133
  %v2401 = vpack.c.bf16 %v2139, %v2135
  %v2402 = vpack.c.bf16 %v2330, %v2326
  %v2403 = vpack.c.bf16 %v2332, %v2328
  %v2404 = vpack.c.bf16 %v2147, %v2143
  %v2405 = vpack.c.bf16 %v2149, %v2145
  %v2406 = vpack.c.bf16 %v2340, %v2336
  %v2407 = vpack.c.bf16 %v2342, %v2338
  %2408 = vst [vmem:[#allocation4] sm:$0xff] %v2344
  %2409 = vst [vmem:[#allocation4 + $0x8] sm:$0xff] %v2345
  %2410 = vst [vmem:[#allocation4 + $0x10] sm:$0xff] %v2346
  %2411 = vst [vmem:[#allocation4 + $0x18] sm:$0xff] %v2347
  %2412 = vst [vmem:[#allocation4 + $0x20] sm:$0xff] %v2348
  %2413 = vst [vmem:[#allocation4 + $0x28] sm:$0xff] %v2349
  %2414 = vst [vmem:[#allocation4 + $0x30] sm:$0xff] %v2350
  %2415 = vst [vmem:[#allocation4 + $0x38] sm:$0xff] %v2351
  %2416 = vst [vmem:[#allocation4 + $0x40] sm:$0xff] %v2352
  %2417 = vst [vmem:[#allocation4 + $0x48] sm:$0xff] %v2353
  %2418 = vst [vmem:[#allocation4 + $0x50] sm:$0xff] %v2354
  %2419 = vst [vmem:[#allocation4 + $0x58] sm:$0xff] %v2355
  %2420 = vst [vmem:[#allocation4 + $0x60] sm:$0xff] %v2356
  %2421 = vst [vmem:[#allocation4 + $0x68] sm:$0xff] %v2357
  %2422 = vst [vmem:[#allocation4 + $0x70] sm:$0xff] %v2358
  %2423 = vst [vmem:[#allocation4 + $0x78] sm:$0xff] %v2359
  %2424 = vst [vmem:[#allocation4 + $0x80] sm:$0xff] %v2360
  %2425 = vst [vmem:[#allocation4 + $0x88] sm:$0xff] %v2361
  %2426 = vst [vmem:[#allocation4 + $0x90] sm:$0xff] %v2362
  %2427 = vst [vmem:[#allocation4 + $0x98] sm:$0xff] %v2363
  %2428 = vst [vmem:[#allocation4 + $0xa0] sm:$0xff] %v2364
  %2429 = vst [vmem:[#allocation4 + $0xa8] sm:$0xff] %v2365
  %2430 = vst [vmem:[#allocation4 + $0xb0] sm:$0xff] %v2366
  %2431 = vst [vmem:[#allocation4 + $0xb8] sm:$0xff] %v2367
  %2432 = vst [vmem:[#allocation4 + $0xc0] sm:$0xff] %v2368
  %2433 = vst [vmem:[#allocation4 + $0xc8] sm:$0xff] %v2369
  %2434 = vst [vmem:[#allocation4 + $0xd0] sm:$0xff] %v2370
  %2435 = vst [vmem:[#allocation4 + $0xd8] sm:$0xff] %v2371
  %2436 = vst [vmem:[#allocation4 + $0xe0] sm:$0xff] %v2372
  %2437 = vst [vmem:[#allocation4 + $0xe8] sm:$0xff] %v2373
  %2438 = vst [vmem:[#allocation4 + $0xf0] sm:$0xff] %v2374
  %2439 = vst [vmem:[#allocation4 + $0xf8] sm:$0xff] %v2375
  %2440 = vst [vmem:[#allocation4 + $0x100] sm:$0xff] %v2376
  %2441 = vst [vmem:[#allocation4 + $0x108] sm:$0xff] %v2377
  %2442 = vst [vmem:[#allocation4 + $0x110] sm:$0xff] %v2378
  %2443 = vst [vmem:[#allocation4 + $0x118] sm:$0xff] %v2379
  %2444 = vst [vmem:[#allocation4 + $0x120] sm:$0xff] %v2380
  %2445 = vst [vmem:[#allocation4 + $0x128] sm:$0xff] %v2381
  %2446 = vst [vmem:[#allocation4 + $0x130] sm:$0xff] %v2382
  %2447 = vst [vmem:[#allocation4 + $0x138] sm:$0xff] %v2383
  %2448 = vst [vmem:[#allocation4 + $0x140] sm:$0xff] %v2384
  %2449 = vst [vmem:[#allocation4 + $0x148] sm:$0xff] %v2385
  %2450 = vst [vmem:[#allocation4 + $0x150] sm:$0xff] %v2386
  %2451 = vst [vmem:[#allocation4 + $0x158] sm:$0xff] %v2387
  %2452 = vst [vmem:[#allocation4 + $0x160] sm:$0xff] %v2388
  %2453 = vst [vmem:[#allocation4 + $0x168] sm:$0xff] %v2389
  %2454 = vst [vmem:[#allocation4 + $0x170] sm:$0xff] %v2390
  %2455 = vst [vmem:[#allocation4 + $0x178] sm:$0xff] %v2391
  %2456 = vst [vmem:[#allocation4 + $0x180] sm:$0xff] %v2392
  %2457 = vst [vmem:[#allocation4 + $0x188] sm:$0xff] %v2393
  %2458 = vst [vmem:[#allocation4 + $0x190] sm:$0xff] %v2394
  %2459 = vst [vmem:[#allocation4 + $0x198] sm:$0xff] %v2395
  %2460 = vst [vmem:[#allocation4 + $0x1a0] sm:$0xff] %v2396
  %2461 = vst [vmem:[#allocation4 + $0x1a8] sm:$0xff] %v2397
  %2462 = vst [vmem:[#allocation4 + $0x1b0] sm:$0xff] %v2398
  %2463 = vst [vmem:[#allocation4 + $0x1b8] sm:$0xff] %v2399
  %2464 = vst [vmem:[#allocation4 + $0x1c0] sm:$0xff] %v2400
  %2465 = vst [vmem:[#allocation4 + $0x1c8] sm:$0xff] %v2401
  %2466 = vst [vmem:[#allocation4 + $0x1d0] sm:$0xff] %v2402
  %2467 = vst [vmem:[#allocation4 + $0x1d8] sm:$0xff] %v2403
  %2468 = vst [vmem:[#allocation4 + $0x1e0] sm:$0xff] %v2404
  %2469 = vst [vmem:[#allocation4 + $0x1e8] sm:$0xff] %v2405
  %2470 = vst [vmem:[#allocation4 + $0x1f0] sm:$0xff] %v2406
  %2471 = vst [vmem:[#allocation4 + $0x1f8] sm:$0xff] %v2407
  %v2472 = vld [vmem:[%s0] sm:$0xff]
  %v2473 = vld [vmem:[%s0 + $0x8] sm:$0xff]
  %v2474 = vld [vmem:[%s0 + $0x10] sm:$0xff]
  %v2475 = vld [vmem:[%s0 + $0x18] sm:$0xff]
  %v2476 = vld [vmem:[%s0 + $0x20] sm:$0xff]
  %v2477 = vld [vmem:[%s0 + $0x28] sm:$0xff]
  %v2478 = vld [vmem:[%s0 + $0x30] sm:$0xff]
  %v2479 = vld [vmem:[%s0 + $0x38] sm:$0xff]
  %v2480 = vld [vmem:[%s0 + $0x40] sm:$0xff]
  %v2481 = vld [vmem:[%s0 + $0x48] sm:$0xff]
  %v2482 = vld [vmem:[%s0 + $0x50] sm:$0xff]
  %v2483 = vld [vmem:[%s0 + $0x58] sm:$0xff]
  %v2484 = vld [vmem:[%s0 + $0x60] sm:$0xff]
  %v2485 = vld [vmem:[%s0 + $0x68] sm:$0xff]
  %v2486 = vld [vmem:[%s0 + $0x70] sm:$0xff]
  %v2487 = vld [vmem:[%s0 + $0x78] sm:$0xff]
  %v2488 = vld [vmem:[#allocation2] sm:$0xff]
  %v2489 = vld [vmem:[#allocation2 + $0x20] sm:$0xff]
  %v2490 = vld [vmem:[#allocation2 + $0x40] sm:$0xff]
  %v2491 = vld [vmem:[#allocation2 + $0x60] sm:$0xff]
  %v2492 = vld [vmem:[#allocation2 + $0x80] sm:$0xff]
  %v2493 = vld [vmem:[#allocation2 + $0xa0] sm:$0xff]
  %v2494 = vld [vmem:[#allocation2 + $0xc0] sm:$0xff]
  %v2495 = vld [vmem:[#allocation2 + $0xe0] sm:$0xff]
  %v2496 = vld [vmem:[#allocation3] sm:$0xff]
  %v2497 = vld [vmem:[#allocation3 + $0x20] sm:$0xff]
  %v2498 = vld [vmem:[#allocation3 + $0x40] sm:$0xff]
  %v2499 = vld [vmem:[#allocation3 + $0x60] sm:$0xff]
  %v2500 = vld [vmem:[#allocation3 + $0x80] sm:$0xff]
  %v2501 = vld [vmem:[#allocation3 + $0xa0] sm:$0xff]
  %v2502 = vld [vmem:[#allocation3 + $0xc0] sm:$0xff]
  %v2503 = vld [vmem:[#allocation3 + $0xe0] sm:$0xff]
  %v2504 = vld [vmem:[#allocation4] sm:$0xff]
  %v2505 = vld [vmem:[#allocation4 + $0x20] sm:$0xff]
  %v2506 = vld [vmem:[#allocation4 + $0x40] sm:$0xff]
  %v2507 = vld [vmem:[#allocation4 + $0x60] sm:$0xff]
  %v2508 = vld [vmem:[#allocation4 + $0x80] sm:$0xff]
  %v2509 = vld [vmem:[#allocation4 + $0xa0] sm:$0xff]
  %v2510 = vld [vmem:[#allocation4 + $0xc0] sm:$0xff]
  %v2511 = vld [vmem:[#allocation4 + $0xe0] sm:$0xff]
  %v2513 = vsel %vm305, %v2488, 0
  %v2516 = vsel %vm305, %v2489, 0
  %v2519 = vsel %vm305, %v2490, 0
  %v2522 = vsel %vm305, %v2491, 0
  %v2525 = vsel %vm305, %v2492, 0
  %v2528 = vsel %vm305, %v2493, 0
  %v2531 = vsel %vm305, %v2494, 0
  %v2534 = vsel %vm305, %v2495, 0
  %v2537 = vsel %vm305, %v2496, 0
  %v2540 = vsel %vm305, %v2497, 0
  %v2543 = vsel %vm305, %v2498, 0
  %v2546 = vsel %vm305, %v2499, 0
  %v2549 = vsel %vm305, %v2500, 0
  %v2552 = vsel %vm305, %v2501, 0
  %v2555 = vsel %vm305, %v2502, 0
  %v2558 = vsel %vm305, %v2503, 0
  %2560 = vmatprep.subr.bf16.mxu0 0
  %2561 = vmatpush1.bf16.xpose.msra.mxu0 %v2537
  %2562 = vmatprep.subr.bf16.mxu0 0
  %2563 = vmatpush1.bf16.xpose.msra.mxu0 %v2540
  %2564 = vmatprep.subr.bf16.mxu0 0
  %2565 = vmatpush1.bf16.xpose.msra.mxu0 %v2543
  %2566 = vmatprep.subr.bf16.mxu0 0
  %2567 = vmatpush1.bf16.xpose.msra.mxu0 %v2546
  %2568 = vmatprep.subr.bf16.mxu0 0
  %2569 = vmatpush1.bf16.xpose.msra.mxu0 %v2549
  %2570 = vmatprep.subr.bf16.mxu0 0
  %2571 = vmatpush1.bf16.xpose.msra.mxu0 %v2552
  %2572 = vmatprep.subr.bf16.mxu0 0
  %2573 = vmatpush1.bf16.xpose.msra.mxu0 %v2555
  %2574 = vmatprep.subr.bf16.mxu0 0
  %2575 = vmatpush1.bf16.xpose.msra.mxu0 %v2558
  %2576 = vmatprep.subr.bf16.mxu0 0
  %2577 = vmatpush1.bf16.xpose.msra.mxu0 0
  %2578 = vmatprep.subr.bf16.mxu0 0
  %2579 = vmatpush1.bf16.xpose.msra.mxu0 0
  %2580 = vmatprep.subr.bf16.mxu0 0
  %2581 = vmatpush1.bf16.xpose.msra.mxu0 0
  %2582 = vmatprep.subr.bf16.mxu0 0
  %2583 = vmatpush1.bf16.xpose.msra.mxu0 0
  %2584 = vmatprep.subr.bf16.mxu0 0
  %2585 = vmatpush1.bf16.xpose.msra.mxu0 0
  %2586 = vmatprep.subr.bf16.mxu0 0
  %2587 = vmatpush1.bf16.xpose.msra.mxu0 0
  %2588 = vmatprep.subr.bf16.mxu0 0
  %2589 = vmatpush1.bf16.xpose.msra.mxu0 0
  %2590 = vmatprep.subr.bf16.mxu0 0
  %2591 = vmatpush1.bf16.xpose.msra.mxu0 0
  %2592 = vmatprep.mubr.bf16.mxu0 0
  %2593 = vmatmul.mubr.bf16.gmra.mrb[0].mxu0 %v2513
  %v2594 = vpop.f32.mrb[0].mxu0
  %v2595 = vadd.f32 %v2472, %v2594
  %v2596 = vpop.f32.mrb[0].mxu0
  %v2597 = vpop.f32.mrb[0].mxu0
  %v2598 = vadd.f32 %v2473, %v2597
  %v2599 = vpop.f32.mrb[0].mxu0
  %2600 = vmatprep.mubr.bf16.mxu0 0
  %2601 = vmatmul.mubr.bf16.gmra.mrb[0].mxu0 %v2516
  %v2602 = vpop.f32.mrb[0].mxu0
  %v2603 = vadd.f32 %v2474, %v2602
  %v2604 = vpop.f32.mrb[0].mxu0
  %v2605 = vpop.f32.mrb[0].mxu0
  %v2606 = vadd.f32 %v2475, %v2605
  %v2607 = vpop.f32.mrb[0].mxu0
  %2608 = vmatprep.mubr.bf16.mxu0 0
  %2609 = vmatmul.mubr.bf16.gmra.mrb[0].mxu0 %v2519
  %v2610 = vpop.f32.mrb[0].mxu0
  %v2611 = vadd.f32 %v2476, %v2610
  %v2612 = vpop.f32.mrb[0].mxu0
  %v2613 = vpop.f32.mrb[0].mxu0
  %v2614 = vadd.f32 %v2477, %v2613
  %v2615 = vpop.f32.mrb[0].mxu0
  %2616 = vmatprep.mubr.bf16.mxu0 0
  %2617 = vmatmul.mubr.bf16.gmra.mrb[0].mxu0 %v2522
  %v2618 = vpop.f32.mrb[0].mxu0
  %v2619 = vadd.f32 %v2478, %v2618
  %v2620 = vpop.f32.mrb[0].mxu0
  %v2621 = vpop.f32.mrb[0].mxu0
  %v2622 = vadd.f32 %v2479, %v2621
  %v2623 = vpop.f32.mrb[0].mxu0
  %2624 = vmatprep.mubr.bf16.mxu0 0
  %2625 = vmatmul.mubr.bf16.gmra.mrb[0].mxu0 %v2525
  %v2626 = vpop.f32.mrb[0].mxu0
  %v2627 = vadd.f32 %v2480, %v2626
  %v2628 = vpop.f32.mrb[0].mxu0
  %v2629 = vpop.f32.mrb[0].mxu0
  %v2630 = vadd.f32 %v2481, %v2629
  %v2631 = vpop.f32.mrb[0].mxu0
  %2632 = vmatprep.mubr.bf16.mxu0 0
  %2633 = vmatmul.mubr.bf16.gmra.mrb[0].mxu0 %v2528
  %v2634 = vpop.f32.mrb[0].mxu0
  %v2635 = vadd.f32 %v2482, %v2634
  %v2636 = vpop.f32.mrb[0].mxu0
  %v2637 = vpop.f32.mrb[0].mxu0
  %v2638 = vadd.f32 %v2483, %v2637
  %v2639 = vpop.f32.mrb[0].mxu0
  %2640 = vmatprep.mubr.bf16.mxu0 0
  %2641 = vmatmul.mubr.bf16.gmra.mrb[0].mxu0 %v2531
  %v2642 = vpop.f32.mrb[0].mxu0
  %v2643 = vadd.f32 %v2484, %v2642
  %v2644 = vpop.f32.mrb[0].mxu0
  %v2645 = vpop.f32.mrb[0].mxu0
  %v2646 = vadd.f32 %v2485, %v2645
  %v2647 = vpop.f32.mrb[0].mxu0
  %2648 = vmatprep.mubr.bf16.mxu0 0
  %2649 = vmatmul.mubr.bf16.gmra.mrb[0].mxu0 %v2534
  %v2650 = vpop.f32.mrb[0].mxu0
  %v2651 = vadd.f32 %v2486, %v2650
  %v2652 = vpop.f32.mrb[0].mxu0
  %v2653 = vpop.f32.mrb[0].mxu0
  %v2654 = vadd.f32 %v2487, %v2653
  %v2655 = vpop.f32.mrb[0].mxu0
  %2656 = vdwg.mxu0
  %2657 = vmax.xlane.f32.xlu0 %v2595
  %v2658 = vpop.xlane.xlu0 %2657
  %2659 = vmax.xlane.f32.xlu0 %v2598
  %v2660 = vpop.xlane.xlu0 %2659
  %2661 = vmax.xlane.f32.xlu0 %v2603
  %v2662 = vpop.xlane.xlu0 %2661
  %2663 = vmax.xlane.f32.xlu0 %v2606
  %v2664 = vpop.xlane.xlu0 %2663
  %2665 = vmax.xlane.f32.xlu0 %v2611
  %v2666 = vpop.xlane.xlu0 %2665
  %2667 = vmax.xlane.f32.xlu0 %v2614
  %v2668 = vpop.xlane.xlu0 %2667
  %2669 = vmax.xlane.f32.xlu0 %v2619
  %v2670 = vpop.xlane.xlu0 %2669
  %2671 = vmax.xlane.f32.xlu0 %v2622
  %v2672 = vpop.xlane.xlu0 %2671
  %2673 = vmax.xlane.f32.xlu0 %v2627
  %v2674 = vpop.xlane.xlu0 %2673
  %2675 = vmax.xlane.f32.xlu0 %v2630
  %v2676 = vpop.xlane.xlu0 %2675
  %2677 = vmax.xlane.f32.xlu0 %v2635
  %v2678 = vpop.xlane.xlu0 %2677
  %2679 = vmax.xlane.f32.xlu0 %v2638
  %v2680 = vpop.xlane.xlu0 %2679
  %2681 = vmax.xlane.f32.xlu0 %v2643
  %v2682 = vpop.xlane.xlu0 %2681
  %2683 = vmax.xlane.f32.xlu0 %v2646
  %v2684 = vpop.xlane.xlu0 %2683
  %2685 = vmax.xlane.f32.xlu0 %v2651
  %v2686 = vpop.xlane.xlu0 %2685
  %2687 = vmax.xlane.f32.xlu0 %v2654
  %v2688 = vpop.xlane.xlu0 %2687
  %v2689 = vsub.f32 %v2595, %v2658
  %v2690 = vsub.f32 %v2598, %v2660
  %v2691 = vsub.f32 %v2603, %v2662
  %v2692 = vsub.f32 %v2606, %v2664
  %v2693 = vsub.f32 %v2611, %v2666
  %v2694 = vsub.f32 %v2614, %v2668
  %v2695 = vsub.f32 %v2619, %v2670
  %v2696 = vsub.f32 %v2622, %v2672
  %v2697 = vsub.f32 %v2627, %v2674
  %v2698 = vsub.f32 %v2630, %v2676
  %v2699 = vsub.f32 %v2635, %v2678
  %v2700 = vsub.f32 %v2638, %v2680
  %v2701 = vsub.f32 %v2643, %v2682
  %v2702 = vsub.f32 %v2646, %v2684
  %v2703 = vsub.f32 %v2651, %v2686
  %v2704 = vsub.f32 %v2654, %v2688
  %v2705 = vmul.f32 %v2689, 1.442695
  %v2706 = vpow.pop %v2705
  %v2707 = vmul.f32 %v2690, 1.442695
  %v2708 = vpow.pop %v2707
  %v2709 = vmul.f32 %v2691, 1.442695
  %v2710 = vpow.pop %v2709
  %v2711 = vmul.f32 %v2692, 1.442695
  %v2712 = vpow.pop %v2711
  %v2713 = vmul.f32 %v2693, 1.442695
  %v2714 = vpow.pop %v2713
  %v2715 = vmul.f32 %v2694, 1.442695
  %v2716 = vpow.pop %v2715
  %v2717 = vmul.f32 %v2695, 1.442695
  %v2718 = vpow.pop %v2717
  %v2719 = vmul.f32 %v2696, 1.442695
  %v2720 = vpow.pop %v2719
  %v2721 = vmul.f32 %v2697, 1.442695
  %v2722 = vpow.pop %v2721
  %v2723 = vmul.f32 %v2698, 1.442695
  %v2724 = vpow.pop %v2723
  %v2725 = vmul.f32 %v2699, 1.442695
  %v2726 = vpow.pop %v2725
  %v2727 = vmul.f32 %v2700, 1.442695
  %v2728 = vpow.pop %v2727
  %v2729 = vmul.f32 %v2701, 1.442695
  %v2730 = vpow.pop %v2729
  %v2731 = vmul.f32 %v2702, 1.442695
  %v2732 = vpow.pop %v2731
  %v2733 = vmul.f32 %v2703, 1.442695
  %v2734 = vpow.pop %v2733
  %v2735 = vmul.f32 %v2704, 1.442695
  %v2736 = vpow.pop %v2735
  %2737 = vadd.xlane.f32.xlu0 %v2706
  %v2738 = vpop.xlane.xlu0 %2737
  %2739 = vadd.xlane.f32.xlu0 %v2708
  %v2740 = vpop.xlane.xlu0 %2739
  %2741 = vadd.xlane.f32.xlu0 %v2710
  %v2742 = vpop.xlane.xlu0 %2741
  %2743 = vadd.xlane.f32.xlu0 %v2712
  %v2744 = vpop.xlane.xlu0 %2743
  %2745 = vadd.xlane.f32.xlu0 %v2714
  %v2746 = vpop.xlane.xlu0 %2745
  %2747 = vadd.xlane.f32.xlu0 %v2716
  %v2748 = vpop.xlane.xlu0 %2747
  %2749 = vadd.xlane.f32.xlu0 %v2718
  %v2750 = vpop.xlane.xlu0 %2749
  %2751 = vadd.xlane.f32.xlu0 %v2720
  %v2752 = vpop.xlane.xlu0 %2751
  %2753 = vadd.xlane.f32.xlu0 %v2722
  %v2754 = vpop.xlane.xlu0 %2753
  %2755 = vadd.xlane.f32.xlu0 %v2724
  %v2756 = vpop.xlane.xlu0 %2755
  %2757 = vadd.xlane.f32.xlu0 %v2726
  %v2758 = vpop.xlane.xlu0 %2757
  %2759 = vadd.xlane.f32.xlu0 %v2728
  %v2760 = vpop.xlane.xlu0 %2759
  %2761 = vadd.xlane.f32.xlu0 %v2730
  %v2762 = vpop.xlane.xlu0 %2761
  %2763 = vadd.xlane.f32.xlu0 %v2732
  %v2764 = vpop.xlane.xlu0 %2763
  %2765 = vadd.xlane.f32.xlu0 %v2734
  %v2766 = vpop.xlane.xlu0 %2765
  %2767 = vadd.xlane.f32.xlu0 %v2736
  %v2768 = vpop.xlane.xlu0 %2767
  %v2769 = vrcp.pop %v2738
  %v2770 = vrcp.pop %v2740
  %v2771 = vrcp.pop %v2742
  %v2772 = vrcp.pop %v2744
  %v2773 = vrcp.pop %v2746
  %v2774 = vrcp.pop %v2748
  %v2775 = vrcp.pop %v2750
  %v2776 = vrcp.pop %v2752
  %v2777 = vrcp.pop %v2754
  %v2778 = vrcp.pop %v2756
  %v2779 = vrcp.pop %v2758
  %v2780 = vrcp.pop %v2760
  %v2781 = vrcp.pop %v2762
  %v2782 = vrcp.pop %v2764
  %v2783 = vrcp.pop %v2766
  %v2784 = vrcp.pop %v2768
  %v2785 = vmul.f32 %v2706, %v2769
  %v2786 = vmul.f32 %v2708, %v2770
  %v2787 = vmul.f32 %v2710, %v2771
  %v2788 = vmul.f32 %v2712, %v2772
  %v2789 = vmul.f32 %v2714, %v2773
  %v2790 = vmul.f32 %v2716, %v2774
  %v2791 = vmul.f32 %v2718, %v2775
  %v2792 = vmul.f32 %v2720, %v2776
  %v2793 = vmul.f32 %v2722, %v2777
  %v2794 = vmul.f32 %v2724, %v2778
  %v2795 = vmul.f32 %v2726, %v2779
  %v2796 = vmul.f32 %v2728, %v2780
  %v2797 = vmul.f32 %v2730, %v2781
  %v2798 = vmul.f32 %v2732, %v2782
  %v2799 = vmul.f32 %v2734, %v2783
  %v2800 = vmul.f32 %v2736, %v2784
  %v2801 = vpack.c.bf16 %v2786, %v2785
  %v2802 = vpack.c.bf16 %v2788, %v2787
  %v2803 = vpack.c.bf16 %v2790, %v2789
  %v2804 = vpack.c.bf16 %v2792, %v2791
  %v2805 = vpack.c.bf16 %v2794, %v2793
  %v2806 = vpack.c.bf16 %v2796, %v2795
  %v2807 = vpack.c.bf16 %v2798, %v2797
  %v2808 = vpack.c.bf16 %v2800, %v2799
  %2809 = vmatprep.subr.bf16.mxu0 0
  %2810 = vmatpush1.bf16.msra.mxu0 %v2504
  %2811 = vmatprep.subr.bf16.mxu0 0
  %2812 = vmatpush1.bf16.msra.mxu0 %v2505
  %2813 = vmatprep.subr.bf16.mxu0 0
  %2814 = vmatpush1.bf16.msra.mxu0 %v2506
  %2815 = vmatprep.subr.bf16.mxu0 0
  %2816 = vmatpush1.bf16.msra.mxu0 %v2507
  %2817 = vmatprep.subr.bf16.mxu0 0
  %2818 = vmatpush1.bf16.msra.mxu0 %v2508
  %2819 = vmatprep.subr.bf16.mxu0 0
  %2820 = vmatpush1.bf16.msra.mxu0 %v2509
  %2821 = vmatprep.subr.bf16.mxu0 0
  %2822 = vmatpush1.bf16.msra.mxu0 %v2510
  %2823 = vmatprep.subr.bf16.mxu0 0
  %2824 = vmatpush1.bf16.msra.mxu0 %v2511
  %2825 = vmatprep.subr.bf16.mxu0 0
  %2826 = vmatpush1.bf16.msra.mxu0 0
  %2827 = vmatprep.subr.bf16.mxu0 0
  %2828 = vmatpush1.bf16.msra.mxu0 0
  %2829 = vmatprep.subr.bf16.mxu0 0
  %2830 = vmatpush1.bf16.msra.mxu0 0
  %2831 = vmatprep.subr.bf16.mxu0 0
  %2832 = vmatpush1.bf16.msra.mxu0 0
  %2833 = vmatprep.subr.bf16.mxu0 0
  %2834 = vmatpush1.bf16.msra.mxu0 0
  %2835 = vmatprep.subr.bf16.mxu0 0
  %2836 = vmatpush1.bf16.msra.mxu0 0
  %2837 = vmatprep.subr.bf16.mxu0 0
  %2838 = vmatpush1.bf16.msra.mxu0 0
  %2839 = vmatprep.subr.bf16.mxu0 0
  %2840 = vmatpush1.bf16.msra.mxu0 0
  %2841 = vmatprep.mubr.bf16.mxu0 0
  %2842 = vmatmul.mubr.bf16.gmra.mrb[0].mxu0 %v2801
  %v2843 = vpop.f32.mrb[0].mxu0
  %v2844 = vadd.f32 0.0, %v2843
  %v2845 = vpop.f32.mrb[0].mxu0
  %v2846 = vpop.f32.mrb[0].mxu0
  %v2847 = vadd.f32 0.0, %v2846
  %v2848 = vpop.f32.mrb[0].mxu0
  %2849 = vmatprep.mubr.bf16.mxu0 0
  %2850 = vmatmul.mubr.bf16.gmra.mrb[0].mxu0 %v2802
  %v2851 = vpop.f32.mrb[0].mxu0
  %v2852 = vadd.f32 0.0, %v2851
  %v2853 = vpop.f32.mrb[0].mxu0
  %v2854 = vpop.f32.mrb[0].mxu0
  %v2855 = vadd.f32 0.0, %v2854
  %v2856 = vpop.f32.mrb[0].mxu0
  %2857 = vmatprep.mubr.bf16.mxu0 0
  %2858 = vmatmul.mubr.bf16.gmra.mrb[0].mxu0 %v2803
  %v2859 = vpop.f32.mrb[0].mxu0
  %v2860 = vadd.f32 0.0, %v2859
  %v2861 = vpop.f32.mrb[0].mxu0
  %v2862 = vpop.f32.mrb[0].mxu0
  %v2863 = vadd.f32 0.0, %v2862
  %v2864 = vpop.f32.mrb[0].mxu0
  %2865 = vmatprep.mubr.bf16.mxu0 0
  %2866 = vmatmul.mubr.bf16.gmra.mrb[0].mxu0 %v2804
  %v2867 = vpop.f32.mrb[0].mxu0
  %v2868 = vadd.f32 0.0, %v2867
  %v2869 = vpop.f32.mrb[0].mxu0
  %v2870 = vpop.f32.mrb[0].mxu0
  %v2871 = vadd.f32 0.0, %v2870
  %v2872 = vpop.f32.mrb[0].mxu0
  %2873 = vmatprep.mubr.bf16.mxu0 0
  %2874 = vmatmul.mubr.bf16.gmra.mrb[0].mxu0 %v2805
  %v2875 = vpop.f32.mrb[0].mxu0
  %v2876 = vadd.f32 0.0, %v2875
  %v2877 = vpop.f32.mrb[0].mxu0
  %v2878 = vpop.f32.mrb[0].mxu0
  %v2879 = vadd.f32 0.0, %v2878
  %v2880 = vpop.f32.mrb[0].mxu0
  %2881 = vmatprep.mubr.bf16.mxu0 0
  %2882 = vmatmul.mubr.bf16.gmra.mrb[0].mxu0 %v2806
  %v2883 = vpop.f32.mrb[0].mxu0
  %v2884 = vadd.f32 0.0, %v2883
  %v2885 = vpop.f32.mrb[0].mxu0
  %v2886 = vpop.f32.mrb[0].mxu0
  %v2887 = vadd.f32 0.0, %v2886
  %v2888 = vpop.f32.mrb[0].mxu0
  %2889 = vmatprep.mubr.bf16.mxu0 0
  %2890 = vmatmul.mubr.bf16.gmra.mrb[0].mxu0 %v2807
  %v2891 = vpop.f32.mrb[0].mxu0
  %v2892 = vadd.f32 0.0, %v2891
  %v2893 = vpop.f32.mrb[0].mxu0
  %v2894 = vpop.f32.mrb[0].mxu0
  %v2895 = vadd.f32 0.0, %v2894
  %v2896 = vpop.f32.mrb[0].mxu0
  %2897 = vmatprep.mubr.bf16.mxu0 0
  %2898 = vmatmul.mubr.bf16.gmra.mrb[0].mxu0 %v2808
  %v2899 = vpop.f32.mrb[0].mxu0
  %v2900 = vadd.f32 0.0, %v2899
  %v2901 = vpop.f32.mrb[0].mxu0
  %v2902 = vpop.f32.mrb[0].mxu0
  %v2903 = vadd.f32 0.0, %v2902
  %v2904 = vpop.f32.mrb[0].mxu0
  %2905 = vdwg.mxu0
  %v2906 = vpack.c.bf16 %v2847, %v2844
  %v2907 = vpack.c.bf16 %v2855, %v2852
  %v2908 = vpack.c.bf16 %v2863, %v2860
  %v2909 = vpack.c.bf16 %v2871, %v2868
  %v2910 = vpack.c.bf16 %v2879, %v2876
  %v2911 = vpack.c.bf16 %v2887, %v2884
  %v2912 = vpack.c.bf16 %v2895, %v2892
  %v2913 = vpack.c.bf16 %v2903, %v2900
  %2914 = vst.msk [vmem:[#allocation5] sm:$0xff] %vm305, %v2906
  %2915 = vst.msk [vmem:[#allocation5 + $0x20] sm:$0xff] %vm305, %v2907
  %2916 = vst.msk [vmem:[#allocation5 + $0x40] sm:$0xff] %vm305, %v2908
  %2917 = vst.msk [vmem:[#allocation5 + $0x60] sm:$0xff] %vm305, %v2909
  %2918 = vst.msk [vmem:[#allocation5 + $0x80] sm:$0xff] %vm305, %v2910
  %2919 = vst.msk [vmem:[#allocation5 + $0xa0] sm:$0xff] %vm305, %v2911
  %2920 = vst.msk [vmem:[#allocation5 + $0xc0] sm:$0xff] %vm305, %v2912
  %2921 = vst.msk [vmem:[#allocation5 + $0xe0] sm:$0xff] %vm305, %v2913
  %v2922 = vld [vmem:[#allocation2] sm:$0xff]
  %v2923 = vld [vmem:[#allocation2 + $0x20] sm:$0xff]
  %v2924 = vld [vmem:[#allocation2 + $0x40] sm:$0xff]
  %v2925 = vld [vmem:[#allocation2 + $0x60] sm:$0xff]
  %v2926 = vld [vmem:[#allocation2 + $0x80] sm:$0xff]
  %v2927 = vld [vmem:[#allocation2 + $0xa0] sm:$0xff]
  %v2928 = vld [vmem:[#allocation2 + $0xc0] sm:$0xff]
  %v2929 = vld [vmem:[#allocation2 + $0xe0] sm:$0xff]
  %v2930 = vld [vmem:[#allocation3] sm:$0xff]
  %v2931 = vld [vmem:[#allocation3 + $0x20] sm:$0xff]
  %v2932 = vld [vmem:[#allocation3 + $0x40] sm:$0xff]
  %v2933 = vld [vmem:[#allocation3 + $0x60] sm:$0xff]
  %v2934 = vld [vmem:[#allocation3 + $0x80] sm:$0xff]
  %v2935 = vld [vmem:[#allocation3 + $0xa0] sm:$0xff]
  %v2936 = vld [vmem:[#allocation3 + $0xc0] sm:$0xff]
  %v2937 = vld [vmem:[#allocation3 + $0xe0] sm:$0xff]
  %v2938 = vld [vmem:[#allocation4] sm:$0xff]
  %v2939 = vld [vmem:[#allocation4 + $0x20] sm:$0xff]
  %v2940 = vld [vmem:[#allocation4 + $0x40] sm:$0xff]
  %v2941 = vld [vmem:[#allocation4 + $0x60] sm:$0xff]
  %v2942 = vld [vmem:[#allocation4 + $0x80] sm:$0xff]
  %v2943 = vld [vmem:[#allocation4 + $0xa0] sm:$0xff]
  %v2944 = vld [vmem:[#allocation4 + $0xc0] sm:$0xff]
  %v2945 = vld [vmem:[#allocation4 + $0xe0] sm:$0xff]
  %2954 = vrot.lane.b32.xlu0 %v2922, 64
  %v2955 = vpop.permute.xlu0 %2954
  %2956 = vrot.lane.b32.xlu0 %v2923, 64
  %v2957 = vpop.permute.xlu0 %2956
  %2958 = vrot.lane.b32.xlu0 %v2924, 64
  %v2959 = vpop.permute.xlu0 %2958
  %2960 = vrot.lane.b32.xlu0 %v2925, 64
  %v2961 = vpop.permute.xlu0 %2960
  %2962 = vrot.lane.b32.xlu0 %v2926, 64
  %v2963 = vpop.permute.xlu0 %2962
  %2964 = vrot.lane.b32.xlu0 %v2927, 64
  %v2965 = vpop.permute.xlu0 %2964
  %2966 = vrot.lane.b32.xlu0 %v2928, 64
  %v2967 = vpop.permute.xlu0 %2966
  %2968 = vrot.lane.b32.xlu0 %v2929, 64
  %v2969 = vpop.permute.xlu0 %2968
  %2978 = vrot.lane.b32.xlu0 %v2930, 64
  %v2979 = vpop.permute.xlu0 %2978
  %2980 = vrot.lane.b32.xlu0 %v2931, 64
  %v2981 = vpop.permute.xlu0 %2980
  %2982 = vrot.lane.b32.xlu0 %v2932, 64
  %v2983 = vpop.permute.xlu0 %2982
  %2984 = vrot.lane.b32.xlu0 %v2933, 64
  %v2985 = vpop.permute.xlu0 %2984
  %2986 = vrot.lane.b32.xlu0 %v2934, 64
  %v2987 = vpop.permute.xlu0 %2986
  %2988 = vrot.lane.b32.xlu0 %v2935, 64
  %v2989 = vpop.permute.xlu0 %2988
  %2990 = vrot.lane.b32.xlu0 %v2936, 64
  %v2991 = vpop.permute.xlu0 %2990
  %2992 = vrot.lane.b32.xlu0 %v2937, 64
  %v2993 = vpop.permute.xlu0 %2992
  %v2995 = vsel %vm305, %v2955, 0
  %v2998 = vsel %vm305, %v2957, 0
  %v3001 = vsel %vm305, %v2959, 0
  %v3004 = vsel %vm305, %v2961, 0
  %v3007 = vsel %vm305, %v2963, 0
  %v3010 = vsel %vm305, %v2965, 0
  %v3013 = vsel %vm305, %v2967, 0
  %v3016 = vsel %vm305, %v2969, 0
  %v3019 = vsel %vm305, %v2979, 0
  %v3022 = vsel %vm305, %v2981, 0
  %v3025 = vsel %vm305, %v2983, 0
  %v3028 = vsel %vm305, %v2985, 0
  %v3031 = vsel %vm305, %v2987, 0
  %v3034 = vsel %vm305, %v2989, 0
  %v3037 = vsel %vm305, %v2991, 0
  %v3040 = vsel %vm305, %v2993, 0
  %3042 = vmatprep.subr.bf16.mxu0 0
  %3043 = vmatpush1.bf16.xpose.msra.mxu0 %v3019
  %3044 = vmatprep.subr.bf16.mxu0 0
  %3045 = vmatpush1.bf16.xpose.msra.mxu0 %v3022
  %3046 = vmatprep.subr.bf16.mxu0 0
  %3047 = vmatpush1.bf16.xpose.msra.mxu0 %v3025
  %3048 = vmatprep.subr.bf16.mxu0 0
  %3049 = vmatpush1.bf16.xpose.msra.mxu0 %v3028
  %3050 = vmatprep.subr.bf16.mxu0 0
  %3051 = vmatpush1.bf16.xpose.msra.mxu0 %v3031
  %3052 = vmatprep.subr.bf16.mxu0 0
  %3053 = vmatpush1.bf16.xpose.msra.mxu0 %v3034
  %3054 = vmatprep.subr.bf16.mxu0 0
  %3055 = vmatpush1.bf16.xpose.msra.mxu0 %v3037
  %3056 = vmatprep.subr.bf16.mxu0 0
  %3057 = vmatpush1.bf16.xpose.msra.mxu0 %v3040
  %3058 = vmatprep.subr.bf16.mxu0 0
  %3059 = vmatpush1.bf16.xpose.msra.mxu0 0
  %3060 = vmatprep.subr.bf16.mxu0 0
  %3061 = vmatpush1.bf16.xpose.msra.mxu0 0
  %3062 = vmatprep.subr.bf16.mxu0 0
  %3063 = vmatpush1.bf16.xpose.msra.mxu0 0
  %3064 = vmatprep.subr.bf16.mxu0 0
  %3065 = vmatpush1.bf16.xpose.msra.mxu0 0
  %3066 = vmatprep.subr.bf16.mxu0 0
  %3067 = vmatpush1.bf16.xpose.msra.mxu0 0
  %3068 = vmatprep.subr.bf16.mxu0 0
  %3069 = vmatpush1.bf16.xpose.msra.mxu0 0
  %3070 = vmatprep.subr.bf16.mxu0 0
  %3071 = vmatpush1.bf16.xpose.msra.mxu0 0
  %3072 = vmatprep.subr.bf16.mxu0 0
  %3073 = vmatpush1.bf16.xpose.msra.mxu0 0
  %3074 = vmatprep.mubr.bf16.mxu0 0
  %3075 = vmatmul.mubr.bf16.gmra.mrb[0].mxu0 %v2995
  %v3076 = vpop.f32.mrb[0].mxu0
  %v3077 = vadd.f32 %v2472, %v3076
  %v3078 = vpop.f32.mrb[0].mxu0
  %v3079 = vpop.f32.mrb[0].mxu0
  %v3080 = vadd.f32 %v2473, %v3079
  %v3081 = vpop.f32.mrb[0].mxu0
  %3082 = vmatprep.mubr.bf16.mxu0 0
  %3083 = vmatmul.mubr.bf16.gmra.mrb[0].mxu0 %v2998
  %v3084 = vpop.f32.mrb[0].mxu0
  %v3085 = vadd.f32 %v2474, %v3084
  %v3086 = vpop.f32.mrb[0].mxu0
  %v3087 = vpop.f32.mrb[0].mxu0
  %v3088 = vadd.f32 %v2475, %v3087
  %v3089 = vpop.f32.mrb[0].mxu0
  %3090 = vmatprep.mubr.bf16.mxu0 0
  %3091 = vmatmul.mubr.bf16.gmra.mrb[0].mxu0 %v3001
  %v3092 = vpop.f32.mrb[0].mxu0
  %v3093 = vadd.f32 %v2476, %v3092
  %v3094 = vpop.f32.mrb[0].mxu0
  %v3095 = vpop.f32.mrb[0].mxu0
  %v3096 = vadd.f32 %v2477, %v3095
  %v3097 = vpop.f32.mrb[0].mxu0
  %3098 = vmatprep.mubr.bf16.mxu0 0
  %3099 = vmatmul.mubr.bf16.gmra.mrb[0].mxu0 %v3004
  %v3100 = vpop.f32.mrb[0].mxu0
  %v3101 = vadd.f32 %v2478, %v3100
  %v3102 = vpop.f32.mrb[0].mxu0
  %v3103 = vpop.f32.mrb[0].mxu0
  %v3104 = vadd.f32 %v2479, %v3103
  %v3105 = vpop.f32.mrb[0].mxu0
  %3106 = vmatprep.mubr.bf16.mxu0 0
  %3107 = vmatmul.mubr.bf16.gmra.mrb[0].mxu0 %v3007
  %v3108 = vpop.f32.mrb[0].mxu0
  %v3109 = vadd.f32 %v2480, %v3108
  %v3110 = vpop.f32.mrb[0].mxu0
  %v3111 = vpop.f32.mrb[0].mxu0
  %v3112 = vadd.f32 %v2481, %v3111
  %v3113 = vpop.f32.mrb[0].mxu0
  %3114 = vmatprep.mubr.bf16.mxu0 0
  %3115 = vmatmul.mubr.bf16.gmra.mrb[0].mxu0 %v3010
  %v3116 = vpop.f32.mrb[0].mxu0
  %v3117 = vadd.f32 %v2482, %v3116
  %v3118 = vpop.f32.mrb[0].mxu0
  %v3119 = vpop.f32.mrb[0].mxu0
  %v3120 = vadd.f32 %v2483, %v3119
  %v3121 = vpop.f32.mrb[0].mxu0
  %3122 = vmatprep.mubr.bf16.mxu0 0
  %3123 = vmatmul.mubr.bf16.gmra.mrb[0].mxu0 %v3013
  %v3124 = vpop.f32.mrb[0].mxu0
  %v3125 = vadd.f32 %v2484, %v3124
  %v3126 = vpop.f32.mrb[0].mxu0
  %v3127 = vpop.f32.mrb[0].mxu0
  %v3128 = vadd.f32 %v2485, %v3127
  %v3129 = vpop.f32.mrb[0].mxu0
  %3130 = vmatprep.mubr.bf16.mxu0 0
  %3131 = vmatmul.mubr.bf16.gmra.mrb[0].mxu0 %v3016
  %v3132 = vpop.f32.mrb[0].mxu0
  %v3133 = vadd.f32 %v2486, %v3132
  %v3134 = vpop.f32.mrb[0].mxu0
  %v3135 = vpop.f32.mrb[0].mxu0
  %v3136 = vadd.f32 %v2487, %v3135
  %v3137 = vpop.f32.mrb[0].mxu0
  %3138 = vdwg.mxu0
  %3139 = vmax.xlane.f32.xlu0 %v3077
  %v3140 = vpop.xlane.xlu0 %3139
  %3141 = vmax.xlane.f32.xlu0 %v3080
  %v3142 = vpop.xlane.xlu0 %3141
  %3143 = vmax.xlane.f32.xlu0 %v3085
  %v3144 = vpop.xlane.xlu0 %3143
  %3145 = vmax.xlane.f32.xlu0 %v3088
  %v3146 = vpop.xlane.xlu0 %3145
  %3147 = vmax.xlane.f32.xlu0 %v3093
  %v3148 = vpop.xlane.xlu0 %3147
  %3149 = vmax.xlane.f32.xlu0 %v3096
  %v3150 = vpop.xlane.xlu0 %3149
  %3151 = vmax.xlane.f32.xlu0 %v3101
  %v3152 = vpop.xlane.xlu0 %3151
  %3153 = vmax.xlane.f32.xlu0 %v3104
  %v3154 = vpop.xlane.xlu0 %3153
  %3155 = vmax.xlane.f32.xlu0 %v3109
  %v3156 = vpop.xlane.xlu0 %3155
  %3157 = vmax.xlane.f32.xlu0 %v3112
  %v3158 = vpop.xlane.xlu0 %3157
  %3159 = vmax.xlane.f32.xlu0 %v3117
  %v3160 = vpop.xlane.xlu0 %3159
  %3161 = vmax.xlane.f32.xlu0 %v3120
  %v3162 = vpop.xlane.xlu0 %3161
  %3163 = vmax.xlane.f32.xlu0 %v3125
  %v3164 = vpop.xlane.xlu0 %3163
  %3165 = vmax.xlane.f32.xlu0 %v3128
  %v3166 = vpop.xlane.xlu0 %3165
  %3167 = vmax.xlane.f32.xlu0 %v3133
  %v3168 = vpop.xlane.xlu0 %3167
  %3169 = vmax.xlane.f32.xlu0 %v3136
  %v3170 = vpop.xlane.xlu0 %3169
  %v3171 = vsub.f32 %v3077, %v3140
  %v3172 = vsub.f32 %v3080, %v3142
  %v3173 = vsub.f32 %v3085, %v3144
  %v3174 = vsub.f32 %v3088, %v3146
  %v3175 = vsub.f32 %v3093, %v3148
  %v3176 = vsub.f32 %v3096, %v3150
  %v3177 = vsub.f32 %v3101, %v3152
  %v3178 = vsub.f32 %v3104, %v3154
  %v3179 = vsub.f32 %v3109, %v3156
  %v3180 = vsub.f32 %v3112, %v3158
  %v3181 = vsub.f32 %v3117, %v3160
  %v3182 = vsub.f32 %v3120, %v3162
  %v3183 = vsub.f32 %v3125, %v3164
  %v3184 = vsub.f32 %v3128, %v3166
  %v3185 = vsub.f32 %v3133, %v3168
  %v3186 = vsub.f32 %v3136, %v3170
  %v3187 = vmul.f32 %v3171, 1.442695
  %v3188 = vpow.pop %v3187
  %v3189 = vmul.f32 %v3172, 1.442695
  %v3190 = vpow.pop %v3189
  %v3191 = vmul.f32 %v3173, 1.442695
  %v3192 = vpow.pop %v3191
  %v3193 = vmul.f32 %v3174, 1.442695
  %v3194 = vpow.pop %v3193
  %v3195 = vmul.f32 %v3175, 1.442695
  %v3196 = vpow.pop %v3195
  %v3197 = vmul.f32 %v3176, 1.442695
  %v3198 = vpow.pop %v3197
  %v3199 = vmul.f32 %v3177, 1.442695
  %v3200 = vpow.pop %v3199
  %v3201 = vmul.f32 %v3178, 1.442695
  %v3202 = vpow.pop %v3201
  %v3203 = vmul.f32 %v3179, 1.442695
  %v3204 = vpow.pop %v3203
  %v3205 = vmul.f32 %v3180, 1.442695
  %v3206 = vpow.pop %v3205
  %v3207 = vmul.f32 %v3181, 1.442695
  %v3208 = vpow.pop %v3207
  %v3209 = vmul.f32 %v3182, 1.442695
  %v3210 = vpow.pop %v3209
  %v3211 = vmul.f32 %v3183, 1.442695
  %v3212 = vpow.pop %v3211
  %v3213 = vmul.f32 %v3184, 1.442695
  %v3214 = vpow.pop %v3213
  %v3215 = vmul.f32 %v3185, 1.442695
  %v3216 = vpow.pop %v3215
  %v3217 = vmul.f32 %v3186, 1.442695
  %v3218 = vpow.pop %v3217
  %3219 = vadd.xlane.f32.xlu0 %v3188
  %v3220 = vpop.xlane.xlu0 %3219
  %3221 = vadd.xlane.f32.xlu0 %v3190
  %v3222 = vpop.xlane.xlu0 %3221
  %3223 = vadd.xlane.f32.xlu0 %v3192
  %v3224 = vpop.xlane.xlu0 %3223
  %3225 = vadd.xlane.f32.xlu0 %v3194
  %v3226 = vpop.xlane.xlu0 %3225
  %3227 = vadd.xlane.f32.xlu0 %v3196
  %v3228 = vpop.xlane.xlu0 %3227
  %3229 = vadd.xlane.f32.xlu0 %v3198
  %v3230 = vpop.xlane.xlu0 %3229
  %3231 = vadd.xlane.f32.xlu0 %v3200
  %v3232 = vpop.xlane.xlu0 %3231
  %3233 = vadd.xlane.f32.xlu0 %v3202
  %v3234 = vpop.xlane.xlu0 %3233
  %3235 = vadd.xlane.f32.xlu0 %v3204
  %v3236 = vpop.xlane.xlu0 %3235
  %3237 = vadd.xlane.f32.xlu0 %v3206
  %v3238 = vpop.xlane.xlu0 %3237
  %3239 = vadd.xlane.f32.xlu0 %v3208
  %v3240 = vpop.xlane.xlu0 %3239
  %3241 = vadd.xlane.f32.xlu0 %v3210
  %v3242 = vpop.xlane.xlu0 %3241
  %3243 = vadd.xlane.f32.xlu0 %v3212
  %v3244 = vpop.xlane.xlu0 %3243
  %3245 = vadd.xlane.f32.xlu0 %v3214
  %v3246 = vpop.xlane.xlu0 %3245
  %3247 = vadd.xlane.f32.xlu0 %v3216
  %v3248 = vpop.xlane.xlu0 %3247
  %3249 = vadd.xlane.f32.xlu0 %v3218
  %v3250 = vpop.xlane.xlu0 %3249
  %v3251 = vrcp.pop %v3220
  %v3252 = vrcp.pop %v3222
  %v3253 = vrcp.pop %v3224
  %v3254 = vrcp.pop %v3226
  %v3255 = vrcp.pop %v3228
  %v3256 = vrcp.pop %v3230
  %v3257 = vrcp.pop %v3232
  %v3258 = vrcp.pop %v3234
  %v3259 = vrcp.pop %v3236
  %v3260 = vrcp.pop %v3238
  %v3261 = vrcp.pop %v3240
  %v3262 = vrcp.pop %v3242
  %v3263 = vrcp.pop %v3244
  %v3264 = vrcp.pop %v3246
  %v3265 = vrcp.pop %v3248
  %v3266 = vrcp.pop %v3250
  %v3267 = vmul.f32 %v3188, %v3251
  %v3268 = vmul.f32 %v3190, %v3252
  %v3269 = vmul.f32 %v3192, %v3253
  %v3270 = vmul.f32 %v3194, %v3254
  %v3271 = vmul.f32 %v3196, %v3255
  %v3272 = vmul.f32 %v3198, %v3256
  %v3273 = vmul.f32 %v3200, %v3257
  %v3274 = vmul.f32 %v3202, %v3258
  %v3275 = vmul.f32 %v3204, %v3259
  %v3276 = vmul.f32 %v3206, %v3260
  %v3277 = vmul.f32 %v3208, %v3261
  %v3278 = vmul.f32 %v3210, %v3262
  %v3279 = vmul.f32 %v3212, %v3263
  %v3280 = vmul.f32 %v3214, %v3264
  %v3281 = vmul.f32 %v3216, %v3265
  %v3282 = vmul.f32 %v3218, %v3266
  %v3283 = vpack.c.bf16 %v3268, %v3267
  %v3284 = vpack.c.bf16 %v3270, %v3269
  %v3285 = vpack.c.bf16 %v3272, %v3271
  %v3286 = vpack.c.bf16 %v3274, %v3273
  %v3287 = vpack.c.bf16 %v3276, %v3275
  %v3288 = vpack.c.bf16 %v3278, %v3277
  %v3289 = vpack.c.bf16 %v3280, %v3279
  %v3290 = vpack.c.bf16 %v3282, %v3281
  %3299 = vrot.lane.b32.xlu0 %v2938, 64
  %v3300 = vpop.permute.xlu0 %3299
  %3301 = vrot.lane.b32.xlu0 %v2939, 64
  %v3302 = vpop.permute.xlu0 %3301
  %3303 = vrot.lane.b32.xlu0 %v2940, 64
  %v3304 = vpop.permute.xlu0 %3303
  %3305 = vrot.lane.b32.xlu0 %v2941, 64
  %v3306 = vpop.permute.xlu0 %3305
  %3307 = vrot.lane.b32.xlu0 %v2942, 64
  %v3308 = vpop.permute.xlu0 %3307
  %3309 = vrot.lane.b32.xlu0 %v2943, 64
  %v3310 = vpop.permute.xlu0 %3309
  %3311 = vrot.lane.b32.xlu0 %v2944, 64
  %v3312 = vpop.permute.xlu0 %3311
  %3313 = vrot.lane.b32.xlu0 %v2945, 64
  %v3314 = vpop.permute.xlu0 %3313
  %3323 = vmatprep.subr.bf16.mxu0 0
  %3324 = vmatpush1.bf16.msra.mxu0 %v3300
  %3325 = vmatprep.subr.bf16.mxu0 0
  %3326 = vmatpush1.bf16.msra.mxu0 %v3302
  %3327 = vmatprep.subr.bf16.mxu0 0
  %3328 = vmatpush1.bf16.msra.mxu0 %v3304
  %3329 = vmatprep.subr.bf16.mxu0 0
  %3330 = vmatpush1.bf16.msra.mxu0 %v3306
  %3331 = vmatprep.subr.bf16.mxu0 0
  %3332 = vmatpush1.bf16.msra.mxu0 %v3308
  %3333 = vmatprep.subr.bf16.mxu0 0
  %3334 = vmatpush1.bf16.msra.mxu0 %v3310
  %3335 = vmatprep.subr.bf16.mxu0 0
  %3336 = vmatpush1.bf16.msra.mxu0 %v3312
  %3337 = vmatprep.subr.bf16.mxu0 0
  %3338 = vmatpush1.bf16.msra.mxu0 %v3314
  %3339 = vmatprep.subr.bf16.mxu0 0
  %3340 = vmatpush1.bf16.msra.mxu0 0
  %3341 = vmatprep.subr.bf16.mxu0 0
  %3342 = vmatpush1.bf16.msra.mxu0 0
  %3343 = vmatprep.subr.bf16.mxu0 0
  %3344 = vmatpush1.bf16.msra.mxu0 0
  %3345 = vmatprep.subr.bf16.mxu0 0
  %3346 = vmatpush1.bf16.msra.mxu0 0
  %3347 = vmatprep.subr.bf16.mxu0 0
  %3348 = vmatpush1.bf16.msra.mxu0 0
  %3349 = vmatprep.subr.bf16.mxu0 0
  %3350 = vmatpush1.bf16.msra.mxu0 0
  %3351 = vmatprep.subr.bf16.mxu0 0
  %3352 = vmatpush1.bf16.msra.mxu0 0
  %3353 = vmatprep.subr.bf16.mxu0 0
  %3354 = vmatpush1.bf16.msra.mxu0 0
  %3355 = vmatprep.mubr.bf16.mxu0 0
  %3356 = vmatmul.mubr.bf16.gmra.mrb[0].mxu0 %v3283
  %v3357 = vpop.f32.mrb[0].mxu0
  %v3358 = vadd.f32 0.0, %v3357
  %v3359 = vpop.f32.mrb[0].mxu0
  %v3360 = vpop.f32.mrb[0].mxu0
  %v3361 = vadd.f32 0.0, %v3360
  %v3362 = vpop.f32.mrb[0].mxu0
  %3363 = vmatprep.mubr.bf16.mxu0 0
  %3364 = vmatmul.mubr.bf16.gmra.mrb[0].mxu0 %v3284
  %v3365 = vpop.f32.mrb[0].mxu0
  %v3366 = vadd.f32 0.0, %v3365
  %v3367 = vpop.f32.mrb[0].mxu0
  %v3368 = vpop.f32.mrb[0].mxu0
  %v3369 = vadd.f32 0.0, %v3368
  %v3370 = vpop.f32.mrb[0].mxu0
  %3371 = vmatprep.mubr.bf16.mxu0 0
  %3372 = vmatmul.mubr.bf16.gmra.mrb[0].mxu0 %v3285
  %v3373 = vpop.f32.mrb[0].mxu0
  %v3374 = vadd.f32 0.0, %v3373
  %v3375 = vpop.f32.mrb[0].mxu0
  %v3376 = vpop.f32.mrb[0].mxu0
  %v3377 = vadd.f32 0.0, %v3376
  %v3378 = vpop.f32.mrb[0].mxu0
  %3379 = vmatprep.mubr.bf16.mxu0 0
  %3380 = vmatmul.mubr.bf16.gmra.mrb[0].mxu0 %v3286
  %v3381 = vpop.f32.mrb[0].mxu0
  %v3382 = vadd.f32 0.0, %v3381
  %v3383 = vpop.f32.mrb[0].mxu0
  %v3384 = vpop.f32.mrb[0].mxu0
  %v3385 = vadd.f32 0.0, %v3384
  %v3386 = vpop.f32.mrb[0].mxu0
  %3387 = vmatprep.mubr.bf16.mxu0 0
  %3388 = vmatmul.mubr.bf16.gmra.mrb[0].mxu0 %v3287
  %v3389 = vpop.f32.mrb[0].mxu0
  %v3390 = vadd.f32 0.0, %v3389
  %v3391 = vpop.f32.mrb[0].mxu0
  %v3392 = vpop.f32.mrb[0].mxu0
  %v3393 = vadd.f32 0.0, %v3392
  %v3394 = vpop.f32.mrb[0].mxu0
  %3395 = vmatprep.mubr.bf16.mxu0 0
  %3396 = vmatmul.mubr.bf16.gmra.mrb[0].mxu0 %v3288
  %v3397 = vpop.f32.mrb[0].mxu0
  %v3398 = vadd.f32 0.0, %v3397
  %v3399 = vpop.f32.mrb[0].mxu0
  %v3400 = vpop.f32.mrb[0].mxu0
  %v3401 = vadd.f32 0.0, %v3400
  %v3402 = vpop.f32.mrb[0].mxu0
  %3403 = vmatprep.mubr.bf16.mxu0 0
  %3404 = vmatmul.mubr.bf16.gmra.mrb[0].mxu0 %v3289
  %v3405 = vpop.f32.mrb[0].mxu0
  %v3406 = vadd.f32 0.0, %v3405
  %v3407 = vpop.f32.mrb[0].mxu0
  %v3408 = vpop.f32.mrb[0].mxu0
  %v3409 = vadd.f32 0.0, %v3408
  %v3410 = vpop.f32.mrb[0].mxu0
  %3411 = vmatprep.mubr.bf16.mxu0 0
  %3412 = vmatmul.mubr.bf16.gmra.mrb[0].mxu0 %v3290
  %v3413 = vpop.f32.mrb[0].mxu0
  %v3414 = vadd.f32 0.0, %v3413
  %v3415 = vpop.f32.mrb[0].mxu0
  %v3416 = vpop.f32.mrb[0].mxu0
  %v3417 = vadd.f32 0.0, %v3416
  %v3418 = vpop.f32.mrb[0].mxu0
  %3419 = vdwg.mxu0
  %v3420 = vpack.c.bf16 %v3361, %v3358
  %v3421 = vpack.c.bf16 %v3369, %v3366
  %v3422 = vpack.c.bf16 %v3377, %v3374
  %v3423 = vpack.c.bf16 %v3385, %v3382
  %v3424 = vpack.c.bf16 %v3393, %v3390
  %v3425 = vpack.c.bf16 %v3401, %v3398
  %v3426 = vpack.c.bf16 %v3409, %v3406
  %v3427 = vpack.c.bf16 %v3417, %v3414
  %3436 = vrot.lane.b32.xlu0 %v3420, 64
  %v3437 = vpop.permute.xlu0 %3436
  %3438 = vrot.lane.b32.xlu0 %v3421, 64
  %v3439 = vpop.permute.xlu0 %3438
  %3440 = vrot.lane.b32.xlu0 %v3422, 64
  %v3441 = vpop.permute.xlu0 %3440
  %3442 = vrot.lane.b32.xlu0 %v3423, 64
  %v3443 = vpop.permute.xlu0 %3442
  %3444 = vrot.lane.b32.xlu0 %v3424, 64
  %v3445 = vpop.permute.xlu0 %3444
  %3446 = vrot.lane.b32.xlu0 %v3425, 64
  %v3447 = vpop.permute.xlu0 %3446
  %3448 = vrot.lane.b32.xlu0 %v3426, 64
  %v3449 = vpop.permute.xlu0 %3448
  %3450 = vrot.lane.b32.xlu0 %v3427, 64
  %v3451 = vpop.permute.xlu0 %3450
  %vm3460 = vcmask 1048064
  %3461 = vst.msk [vmem:[#allocation5] sm:$0xff] %vm3460, %v3437
  %3462 = vst.msk [vmem:[#allocation5 + $0x20] sm:$0xff] %vm3460, %v3439
  %3463 = vst.msk [vmem:[#allocation5 + $0x40] sm:$0xff] %vm3460, %v3441
  %3464 = vst.msk [vmem:[#allocation5 + $0x60] sm:$0xff] %vm3460, %v3443
  %3465 = vst.msk [vmem:[#allocation5 + $0x80] sm:$0xff] %vm3460, %v3445
  %3466 = vst.msk [vmem:[#allocation5 + $0xa0] sm:$0xff] %vm3460, %v3447
  %3467 = vst.msk [vmem:[#allocation5 + $0xc0] sm:$0xff] %vm3460, %v3449
  %3468 = vst.msk [vmem:[#allocation5 + $0xe0] sm:$0xff] %vm3460, %v3451
  %v3469 = vld [vmem:[#allocation2 + $0x8] sm:$0xff]
  %v3470 = vld [vmem:[#allocation2 + $0x28] sm:$0xff]
  %v3471 = vld [vmem:[#allocation2 + $0x48] sm:$0xff]
  %v3472 = vld [vmem:[#allocation2 + $0x68] sm:$0xff]
  %v3473 = vld [vmem:[#allocation2 + $0x88] sm:$0xff]
  %v3474 = vld [vmem:[#allocation2 + $0xa8] sm:$0xff]
  %v3475 = vld [vmem:[#allocation2 + $0xc8] sm:$0xff]
  %v3476 = vld [vmem:[#allocation2 + $0xe8] sm:$0xff]
  %v3477 = vld [vmem:[#allocation3 + $0x8] sm:$0xff]
  %v3478 = vld [vmem:[#allocation3 + $0x28] sm:$0xff]
  %v3479 = vld [vmem:[#allocation3 + $0x48] sm:$0xff]
  %v3480 = vld [vmem:[#allocation3 + $0x68] sm:$0xff]
  %v3481 = vld [vmem:[#allocation3 + $0x88] sm:$0xff]
  %v3482 = vld [vmem:[#allocation3 + $0xa8] sm:$0xff]
  %v3483 = vld [vmem:[#allocation3 + $0xc8] sm:$0xff]
  %v3484 = vld [vmem:[#allocation3 + $0xe8] sm:$0xff]
  %v3485 = vld [vmem:[#allocation4 + $0x8] sm:$0xff]
  %v3486 = vld [vmem:[#allocation4 + $0x28] sm:$0xff]
  %v3487 = vld [vmem:[#allocation4 + $0x48] sm:$0xff]
  %v3488 = vld [vmem:[#allocation4 + $0x68] sm:$0xff]
  %v3489 = vld [vmem:[#allocation4 + $0x88] sm:$0xff]
  %v3490 = vld [vmem:[#allocation4 + $0xa8] sm:$0xff]
  %v3491 = vld [vmem:[#allocation4 + $0xc8] sm:$0xff]
  %v3492 = vld [vmem:[#allocation4 + $0xe8] sm:$0xff]
  %v3494 = vsel %vm305, %v3469, 0
  %v3497 = vsel %vm305, %v3470, 0
  %v3500 = vsel %vm305, %v3471, 0
  %v3503 = vsel %vm305, %v3472, 0
  %v3506 = vsel %vm305, %v3473, 0
  %v3509 = vsel %vm305, %v3474, 0
  %v3512 = vsel %vm305, %v3475, 0
  %v3515 = vsel %vm305, %v3476, 0
  %v3518 = vsel %vm305, %v3477, 0
  %v3521 = vsel %vm305, %v3478, 0
  %v3524 = vsel %vm305, %v3479, 0
  %v3527 = vsel %vm305, %v3480, 0
  %v3530 = vsel %vm305, %v3481, 0
  %v3533 = vsel %vm305, %v3482, 0
  %v3536 = vsel %vm305, %v3483, 0
  %v3539 = vsel %vm305, %v3484, 0
  %3541 = vmatprep.subr.bf16.mxu0 0
  %3542 = vmatpush1.bf16.xpose.msra.mxu0 %v3518
  %3543 = vmatprep.subr.bf16.mxu0 0
  %3544 = vmatpush1.bf16.xpose.msra.mxu0 %v3521
  %3545 = vmatprep.subr.bf16.mxu0 0
  %3546 = vmatpush1.bf16.xpose.msra.mxu0 %v3524
  %3547 = vmatprep.subr.bf16.mxu0 0
  %3548 = vmatpush1.bf16.xpose.msra.mxu0 %v3527
  %3549 = vmatprep.subr.bf16.mxu0 0
  %3550 = vmatpush1.bf16.xpose.msra.mxu0 %v3530
  %3551 = vmatprep.subr.bf16.mxu0 0
  %3552 = vmatpush1.bf16.xpose.msra.mxu0 %v3533
  %3553 = vmatprep.subr.bf16.mxu0 0
  %3554 = vmatpush1.bf16.xpose.msra.mxu0 %v3536
  %3555 = vmatprep.subr.bf16.mxu0 0
  %3556 = vmatpush1.bf16.xpose.msra.mxu0 %v3539
  %3557 = vmatprep.subr.bf16.mxu0 0
  %3558 = vmatpush1.bf16.xpose.msra.mxu0 0
  %3559 = vmatprep.subr.bf16.mxu0 0
  %3560 = vmatpush1.bf16.xpose.msra.mxu0 0
  %3561 = vmatprep.subr.bf16.mxu0 0
  %3562 = vmatpush1.bf16.xpose.msra.mxu0 0
  %3563 = vmatprep.subr.bf16.mxu0 0
  %3564 = vmatpush1.bf16.xpose.msra.mxu0 0
  %3565 = vmatprep.subr.bf16.mxu0 0
  %3566 = vmatpush1.bf16.xpose.msra.mxu0 0
  %3567 = vmatprep.subr.bf16.mxu0 0
  %3568 = vmatpush1.bf16.xpose.msra.mxu0 0
  %3569 = vmatprep.subr.bf16.mxu0 0
  %3570 = vmatpush1.bf16.xpose.msra.mxu0 0
  %3571 = vmatprep.subr.bf16.mxu0 0
  %3572 = vmatpush1.bf16.xpose.msra.mxu0 0
  %3573 = vmatprep.mubr.bf16.mxu0 0
  %3574 = vmatmul.mubr.bf16.gmra.mrb[0].mxu0 %v3494
  %v3575 = vpop.f32.mrb[0].mxu0
  %v3576 = vadd.f32 %v2472, %v3575
  %v3577 = vpop.f32.mrb[0].mxu0
  %v3578 = vpop.f32.mrb[0].mxu0
  %v3579 = vadd.f32 %v2473, %v3578
  %v3580 = vpop.f32.mrb[0].mxu0
  %3581 = vmatprep.mubr.bf16.mxu0 0
  %3582 = vmatmul.mubr.bf16.gmra.mrb[0].mxu0 %v3497
  %v3583 = vpop.f32.mrb[0].mxu0
  %v3584 = vadd.f32 %v2474, %v3583
  %v3585 = vpop.f32.mrb[0].mxu0
  %v3586 = vpop.f32.mrb[0].mxu0
  %v3587 = vadd.f32 %v2475, %v3586
  %v3588 = vpop.f32.mrb[0].mxu0
  %3589 = vmatprep.mubr.bf16.mxu0 0
  %3590 = vmatmul.mubr.bf16.gmra.mrb[0].mxu0 %v3500
  %v3591 = vpop.f32.mrb[0].mxu0
  %v3592 = vadd.f32 %v2476, %v3591
  %v3593 = vpop.f32.mrb[0].mxu0
  %v3594 = vpop.f32.mrb[0].mxu0
  %v3595 = vadd.f32 %v2477, %v3594
  %v3596 = vpop.f32.mrb[0].mxu0
  %3597 = vmatprep.mubr.bf16.mxu0 0
  %3598 = vmatmul.mubr.bf16.gmra.mrb[0].mxu0 %v3503
  %v3599 = vpop.f32.mrb[0].mxu0
  %v3600 = vadd.f32 %v2478, %v3599
  %v3601 = vpop.f32.mrb[0].mxu0
  %v3602 = vpop.f32.mrb[0].mxu0
  %v3603 = vadd.f32 %v2479, %v3602
  %v3604 = vpop.f32.mrb[0].mxu0
  %3605 = vmatprep.mubr.bf16.mxu0 0
  %3606 = vmatmul.mubr.bf16.gmra.mrb[0].mxu0 %v3506
  %v3607 = vpop.f32.mrb[0].mxu0
  %v3608 = vadd.f32 %v2480, %v3607
  %v3609 = vpop.f32.mrb[0].mxu0
  %v3610 = vpop.f32.mrb[0].mxu0
  %v3611 = vadd.f32 %v2481, %v3610
  %v3612 = vpop.f32.mrb[0].mxu0
  %3613 = vmatprep.mubr.bf16.mxu0 0
  %3614 = vmatmul.mubr.bf16.gmra.mrb[0].mxu0 %v3509
  %v3615 = vpop.f32.mrb[0].mxu0
  %v3616 = vadd.f32 %v2482, %v3615
  %v3617 = vpop.f32.mrb[0].mxu0
  %v3618 = vpop.f32.mrb[0].mxu0
  %v3619 = vadd.f32 %v2483, %v3618
  %v3620 = vpop.f32.mrb[0].mxu0
  %3621 = vmatprep.mubr.bf16.mxu0 0
  %3622 = vmatmul.mubr.bf16.gmra.mrb[0].mxu0 %v3512
  %v3623 = vpop.f32.mrb[0].mxu0
  %v3624 = vadd.f32 %v2484, %v3623
  %v3625 = vpop.f32.mrb[0].mxu0
  %v3626 = vpop.f32.mrb[0].mxu0
  %v3627 = vadd.f32 %v2485, %v3626
  %v3628 = vpop.f32.mrb[0].mxu0
  %3629 = vmatprep.mubr.bf16.mxu0 0
  %3630 = vmatmul.mubr.bf16.gmra.mrb[0].mxu0 %v3515
  %v3631 = vpop.f32.mrb[0].mxu0
  %v3632 = vadd.f32 %v2486, %v3631
  %v3633 = vpop.f32.mrb[0].mxu0
  %v3634 = vpop.f32.mrb[0].mxu0
  %v3635 = vadd.f32 %v2487, %v3634
  %v3636 = vpop.f32.mrb[0].mxu0
  %3637 = vdwg.mxu0
  %3638 = vmax.xlane.f32.xlu0 %v3576
  %v3639 = vpop.xlane.xlu0 %3638
  %3640 = vmax.xlane.f32.xlu0 %v3579
  %v3641 = vpop.xlane.xlu0 %3640
  %3642 = vmax.xlane.f32.xlu0 %v3584
  %v3643 = vpop.xlane.xlu0 %3642
  %3644 = vmax.xlane.f32.xlu0 %v3587
  %v3645 = vpop.xlane.xlu0 %3644
  %3646 = vmax.xlane.f32.xlu0 %v3592
  %v3647 = vpop.xlane.xlu0 %3646
  %3648 = vmax.xlane.f32.xlu0 %v3595
  %v3649 = vpop.xlane.xlu0 %3648
  %3650 = vmax.xlane.f32.xlu0 %v3600
  %v3651 = vpop.xlane.xlu0 %3650
  %3652 = vmax.xlane.f32.xlu0 %v3603
  %v3653 = vpop.xlane.xlu0 %3652
  %3654 = vmax.xlane.f32.xlu0 %v3608
  %v3655 = vpop.xlane.xlu0 %3654
  %3656 = vmax.xlane.f32.xlu0 %v3611
  %v3657 = vpop.xlane.xlu0 %3656
  %3658 = vmax.xlane.f32.xlu0 %v3616
  %v3659 = vpop.xlane.xlu0 %3658
  %3660 = vmax.xlane.f32.xlu0 %v3619
  %v3661 = vpop.xlane.xlu0 %3660
  %3662 = vmax.xlane.f32.xlu0 %v3624
  %v3663 = vpop.xlane.xlu0 %3662
  %3664 = vmax.xlane.f32.xlu0 %v3627
  %v3665 = vpop.xlane.xlu0 %3664
  %3666 = vmax.xlane.f32.xlu0 %v3632
  %v3667 = vpop.xlane.xlu0 %3666
  %3668 = vmax.xlane.f32.xlu0 %v3635
  %v3669 = vpop.xlane.xlu0 %3668
  %v3670 = vsub.f32 %v3576, %v3639
  %v3671 = vsub.f32 %v3579, %v3641
  %v3672 = vsub.f32 %v3584, %v3643
  %v3673 = vsub.f32 %v3587, %v3645
  %v3674 = vsub.f32 %v3592, %v3647
  %v3675 = vsub.f32 %v3595, %v3649
  %v3676 = vsub.f32 %v3600, %v3651
  %v3677 = vsub.f32 %v3603, %v3653
  %v3678 = vsub.f32 %v3608, %v3655
  %v3679 = vsub.f32 %v3611, %v3657
  %v3680 = vsub.f32 %v3616, %v3659
  %v3681 = vsub.f32 %v3619, %v3661
  %v3682 = vsub.f32 %v3624, %v3663
  %v3683 = vsub.f32 %v3627, %v3665
  %v3684 = vsub.f32 %v3632, %v3667
  %v3685 = vsub.f32 %v3635, %v3669
  %v3686 = vmul.f32 %v3670, 1.442695
  %v3687 = vpow.pop %v3686
  %v3688 = vmul.f32 %v3671, 1.442695
  %v3689 = vpow.pop %v3688
  %v3690 = vmul.f32 %v3672, 1.442695
  %v3691 = vpow.pop %v3690
  %v3692 = vmul.f32 %v3673, 1.442695
  %v3693 = vpow.pop %v3692
  %v3694 = vmul.f32 %v3674, 1.442695
  %v3695 = vpow.pop %v3694
  %v3696 = vmul.f32 %v3675, 1.442695
  %v3697 = vpow.pop %v3696
  %v3698 = vmul.f32 %v3676, 1.442695
  %v3699 = vpow.pop %v3698
  %v3700 = vmul.f32 %v3677, 1.442695
  %v3701 = vpow.pop %v3700
  %v3702 = vmul.f32 %v3678, 1.442695
  %v3703 = vpow.pop %v3702
  %v3704 = vmul.f32 %v3679, 1.442695
  %v3705 = vpow.pop %v3704
  %v3706 = vmul.f32 %v3680, 1.442695
  %v3707 = vpow.pop %v3706
  %v3708 = vmul.f32 %v3681, 1.442695
  %v3709 = vpow.pop %v3708
  %v3710 = vmul.f32 %v3682, 1.442695
  %v3711 = vpow.pop %v3710
  %v3712 = vmul.f32 %v3683, 1.442695
  %v3713 = vpow.pop %v3712
  %v3714 = vmul.f32 %v3684, 1.442695
  %v3715 = vpow.pop %v3714
  %v3716 = vmul.f32 %v3685, 1.442695
  %v3717 = vpow.pop %v3716
  %3718 = vadd.xlane.f32.xlu0 %v3687
  %v3719 = vpop.xlane.xlu0 %3718
  %3720 = vadd.xlane.f32.xlu0 %v3689
  %v3721 = vpop.xlane.xlu0 %3720
  %3722 = vadd.xlane.f32.xlu0 %v3691
  %v3723 = vpop.xlane.xlu0 %3722
  %3724 = vadd.xlane.f32.xlu0 %v3693
  %v3725 = vpop.xlane.xlu0 %3724
  %3726 = vadd.xlane.f32.xlu0 %v3695
  %v3727 = vpop.xlane.xlu0 %3726
  %3728 = vadd.xlane.f32.xlu0 %v3697
  %v3729 = vpop.xlane.xlu0 %3728
  %3730 = vadd.xlane.f32.xlu0 %v3699
  %v3731 = vpop.xlane.xlu0 %3730
  %3732 = vadd.xlane.f32.xlu0 %v3701
  %v3733 = vpop.xlane.xlu0 %3732
  %3734 = vadd.xlane.f32.xlu0 %v3703
  %v3735 = vpop.xlane.xlu0 %3734
  %3736 = vadd.xlane.f32.xlu0 %v3705
  %v3737 = vpop.xlane.xlu0 %3736
  %3738 = vadd.xlane.f32.xlu0 %v3707
  %v3739 = vpop.xlane.xlu0 %3738
  %3740 = vadd.xlane.f32.xlu0 %v3709
  %v3741 = vpop.xlane.xlu0 %3740
  %3742 = vadd.xlane.f32.xlu0 %v3711
  %v3743 = vpop.xlane.xlu0 %3742
  %3744 = vadd.xlane.f32.xlu0 %v3713
  %v3745 = vpop.xlane.xlu0 %3744
  %3746 = vadd.xlane.f32.xlu0 %v3715
  %v3747 = vpop.xlane.xlu0 %3746
  %3748 = vadd.xlane.f32.xlu0 %v3717
  %v3749 = vpop.xlane.xlu0 %3748
  %v3750 = vrcp.pop %v3719
  %v3751 = vrcp.pop %v3721
  %v3752 = vrcp.pop %v3723
  %v3753 = vrcp.pop %v3725
  %v3754 = vrcp.pop %v3727
  %v3755 = vrcp.pop %v3729
  %v3756 = vrcp.pop %v3731
  %v3757 = vrcp.pop %v3733
  %v3758 = vrcp.pop %v3735
  %v3759 = vrcp.pop %v3737
  %v3760 = vrcp.pop %v3739
  %v3761 = vrcp.pop %v3741
  %v3762 = vrcp.pop %v3743
  %v3763 = vrcp.pop %v3745
  %v3764 = vrcp.pop %v3747
  %v3765 = vrcp.pop %v3749
  %v3766 = vmul.f32 %v3687, %v3750
  %v3767 = vmul.f32 %v3689, %v3751
  %v3768 = vmul.f32 %v3691, %v3752
  %v3769 = vmul.f32 %v3693, %v3753
  %v3770 = vmul.f32 %v3695, %v3754
  %v3771 = vmul.f32 %v3697, %v3755
  %v3772 = vmul.f32 %v3699, %v3756
  %v3773 = vmul.f32 %v3701, %v3757
  %v3774 = vmul.f32 %v3703, %v3758
  %v3775 = vmul.f32 %v3705, %v3759
  %v3776 = vmul.f32 %v3707, %v3760
  %v3777 = vmul.f32 %v3709, %v3761
  %v3778 = vmul.f32 %v3711, %v3762
  %v3779 = vmul.f32 %v3713, %v3763
  %v3780 = vmul.f32 %v3715, %v3764
  %v3781 = vmul.f32 %v3717, %v3765
  %v3782 = vpack.c.bf16 %v3767, %v3766
  %v3783 = vpack.c.bf16 %v3769, %v3768
  %v3784 = vpack.c.bf16 %v3771, %v3770
  %v3785 = vpack.c.bf16 %v3773, %v3772
  %v3786 = vpack.c.bf16 %v3775, %v3774
  %v3787 = vpack.c.bf16 %v3777, %v3776
  %v3788 = vpack.c.bf16 %v3779, %v3778
  %v3789 = vpack.c.bf16 %v3781, %v3780
  %3790 = vmatprep.subr.bf16.mxu0 0
  %3791 = vmatpush1.bf16.msra.mxu0 %v3485
  %3792 = vmatprep.subr.bf16.mxu0 0
  %3793 = vmatpush1.bf16.msra.mxu0 %v3486
  %3794 = vmatprep.subr.bf16.mxu0 0
  %3795 = vmatpush1.bf16.msra.mxu0 %v3487
  %3796 = vmatprep.subr.bf16.mxu0 0
  %3797 = vmatpush1.bf16.msra.mxu0 %v3488
  %3798 = vmatprep.subr.bf16.mxu0 0
  %3799 = vmatpush1.bf16.msra.mxu0 %v3489
  %3800 = vmatprep.subr.bf16.mxu0 0
  %3801 = vmatpush1.bf16.msra.mxu0 %v3490
  %3802 = vmatprep.subr.bf16.mxu0 0
  %3803 = vmatpush1.bf16.msra.mxu0 %v3491
  %3804 = vmatprep.subr.bf16.mxu0 0
  %3805 = vmatpush1.bf16.msra.mxu0 %v3492
  %3806 = vmatprep.subr.bf16.mxu0 0
  %3807 = vmatpush1.bf16.msra.mxu0 0
  %3808 = vmatprep.subr.bf16.mxu0 0
  %3809 = vmatpush1.bf16.msra.mxu0 0
  %3810 = vmatprep.subr.bf16.mxu0 0
  %3811 = vmatpush1.bf16.msra.mxu0 0
  %3812 = vmatprep.subr.bf16.mxu0 0
  %3813 = vmatpush1.bf16.msra.mxu0 0
  %3814 = vmatprep.subr.bf16.mxu0 0
  %3815 = vmatpush1.bf16.msra.mxu0 0
  %3816 = vmatprep.subr.bf16.mxu0 0
  %3817 = vmatpush1.bf16.msra.mxu0 0
  %3818 = vmatprep.subr.bf16.mxu0 0
  %3819 = vmatpush1.bf16.msra.mxu0 0
  %3820 = vmatprep.subr.bf16.mxu0 0
  %3821 = vmatpush1.bf16.msra.mxu0 0
  %3822 = vmatprep.mubr.bf16.mxu0 0
  %3823 = vmatmul.mubr.bf16.gmra.mrb[0].mxu0 %v3782
  %v3824 = vpop.f32.mrb[0].mxu0
  %v3825 = vadd.f32 0.0, %v3824
  %v3826 = vpop.f32.mrb[0].mxu0
  %v3827 = vpop.f32.mrb[0].mxu0
  %v3828 = vadd.f32 0.0, %v3827
  %v3829 = vpop.f32.mrb[0].mxu0
  %3830 = vmatprep.mubr.bf16.mxu0 0
  %3831 = vmatmul.mubr.bf16.gmra.mrb[0].mxu0 %v3783
  %v3832 = vpop.f32.mrb[0].mxu0
  %v3833 = vadd.f32 0.0, %v3832
  %v3834 = vpop.f32.mrb[0].mxu0
  %v3835 = vpop.f32.mrb[0].mxu0
  %v3836 = vadd.f32 0.0, %v3835
  %v3837 = vpop.f32.mrb[0].mxu0
  %3838 = vmatprep.mubr.bf16.mxu0 0
  %3839 = vmatmul.mubr.bf16.gmra.mrb[0].mxu0 %v3784
  %v3840 = vpop.f32.mrb[0].mxu0
  %v3841 = vadd.f32 0.0, %v3840
  %v3842 = vpop.f32.mrb[0].mxu0
  %v3843 = vpop.f32.mrb[0].mxu0
  %v3844 = vadd.f32 0.0, %v3843
  %v3845 = vpop.f32.mrb[0].mxu0
  %3846 = vmatprep.mubr.bf16.mxu0 0
  %3847 = vmatmul.mubr.bf16.gmra.mrb[0].mxu0 %v3785
  %v3848 = vpop.f32.mrb[0].mxu0
  %v3849 = vadd.f32 0.0, %v3848
  %v3850 = vpop.f32.mrb[0].mxu0
  %v3851 = vpop.f32.mrb[0].mxu0
  %v3852 = vadd.f32 0.0, %v3851
  %v3853 = vpop.f32.mrb[0].mxu0
  %3854 = vmatprep.mubr.bf16.mxu0 0
  %3855 = vmatmul.mubr.bf16.gmra.mrb[0].mxu0 %v3786
  %v3856 = vpop.f32.mrb[0].mxu0
  %v3857 = vadd.f32 0.0, %v3856
  %v3858 = vpop.f32.mrb[0].mxu0
  %v3859 = vpop.f32.mrb[0].mxu0
  %v3860 = vadd.f32 0.0, %v3859
  %v3861 = vpop.f32.mrb[0].mxu0
  %3862 = vmatprep.mubr.bf16.mxu0 0
  %3863 = vmatmul.mubr.bf16.gmra.mrb[0].mxu0 %v3787
  %v3864 = vpop.f32.mrb[0].mxu0
  %v3865 = vadd.f32 0.0, %v3864
  %v3866 = vpop.f32.mrb[0].mxu0
  %v3867 = vpop.f32.mrb[0].mxu0
  %v3868 = vadd.f32 0.0, %v3867
  %v3869 = vpop.f32.mrb[0].mxu0
  %3870 = vmatprep.mubr.bf16.mxu0 0
  %3871 = vmatmul.mubr.bf16.gmra.mrb[0].mxu0 %v3788
  %v3872 = vpop.f32.mrb[0].mxu0
  %v3873 = vadd.f32 0.0, %v3872
  %v3874 = vpop.f32.mrb[0].mxu0
  %v3875 = vpop.f32.mrb[0].mxu0
  %v3876 = vadd.f32 0.0, %v3875
  %v3877 = vpop.f32.mrb[0].mxu0
  %3878 = vmatprep.mubr.bf16.mxu0 0
  %3879 = vmatmul.mubr.bf16.gmra.mrb[0].mxu0 %v3789
  %v3880 = vpop.f32.mrb[0].mxu0
  %v3881 = vadd.f32 0.0, %v3880
  %v3882 = vpop.f32.mrb[0].mxu0
  %v3883 = vpop.f32.mrb[0].mxu0
  %v3884 = vadd.f32 0.0, %v3883
  %v3885 = vpop.f32.mrb[0].mxu0
  %3886 = vdwg.mxu0
  %v3887 = vpack.c.bf16 %v3828, %v3825
  %v3888 = vpack.c.bf16 %v3836, %v3833
  %v3889 = vpack.c.bf16 %v3844, %v3841
  %v3890 = vpack.c.bf16 %v3852, %v3849
  %v3891 = vpack.c.bf16 %v3860, %v3857
  %v3892 = vpack.c.bf16 %v3868, %v3865
  %v3893 = vpack.c.bf16 %v3876, %v3873
  %v3894 = vpack.c.bf16 %v3884, %v3881
  %3895 = vst.msk [vmem:[#allocation5 + $0x8] sm:$0xff] %vm305, %v3887
  %3896 = vst.msk [vmem:[#allocation5 + $0x28] sm:$0xff] %vm305, %v3888
  %3897 = vst.msk [vmem:[#allocation5 + $0x48] sm:$0xff] %vm305, %v3889
  %3898 = vst.msk [vmem:[#allocation5 + $0x68] sm:$0xff] %vm305, %v3890
  %3899 = vst.msk [vmem:[#allocation5 + $0x88] sm:$0xff] %vm305, %v3891
  %3900 = vst.msk [vmem:[#allocation5 + $0xa8] sm:$0xff] %vm305, %v3892
  %3901 = vst.msk [vmem:[#allocation5 + $0xc8] sm:$0xff] %vm305, %v3893
  %3902 = vst.msk [vmem:[#allocation5 + $0xe8] sm:$0xff] %vm305, %v3894
  %v3903 = vld [vmem:[#allocation2 + $0x8] sm:$0xff]
  %v3904 = vld [vmem:[#allocation2 + $0x28] sm:$0xff]
  %v3905 = vld [vmem:[#allocation2 + $0x48] sm:$0xff]
  %v3906 = vld [vmem:[#allocation2 + $0x68] sm:$0xff]
  %v3907 = vld [vmem:[#allocation2 + $0x88] sm:$0xff]
  %v3908 = vld [vmem:[#allocation2 + $0xa8] sm:$0xff]
  %v3909 = vld [vmem:[#allocation2 + $0xc8] sm:$0xff]
  %v3910 = vld [vmem:[#allocation2 + $0xe8] sm:$0xff]
  %v3911 = vld [vmem:[#allocation3 + $0x8] sm:$0xff]
  %v3912 = vld [vmem:[#allocation3 + $0x28] sm:$0xff]
  %v3913 = vld [vmem:[#allocation3 + $0x48] sm:$0xff]
  %v3914 = vld [vmem:[#allocation3 + $0x68] sm:$0xff]
  %v3915 = vld [vmem:[#allocation3 + $0x88] sm:$0xff]
  %v3916 = vld [vmem:[#allocation3 + $0xa8] sm:$0xff]
  %v3917 = vld [vmem:[#allocation3 + $0xc8] sm:$0xff]
  %v3918 = vld [vmem:[#allocation3 + $0xe8] sm:$0xff]
  %v3919 = vld [vmem:[#allocation4 + $0x8] sm:$0xff]
  %v3920 = vld [vmem:[#allocation4 + $0x28] sm:$0xff]
  %v3921 = vld [vmem:[#allocation4 + $0x48] sm:$0xff]
  %v3922 = vld [vmem:[#allocation4 + $0x68] sm:$0xff]
  %v3923 = vld [vmem:[#allocation4 + $0x88] sm:$0xff]
  %v3924 = vld [vmem:[#allocation4 + $0xa8] sm:$0xff]
  %v3925 = vld [vmem:[#allocation4 + $0xc8] sm:$0xff]
  %v3926 = vld [vmem:[#allocation4 + $0xe8] sm:$0xff]
  %3935 = vrot.lane.b32.xlu0 %v3903, 64
  %v3936 = vpop.permute.xlu0 %3935
  %3937 = vrot.lane.b32.xlu0 %v3904, 64
  %v3938 = vpop.permute.xlu0 %3937
  %3939 = vrot.lane.b32.xlu0 %v3905, 64
  %v3940 = vpop.permute.xlu0 %3939
  %3941 = vrot.lane.b32.xlu0 %v3906, 64
  %v3942 = vpop.permute.xlu0 %3941
  %3943 = vrot.lane.b32.xlu0 %v3907, 64
  %v3944 = vpop.permute.xlu0 %3943
  %3945 = vrot.lane.b32.xlu0 %v3908, 64
  %v3946 = vpop.permute.xlu0 %3945
  %3947 = vrot.lane.b32.xlu0 %v3909, 64
  %v3948 = vpop.permute.xlu0 %3947
  %3949 = vrot.lane.b32.xlu0 %v3910, 64
  %v3950 = vpop.permute.xlu0 %3949
  %3959 = vrot.lane.b32.xlu0 %v3911, 64
  %v3960 = vpop.permute.xlu0 %3959
  %3961 = vrot.lane.b32.xlu0 %v3912, 64
  %v3962 = vpop.permute.xlu0 %3961
  %3963 = vrot.lane.b32.xlu0 %v3913, 64
  %v3964 = vpop.permute.xlu0 %3963
  %3965 = vrot.lane.b32.xlu0 %v3914, 64
  %v3966 = vpop.permute.xlu0 %3965
  %3967 = vrot.lane.b32.xlu0 %v3915, 64
  %v3968 = vpop.permute.xlu0 %3967
  %3969 = vrot.lane.b32.xlu0 %v3916, 64
  %v3970 = vpop.permute.xlu0 %3969
  %3971 = vrot.lane.b32.xlu0 %v3917, 64
  %v3972 = vpop.permute.xlu0 %3971
  %3973 = vrot.lane.b32.xlu0 %v3918, 64
  %v3974 = vpop.permute.xlu0 %3973
  %v3976 = vsel %vm305, %v3936, 0
  %v3979 = vsel %vm305, %v3938, 0
  %v3982 = vsel %vm305, %v3940, 0
  %v3985 = vsel %vm305, %v3942, 0
  %v3988 = vsel %vm305, %v3944, 0
  %v3991 = vsel %vm305, %v3946, 0
  %v3994 = vsel %vm305, %v3948, 0
  %v3997 = vsel %vm305, %v3950, 0
  %v4000 = vsel %vm305, %v3960, 0
  %v4003 = vsel %vm305, %v3962, 0
  %v4006 = vsel %vm305, %v3964, 0
  %v4009 = vsel %vm305, %v3966, 0
  %v4012 = vsel %vm305, %v3968, 0
  %v4015 = vsel %vm305, %v3970, 0
  %v4018 = vsel %vm305, %v3972, 0
  %v4021 = vsel %vm305, %v3974, 0
  %4023 = vmatprep.subr.bf16.mxu0 0
  %4024 = vmatpush1.bf16.xpose.msra.mxu0 %v4000
  %4025 = vmatprep.subr.bf16.mxu0 0
  %4026 = vmatpush1.bf16.xpose.msra.mxu0 %v4003
  %4027 = vmatprep.subr.bf16.mxu0 0
  %4028 = vmatpush1.bf16.xpose.msra.mxu0 %v4006
  %4029 = vmatprep.subr.bf16.mxu0 0
  %4030 = vmatpush1.bf16.xpose.msra.mxu0 %v4009
  %4031 = vmatprep.subr.bf16.mxu0 0
  %4032 = vmatpush1.bf16.xpose.msra.mxu0 %v4012
  %4033 = vmatprep.subr.bf16.mxu0 0
  %4034 = vmatpush1.bf16.xpose.msra.mxu0 %v4015
  %4035 = vmatprep.subr.bf16.mxu0 0
  %4036 = vmatpush1.bf16.xpose.msra.mxu0 %v4018
  %4037 = vmatprep.subr.bf16.mxu0 0
  %4038 = vmatpush1.bf16.xpose.msra.mxu0 %v4021
  %4039 = vmatprep.subr.bf16.mxu0 0
  %4040 = vmatpush1.bf16.xpose.msra.mxu0 0
  %4041 = vmatprep.subr.bf16.mxu0 0
  %4042 = vmatpush1.bf16.xpose.msra.mxu0 0
  %4043 = vmatprep.subr.bf16.mxu0 0
  %4044 = vmatpush1.bf16.xpose.msra.mxu0 0
  %4045 = vmatprep.subr.bf16.mxu0 0
  %4046 = vmatpush1.bf16.xpose.msra.mxu0 0
  %4047 = vmatprep.subr.bf16.mxu0 0
  %4048 = vmatpush1.bf16.xpose.msra.mxu0 0
  %4049 = vmatprep.subr.bf16.mxu0 0
  %4050 = vmatpush1.bf16.xpose.msra.mxu0 0
  %4051 = vmatprep.subr.bf16.mxu0 0
  %4052 = vmatpush1.bf16.xpose.msra.mxu0 0
  %4053 = vmatprep.subr.bf16.mxu0 0
  %4054 = vmatpush1.bf16.xpose.msra.mxu0 0
  %4055 = vmatprep.mubr.bf16.mxu0 0
  %4056 = vmatmul.mubr.bf16.gmra.mrb[0].mxu0 %v3976
  %v4057 = vpop.f32.mrb[0].mxu0
  %v4058 = vadd.f32 %v2472, %v4057
  %v4059 = vpop.f32.mrb[0].mxu0
  %v4060 = vpop.f32.mrb[0].mxu0
  %v4061 = vadd.f32 %v2473, %v4060
  %v4062 = vpop.f32.mrb[0].mxu0
  %4063 = vmatprep.mubr.bf16.mxu0 0
  %4064 = vmatmul.mubr.bf16.gmra.mrb[0].mxu0 %v3979
  %v4065 = vpop.f32.mrb[0].mxu0
  %v4066 = vadd.f32 %v2474, %v4065
  %v4067 = vpop.f32.mrb[0].mxu0
  %v4068 = vpop.f32.mrb[0].mxu0
  %v4069 = vadd.f32 %v2475, %v4068
  %v4070 = vpop.f32.mrb[0].mxu0
  %4071 = vmatprep.mubr.bf16.mxu0 0
  %4072 = vmatmul.mubr.bf16.gmra.mrb[0].mxu0 %v3982
  %v4073 = vpop.f32.mrb[0].mxu0
  %v4074 = vadd.f32 %v2476, %v4073
  %v4075 = vpop.f32.mrb[0].mxu0
  %v4076 = vpop.f32.mrb[0].mxu0
  %v4077 = vadd.f32 %v2477, %v4076
  %v4078 = vpop.f32.mrb[0].mxu0
  %4079 = vmatprep.mubr.bf16.mxu0 0
  %4080 = vmatmul.mubr.bf16.gmra.mrb[0].mxu0 %v3985
  %v4081 = vpop.f32.mrb[0].mxu0
  %v4082 = vadd.f32 %v2478, %v4081
  %v4083 = vpop.f32.mrb[0].mxu0
  %v4084 = vpop.f32.mrb[0].mxu0
  %v4085 = vadd.f32 %v2479, %v4084
  %v4086 = vpop.f32.mrb[0].mxu0
  %4087 = vmatprep.mubr.bf16.mxu0 0
  %4088 = vmatmul.mubr.bf16.gmra.mrb[0].mxu0 %v3988
  %v4089 = vpop.f32.mrb[0].mxu0
  %v4090 = vadd.f32 %v2480, %v4089
  %v4091 = vpop.f32.mrb[0].mxu0
  %v4092 = vpop.f32.mrb[0].mxu0
  %v4093 = vadd.f32 %v2481, %v4092
  %v4094 = vpop.f32.mrb[0].mxu0
  %4095 = vmatprep.mubr.bf16.mxu0 0
  %4096 = vmatmul.mubr.bf16.gmra.mrb[0].mxu0 %v3991
  %v4097 = vpop.f32.mrb[0].mxu0
  %v4098 = vadd.f32 %v2482, %v4097
  %v4099 = vpop.f32.mrb[0].mxu0
  %v4100 = vpop.f32.mrb[0].mxu0
  %v4101 = vadd.f32 %v2483, %v4100
  %v4102 = vpop.f32.mrb[0].mxu0
  %4103 = vmatprep.mubr.bf16.mxu0 0
  %4104 = vmatmul.mubr.bf16.gmra.mrb[0].mxu0 %v3994
  %v4105 = vpop.f32.mrb[0].mxu0
  %v4106 = vadd.f32 %v2484, %v4105
  %v4107 = vpop.f32.mrb[0].mxu0
  %v4108 = vpop.f32.mrb[0].mxu0
  %v4109 = vadd.f32 %v2485, %v4108
  %v4110 = vpop.f32.mrb[0].mxu0
  %4111 = vmatprep.mubr.bf16.mxu0 0
  %4112 = vmatmul.mubr.bf16.gmra.mrb[0].mxu0 %v3997
  %v4113 = vpop.f32.mrb[0].mxu0
  %v4114 = vadd.f32 %v2486, %v4113
  %v4115 = vpop.f32.mrb[0].mxu0
  %v4116 = vpop.f32.mrb[0].mxu0
  %v4117 = vadd.f32 %v2487, %v4116
  %v4118 = vpop.f32.mrb[0].mxu0
  %4119 = vdwg.mxu0
  %4120 = vmax.xlane.f32.xlu0 %v4058
  %v4121 = vpop.xlane.xlu0 %4120
  %4122 = vmax.xlane.f32.xlu0 %v4061
  %v4123 = vpop.xlane.xlu0 %4122
  %4124 = vmax.xlane.f32.xlu0 %v4066
  %v4125 = vpop.xlane.xlu0 %4124
  %4126 = vmax.xlane.f32.xlu0 %v4069
  %v4127 = vpop.xlane.xlu0 %4126
  %4128 = vmax.xlane.f32.xlu0 %v4074
  %v4129 = vpop.xlane.xlu0 %4128
  %4130 = vmax.xlane.f32.xlu0 %v4077
  %v4131 = vpop.xlane.xlu0 %4130
  %4132 = vmax.xlane.f32.xlu0 %v4082
  %v4133 = vpop.xlane.xlu0 %4132
  %4134 = vmax.xlane.f32.xlu0 %v4085
  %v4135 = vpop.xlane.xlu0 %4134
  %4136 = vmax.xlane.f32.xlu0 %v4090
  %v4137 = vpop.xlane.xlu0 %4136
  %4138 = vmax.xlane.f32.xlu0 %v4093
  %v4139 = vpop.xlane.xlu0 %4138
  %4140 = vmax.xlane.f32.xlu0 %v4098
  %v4141 = vpop.xlane.xlu0 %4140
  %4142 = vmax.xlane.f32.xlu0 %v4101
  %v4143 = vpop.xlane.xlu0 %4142
  %4144 = vmax.xlane.f32.xlu0 %v4106
  %v4145 = vpop.xlane.xlu0 %4144
  %4146 = vmax.xlane.f32.xlu0 %v4109
  %v4147 = vpop.xlane.xlu0 %4146
  %4148 = vmax.xlane.f32.xlu0 %v4114
  %v4149 = vpop.xlane.xlu0 %4148
  %4150 = vmax.xlane.f32.xlu0 %v4117
  %v4151 = vpop.xlane.xlu0 %4150
  %v4152 = vsub.f32 %v4058, %v4121
  %v4153 = vsub.f32 %v4061, %v4123
  %v4154 = vsub.f32 %v4066, %v4125
  %v4155 = vsub.f32 %v4069, %v4127
  %v4156 = vsub.f32 %v4074, %v4129
  %v4157 = vsub.f32 %v4077, %v4131
  %v4158 = vsub.f32 %v4082, %v4133
  %v4159 = vsub.f32 %v4085, %v4135
  %v4160 = vsub.f32 %v4090, %v4137
  %v4161 = vsub.f32 %v4093, %v4139
  %v4162 = vsub.f32 %v4098, %v4141
  %v4163 = vsub.f32 %v4101, %v4143
  %v4164 = vsub.f32 %v4106, %v4145
  %v4165 = vsub.f32 %v4109, %v4147
  %v4166 = vsub.f32 %v4114, %v4149
  %v4167 = vsub.f32 %v4117, %v4151
  %v4168 = vmul.f32 %v4152, 1.442695
  %v4169 = vpow.pop %v4168
  %v4170 = vmul.f32 %v4153, 1.442695
  %v4171 = vpow.pop %v4170
  %v4172 = vmul.f32 %v4154, 1.442695
  %v4173 = vpow.pop %v4172
  %v4174 = vmul.f32 %v4155, 1.442695
  %v4175 = vpow.pop %v4174
  %v4176 = vmul.f32 %v4156, 1.442695
  %v4177 = vpow.pop %v4176
  %v4178 = vmul.f32 %v4157, 1.442695
  %v4179 = vpow.pop %v4178
  %v4180 = vmul.f32 %v4158, 1.442695
  %v4181 = vpow.pop %v4180
  %v4182 = vmul.f32 %v4159, 1.442695
  %v4183 = vpow.pop %v4182
  %v4184 = vmul.f32 %v4160, 1.442695
  %v4185 = vpow.pop %v4184
  %v4186 = vmul.f32 %v4161, 1.442695
  %v4187 = vpow.pop %v4186
  %v4188 = vmul.f32 %v4162, 1.442695
  %v4189 = vpow.pop %v4188
  %v4190 = vmul.f32 %v4163, 1.442695
  %v4191 = vpow.pop %v4190
  %v4192 = vmul.f32 %v4164, 1.442695
  %v4193 = vpow.pop %v4192
  %v4194 = vmul.f32 %v4165, 1.442695
  %v4195 = vpow.pop %v4194
  %v4196 = vmul.f32 %v4166, 1.442695
  %v4197 = vpow.pop %v4196
  %v4198 = vmul.f32 %v4167, 1.442695
  %v4199 = vpow.pop %v4198
  %4200 = vadd.xlane.f32.xlu0 %v4169
  %v4201 = vpop.xlane.xlu0 %4200
  %4202 = vadd.xlane.f32.xlu0 %v4171
  %v4203 = vpop.xlane.xlu0 %4202
  %4204 = vadd.xlane.f32.xlu0 %v4173
  %v4205 = vpop.xlane.xlu0 %4204
  %4206 = vadd.xlane.f32.xlu0 %v4175
  %v4207 = vpop.xlane.xlu0 %4206
  %4208 = vadd.xlane.f32.xlu0 %v4177
  %v4209 = vpop.xlane.xlu0 %4208
  %4210 = vadd.xlane.f32.xlu0 %v4179
  %v4211 = vpop.xlane.xlu0 %4210
  %4212 = vadd.xlane.f32.xlu0 %v4181
  %v4213 = vpop.xlane.xlu0 %4212
  %4214 = vadd.xlane.f32.xlu0 %v4183
  %v4215 = vpop.xlane.xlu0 %4214
  %4216 = vadd.xlane.f32.xlu0 %v4185
  %v4217 = vpop.xlane.xlu0 %4216
  %4218 = vadd.xlane.f32.xlu0 %v4187
  %v4219 = vpop.xlane.xlu0 %4218
  %4220 = vadd.xlane.f32.xlu0 %v4189
  %v4221 = vpop.xlane.xlu0 %4220
  %4222 = vadd.xlane.f32.xlu0 %v4191
  %v4223 = vpop.xlane.xlu0 %4222
  %4224 = vadd.xlane.f32.xlu0 %v4193
  %v4225 = vpop.xlane.xlu0 %4224
  %4226 = vadd.xlane.f32.xlu0 %v4195
  %v4227 = vpop.xlane.xlu0 %4226
  %4228 = vadd.xlane.f32.xlu0 %v4197
  %v4229 = vpop.xlane.xlu0 %4228
  %4230 = vadd.xlane.f32.xlu0 %v4199
  %v4231 = vpop.xlane.xlu0 %4230
  %v4232 = vrcp.pop %v4201
  %v4233 = vrcp.pop %v4203
  %v4234 = vrcp.pop %v4205
  %v4235 = vrcp.pop %v4207
  %v4236 = vrcp.pop %v4209
  %v4237 = vrcp.pop %v4211
  %v4238 = vrcp.pop %v4213
  %v4239 = vrcp.pop %v4215
  %v4240 = vrcp.pop %v4217
  %v4241 = vrcp.pop %v4219
  %v4242 = vrcp.pop %v4221
  %v4243 = vrcp.pop %v4223
  %v4244 = vrcp.pop %v4225
  %v4245 = vrcp.pop %v4227
  %v4246 = vrcp.pop %v4229
  %v4247 = vrcp.pop %v4231
  %v4248 = vmul.f32 %v4169, %v4232
  %v4249 = vmul.f32 %v4171, %v4233
  %v4250 = vmul.f32 %v4173, %v4234
  %v4251 = vmul.f32 %v4175, %v4235
  %v4252 = vmul.f32 %v4177, %v4236
  %v4253 = vmul.f32 %v4179, %v4237
  %v4254 = vmul.f32 %v4181, %v4238
  %v4255 = vmul.f32 %v4183, %v4239
  %v4256 = vmul.f32 %v4185, %v4240
  %v4257 = vmul.f32 %v4187, %v4241
  %v4258 = vmul.f32 %v4189, %v4242
  %v4259 = vmul.f32 %v4191, %v4243
  %v4260 = vmul.f32 %v4193, %v4244
  %v4261 = vmul.f32 %v4195, %v4245
  %v4262 = vmul.f32 %v4197, %v4246
  %v4263 = vmul.f32 %v4199, %v4247
  %v4264 = vpack.c.bf16 %v4249, %v4248
  %v4265 = vpack.c.bf16 %v4251, %v4250
  %v4266 = vpack.c.bf16 %v4253, %v4252
  %v4267 = vpack.c.bf16 %v4255, %v4254
  %v4268 = vpack.c.bf16 %v4257, %v4256
  %v4269 = vpack.c.bf16 %v4259, %v4258
  %v4270 = vpack.c.bf16 %v4261, %v4260
  %v4271 = vpack.c.bf16 %v4263, %v4262
  %4280 = vrot.lane.b32.xlu0 %v3919, 64
  %v4281 = vpop.permute.xlu0 %4280
  %4282 = vrot.lane.b32.xlu0 %v3920, 64
  %v4283 = vpop.permute.xlu0 %4282
  %4284 = vrot.lane.b32.xlu0 %v3921, 64
  %v4285 = vpop.permute.xlu0 %4284
  %4286 = vrot.lane.b32.xlu0 %v3922, 64
  %v4287 = vpop.permute.xlu0 %4286
  %4288 = vrot.lane.b32.xlu0 %v3923, 64
  %v4289 = vpop.permute.xlu0 %4288
  %4290 = vrot.lane.b32.xlu0 %v3924, 64
  %v4291 = vpop.permute.xlu0 %4290
  %4292 = vrot.lane.b32.xlu0 %v3925, 64
  %v4293 = vpop.permute.xlu0 %4292
  %4294 = vrot.lane.b32.xlu0 %v3926, 64
  %v4295 = vpop.permute.xlu0 %4294
  %4304 = vmatprep.subr.bf16.mxu0 0
  %4305 = vmatpush1.bf16.msra.mxu0 %v4281
  %4306 = vmatprep.subr.bf16.mxu0 0
  %4307 = vmatpush1.bf16.msra.mxu0 %v4283
  %4308 = vmatprep.subr.bf16.mxu0 0
  %4309 = vmatpush1.bf16.msra.mxu0 %v4285
  %4310 = vmatprep.subr.bf16.mxu0 0
  %4311 = vmatpush1.bf16.msra.mxu0 %v4287
  %4312 = vmatprep.subr.bf16.mxu0 0
  %4313 = vmatpush1.bf16.msra.mxu0 %v4289
  %4314 = vmatprep.subr.bf16.mxu0 0
  %4315 = vmatpush1.bf16.msra.mxu0 %v4291
  %4316 = vmatprep.subr.bf16.mxu0 0
  %4317 = vmatpush1.bf16.msra.mxu0 %v4293
  %4318 = vmatprep.subr.bf16.mxu0 0
  %4319 = vmatpush1.bf16.msra.mxu0 %v4295
  %4320 = vmatprep.subr.bf16.mxu0 0
  %4321 = vmatpush1.bf16.msra.mxu0 0
  %4322 = vmatprep.subr.bf16.mxu0 0
  %4323 = vmatpush1.bf16.msra.mxu0 0
  %4324 = vmatprep.subr.bf16.mxu0 0
  %4325 = vmatpush1.bf16.msra.mxu0 0
  %4326 = vmatprep.subr.bf16.mxu0 0
  %4327 = vmatpush1.bf16.msra.mxu0 0
  %4328 = vmatprep.subr.bf16.mxu0 0
  %4329 = vmatpush1.bf16.msra.mxu0 0
  %4330 = vmatprep.subr.bf16.mxu0 0
  %4331 = vmatpush1.bf16.msra.mxu0 0
  %4332 = vmatprep.subr.bf16.mxu0 0
  %4333 = vmatpush1.bf16.msra.mxu0 0
  %4334 = vmatprep.subr.bf16.mxu0 0
  %4335 = vmatpush1.bf16.msra.mxu0 0
  %4336 = vmatprep.mubr.bf16.mxu0 0
  %4337 = vmatmul.mubr.bf16.gmra.mrb[0].mxu0 %v4264
  %v4338 = vpop.f32.mrb[0].mxu0
  %v4339 = vadd.f32 0.0, %v4338
  %v4340 = vpop.f32.mrb[0].mxu0
  %v4341 = vpop.f32.mrb[0].mxu0
  %v4342 = vadd.f32 0.0, %v4341
  %v4343 = vpop.f32.mrb[0].mxu0
  %4344 = vmatprep.mubr.bf16.mxu0 0
  %4345 = vmatmul.mubr.bf16.gmra.mrb[0].mxu0 %v4265
  %v4346 = vpop.f32.mrb[0].mxu0
  %v4347 = vadd.f32 0.0, %v4346
  %v4348 = vpop.f32.mrb[0].mxu0
  %v4349 = vpop.f32.mrb[0].mxu0
  %v4350 = vadd.f32 0.0, %v4349
  %v4351 = vpop.f32.mrb[0].mxu0
  %4352 = vmatprep.mubr.bf16.mxu0 0
  %4353 = vmatmul.mubr.bf16.gmra.mrb[0].mxu0 %v4266
  %v4354 = vpop.f32.mrb[0].mxu0
  %v4355 = vadd.f32 0.0, %v4354
  %v4356 = vpop.f32.mrb[0].mxu0
  %v4357 = vpop.f32.mrb[0].mxu0
  %v4358 = vadd.f32 0.0, %v4357
  %v4359 = vpop.f32.mrb[0].mxu0
  %4360 = vmatprep.mubr.bf16.mxu0 0
  %4361 = vmatmul.mubr.bf16.gmra.mrb[0].mxu0 %v4267
  %v4362 = vpop.f32.mrb[0].mxu0
  %v4363 = vadd.f32 0.0, %v4362
  %v4364 = vpop.f32.mrb[0].mxu0
  %v4365 = vpop.f32.mrb[0].mxu0
  %v4366 = vadd.f32 0.0, %v4365
  %v4367 = vpop.f32.mrb[0].mxu0
  %4368 = vmatprep.mubr.bf16.mxu0 0
  %4369 = vmatmul.mubr.bf16.gmra.mrb[0].mxu0 %v4268
  %v4370 = vpop.f32.mrb[0].mxu0
  %v4371 = vadd.f32 0.0, %v4370
  %v4372 = vpop.f32.mrb[0].mxu0
  %v4373 = vpop.f32.mrb[0].mxu0
  %v4374 = vadd.f32 0.0, %v4373
  %v4375 = vpop.f32.mrb[0].mxu0
  %4376 = vmatprep.mubr.bf16.mxu0 0
  %4377 = vmatmul.mubr.bf16.gmra.mrb[0].mxu0 %v4269
  %v4378 = vpop.f32.mrb[0].mxu0
  %v4379 = vadd.f32 0.0, %v4378
  %v4380 = vpop.f32.mrb[0].mxu0
  %v4381 = vpop.f32.mrb[0].mxu0
  %v4382 = vadd.f32 0.0, %v4381
  %v4383 = vpop.f32.mrb[0].mxu0
  %4384 = vmatprep.mubr.bf16.mxu0 0
  %4385 = vmatmul.mubr.bf16.gmra.mrb[0].mxu0 %v4270
  %v4386 = vpop.f32.mrb[0].mxu0
  %v4387 = vadd.f32 0.0, %v4386
  %v4388 = vpop.f32.mrb[0].mxu0
  %v4389 = vpop.f32.mrb[0].mxu0
  %v4390 = vadd.f32 0.0, %v4389
  %v4391 = vpop.f32.mrb[0].mxu0
  %4392 = vmatprep.mubr.bf16.mxu0 0
  %4393 = vmatmul.mubr.bf16.gmra.mrb[0].mxu0 %v4271
  %v4394 = vpop.f32.mrb[0].mxu0
  %v4395 = vadd.f32 0.0, %v4394
  %v4396 = vpop.f32.mrb[0].mxu0
  %v4397 = vpop.f32.mrb[0].mxu0
  %v4398 = vadd.f32 0.0, %v4397
  %v4399 = vpop.f32.mrb[0].mxu0
  %4400 = vdwg.mxu0
  %v4401 = vpack.c.bf16 %v4342, %v4339
  %v4402 = vpack.c.bf16 %v4350, %v4347
  %v4403 = vpack.c.bf16 %v4358, %v4355
  %v4404 = vpack.c.bf16 %v4366, %v4363
  %v4405 = vpack.c.bf16 %v4374, %v4371
  %v4406 = vpack.c.bf16 %v4382, %v4379
  %v4407 = vpack.c.bf16 %v4390, %v4387
  %v4408 = vpack.c.bf16 %v4398, %v4395
  %4417 = vrot.lane.b32.xlu0 %v4401, 64
  %v4418 = vpop.permute.xlu0 %4417
  %4419 = vrot.lane.b32.xlu0 %v4402, 64
  %v4420 = vpop.permute.xlu0 %4419
  %4421 = vrot.lane.b32.xlu0 %v4403, 64
  %v4422 = vpop.permute.xlu0 %4421
  %4423 = vrot.lane.b32.xlu0 %v4404, 64
  %v4424 = vpop.permute.xlu0 %4423
  %4425 = vrot.lane.b32.xlu0 %v4405, 64
  %v4426 = vpop.permute.xlu0 %4425
  %4427 = vrot.lane.b32.xlu0 %v4406, 64
  %v4428 = vpop.permute.xlu0 %4427
  %4429 = vrot.lane.b32.xlu0 %v4407, 64
  %v4430 = vpop.permute.xlu0 %4429
  %4431 = vrot.lane.b32.xlu0 %v4408, 64
  %v4432 = vpop.permute.xlu0 %4431
  %4441 = vst.msk [vmem:[#allocation5 + $0x8] sm:$0xff] %vm3460, %v4418
  %4442 = vst.msk [vmem:[#allocation5 + $0x28] sm:$0xff] %vm3460, %v4420
  %4443 = vst.msk [vmem:[#allocation5 + $0x48] sm:$0xff] %vm3460, %v4422
  %4444 = vst.msk [vmem:[#allocation5 + $0x68] sm:$0xff] %vm3460, %v4424
  %4445 = vst.msk [vmem:[#allocation5 + $0x88] sm:$0xff] %vm3460, %v4426
  %4446 = vst.msk [vmem:[#allocation5 + $0xa8] sm:$0xff] %vm3460, %v4428
  %4447 = vst.msk [vmem:[#allocation5 + $0xc8] sm:$0xff] %vm3460, %v4430
  %4448 = vst.msk [vmem:[#allocation5 + $0xe8] sm:$0xff] %vm3460, %v4432
  %v4449 = vld [vmem:[#allocation2 + $0x10] sm:$0xff]
  %v4450 = vld [vmem:[#allocation2 + $0x30] sm:$0xff]
  %v4451 = vld [vmem:[#allocation2 + $0x50] sm:$0xff]
  %v4452 = vld [vmem:[#allocation2 + $0x70] sm:$0xff]
  %v4453 = vld [vmem:[#allocation2 + $0x90] sm:$0xff]
  %v4454 = vld [vmem:[#allocation2 + $0xb0] sm:$0xff]
  %v4455 = vld [vmem:[#allocation2 + $0xd0] sm:$0xff]
  %v4456 = vld [vmem:[#allocation2 + $0xf0] sm:$0xff]
  %v4457 = vld [vmem:[#allocation3 + $0x10] sm:$0xff]
  %v4458 = vld [vmem:[#allocation3 + $0x30] sm:$0xff]
  %v4459 = vld [vmem:[#allocation3 + $0x50] sm:$0xff]
  %v4460 = vld [vmem:[#allocation3 + $0x70] sm:$0xff]
  %v4461 = vld [vmem:[#allocation3 + $0x90] sm:$0xff]
  %v4462 = vld [vmem:[#allocation3 + $0xb0] sm:$0xff]
  %v4463 = vld [vmem:[#allocation3 + $0xd0] sm:$0xff]
  %v4464 = vld [vmem:[#allocation3 + $0xf0] sm:$0xff]
  %v4465 = vld [vmem:[#allocation4 + $0x10] sm:$0xff]
  %v4466 = vld [vmem:[#allocation4 + $0x30] sm:$0xff]
  %v4467 = vld [vmem:[#allocation4 + $0x50] sm:$0xff]
  %v4468 = vld [vmem:[#allocation4 + $0x70] sm:$0xff]
  %v4469 = vld [vmem:[#allocation4 + $0x90] sm:$0xff]
  %v4470 = vld [vmem:[#allocation4 + $0xb0] sm:$0xff]
  %v4471 = vld [vmem:[#allocation4 + $0xd0] sm:$0xff]
  %v4472 = vld [vmem:[#allocation4 + $0xf0] sm:$0xff]
  %v4474 = vsel %vm305, %v4449, 0
  %v4477 = vsel %vm305, %v4450, 0
  %v4480 = vsel %vm305, %v4451, 0
  %v4483 = vsel %vm305, %v4452, 0
  %v4486 = vsel %vm305, %v4453, 0
  %v4489 = vsel %vm305, %v4454, 0
  %v4492 = vsel %vm305, %v4455, 0
  %v4495 = vsel %vm305, %v4456, 0
  %v4498 = vsel %vm305, %v4457, 0
  %v4501 = vsel %vm305, %v4458, 0
  %v4504 = vsel %vm305, %v4459, 0
  %v4507 = vsel %vm305, %v4460, 0
  %v4510 = vsel %vm305, %v4461, 0
  %v4513 = vsel %vm305, %v4462, 0
  %v4516 = vsel %vm305, %v4463, 0
  %v4519 = vsel %vm305, %v4464, 0
  %4521 = vmatprep.subr.bf16.mxu0 0
  %4522 = vmatpush1.bf16.xpose.msra.mxu0 %v4498
  %4523 = vmatprep.subr.bf16.mxu0 0
  %4524 = vmatpush1.bf16.xpose.msra.mxu0 %v4501
  %4525 = vmatprep.subr.bf16.mxu0 0
  %4526 = vmatpush1.bf16.xpose.msra.mxu0 %v4504
  %4527 = vmatprep.subr.bf16.mxu0 0
  %4528 = vmatpush1.bf16.xpose.msra.mxu0 %v4507
  %4529 = vmatprep.subr.bf16.mxu0 0
  %4530 = vmatpush1.bf16.xpose.msra.mxu0 %v4510
  %4531 = vmatprep.subr.bf16.mxu0 0
  %4532 = vmatpush1.bf16.xpose.msra.mxu0 %v4513
  %4533 = vmatprep.subr.bf16.mxu0 0
  %4534 = vmatpush1.bf16.xpose.msra.mxu0 %v4516
  %4535 = vmatprep.subr.bf16.mxu0 0
  %4536 = vmatpush1.bf16.xpose.msra.mxu0 %v4519
  %4537 = vmatprep.subr.bf16.mxu0 0
  %4538 = vmatpush1.bf16.xpose.msra.mxu0 0
  %4539 = vmatprep.subr.bf16.mxu0 0
  %4540 = vmatpush1.bf16.xpose.msra.mxu0 0
  %4541 = vmatprep.subr.bf16.mxu0 0
  %4542 = vmatpush1.bf16.xpose.msra.mxu0 0
  %4543 = vmatprep.subr.bf16.mxu0 0
  %4544 = vmatpush1.bf16.xpose.msra.mxu0 0
  %4545 = vmatprep.subr.bf16.mxu0 0
  %4546 = vmatpush1.bf16.xpose.msra.mxu0 0
  %4547 = vmatprep.subr.bf16.mxu0 0
  %4548 = vmatpush1.bf16.xpose.msra.mxu0 0
  %4549 = vmatprep.subr.bf16.mxu0 0
  %4550 = vmatpush1.bf16.xpose.msra.mxu0 0
  %4551 = vmatprep.subr.bf16.mxu0 0
  %4552 = vmatpush1.bf16.xpose.msra.mxu0 0
  %4553 = vmatprep.mubr.bf16.mxu0 0
  %4554 = vmatmul.mubr.bf16.gmra.mrb[0].mxu0 %v4474
  %v4555 = vpop.f32.mrb[0].mxu0
  %v4556 = vadd.f32 %v2472, %v4555
  %v4557 = vpop.f32.mrb[0].mxu0
  %v4558 = vpop.f32.mrb[0].mxu0
  %v4559 = vadd.f32 %v2473, %v4558
  %v4560 = vpop.f32.mrb[0].mxu0
  %4561 = vmatprep.mubr.bf16.mxu0 0
  %4562 = vmatmul.mubr.bf16.gmra.mrb[0].mxu0 %v4477
  %v4563 = vpop.f32.mrb[0].mxu0
  %v4564 = vadd.f32 %v2474, %v4563
  %v4565 = vpop.f32.mrb[0].mxu0
  %v4566 = vpop.f32.mrb[0].mxu0
  %v4567 = vadd.f32 %v2475, %v4566
  %v4568 = vpop.f32.mrb[0].mxu0
  %4569 = vmatprep.mubr.bf16.mxu0 0
  %4570 = vmatmul.mubr.bf16.gmra.mrb[0].mxu0 %v4480
  %v4571 = vpop.f32.mrb[0].mxu0
  %v4572 = vadd.f32 %v2476, %v4571
  %v4573 = vpop.f32.mrb[0].mxu0
  %v4574 = vpop.f32.mrb[0].mxu0
  %v4575 = vadd.f32 %v2477, %v4574
  %v4576 = vpop.f32.mrb[0].mxu0
  %4577 = vmatprep.mubr.bf16.mxu0 0
  %4578 = vmatmul.mubr.bf16.gmra.mrb[0].mxu0 %v4483
  %v4579 = vpop.f32.mrb[0].mxu0
  %v4580 = vadd.f32 %v2478, %v4579
  %v4581 = vpop.f32.mrb[0].mxu0
  %v4582 = vpop.f32.mrb[0].mxu0
  %v4583 = vadd.f32 %v2479, %v4582
  %v4584 = vpop.f32.mrb[0].mxu0
  %4585 = vmatprep.mubr.bf16.mxu0 0
  %4586 = vmatmul.mubr.bf16.gmra.mrb[0].mxu0 %v4486
  %v4587 = vpop.f32.mrb[0].mxu0
  %v4588 = vadd.f32 %v2480, %v4587
  %v4589 = vpop.f32.mrb[0].mxu0
  %v4590 = vpop.f32.mrb[0].mxu0
  %v4591 = vadd.f32 %v2481, %v4590
  %v4592 = vpop.f32.mrb[0].mxu0
  %4593 = vmatprep.mubr.bf16.mxu0 0
  %4594 = vmatmul.mubr.bf16.gmra.mrb[0].mxu0 %v4489
  %v4595 = vpop.f32.mrb[0].mxu0
  %v4596 = vadd.f32 %v2482, %v4595
  %v4597 = vpop.f32.mrb[0].mxu0
  %v4598 = vpop.f32.mrb[0].mxu0
  %v4599 = vadd.f32 %v2483, %v4598
  %v4600 = vpop.f32.mrb[0].mxu0
  %4601 = vmatprep.mubr.bf16.mxu0 0
  %4602 = vmatmul.mubr.bf16.gmra.mrb[0].mxu0 %v4492
  %v4603 = vpop.f32.mrb[0].mxu0
  %v4604 = vadd.f32 %v2484, %v4603
  %v4605 = vpop.f32.mrb[0].mxu0
  %v4606 = vpop.f32.mrb[0].mxu0
  %v4607 = vadd.f32 %v2485, %v4606
  %v4608 = vpop.f32.mrb[0].mxu0
  %4609 = vmatprep.mubr.bf16.mxu0 0
  %4610 = vmatmul.mubr.bf16.gmra.mrb[0].mxu0 %v4495
  %v4611 = vpop.f32.mrb[0].mxu0
  %v4612 = vadd.f32 %v2486, %v4611
  %v4613 = vpop.f32.mrb[0].mxu0
  %v4614 = vpop.f32.mrb[0].mxu0
  %v4615 = vadd.f32 %v2487, %v4614
  %v4616 = vpop.f32.mrb[0].mxu0
  %4617 = vdwg.mxu0
  %4618 = vmax.xlane.f32.xlu0 %v4556
  %v4619 = vpop.xlane.xlu0 %4618
  %4620 = vmax.xlane.f32.xlu0 %v4559
  %v4621 = vpop.xlane.xlu0 %4620
  %4622 = vmax.xlane.f32.xlu0 %v4564
  %v4623 = vpop.xlane.xlu0 %4622
  %4624 = vmax.xlane.f32.xlu0 %v4567
  %v4625 = vpop.xlane.xlu0 %4624
  %4626 = vmax.xlane.f32.xlu0 %v4572
  %v4627 = vpop.xlane.xlu0 %4626
  %4628 = vmax.xlane.f32.xlu0 %v4575
  %v4629 = vpop.xlane.xlu0 %4628
  %4630 = vmax.xlane.f32.xlu0 %v4580
  %v4631 = vpop.xlane.xlu0 %4630
  %4632 = vmax.xlane.f32.xlu0 %v4583
  %v4633 = vpop.xlane.xlu0 %4632
  %4634 = vmax.xlane.f32.xlu0 %v4588
  %v4635 = vpop.xlane.xlu0 %4634
  %4636 = vmax.xlane.f32.xlu0 %v4591
  %v4637 = vpop.xlane.xlu0 %4636
  %4638 = vmax.xlane.f32.xlu0 %v4596
  %v4639 = vpop.xlane.xlu0 %4638
  %4640 = vmax.xlane.f32.xlu0 %v4599
  %v4641 = vpop.xlane.xlu0 %4640
  %4642 = vmax.xlane.f32.xlu0 %v4604
  %v4643 = vpop.xlane.xlu0 %4642
  %4644 = vmax.xlane.f32.xlu0 %v4607
  %v4645 = vpop.xlane.xlu0 %4644
  %4646 = vmax.xlane.f32.xlu0 %v4612
  %v4647 = vpop.xlane.xlu0 %4646
  %4648 = vmax.xlane.f32.xlu0 %v4615
  %v4649 = vpop.xlane.xlu0 %4648
  %v4650 = vsub.f32 %v4556, %v4619
  %v4651 = vsub.f32 %v4559, %v4621
  %v4652 = vsub.f32 %v4564, %v4623
  %v4653 = vsub.f32 %v4567, %v4625
  %v4654 = vsub.f32 %v4572, %v4627
  %v4655 = vsub.f32 %v4575, %v4629
  %v4656 = vsub.f32 %v4580, %v4631
  %v4657 = vsub.f32 %v4583, %v4633
  %v4658 = vsub.f32 %v4588, %v4635
  %v4659 = vsub.f32 %v4591, %v4637
  %v4660 = vsub.f32 %v4596, %v4639
  %v4661 = vsub.f32 %v4599, %v4641
  %v4662 = vsub.f32 %v4604, %v4643
  %v4663 = vsub.f32 %v4607, %v4645
  %v4664 = vsub.f32 %v4612, %v4647
  %v4665 = vsub.f32 %v4615, %v4649
  %v4666 = vmul.f32 %v4650, 1.442695
  %v4667 = vpow.pop %v4666
  %v4668 = vmul.f32 %v4651, 1.442695
  %v4669 = vpow.pop %v4668
  %v4670 = vmul.f32 %v4652, 1.442695
  %v4671 = vpow.pop %v4670
  %v4672 = vmul.f32 %v4653, 1.442695
  %v4673 = vpow.pop %v4672
  %v4674 = vmul.f32 %v4654, 1.442695
  %v4675 = vpow.pop %v4674
  %v4676 = vmul.f32 %v4655, 1.442695
  %v4677 = vpow.pop %v4676
  %v4678 = vmul.f32 %v4656, 1.442695
  %v4679 = vpow.pop %v4678
  %v4680 = vmul.f32 %v4657, 1.442695
  %v4681 = vpow.pop %v4680
  %v4682 = vmul.f32 %v4658, 1.442695
  %v4683 = vpow.pop %v4682
  %v4684 = vmul.f32 %v4659, 1.442695
  %v4685 = vpow.pop %v4684
  %v4686 = vmul.f32 %v4660, 1.442695
  %v4687 = vpow.pop %v4686
  %v4688 = vmul.f32 %v4661, 1.442695
  %v4689 = vpow.pop %v4688
  %v4690 = vmul.f32 %v4662, 1.442695
  %v4691 = vpow.pop %v4690
  %v4692 = vmul.f32 %v4663, 1.442695
  %v4693 = vpow.pop %v4692
  %v4694 = vmul.f32 %v4664, 1.442695
  %v4695 = vpow.pop %v4694
  %v4696 = vmul.f32 %v4665, 1.442695
  %v4697 = vpow.pop %v4696
  %4698 = vadd.xlane.f32.xlu0 %v4667
  %v4699 = vpop.xlane.xlu0 %4698
  %4700 = vadd.xlane.f32.xlu0 %v4669
  %v4701 = vpop.xlane.xlu0 %4700
  %4702 = vadd.xlane.f32.xlu0 %v4671
  %v4703 = vpop.xlane.xlu0 %4702
  %4704 = vadd.xlane.f32.xlu0 %v4673
  %v4705 = vpop.xlane.xlu0 %4704
  %4706 = vadd.xlane.f32.xlu0 %v4675
  %v4707 = vpop.xlane.xlu0 %4706
  %4708 = vadd.xlane.f32.xlu0 %v4677
  %v4709 = vpop.xlane.xlu0 %4708
  %4710 = vadd.xlane.f32.xlu0 %v4679
  %v4711 = vpop.xlane.xlu0 %4710
  %4712 = vadd.xlane.f32.xlu0 %v4681
  %v4713 = vpop.xlane.xlu0 %4712
  %4714 = vadd.xlane.f32.xlu0 %v4683
  %v4715 = vpop.xlane.xlu0 %4714
  %4716 = vadd.xlane.f32.xlu0 %v4685
  %v4717 = vpop.xlane.xlu0 %4716
  %4718 = vadd.xlane.f32.xlu0 %v4687
  %v4719 = vpop.xlane.xlu0 %4718
  %4720 = vadd.xlane.f32.xlu0 %v4689
  %v4721 = vpop.xlane.xlu0 %4720
  %4722 = vadd.xlane.f32.xlu0 %v4691
  %v4723 = vpop.xlane.xlu0 %4722
  %4724 = vadd.xlane.f32.xlu0 %v4693
  %v4725 = vpop.xlane.xlu0 %4724
  %4726 = vadd.xlane.f32.xlu0 %v4695
  %v4727 = vpop.xlane.xlu0 %4726
  %4728 = vadd.xlane.f32.xlu0 %v4697
  %v4729 = vpop.xlane.xlu0 %4728
  %v4730 = vrcp.pop %v4699
  %v4731 = vrcp.pop %v4701
  %v4732 = vrcp.pop %v4703
  %v4733 = vrcp.pop %v4705
  %v4734 = vrcp.pop %v4707
  %v4735 = vrcp.pop %v4709
  %v4736 = vrcp.pop %v4711
  %v4737 = vrcp.pop %v4713
  %v4738 = vrcp.pop %v4715
  %v4739 = vrcp.pop %v4717
  %v4740 = vrcp.pop %v4719
  %v4741 = vrcp.pop %v4721
  %v4742 = vrcp.pop %v4723
  %v4743 = vrcp.pop %v4725
  %v4744 = vrcp.pop %v4727
  %v4745 = vrcp.pop %v4729
  %v4746 = vmul.f32 %v4667, %v4730
  %v4747 = vmul.f32 %v4669, %v4731
  %v4748 = vmul.f32 %v4671, %v4732
  %v4749 = vmul.f32 %v4673, %v4733
  %v4750 = vmul.f32 %v4675, %v4734
  %v4751 = vmul.f32 %v4677, %v4735
  %v4752 = vmul.f32 %v4679, %v4736
  %v4753 = vmul.f32 %v4681, %v4737
  %v4754 = vmul.f32 %v4683, %v4738
  %v4755 = vmul.f32 %v4685, %v4739
  %v4756 = vmul.f32 %v4687, %v4740
  %v4757 = vmul.f32 %v4689, %v4741
  %v4758 = vmul.f32 %v4691, %v4742
  %v4759 = vmul.f32 %v4693, %v4743
  %v4760 = vmul.f32 %v4695, %v4744
  %v4761 = vmul.f32 %v4697, %v4745
  %v4762 = vpack.c.bf16 %v4747, %v4746
  %v4763 = vpack.c.bf16 %v4749, %v4748
  %v4764 = vpack.c.bf16 %v4751, %v4750
  %v4765 = vpack.c.bf16 %v4753, %v4752
  %v4766 = vpack.c.bf16 %v4755, %v4754
  %v4767 = vpack.c.bf16 %v4757, %v4756
  %v4768 = vpack.c.bf16 %v4759, %v4758
  %v4769 = vpack.c.bf16 %v4761, %v4760
  %4770 = vmatprep.subr.bf16.mxu0 0
  %4771 = vmatpush1.bf16.msra.mxu0 %v4465
  %4772 = vmatprep.subr.bf16.mxu0 0
  %4773 = vmatpush1.bf16.msra.mxu0 %v4466
  %4774 = vmatprep.subr.bf16.mxu0 0
  %4775 = vmatpush1.bf16.msra.mxu0 %v4467
  %4776 = vmatprep.subr.bf16.mxu0 0
  %4777 = vmatpush1.bf16.msra.mxu0 %v4468
  %4778 = vmatprep.subr.bf16.mxu0 0
  %4779 = vmatpush1.bf16.msra.mxu0 %v4469
  %4780 = vmatprep.subr.bf16.mxu0 0
  %4781 = vmatpush1.bf16.msra.mxu0 %v4470
  %4782 = vmatprep.subr.bf16.mxu0 0
  %4783 = vmatpush1.bf16.msra.mxu0 %v4471
  %4784 = vmatprep.subr.bf16.mxu0 0
  %4785 = vmatpush1.bf16.msra.mxu0 %v4472
  %4786 = vmatprep.subr.bf16.mxu0 0
  %4787 = vmatpush1.bf16.msra.mxu0 0
  %4788 = vmatprep.subr.bf16.mxu0 0
  %4789 = vmatpush1.bf16.msra.mxu0 0
  %4790 = vmatprep.subr.bf16.mxu0 0
  %4791 = vmatpush1.bf16.msra.mxu0 0
  %4792 = vmatprep.subr.bf16.mxu0 0
  %4793 = vmatpush1.bf16.msra.mxu0 0
  %4794 = vmatprep.subr.bf16.mxu0 0
  %4795 = vmatpush1.bf16.msra.mxu0 0
  %4796 = vmatprep.subr.bf16.mxu0 0
  %4797 = vmatpush1.bf16.msra.mxu0 0
  %4798 = vmatprep.subr.bf16.mxu0 0
  %4799 = vmatpush1.bf16.msra.mxu0 0
  %4800 = vmatprep.subr.bf16.mxu0 0
  %4801 = vmatpush1.bf16.msra.mxu0 0
  %4802 = vmatprep.mubr.bf16.mxu0 0
  %4803 = vmatmul.mubr.bf16.gmra.mrb[0].mxu0 %v4762
  %v4804 = vpop.f32.mrb[0].mxu0
  %v4805 = vadd.f32 0.0, %v4804
  %v4806 = vpop.f32.mrb[0].mxu0
  %v4807 = vpop.f32.mrb[0].mxu0
  %v4808 = vadd.f32 0.0, %v4807
  %v4809 = vpop.f32.mrb[0].mxu0
  %4810 = vmatprep.mubr.bf16.mxu0 0
  %4811 = vmatmul.mubr.bf16.gmra.mrb[0].mxu0 %v4763
  %v4812 = vpop.f32.mrb[0].mxu0
  %v4813 = vadd.f32 0.0, %v4812
  %v4814 = vpop.f32.mrb[0].mxu0
  %v4815 = vpop.f32.mrb[0].mxu0
  %v4816 = vadd.f32 0.0, %v4815
  %v4817 = vpop.f32.mrb[0].mxu0
  %4818 = vmatprep.mubr.bf16.mxu0 0
  %4819 = vmatmul.mubr.bf16.gmra.mrb[0].mxu0 %v4764
  %v4820 = vpop.f32.mrb[0].mxu0
  %v4821 = vadd.f32 0.0, %v4820
  %v4822 = vpop.f32.mrb[0].mxu0
  %v4823 = vpop.f32.mrb[0].mxu0
  %v4824 = vadd.f32 0.0, %v4823
  %v4825 = vpop.f32.mrb[0].mxu0
  %4826 = vmatprep.mubr.bf16.mxu0 0
  %4827 = vmatmul.mubr.bf16.gmra.mrb[0].mxu0 %v4765
  %v4828 = vpop.f32.mrb[0].mxu0
  %v4829 = vadd.f32 0.0, %v4828
  %v4830 = vpop.f32.mrb[0].mxu0
  %v4831 = vpop.f32.mrb[0].mxu0
  %v4832 = vadd.f32 0.0, %v4831
  %v4833 = vpop.f32.mrb[0].mxu0
  %4834 = vmatprep.mubr.bf16.mxu0 0
  %4835 = vmatmul.mubr.bf16.gmra.mrb[0].mxu0 %v4766
  %v4836 = vpop.f32.mrb[0].mxu0
  %v4837 = vadd.f32 0.0, %v4836
  %v4838 = vpop.f32.mrb[0].mxu0
  %v4839 = vpop.f32.mrb[0].mxu0
  %v4840 = vadd.f32 0.0, %v4839
  %v4841 = vpop.f32.mrb[0].mxu0
  %4842 = vmatprep.mubr.bf16.mxu0 0
  %4843 = vmatmul.mubr.bf16.gmra.mrb[0].mxu0 %v4767
  %v4844 = vpop.f32.mrb[0].mxu0
  %v4845 = vadd.f32 0.0, %v4844
  %v4846 = vpop.f32.mrb[0].mxu0
  %v4847 = vpop.f32.mrb[0].mxu0
  %v4848 = vadd.f32 0.0, %v4847
  %v4849 = vpop.f32.mrb[0].mxu0
  %4850 = vmatprep.mubr.bf16.mxu0 0
  %4851 = vmatmul.mubr.bf16.gmra.mrb[0].mxu0 %v4768
  %v4852 = vpop.f32.mrb[0].mxu0
  %v4853 = vadd.f32 0.0, %v4852
  %v4854 = vpop.f32.mrb[0].mxu0
  %v4855 = vpop.f32.mrb[0].mxu0
  %v4856 = vadd.f32 0.0, %v4855
  %v4857 = vpop.f32.mrb[0].mxu0
  %4858 = vmatprep.mubr.bf16.mxu0 0
  %4859 = vmatmul.mubr.bf16.gmra.mrb[0].mxu0 %v4769
  %v4860 = vpop.f32.mrb[0].mxu0
  %v4861 = vadd.f32 0.0, %v4860
  %v4862 = vpop.f32.mrb[0].mxu0
  %v4863 = vpop.f32.mrb[0].mxu0
  %v4864 = vadd.f32 0.0, %v4863
  %v4865 = vpop.f32.mrb[0].mxu0
  %4866 = vdwg.mxu0
  %v4867 = vpack.c.bf16 %v4808, %v4805
  %v4868 = vpack.c.bf16 %v4816, %v4813
  %v4869 = vpack.c.bf16 %v4824, %v4821
  %v4870 = vpack.c.bf16 %v4832, %v4829
  %v4871 = vpack.c.bf16 %v4840, %v4837
  %v4872 = vpack.c.bf16 %v4848, %v4845
  %v4873 = vpack.c.bf16 %v4856, %v4853
  %v4874 = vpack.c.bf16 %v4864, %v4861
  %4875 = vst.msk [vmem:[#allocation5 + $0x10] sm:$0xff] %vm305, %v4867
  %4876 = vst.msk [vmem:[#allocation5 + $0x30] sm:$0xff] %vm305, %v4868
  %4877 = vst.msk [vmem:[#allocation5 + $0x50] sm:$0xff] %vm305, %v4869
  %4878 = vst.msk [vmem:[#allocation5 + $0x70] sm:$0xff] %vm305, %v4870
  %4879 = vst.msk [vmem:[#allocation5 + $0x90] sm:$0xff] %vm305, %v4871
  %4880 = vst.msk [vmem:[#allocation5 + $0xb0] sm:$0xff] %vm305, %v4872
  %4881 = vst.msk [vmem:[#allocation5 + $0xd0] sm:$0xff] %vm305, %v4873
  %4882 = vst.msk [vmem:[#allocation5 + $0xf0] sm:$0xff] %vm305, %v4874
  %v4883 = vld [vmem:[#allocation2 + $0x10] sm:$0xff]
  %v4884 = vld [vmem:[#allocation2 + $0x30] sm:$0xff]
  %v4885 = vld [vmem:[#allocation2 + $0x50] sm:$0xff]
  %v4886 = vld [vmem:[#allocation2 + $0x70] sm:$0xff]
  %v4887 = vld [vmem:[#allocation2 + $0x90] sm:$0xff]
  %v4888 = vld [vmem:[#allocation2 + $0xb0] sm:$0xff]
  %v4889 = vld [vmem:[#allocation2 + $0xd0] sm:$0xff]
  %v4890 = vld [vmem:[#allocation2 + $0xf0] sm:$0xff]
  %v4891 = vld [vmem:[#allocation3 + $0x10] sm:$0xff]
  %v4892 = vld [vmem:[#allocation3 + $0x30] sm:$0xff]
  %v4893 = vld [vmem:[#allocation3 + $0x50] sm:$0xff]
  %v4894 = vld [vmem:[#allocation3 + $0x70] sm:$0xff]
  %v4895 = vld [vmem:[#allocation3 + $0x90] sm:$0xff]
  %v4896 = vld [vmem:[#allocation3 + $0xb0] sm:$0xff]
  %v4897 = vld [vmem:[#allocation3 + $0xd0] sm:$0xff]
  %v4898 = vld [vmem:[#allocation3 + $0xf0] sm:$0xff]
  %v4899 = vld [vmem:[#allocation4 + $0x10] sm:$0xff]
  %v4900 = vld [vmem:[#allocation4 + $0x30] sm:$0xff]
  %v4901 = vld [vmem:[#allocation4 + $0x50] sm:$0xff]
  %v4902 = vld [vmem:[#allocation4 + $0x70] sm:$0xff]
  %v4903 = vld [vmem:[#allocation4 + $0x90] sm:$0xff]
  %v4904 = vld [vmem:[#allocation4 + $0xb0] sm:$0xff]
  %v4905 = vld [vmem:[#allocation4 + $0xd0] sm:$0xff]
  %v4906 = vld [vmem:[#allocation4 + $0xf0] sm:$0xff]
  %4915 = vrot.lane.b32.xlu0 %v4883, 64
  %v4916 = vpop.permute.xlu0 %4915
  %4917 = vrot.lane.b32.xlu0 %v4884, 64
  %v4918 = vpop.permute.xlu0 %4917
  %4919 = vrot.lane.b32.xlu0 %v4885, 64
  %v4920 = vpop.permute.xlu0 %4919
  %4921 = vrot.lane.b32.xlu0 %v4886, 64
  %v4922 = vpop.permute.xlu0 %4921
  %4923 = vrot.lane.b32.xlu0 %v4887, 64
  %v4924 = vpop.permute.xlu0 %4923
  %4925 = vrot.lane.b32.xlu0 %v4888, 64
  %v4926 = vpop.permute.xlu0 %4925
  %4927 = vrot.lane.b32.xlu0 %v4889, 64
  %v4928 = vpop.permute.xlu0 %4927
  %4929 = vrot.lane.b32.xlu0 %v4890, 64
  %v4930 = vpop.permute.xlu0 %4929
  %4939 = vrot.lane.b32.xlu0 %v4891, 64
  %v4940 = vpop.permute.xlu0 %4939
  %4941 = vrot.lane.b32.xlu0 %v4892, 64
  %v4942 = vpop.permute.xlu0 %4941
  %4943 = vrot.lane.b32.xlu0 %v4893, 64
  %v4944 = vpop.permute.xlu0 %4943
  %4945 = vrot.lane.b32.xlu0 %v4894, 64
  %v4946 = vpop.permute.xlu0 %4945
  %4947 = vrot.lane.b32.xlu0 %v4895, 64
  %v4948 = vpop.permute.xlu0 %4947
  %4949 = vrot.lane.b32.xlu0 %v4896, 64
  %v4950 = vpop.permute.xlu0 %4949
  %4951 = vrot.lane.b32.xlu0 %v4897, 64
  %v4952 = vpop.permute.xlu0 %4951
  %4953 = vrot.lane.b32.xlu0 %v4898, 64
  %v4954 = vpop.permute.xlu0 %4953
  %v4956 = vsel %vm305, %v4916, 0
  %v4959 = vsel %vm305, %v4918, 0
  %v4962 = vsel %vm305, %v4920, 0
  %v4965 = vsel %vm305, %v4922, 0
  %v4968 = vsel %vm305, %v4924, 0
  %v4971 = vsel %vm305, %v4926, 0
  %v4974 = vsel %vm305, %v4928, 0
  %v4977 = vsel %vm305, %v4930, 0
  %v4980 = vsel %vm305, %v4940, 0
  %v4983 = vsel %vm305, %v4942, 0
  %v4986 = vsel %vm305, %v4944, 0
  %v4989 = vsel %vm305, %v4946, 0
  %v4992 = vsel %vm305, %v4948, 0
  %v4995 = vsel %vm305, %v4950, 0
  %v4998 = vsel %vm305, %v4952, 0
  %v5001 = vsel %vm305, %v4954, 0
  %5003 = vmatprep.subr.bf16.mxu0 0
  %5004 = vmatpush1.bf16.xpose.msra.mxu0 %v4980
  %5005 = vmatprep.subr.bf16.mxu0 0
  %5006 = vmatpush1.bf16.xpose.msra.mxu0 %v4983
  %5007 = vmatprep.subr.bf16.mxu0 0
  %5008 = vmatpush1.bf16.xpose.msra.mxu0 %v4986
  %5009 = vmatprep.subr.bf16.mxu0 0
  %5010 = vmatpush1.bf16.xpose.msra.mxu0 %v4989
  %5011 = vmatprep.subr.bf16.mxu0 0
  %5012 = vmatpush1.bf16.xpose.msra.mxu0 %v4992
  %5013 = vmatprep.subr.bf16.mxu0 0
  %5014 = vmatpush1.bf16.xpose.msra.mxu0 %v4995
  %5015 = vmatprep.subr.bf16.mxu0 0
  %5016 = vmatpush1.bf16.xpose.msra.mxu0 %v4998
  %5017 = vmatprep.subr.bf16.mxu0 0
  %5018 = vmatpush1.bf16.xpose.msra.mxu0 %v5001
  %5019 = vmatprep.subr.bf16.mxu0 0
  %5020 = vmatpush1.bf16.xpose.msra.mxu0 0
  %5021 = vmatprep.subr.bf16.mxu0 0
  %5022 = vmatpush1.bf16.xpose.msra.mxu0 0
  %5023 = vmatprep.subr.bf16.mxu0 0
  %5024 = vmatpush1.bf16.xpose.msra.mxu0 0
  %5025 = vmatprep.subr.bf16.mxu0 0
  %5026 = vmatpush1.bf16.xpose.msra.mxu0 0
  %5027 = vmatprep.subr.bf16.mxu0 0
  %5028 = vmatpush1.bf16.xpose.msra.mxu0 0
  %5029 = vmatprep.subr.bf16.mxu0 0
  %5030 = vmatpush1.bf16.xpose.msra.mxu0 0
  %5031 = vmatprep.subr.bf16.mxu0 0
  %5032 = vmatpush1.bf16.xpose.msra.mxu0 0
  %5033 = vmatprep.subr.bf16.mxu0 0
  %5034 = vmatpush1.bf16.xpose.msra.mxu0 0
  %5035 = vmatprep.mubr.bf16.mxu0 0
  %5036 = vmatmul.mubr.bf16.gmra.mrb[0].mxu0 %v4956
  %v5037 = vpop.f32.mrb[0].mxu0
  %v5038 = vadd.f32 %v2472, %v5037
  %v5039 = vpop.f32.mrb[0].mxu0
  %v5040 = vpop.f32.mrb[0].mxu0
  %v5041 = vadd.f32 %v2473, %v5040
  %v5042 = vpop.f32.mrb[0].mxu0
  %5043 = vmatprep.mubr.bf16.mxu0 0
  %5044 = vmatmul.mubr.bf16.gmra.mrb[0].mxu0 %v4959
  %v5045 = vpop.f32.mrb[0].mxu0
  %v5046 = vadd.f32 %v2474, %v5045
  %v5047 = vpop.f32.mrb[0].mxu0
  %v5048 = vpop.f32.mrb[0].mxu0
  %v5049 = vadd.f32 %v2475, %v5048
  %v5050 = vpop.f32.mrb[0].mxu0
  %5051 = vmatprep.mubr.bf16.mxu0 0
  %5052 = vmatmul.mubr.bf16.gmra.mrb[0].mxu0 %v4962
  %v5053 = vpop.f32.mrb[0].mxu0
  %v5054 = vadd.f32 %v2476, %v5053
  %v5055 = vpop.f32.mrb[0].mxu0
  %v5056 = vpop.f32.mrb[0].mxu0
  %v5057 = vadd.f32 %v2477, %v5056
  %v5058 = vpop.f32.mrb[0].mxu0
  %5059 = vmatprep.mubr.bf16.mxu0 0
  %5060 = vmatmul.mubr.bf16.gmra.mrb[0].mxu0 %v4965
  %v5061 = vpop.f32.mrb[0].mxu0
  %v5062 = vadd.f32 %v2478, %v5061
  %v5063 = vpop.f32.mrb[0].mxu0
  %v5064 = vpop.f32.mrb[0].mxu0
  %v5065 = vadd.f32 %v2479, %v5064
  %v5066 = vpop.f32.mrb[0].mxu0
  %5067 = vmatprep.mubr.bf16.mxu0 0
  %5068 = vmatmul.mubr.bf16.gmra.mrb[0].mxu0 %v4968
  %v5069 = vpop.f32.mrb[0].mxu0
  %v5070 = vadd.f32 %v2480, %v5069
  %v5071 = vpop.f32.mrb[0].mxu0
  %v5072 = vpop.f32.mrb[0].mxu0
  %v5073 = vadd.f32 %v2481, %v5072
  %v5074 = vpop.f32.mrb[0].mxu0
  %5075 = vmatprep.mubr.bf16.mxu0 0
  %5076 = vmatmul.mubr.bf16.gmra.mrb[0].mxu0 %v4971
  %v5077 = vpop.f32.mrb[0].mxu0
  %v5078 = vadd.f32 %v2482, %v5077
  %v5079 = vpop.f32.mrb[0].mxu0
  %v5080 = vpop.f32.mrb[0].mxu0
  %v5081 = vadd.f32 %v2483, %v5080
  %v5082 = vpop.f32.mrb[0].mxu0
  %5083 = vmatprep.mubr.bf16.mxu0 0
  %5084 = vmatmul.mubr.bf16.gmra.mrb[0].mxu0 %v4974
  %v5085 = vpop.f32.mrb[0].mxu0
  %v5086 = vadd.f32 %v2484, %v5085
  %v5087 = vpop.f32.mrb[0].mxu0
  %v5088 = vpop.f32.mrb[0].mxu0
  %v5089 = vadd.f32 %v2485, %v5088
  %v5090 = vpop.f32.mrb[0].mxu0
  %5091 = vmatprep.mubr.bf16.mxu0 0
  %5092 = vmatmul.mubr.bf16.gmra.mrb[0].mxu0 %v4977
  %v5093 = vpop.f32.mrb[0].mxu0
  %v5094 = vadd.f32 %v2486, %v5093
  %v5095 = vpop.f32.mrb[0].mxu0
  %v5096 = vpop.f32.mrb[0].mxu0
  %v5097 = vadd.f32 %v2487, %v5096
  %v5098 = vpop.f32.mrb[0].mxu0
  %5099 = vdwg.mxu0
  %5100 = vmax.xlane.f32.xlu0 %v5038
  %v5101 = vpop.xlane.xlu0 %5100
  %5102 = vmax.xlane.f32.xlu0 %v5041
  %v5103 = vpop.xlane.xlu0 %5102
  %5104 = vmax.xlane.f32.xlu0 %v5046
  %v5105 = vpop.xlane.xlu0 %5104
  %5106 = vmax.xlane.f32.xlu0 %v5049
  %v5107 = vpop.xlane.xlu0 %5106
  %5108 = vmax.xlane.f32.xlu0 %v5054
  %v5109 = vpop.xlane.xlu0 %5108
  %5110 = vmax.xlane.f32.xlu0 %v5057
  %v5111 = vpop.xlane.xlu0 %5110
  %5112 = vmax.xlane.f32.xlu0 %v5062
  %v5113 = vpop.xlane.xlu0 %5112
  %5114 = vmax.xlane.f32.xlu0 %v5065
  %v5115 = vpop.xlane.xlu0 %5114
  %5116 = vmax.xlane.f32.xlu0 %v5070
  %v5117 = vpop.xlane.xlu0 %5116
  %5118 = vmax.xlane.f32.xlu0 %v5073
  %v5119 = vpop.xlane.xlu0 %5118
  %5120 = vmax.xlane.f32.xlu0 %v5078
  %v5121 = vpop.xlane.xlu0 %5120
  %5122 = vmax.xlane.f32.xlu0 %v5081
  %v5123 = vpop.xlane.xlu0 %5122
  %5124 = vmax.xlane.f32.xlu0 %v5086
  %v5125 = vpop.xlane.xlu0 %5124
  %5126 = vmax.xlane.f32.xlu0 %v5089
  %v5127 = vpop.xlane.xlu0 %5126
  %5128 = vmax.xlane.f32.xlu0 %v5094
  %v5129 = vpop.xlane.xlu0 %5128
  %5130 = vmax.xlane.f32.xlu0 %v5097
  %v5131 = vpop.xlane.xlu0 %5130
  %v5132 = vsub.f32 %v5038, %v5101
  %v5133 = vsub.f32 %v5041, %v5103
  %v5134 = vsub.f32 %v5046, %v5105
  %v5135 = vsub.f32 %v5049, %v5107
  %v5136 = vsub.f32 %v5054, %v5109
  %v5137 = vsub.f32 %v5057, %v5111
  %v5138 = vsub.f32 %v5062, %v5113
  %v5139 = vsub.f32 %v5065, %v5115
  %v5140 = vsub.f32 %v5070, %v5117
  %v5141 = vsub.f32 %v5073, %v5119
  %v5142 = vsub.f32 %v5078, %v5121
  %v5143 = vsub.f32 %v5081, %v5123
  %v5144 = vsub.f32 %v5086, %v5125
  %v5145 = vsub.f32 %v5089, %v5127
  %v5146 = vsub.f32 %v5094, %v5129
  %v5147 = vsub.f32 %v5097, %v5131
  %v5148 = vmul.f32 %v5132, 1.442695
  %v5149 = vpow.pop %v5148
  %v5150 = vmul.f32 %v5133, 1.442695
  %v5151 = vpow.pop %v5150
  %v5152 = vmul.f32 %v5134, 1.442695
  %v5153 = vpow.pop %v5152
  %v5154 = vmul.f32 %v5135, 1.442695
  %v5155 = vpow.pop %v5154
  %v5156 = vmul.f32 %v5136, 1.442695
  %v5157 = vpow.pop %v5156
  %v5158 = vmul.f32 %v5137, 1.442695
  %v5159 = vpow.pop %v5158
  %v5160 = vmul.f32 %v5138, 1.442695
  %v5161 = vpow.pop %v5160
  %v5162 = vmul.f32 %v5139, 1.442695
  %v5163 = vpow.pop %v5162
  %v5164 = vmul.f32 %v5140, 1.442695
  %v5165 = vpow.pop %v5164
  %v5166 = vmul.f32 %v5141, 1.442695
  %v5167 = vpow.pop %v5166
  %v5168 = vmul.f32 %v5142, 1.442695
  %v5169 = vpow.pop %v5168
  %v5170 = vmul.f32 %v5143, 1.442695
  %v5171 = vpow.pop %v5170
  %v5172 = vmul.f32 %v5144, 1.442695
  %v5173 = vpow.pop %v5172
  %v5174 = vmul.f32 %v5145, 1.442695
  %v5175 = vpow.pop %v5174
  %v5176 = vmul.f32 %v5146, 1.442695
  %v5177 = vpow.pop %v5176
  %v5178 = vmul.f32 %v5147, 1.442695
  %v5179 = vpow.pop %v5178
  %5180 = vadd.xlane.f32.xlu0 %v5149
  %v5181 = vpop.xlane.xlu0 %5180
  %5182 = vadd.xlane.f32.xlu0 %v5151
  %v5183 = vpop.xlane.xlu0 %5182
  %5184 = vadd.xlane.f32.xlu0 %v5153
  %v5185 = vpop.xlane.xlu0 %5184
  %5186 = vadd.xlane.f32.xlu0 %v5155
  %v5187 = vpop.xlane.xlu0 %5186
  %5188 = vadd.xlane.f32.xlu0 %v5157
  %v5189 = vpop.xlane.xlu0 %5188
  %5190 = vadd.xlane.f32.xlu0 %v5159
  %v5191 = vpop.xlane.xlu0 %5190
  %5192 = vadd.xlane.f32.xlu0 %v5161
  %v5193 = vpop.xlane.xlu0 %5192
  %5194 = vadd.xlane.f32.xlu0 %v5163
  %v5195 = vpop.xlane.xlu0 %5194
  %5196 = vadd.xlane.f32.xlu0 %v5165
  %v5197 = vpop.xlane.xlu0 %5196
  %5198 = vadd.xlane.f32.xlu0 %v5167
  %v5199 = vpop.xlane.xlu0 %5198
  %5200 = vadd.xlane.f32.xlu0 %v5169
  %v5201 = vpop.xlane.xlu0 %5200
  %5202 = vadd.xlane.f32.xlu0 %v5171
  %v5203 = vpop.xlane.xlu0 %5202
  %5204 = vadd.xlane.f32.xlu0 %v5173
  %v5205 = vpop.xlane.xlu0 %5204
  %5206 = vadd.xlane.f32.xlu0 %v5175
  %v5207 = vpop.xlane.xlu0 %5206
  %5208 = vadd.xlane.f32.xlu0 %v5177
  %v5209 = vpop.xlane.xlu0 %5208
  %5210 = vadd.xlane.f32.xlu0 %v5179
  %v5211 = vpop.xlane.xlu0 %5210
  %v5212 = vrcp.pop %v5181
  %v5213 = vrcp.pop %v5183
  %v5214 = vrcp.pop %v5185
  %v5215 = vrcp.pop %v5187
  %v5216 = vrcp.pop %v5189
  %v5217 = vrcp.pop %v5191
  %v5218 = vrcp.pop %v5193
  %v5219 = vrcp.pop %v5195
  %v5220 = vrcp.pop %v5197
  %v5221 = vrcp.pop %v5199
  %v5222 = vrcp.pop %v5201
  %v5223 = vrcp.pop %v5203
  %v5224 = vrcp.pop %v5205
  %v5225 = vrcp.pop %v5207
  %v5226 = vrcp.pop %v5209
  %v5227 = vrcp.pop %v5211
  %v5228 = vmul.f32 %v5149, %v5212
  %v5229 = vmul.f32 %v5151, %v5213
  %v5230 = vmul.f32 %v5153, %v5214
  %v5231 = vmul.f32 %v5155, %v5215
  %v5232 = vmul.f32 %v5157, %v5216
  %v5233 = vmul.f32 %v5159, %v5217
  %v5234 = vmul.f32 %v5161, %v5218
  %v5235 = vmul.f32 %v5163, %v5219
  %v5236 = vmul.f32 %v5165, %v5220
  %v5237 = vmul.f32 %v5167, %v5221
  %v5238 = vmul.f32 %v5169, %v5222
  %v5239 = vmul.f32 %v5171, %v5223
  %v5240 = vmul.f32 %v5173, %v5224
  %v5241 = vmul.f32 %v5175, %v5225
  %v5242 = vmul.f32 %v5177, %v5226
  %v5243 = vmul.f32 %v5179, %v5227
  %v5244 = vpack.c.bf16 %v5229, %v5228
  %v5245 = vpack.c.bf16 %v5231, %v5230
  %v5246 = vpack.c.bf16 %v5233, %v5232
  %v5247 = vpack.c.bf16 %v5235, %v5234
  %v5248 = vpack.c.bf16 %v5237, %v5236
  %v5249 = vpack.c.bf16 %v5239, %v5238
  %v5250 = vpack.c.bf16 %v5241, %v5240
  %v5251 = vpack.c.bf16 %v5243, %v5242
  %5260 = vrot.lane.b32.xlu0 %v4899, 64
  %v5261 = vpop.permute.xlu0 %5260
  %5262 = vrot.lane.b32.xlu0 %v4900, 64
  %v5263 = vpop.permute.xlu0 %5262
  %5264 = vrot.lane.b32.xlu0 %v4901, 64
  %v5265 = vpop.permute.xlu0 %5264
  %5266 = vrot.lane.b32.xlu0 %v4902, 64
  %v5267 = vpop.permute.xlu0 %5266
  %5268 = vrot.lane.b32.xlu0 %v4903, 64
  %v5269 = vpop.permute.xlu0 %5268
  %5270 = vrot.lane.b32.xlu0 %v4904, 64
  %v5271 = vpop.permute.xlu0 %5270
  %5272 = vrot.lane.b32.xlu0 %v4905, 64
  %v5273 = vpop.permute.xlu0 %5272
  %5274 = vrot.lane.b32.xlu0 %v4906, 64
  %v5275 = vpop.permute.xlu0 %5274
  %5284 = vmatprep.subr.bf16.mxu0 0
  %5285 = vmatpush1.bf16.msra.mxu0 %v5261
  %5286 = vmatprep.subr.bf16.mxu0 0
  %5287 = vmatpush1.bf16.msra.mxu0 %v5263
  %5288 = vmatprep.subr.bf16.mxu0 0
  %5289 = vmatpush1.bf16.msra.mxu0 %v5265
  %5290 = vmatprep.subr.bf16.mxu0 0
  %5291 = vmatpush1.bf16.msra.mxu0 %v5267
  %5292 = vmatprep.subr.bf16.mxu0 0
  %5293 = vmatpush1.bf16.msra.mxu0 %v5269
  %5294 = vmatprep.subr.bf16.mxu0 0
  %5295 = vmatpush1.bf16.msra.mxu0 %v5271
  %5296 = vmatprep.subr.bf16.mxu0 0
  %5297 = vmatpush1.bf16.msra.mxu0 %v5273
  %5298 = vmatprep.subr.bf16.mxu0 0
  %5299 = vmatpush1.bf16.msra.mxu0 %v5275
  %5300 = vmatprep.subr.bf16.mxu0 0
  %5301 = vmatpush1.bf16.msra.mxu0 0
  %5302 = vmatprep.subr.bf16.mxu0 0
  %5303 = vmatpush1.bf16.msra.mxu0 0
  %5304 = vmatprep.subr.bf16.mxu0 0
  %5305 = vmatpush1.bf16.msra.mxu0 0
  %5306 = vmatprep.subr.bf16.mxu0 0
  %5307 = vmatpush1.bf16.msra.mxu0 0
  %5308 = vmatprep.subr.bf16.mxu0 0
  %5309 = vmatpush1.bf16.msra.mxu0 0
  %5310 = vmatprep.subr.bf16.mxu0 0
  %5311 = vmatpush1.bf16.msra.mxu0 0
  %5312 = vmatprep.subr.bf16.mxu0 0
  %5313 = vmatpush1.bf16.msra.mxu0 0
  %5314 = vmatprep.subr.bf16.mxu0 0
  %5315 = vmatpush1.bf16.msra.mxu0 0
  %5316 = vmatprep.mubr.bf16.mxu0 0
  %5317 = vmatmul.mubr.bf16.gmra.mrb[0].mxu0 %v5244
  %v5318 = vpop.f32.mrb[0].mxu0
  %v5319 = vadd.f32 0.0, %v5318
  %v5320 = vpop.f32.mrb[0].mxu0
  %v5321 = vpop.f32.mrb[0].mxu0
  %v5322 = vadd.f32 0.0, %v5321
  %v5323 = vpop.f32.mrb[0].mxu0
  %5324 = vmatprep.mubr.bf16.mxu0 0
  %5325 = vmatmul.mubr.bf16.gmra.mrb[0].mxu0 %v5245
  %v5326 = vpop.f32.mrb[0].mxu0
  %v5327 = vadd.f32 0.0, %v5326
  %v5328 = vpop.f32.mrb[0].mxu0
  %v5329 = vpop.f32.mrb[0].mxu0
  %v5330 = vadd.f32 0.0, %v5329
  %v5331 = vpop.f32.mrb[0].mxu0
  %5332 = vmatprep.mubr.bf16.mxu0 0
  %5333 = vmatmul.mubr.bf16.gmra.mrb[0].mxu0 %v5246
  %v5334 = vpop.f32.mrb[0].mxu0
  %v5335 = vadd.f32 0.0, %v5334
  %v5336 = vpop.f32.mrb[0].mxu0
  %v5337 = vpop.f32.mrb[0].mxu0
  %v5338 = vadd.f32 0.0, %v5337
  %v5339 = vpop.f32.mrb[0].mxu0
  %5340 = vmatprep.mubr.bf16.mxu0 0
  %5341 = vmatmul.mubr.bf16.gmra.mrb[0].mxu0 %v5247
  %v5342 = vpop.f32.mrb[0].mxu0
  %v5343 = vadd.f32 0.0, %v5342
  %v5344 = vpop.f32.mrb[0].mxu0
  %v5345 = vpop.f32.mrb[0].mxu0
  %v5346 = vadd.f32 0.0, %v5345
  %v5347 = vpop.f32.mrb[0].mxu0
  %5348 = vmatprep.mubr.bf16.mxu0 0
  %5349 = vmatmul.mubr.bf16.gmra.mrb[0].mxu0 %v5248
  %v5350 = vpop.f32.mrb[0].mxu0
  %v5351 = vadd.f32 0.0, %v5350
  %v5352 = vpop.f32.mrb[0].mxu0
  %v5353 = vpop.f32.mrb[0].mxu0
  %v5354 = vadd.f32 0.0, %v5353
  %v5355 = vpop.f32.mrb[0].mxu0
  %5356 = vmatprep.mubr.bf16.mxu0 0
  %5357 = vmatmul.mubr.bf16.gmra.mrb[0].mxu0 %v5249
  %v5358 = vpop.f32.mrb[0].mxu0
  %v5359 = vadd.f32 0.0, %v5358
  %v5360 = vpop.f32.mrb[0].mxu0
  %v5361 = vpop.f32.mrb[0].mxu0
  %v5362 = vadd.f32 0.0, %v5361
  %v5363 = vpop.f32.mrb[0].mxu0
  %5364 = vmatprep.mubr.bf16.mxu0 0
  %5365 = vmatmul.mubr.bf16.gmra.mrb[0].mxu0 %v5250
  %v5366 = vpop.f32.mrb[0].mxu0
  %v5367 = vadd.f32 0.0, %v5366
  %v5368 = vpop.f32.mrb[0].mxu0
  %v5369 = vpop.f32.mrb[0].mxu0
  %v5370 = vadd.f32 0.0, %v5369
  %v5371 = vpop.f32.mrb[0].mxu0
  %5372 = vmatprep.mubr.bf16.mxu0 0
  %5373 = vmatmul.mubr.bf16.gmra.mrb[0].mxu0 %v5251
  %v5374 = vpop.f32.mrb[0].mxu0
  %v5375 = vadd.f32 0.0, %v5374
  %v5376 = vpop.f32.mrb[0].mxu0
  %v5377 = vpop.f32.mrb[0].mxu0
  %v5378 = vadd.f32 0.0, %v5377
  %v5379 = vpop.f32.mrb[0].mxu0
  %5380 = vdwg.mxu0
  %v5381 = vpack.c.bf16 %v5322, %v5319
  %v5382 = vpack.c.bf16 %v5330, %v5327
  %v5383 = vpack.c.bf16 %v5338, %v5335
  %v5384 = vpack.c.bf16 %v5346, %v5343
  %v5385 = vpack.c.bf16 %v5354, %v5351
  %v5386 = vpack.c.bf16 %v5362, %v5359
  %v5387 = vpack.c.bf16 %v5370, %v5367
  %v5388 = vpack.c.bf16 %v5378, %v5375
  %5397 = vrot.lane.b32.xlu0 %v5381, 64
  %v5398 = vpop.permute.xlu0 %5397
  %5399 = vrot.lane.b32.xlu0 %v5382, 64
  %v5400 = vpop.permute.xlu0 %5399
  %5401 = vrot.lane.b32.xlu0 %v5383, 64
  %v5402 = vpop.permute.xlu0 %5401
  %5403 = vrot.lane.b32.xlu0 %v5384, 64
  %v5404 = vpop.permute.xlu0 %5403
  %5405 = vrot.lane.b32.xlu0 %v5385, 64
  %v5406 = vpop.permute.xlu0 %5405
  %5407 = vrot.lane.b32.xlu0 %v5386, 64
  %v5408 = vpop.permute.xlu0 %5407
  %5409 = vrot.lane.b32.xlu0 %v5387, 64
  %v5410 = vpop.permute.xlu0 %5409
  %5411 = vrot.lane.b32.xlu0 %v5388, 64
  %v5412 = vpop.permute.xlu0 %5411
  %5421 = vst.msk [vmem:[#allocation5 + $0x10] sm:$0xff] %vm3460, %v5398
  %5422 = vst.msk [vmem:[#allocation5 + $0x30] sm:$0xff] %vm3460, %v5400
  %5423 = vst.msk [vmem:[#allocation5 + $0x50] sm:$0xff] %vm3460, %v5402
  %5424 = vst.msk [vmem:[#allocation5 + $0x70] sm:$0xff] %vm3460, %v5404
  %5425 = vst.msk [vmem:[#allocation5 + $0x90] sm:$0xff] %vm3460, %v5406
  %5426 = vst.msk [vmem:[#allocation5 + $0xb0] sm:$0xff] %vm3460, %v5408
  %5427 = vst.msk [vmem:[#allocation5 + $0xd0] sm:$0xff] %vm3460, %v5410
  %5428 = vst.msk [vmem:[#allocation5 + $0xf0] sm:$0xff] %vm3460, %v5412
  %v5429 = vld [vmem:[#allocation2 + $0x18] sm:$0xff]
  %v5430 = vld [vmem:[#allocation2 + $0x38] sm:$0xff]
  %v5431 = vld [vmem:[#allocation2 + $0x58] sm:$0xff]
  %v5432 = vld [vmem:[#allocation2 + $0x78] sm:$0xff]
  %v5433 = vld [vmem:[#allocation2 + $0x98] sm:$0xff]
  %v5434 = vld [vmem:[#allocation2 + $0xb8] sm:$0xff]
  %v5435 = vld [vmem:[#allocation2 + $0xd8] sm:$0xff]
  %v5436 = vld [vmem:[#allocation2 + $0xf8] sm:$0xff]
  %v5437 = vld [vmem:[#allocation3 + $0x18] sm:$0xff]
  %v5438 = vld [vmem:[#allocation3 + $0x38] sm:$0xff]
  %v5439 = vld [vmem:[#allocation3 + $0x58] sm:$0xff]
  %v5440 = vld [vmem:[#allocation3 + $0x78] sm:$0xff]
  %v5441 = vld [vmem:[#allocation3 + $0x98] sm:$0xff]
  %v5442 = vld [vmem:[#allocation3 + $0xb8] sm:$0xff]
  %v5443 = vld [vmem:[#allocation3 + $0xd8] sm:$0xff]
  %v5444 = vld [vmem:[#allocation3 + $0xf8] sm:$0xff]
  %v5445 = vld [vmem:[#allocation4 + $0x18] sm:$0xff]
  %v5446 = vld [vmem:[#allocation4 + $0x38] sm:$0xff]
  %v5447 = vld [vmem:[#allocation4 + $0x58] sm:$0xff]
  %v5448 = vld [vmem:[#allocation4 + $0x78] sm:$0xff]
  %v5449 = vld [vmem:[#allocation4 + $0x98] sm:$0xff]
  %v5450 = vld [vmem:[#allocation4 + $0xb8] sm:$0xff]
  %v5451 = vld [vmem:[#allocation4 + $0xd8] sm:$0xff]
  %v5452 = vld [vmem:[#allocation4 + $0xf8] sm:$0xff]
  %v5454 = vsel %vm305, %v5429, 0
  %v5457 = vsel %vm305, %v5430, 0
  %v5460 = vsel %vm305, %v5431, 0
  %v5463 = vsel %vm305, %v5432, 0
  %v5466 = vsel %vm305, %v5433, 0
  %v5469 = vsel %vm305, %v5434, 0
  %v5472 = vsel %vm305, %v5435, 0
  %v5475 = vsel %vm305, %v5436, 0
  %v5478 = vsel %vm305, %v5437, 0
  %v5481 = vsel %vm305, %v5438, 0
  %v5484 = vsel %vm305, %v5439, 0
  %v5487 = vsel %vm305, %v5440, 0
  %v5490 = vsel %vm305, %v5441, 0
  %v5493 = vsel %vm305, %v5442, 0
  %v5496 = vsel %vm305, %v5443, 0
  %v5499 = vsel %vm305, %v5444, 0
  %5501 = vmatprep.subr.bf16.mxu0 0
  %5502 = vmatpush1.bf16.xpose.msra.mxu0 %v5478
  %5503 = vmatprep.subr.bf16.mxu0 0
  %5504 = vmatpush1.bf16.xpose.msra.mxu0 %v5481
  %5505 = vmatprep.subr.bf16.mxu0 0
  %5506 = vmatpush1.bf16.xpose.msra.mxu0 %v5484
  %5507 = vmatprep.subr.bf16.mxu0 0
  %5508 = vmatpush1.bf16.xpose.msra.mxu0 %v5487
  %5509 = vmatprep.subr.bf16.mxu0 0
  %5510 = vmatpush1.bf16.xpose.msra.mxu0 %v5490
  %5511 = vmatprep.subr.bf16.mxu0 0
  %5512 = vmatpush1.bf16.xpose.msra.mxu0 %v5493
  %5513 = vmatprep.subr.bf16.mxu0 0
  %5514 = vmatpush1.bf16.xpose.msra.mxu0 %v5496
  %5515 = vmatprep.subr.bf16.mxu0 0
  %5516 = vmatpush1.bf16.xpose.msra.mxu0 %v5499
  %5517 = vmatprep.subr.bf16.mxu0 0
  %5518 = vmatpush1.bf16.xpose.msra.mxu0 0
  %5519 = vmatprep.subr.bf16.mxu0 0
  %5520 = vmatpush1.bf16.xpose.msra.mxu0 0
  %5521 = vmatprep.subr.bf16.mxu0 0
  %5522 = vmatpush1.bf16.xpose.msra.mxu0 0
  %5523 = vmatprep.subr.bf16.mxu0 0
  %5524 = vmatpush1.bf16.xpose.msra.mxu0 0
  %5525 = vmatprep.subr.bf16.mxu0 0
  %5526 = vmatpush1.bf16.xpose.msra.mxu0 0
  %5527 = vmatprep.subr.bf16.mxu0 0
  %5528 = vmatpush1.bf16.xpose.msra.mxu0 0
  %5529 = vmatprep.subr.bf16.mxu0 0
  %5530 = vmatpush1.bf16.xpose.msra.mxu0 0
  %5531 = vmatprep.subr.bf16.mxu0 0
  %5532 = vmatpush1.bf16.xpose.msra.mxu0 0
  %5533 = vmatprep.mubr.bf16.mxu0 0
  %5534 = vmatmul.mubr.bf16.gmra.mrb[0].mxu0 %v5454
  %v5535 = vpop.f32.mrb[0].mxu0
  %v5536 = vadd.f32 %v2472, %v5535
  %v5537 = vpop.f32.mrb[0].mxu0
  %v5538 = vpop.f32.mrb[0].mxu0
  %v5539 = vadd.f32 %v2473, %v5538
  %v5540 = vpop.f32.mrb[0].mxu0
  %5541 = vmatprep.mubr.bf16.mxu0 0
  %5542 = vmatmul.mubr.bf16.gmra.mrb[0].mxu0 %v5457
  %v5543 = vpop.f32.mrb[0].mxu0
  %v5544 = vadd.f32 %v2474, %v5543
  %v5545 = vpop.f32.mrb[0].mxu0
  %v5546 = vpop.f32.mrb[0].mxu0
  %v5547 = vadd.f32 %v2475, %v5546
  %v5548 = vpop.f32.mrb[0].mxu0
  %5549 = vmatprep.mubr.bf16.mxu0 0
  %5550 = vmatmul.mubr.bf16.gmra.mrb[0].mxu0 %v5460
  %v5551 = vpop.f32.mrb[0].mxu0
  %v5552 = vadd.f32 %v2476, %v5551
  %v5553 = vpop.f32.mrb[0].mxu0
  %v5554 = vpop.f32.mrb[0].mxu0
  %v5555 = vadd.f32 %v2477, %v5554
  %v5556 = vpop.f32.mrb[0].mxu0
  %5557 = vmatprep.mubr.bf16.mxu0 0
  %5558 = vmatmul.mubr.bf16.gmra.mrb[0].mxu0 %v5463
  %v5559 = vpop.f32.mrb[0].mxu0
  %v5560 = vadd.f32 %v2478, %v5559
  %v5561 = vpop.f32.mrb[0].mxu0
  %v5562 = vpop.f32.mrb[0].mxu0
  %v5563 = vadd.f32 %v2479, %v5562
  %v5564 = vpop.f32.mrb[0].mxu0
  %5565 = vmatprep.mubr.bf16.mxu0 0
  %5566 = vmatmul.mubr.bf16.gmra.mrb[0].mxu0 %v5466
  %v5567 = vpop.f32.mrb[0].mxu0
  %v5568 = vadd.f32 %v2480, %v5567
  %v5569 = vpop.f32.mrb[0].mxu0
  %v5570 = vpop.f32.mrb[0].mxu0
  %v5571 = vadd.f32 %v2481, %v5570
  %v5572 = vpop.f32.mrb[0].mxu0
  %5573 = vmatprep.mubr.bf16.mxu0 0
  %5574 = vmatmul.mubr.bf16.gmra.mrb[0].mxu0 %v5469
  %v5575 = vpop.f32.mrb[0].mxu0
  %v5576 = vadd.f32 %v2482, %v5575
  %v5577 = vpop.f32.mrb[0].mxu0
  %v5578 = vpop.f32.mrb[0].mxu0
  %v5579 = vadd.f32 %v2483, %v5578
  %v5580 = vpop.f32.mrb[0].mxu0
  %5581 = vmatprep.mubr.bf16.mxu0 0
  %5582 = vmatmul.mubr.bf16.gmra.mrb[0].mxu0 %v5472
  %v5583 = vpop.f32.mrb[0].mxu0
  %v5584 = vadd.f32 %v2484, %v5583
  %v5585 = vpop.f32.mrb[0].mxu0
  %v5586 = vpop.f32.mrb[0].mxu0
  %v5587 = vadd.f32 %v2485, %v5586
  %v5588 = vpop.f32.mrb[0].mxu0
  %5589 = vmatprep.mubr.bf16.mxu0 0
  %5590 = vmatmul.mubr.bf16.gmra.mrb[0].mxu0 %v5475
  %v5591 = vpop.f32.mrb[0].mxu0
  %v5592 = vadd.f32 %v2486, %v5591
  %v5593 = vpop.f32.mrb[0].mxu0
  %v5594 = vpop.f32.mrb[0].mxu0
  %v5595 = vadd.f32 %v2487, %v5594
  %v5596 = vpop.f32.mrb[0].mxu0
  %5597 = vdwg.mxu0
  %5598 = vmax.xlane.f32.xlu0 %v5536
  %v5599 = vpop.xlane.xlu0 %5598
  %5600 = vmax.xlane.f32.xlu0 %v5539
  %v5601 = vpop.xlane.xlu0 %5600
  %5602 = vmax.xlane.f32.xlu0 %v5544
  %v5603 = vpop.xlane.xlu0 %5602
  %5604 = vmax.xlane.f32.xlu0 %v5547
  %v5605 = vpop.xlane.xlu0 %5604
  %5606 = vmax.xlane.f32.xlu0 %v5552
  %v5607 = vpop.xlane.xlu0 %5606
  %5608 = vmax.xlane.f32.xlu0 %v5555
  %v5609 = vpop.xlane.xlu0 %5608
  %5610 = vmax.xlane.f32.xlu0 %v5560
  %v5611 = vpop.xlane.xlu0 %5610
  %5612 = vmax.xlane.f32.xlu0 %v5563
  %v5613 = vpop.xlane.xlu0 %5612
  %5614 = vmax.xlane.f32.xlu0 %v5568
  %v5615 = vpop.xlane.xlu0 %5614
  %5616 = vmax.xlane.f32.xlu0 %v5571
  %v5617 = vpop.xlane.xlu0 %5616
  %5618 = vmax.xlane.f32.xlu0 %v5576
  %v5619 = vpop.xlane.xlu0 %5618
  %5620 = vmax.xlane.f32.xlu0 %v5579
  %v5621 = vpop.xlane.xlu0 %5620
  %5622 = vmax.xlane.f32.xlu0 %v5584
  %v5623 = vpop.xlane.xlu0 %5622
  %5624 = vmax.xlane.f32.xlu0 %v5587
  %v5625 = vpop.xlane.xlu0 %5624
  %5626 = vmax.xlane.f32.xlu0 %v5592
  %v5627 = vpop.xlane.xlu0 %5626
  %5628 = vmax.xlane.f32.xlu0 %v5595
  %v5629 = vpop.xlane.xlu0 %5628
  %v5630 = vsub.f32 %v5536, %v5599
  %v5631 = vsub.f32 %v5539, %v5601
  %v5632 = vsub.f32 %v5544, %v5603
  %v5633 = vsub.f32 %v5547, %v5605
  %v5634 = vsub.f32 %v5552, %v5607
  %v5635 = vsub.f32 %v5555, %v5609
  %v5636 = vsub.f32 %v5560, %v5611
  %v5637 = vsub.f32 %v5563, %v5613
  %v5638 = vsub.f32 %v5568, %v5615
  %v5639 = vsub.f32 %v5571, %v5617
  %v5640 = vsub.f32 %v5576, %v5619
  %v5641 = vsub.f32 %v5579, %v5621
  %v5642 = vsub.f32 %v5584, %v5623
  %v5643 = vsub.f32 %v5587, %v5625
  %v5644 = vsub.f32 %v5592, %v5627
  %v5645 = vsub.f32 %v5595, %v5629
  %v5646 = vmul.f32 %v5630, 1.442695
  %v5647 = vpow.pop %v5646
  %v5648 = vmul.f32 %v5631, 1.442695
  %v5649 = vpow.pop %v5648
  %v5650 = vmul.f32 %v5632, 1.442695
  %v5651 = vpow.pop %v5650
  %v5652 = vmul.f32 %v5633, 1.442695
  %v5653 = vpow.pop %v5652
  %v5654 = vmul.f32 %v5634, 1.442695
  %v5655 = vpow.pop %v5654
  %v5656 = vmul.f32 %v5635, 1.442695
  %v5657 = vpow.pop %v5656
  %v5658 = vmul.f32 %v5636, 1.442695
  %v5659 = vpow.pop %v5658
  %v5660 = vmul.f32 %v5637, 1.442695
  %v5661 = vpow.pop %v5660
  %v5662 = vmul.f32 %v5638, 1.442695
  %v5663 = vpow.pop %v5662
  %v5664 = vmul.f32 %v5639, 1.442695
  %v5665 = vpow.pop %v5664
  %v5666 = vmul.f32 %v5640, 1.442695
  %v5667 = vpow.pop %v5666
  %v5668 = vmul.f32 %v5641, 1.442695
  %v5669 = vpow.pop %v5668
  %v5670 = vmul.f32 %v5642, 1.442695
  %v5671 = vpow.pop %v5670
  %v5672 = vmul.f32 %v5643, 1.442695
  %v5673 = vpow.pop %v5672
  %v5674 = vmul.f32 %v5644, 1.442695
  %v5675 = vpow.pop %v5674
  %v5676 = vmul.f32 %v5645, 1.442695
  %v5677 = vpow.pop %v5676
  %5678 = vadd.xlane.f32.xlu0 %v5647
  %v5679 = vpop.xlane.xlu0 %5678
  %5680 = vadd.xlane.f32.xlu0 %v5649
  %v5681 = vpop.xlane.xlu0 %5680
  %5682 = vadd.xlane.f32.xlu0 %v5651
  %v5683 = vpop.xlane.xlu0 %5682
  %5684 = vadd.xlane.f32.xlu0 %v5653
  %v5685 = vpop.xlane.xlu0 %5684
  %5686 = vadd.xlane.f32.xlu0 %v5655
  %v5687 = vpop.xlane.xlu0 %5686
  %5688 = vadd.xlane.f32.xlu0 %v5657
  %v5689 = vpop.xlane.xlu0 %5688
  %5690 = vadd.xlane.f32.xlu0 %v5659
  %v5691 = vpop.xlane.xlu0 %5690
  %5692 = vadd.xlane.f32.xlu0 %v5661
  %v5693 = vpop.xlane.xlu0 %5692
  %5694 = vadd.xlane.f32.xlu0 %v5663
  %v5695 = vpop.xlane.xlu0 %5694
  %5696 = vadd.xlane.f32.xlu0 %v5665
  %v5697 = vpop.xlane.xlu0 %5696
  %5698 = vadd.xlane.f32.xlu0 %v5667
  %v5699 = vpop.xlane.xlu0 %5698
  %5700 = vadd.xlane.f32.xlu0 %v5669
  %v5701 = vpop.xlane.xlu0 %5700
  %5702 = vadd.xlane.f32.xlu0 %v5671
  %v5703 = vpop.xlane.xlu0 %5702
  %5704 = vadd.xlane.f32.xlu0 %v5673
  %v5705 = vpop.xlane.xlu0 %5704
  %5706 = vadd.xlane.f32.xlu0 %v5675
  %v5707 = vpop.xlane.xlu0 %5706
  %5708 = vadd.xlane.f32.xlu0 %v5677
  %v5709 = vpop.xlane.xlu0 %5708
  %v5710 = vrcp.pop %v5679
  %v5711 = vrcp.pop %v5681
  %v5712 = vrcp.pop %v5683
  %v5713 = vrcp.pop %v5685
  %v5714 = vrcp.pop %v5687
  %v5715 = vrcp.pop %v5689
  %v5716 = vrcp.pop %v5691
  %v5717 = vrcp.pop %v5693
  %v5718 = vrcp.pop %v5695
  %v5719 = vrcp.pop %v5697
  %v5720 = vrcp.pop %v5699
  %v5721 = vrcp.pop %v5701
  %v5722 = vrcp.pop %v5703
  %v5723 = vrcp.pop %v5705
  %v5724 = vrcp.pop %v5707
  %v5725 = vrcp.pop %v5709
  %v5726 = vmul.f32 %v5647, %v5710
  %v5727 = vmul.f32 %v5649, %v5711
  %v5728 = vmul.f32 %v5651, %v5712
  %v5729 = vmul.f32 %v5653, %v5713
  %v5730 = vmul.f32 %v5655, %v5714
  %v5731 = vmul.f32 %v5657, %v5715
  %v5732 = vmul.f32 %v5659, %v5716
  %v5733 = vmul.f32 %v5661, %v5717
  %v5734 = vmul.f32 %v5663, %v5718
  %v5735 = vmul.f32 %v5665, %v5719
  %v5736 = vmul.f32 %v5667, %v5720
  %v5737 = vmul.f32 %v5669, %v5721
  %v5738 = vmul.f32 %v5671, %v5722
  %v5739 = vmul.f32 %v5673, %v5723
  %v5740 = vmul.f32 %v5675, %v5724
  %v5741 = vmul.f32 %v5677, %v5725
  %v5742 = vpack.c.bf16 %v5727, %v5726
  %v5743 = vpack.c.bf16 %v5729, %v5728
  %v5744 = vpack.c.bf16 %v5731, %v5730
  %v5745 = vpack.c.bf16 %v5733, %v5732
  %v5746 = vpack.c.bf16 %v5735, %v5734
  %v5747 = vpack.c.bf16 %v5737, %v5736
  %v5748 = vpack.c.bf16 %v5739, %v5738
  %v5749 = vpack.c.bf16 %v5741, %v5740
  %5750 = vmatprep.subr.bf16.mxu0 0
  %5751 = vmatpush1.bf16.msra.mxu0 %v5445
  %5752 = vmatprep.subr.bf16.mxu0 0
  %5753 = vmatpush1.bf16.msra.mxu0 %v5446
  %5754 = vmatprep.subr.bf16.mxu0 0
  %5755 = vmatpush1.bf16.msra.mxu0 %v5447
  %5756 = vmatprep.subr.bf16.mxu0 0
  %5757 = vmatpush1.bf16.msra.mxu0 %v5448
  %5758 = vmatprep.subr.bf16.mxu0 0
  %5759 = vmatpush1.bf16.msra.mxu0 %v5449
  %5760 = vmatprep.subr.bf16.mxu0 0
  %5761 = vmatpush1.bf16.msra.mxu0 %v5450
  %5762 = vmatprep.subr.bf16.mxu0 0
  %5763 = vmatpush1.bf16.msra.mxu0 %v5451
  %5764 = vmatprep.subr.bf16.mxu0 0
  %5765 = vmatpush1.bf16.msra.mxu0 %v5452
  %5766 = vmatprep.subr.bf16.mxu0 0
  %5767 = vmatpush1.bf16.msra.mxu0 0
  %5768 = vmatprep.subr.bf16.mxu0 0
  %5769 = vmatpush1.bf16.msra.mxu0 0
  %5770 = vmatprep.subr.bf16.mxu0 0
  %5771 = vmatpush1.bf16.msra.mxu0 0
  %5772 = vmatprep.subr.bf16.mxu0 0
  %5773 = vmatpush1.bf16.msra.mxu0 0
  %5774 = vmatprep.subr.bf16.mxu0 0
  %5775 = vmatpush1.bf16.msra.mxu0 0
  %5776 = vmatprep.subr.bf16.mxu0 0
  %5777 = vmatpush1.bf16.msra.mxu0 0
  %5778 = vmatprep.subr.bf16.mxu0 0
  %5779 = vmatpush1.bf16.msra.mxu0 0
  %5780 = vmatprep.subr.bf16.mxu0 0
  %5781 = vmatpush1.bf16.msra.mxu0 0
  %5782 = vmatprep.mubr.bf16.mxu0 0
  %5783 = vmatmul.mubr.bf16.gmra.mrb[0].mxu0 %v5742
  %v5784 = vpop.f32.mrb[0].mxu0
  %v5785 = vadd.f32 0.0, %v5784
  %v5786 = vpop.f32.mrb[0].mxu0
  %v5787 = vpop.f32.mrb[0].mxu0
  %v5788 = vadd.f32 0.0, %v5787
  %v5789 = vpop.f32.mrb[0].mxu0
  %5790 = vmatprep.mubr.bf16.mxu0 0
  %5791 = vmatmul.mubr.bf16.gmra.mrb[0].mxu0 %v5743
  %v5792 = vpop.f32.mrb[0].mxu0
  %v5793 = vadd.f32 0.0, %v5792
  %v5794 = vpop.f32.mrb[0].mxu0
  %v5795 = vpop.f32.mrb[0].mxu0
  %v5796 = vadd.f32 0.0, %v5795
  %v5797 = vpop.f32.mrb[0].mxu0
  %5798 = vmatprep.mubr.bf16.mxu0 0
  %5799 = vmatmul.mubr.bf16.gmra.mrb[0].mxu0 %v5744
  %v5800 = vpop.f32.mrb[0].mxu0
  %v5801 = vadd.f32 0.0, %v5800
  %v5802 = vpop.f32.mrb[0].mxu0
  %v5803 = vpop.f32.mrb[0].mxu0
  %v5804 = vadd.f32 0.0, %v5803
  %v5805 = vpop.f32.mrb[0].mxu0
  %5806 = vmatprep.mubr.bf16.mxu0 0
  %5807 = vmatmul.mubr.bf16.gmra.mrb[0].mxu0 %v5745
  %v5808 = vpop.f32.mrb[0].mxu0
  %v5809 = vadd.f32 0.0, %v5808
  %v5810 = vpop.f32.mrb[0].mxu0
  %v5811 = vpop.f32.mrb[0].mxu0
  %v5812 = vadd.f32 0.0, %v5811
  %v5813 = vpop.f32.mrb[0].mxu0
  %5814 = vmatprep.mubr.bf16.mxu0 0
  %5815 = vmatmul.mubr.bf16.gmra.mrb[0].mxu0 %v5746
  %v5816 = vpop.f32.mrb[0].mxu0
  %v5817 = vadd.f32 0.0, %v5816
  %v5818 = vpop.f32.mrb[0].mxu0
  %v5819 = vpop.f32.mrb[0].mxu0
  %v5820 = vadd.f32 0.0, %v5819
  %v5821 = vpop.f32.mrb[0].mxu0
  %5822 = vmatprep.mubr.bf16.mxu0 0
  %5823 = vmatmul.mubr.bf16.gmra.mrb[0].mxu0 %v5747
  %v5824 = vpop.f32.mrb[0].mxu0
  %v5825 = vadd.f32 0.0, %v5824
  %v5826 = vpop.f32.mrb[0].mxu0
  %v5827 = vpop.f32.mrb[0].mxu0
  %v5828 = vadd.f32 0.0, %v5827
  %v5829 = vpop.f32.mrb[0].mxu0
  %5830 = vmatprep.mubr.bf16.mxu0 0
  %5831 = vmatmul.mubr.bf16.gmra.mrb[0].mxu0 %v5748
  %v5832 = vpop.f32.mrb[0].mxu0
  %v5833 = vadd.f32 0.0, %v5832
  %v5834 = vpop.f32.mrb[0].mxu0
  %v5835 = vpop.f32.mrb[0].mxu0
  %v5836 = vadd.f32 0.0, %v5835
  %v5837 = vpop.f32.mrb[0].mxu0
  %5838 = vmatprep.mubr.bf16.mxu0 0
  %5839 = vmatmul.mubr.bf16.gmra.mrb[0].mxu0 %v5749
  %v5840 = vpop.f32.mrb[0].mxu0
  %v5841 = vadd.f32 0.0, %v5840
  %v5842 = vpop.f32.mrb[0].mxu0
  %v5843 = vpop.f32.mrb[0].mxu0
  %v5844 = vadd.f32 0.0, %v5843
  %v5845 = vpop.f32.mrb[0].mxu0
  %5846 = vdwg.mxu0
  %v5847 = vpack.c.bf16 %v5788, %v5785
  %v5848 = vpack.c.bf16 %v5796, %v5793
  %v5849 = vpack.c.bf16 %v5804, %v5801
  %v5850 = vpack.c.bf16 %v5812, %v5809
  %v5851 = vpack.c.bf16 %v5820, %v5817
  %v5852 = vpack.c.bf16 %v5828, %v5825
  %v5853 = vpack.c.bf16 %v5836, %v5833
  %v5854 = vpack.c.bf16 %v5844, %v5841
  %5855 = vst.msk [vmem:[#allocation5 + $0x18] sm:$0xff] %vm305, %v5847
  %5856 = vst.msk [vmem:[#allocation5 + $0x38] sm:$0xff] %vm305, %v5848
  %5857 = vst.msk [vmem:[#allocation5 + $0x58] sm:$0xff] %vm305, %v5849
  %5858 = vst.msk [vmem:[#allocation5 + $0x78] sm:$0xff] %vm305, %v5850
  %5859 = vst.msk [vmem:[#allocation5 + $0x98] sm:$0xff] %vm305, %v5851
  %5860 = vst.msk [vmem:[#allocation5 + $0xb8] sm:$0xff] %vm305, %v5852
  %5861 = vst.msk [vmem:[#allocation5 + $0xd8] sm:$0xff] %vm305, %v5853
  %5862 = vst.msk [vmem:[#allocation5 + $0xf8] sm:$0xff] %vm305, %v5854
  %v5863 = vld [vmem:[#allocation2 + $0x18] sm:$0xff]
  %v5864 = vld [vmem:[#allocation2 + $0x38] sm:$0xff]
  %v5865 = vld [vmem:[#allocation2 + $0x58] sm:$0xff]
  %v5866 = vld [vmem:[#allocation2 + $0x78] sm:$0xff]
  %v5867 = vld [vmem:[#allocation2 + $0x98] sm:$0xff]
  %v5868 = vld [vmem:[#allocation2 + $0xb8] sm:$0xff]
  %v5869 = vld [vmem:[#allocation2 + $0xd8] sm:$0xff]
  %v5870 = vld [vmem:[#allocation2 + $0xf8] sm:$0xff]
  %v5871 = vld [vmem:[#allocation3 + $0x18] sm:$0xff]
  %v5872 = vld [vmem:[#allocation3 + $0x38] sm:$0xff]
  %v5873 = vld [vmem:[#allocation3 + $0x58] sm:$0xff]
  %v5874 = vld [vmem:[#allocation3 + $0x78] sm:$0xff]
  %v5875 = vld [vmem:[#allocation3 + $0x98] sm:$0xff]
  %v5876 = vld [vmem:[#allocation3 + $0xb8] sm:$0xff]
  %v5877 = vld [vmem:[#allocation3 + $0xd8] sm:$0xff]
  %v5878 = vld [vmem:[#allocation3 + $0xf8] sm:$0xff]
  %v5879 = vld [vmem:[#allocation4 + $0x18] sm:$0xff]
  %v5880 = vld [vmem:[#allocation4 + $0x38] sm:$0xff]
  %v5881 = vld [vmem:[#allocation4 + $0x58] sm:$0xff]
  %v5882 = vld [vmem:[#allocation4 + $0x78] sm:$0xff]
  %v5883 = vld [vmem:[#allocation4 + $0x98] sm:$0xff]
  %v5884 = vld [vmem:[#allocation4 + $0xb8] sm:$0xff]
  %v5885 = vld [vmem:[#allocation4 + $0xd8] sm:$0xff]
  %v5886 = vld [vmem:[#allocation4 + $0xf8] sm:$0xff]
  %5895 = vrot.lane.b32.xlu0 %v5863, 64
  %v5896 = vpop.permute.xlu0 %5895
  %5897 = vrot.lane.b32.xlu0 %v5864, 64
  %v5898 = vpop.permute.xlu0 %5897
  %5899 = vrot.lane.b32.xlu0 %v5865, 64
  %v5900 = vpop.permute.xlu0 %5899
  %5901 = vrot.lane.b32.xlu0 %v5866, 64
  %v5902 = vpop.permute.xlu0 %5901
  %5903 = vrot.lane.b32.xlu0 %v5867, 64
  %v5904 = vpop.permute.xlu0 %5903
  %5905 = vrot.lane.b32.xlu0 %v5868, 64
  %v5906 = vpop.permute.xlu0 %5905
  %5907 = vrot.lane.b32.xlu0 %v5869, 64
  %v5908 = vpop.permute.xlu0 %5907
  %5909 = vrot.lane.b32.xlu0 %v5870, 64
  %v5910 = vpop.permute.xlu0 %5909
  %5919 = vrot.lane.b32.xlu0 %v5871, 64
  %v5920 = vpop.permute.xlu0 %5919
  %5921 = vrot.lane.b32.xlu0 %v5872, 64
  %v5922 = vpop.permute.xlu0 %5921
  %5923 = vrot.lane.b32.xlu0 %v5873, 64
  %v5924 = vpop.permute.xlu0 %5923
  %5925 = vrot.lane.b32.xlu0 %v5874, 64
  %v5926 = vpop.permute.xlu0 %5925
  %5927 = vrot.lane.b32.xlu0 %v5875, 64
  %v5928 = vpop.permute.xlu0 %5927
  %5929 = vrot.lane.b32.xlu0 %v5876, 64
  %v5930 = vpop.permute.xlu0 %5929
  %5931 = vrot.lane.b32.xlu0 %v5877, 64
  %v5932 = vpop.permute.xlu0 %5931
  %5933 = vrot.lane.b32.xlu0 %v5878, 64
  %v5934 = vpop.permute.xlu0 %5933
  %v5936 = vsel %vm305, %v5896, 0
  %v5939 = vsel %vm305, %v5898, 0
  %v5942 = vsel %vm305, %v5900, 0
  %v5945 = vsel %vm305, %v5902, 0
  %v5948 = vsel %vm305, %v5904, 0
  %v5951 = vsel %vm305, %v5906, 0
  %v5954 = vsel %vm305, %v5908, 0
  %v5957 = vsel %vm305, %v5910, 0
  %v5960 = vsel %vm305, %v5920, 0
  %v5963 = vsel %vm305, %v5922, 0
  %v5966 = vsel %vm305, %v5924, 0
  %v5969 = vsel %vm305, %v5926, 0
  %v5972 = vsel %vm305, %v5928, 0
  %v5975 = vsel %vm305, %v5930, 0
  %v5978 = vsel %vm305, %v5932, 0
  %v5981 = vsel %vm305, %v5934, 0
  %5983 = vmatprep.subr.bf16.mxu0 0
  %5984 = vmatpush1.bf16.xpose.msra.mxu0 %v5960
  %5985 = vmatprep.subr.bf16.mxu0 0
  %5986 = vmatpush1.bf16.xpose.msra.mxu0 %v5963
  %5987 = vmatprep.subr.bf16.mxu0 0
  %5988 = vmatpush1.bf16.xpose.msra.mxu0 %v5966
  %5989 = vmatprep.subr.bf16.mxu0 0
  %5990 = vmatpush1.bf16.xpose.msra.mxu0 %v5969
  %5991 = vmatprep.subr.bf16.mxu0 0
  %5992 = vmatpush1.bf16.xpose.msra.mxu0 %v5972
  %5993 = vmatprep.subr.bf16.mxu0 0
  %5994 = vmatpush1.bf16.xpose.msra.mxu0 %v5975
  %5995 = vmatprep.subr.bf16.mxu0 0
  %5996 = vmatpush1.bf16.xpose.msra.mxu0 %v5978
  %5997 = vmatprep.subr.bf16.mxu0 0
  %5998 = vmatpush1.bf16.xpose.msra.mxu0 %v5981
  %5999 = vmatprep.subr.bf16.mxu0 0
  %6000 = vmatpush1.bf16.xpose.msra.mxu0 0
  %6001 = vmatprep.subr.bf16.mxu0 0
  %6002 = vmatpush1.bf16.xpose.msra.mxu0 0
  %6003 = vmatprep.subr.bf16.mxu0 0
  %6004 = vmatpush1.bf16.xpose.msra.mxu0 0
  %6005 = vmatprep.subr.bf16.mxu0 0
  %6006 = vmatpush1.bf16.xpose.msra.mxu0 0
  %6007 = vmatprep.subr.bf16.mxu0 0
  %6008 = vmatpush1.bf16.xpose.msra.mxu0 0
  %6009 = vmatprep.subr.bf16.mxu0 0
  %6010 = vmatpush1.bf16.xpose.msra.mxu0 0
  %6011 = vmatprep.subr.bf16.mxu0 0
  %6012 = vmatpush1.bf16.xpose.msra.mxu0 0
  %6013 = vmatprep.subr.bf16.mxu0 0
  %6014 = vmatpush1.bf16.xpose.msra.mxu0 0
  %6015 = vmatprep.mubr.bf16.mxu0 0
  %6016 = vmatmul.mubr.bf16.gmra.mrb[0].mxu0 %v5936
  %v6017 = vpop.f32.mrb[0].mxu0
  %v6018 = vadd.f32 %v2472, %v6017
  %v6019 = vpop.f32.mrb[0].mxu0
  %v6020 = vpop.f32.mrb[0].mxu0
  %v6021 = vadd.f32 %v2473, %v6020
  %v6022 = vpop.f32.mrb[0].mxu0
  %6023 = vmatprep.mubr.bf16.mxu0 0
  %6024 = vmatmul.mubr.bf16.gmra.mrb[0].mxu0 %v5939
  %v6025 = vpop.f32.mrb[0].mxu0
  %v6026 = vadd.f32 %v2474, %v6025
  %v6027 = vpop.f32.mrb[0].mxu0
  %v6028 = vpop.f32.mrb[0].mxu0
  %v6029 = vadd.f32 %v2475, %v6028
  %v6030 = vpop.f32.mrb[0].mxu0
  %6031 = vmatprep.mubr.bf16.mxu0 0
  %6032 = vmatmul.mubr.bf16.gmra.mrb[0].mxu0 %v5942
  %v6033 = vpop.f32.mrb[0].mxu0
  %v6034 = vadd.f32 %v2476, %v6033
  %v6035 = vpop.f32.mrb[0].mxu0
  %v6036 = vpop.f32.mrb[0].mxu0
  %v6037 = vadd.f32 %v2477, %v6036
  %v6038 = vpop.f32.mrb[0].mxu0
  %6039 = vmatprep.mubr.bf16.mxu0 0
  %6040 = vmatmul.mubr.bf16.gmra.mrb[0].mxu0 %v5945
  %v6041 = vpop.f32.mrb[0].mxu0
  %v6042 = vadd.f32 %v2478, %v6041
  %v6043 = vpop.f32.mrb[0].mxu0
  %v6044 = vpop.f32.mrb[0].mxu0
  %v6045 = vadd.f32 %v2479, %v6044
  %v6046 = vpop.f32.mrb[0].mxu0
  %6047 = vmatprep.mubr.bf16.mxu0 0
  %6048 = vmatmul.mubr.bf16.gmra.mrb[0].mxu0 %v5948
  %v6049 = vpop.f32.mrb[0].mxu0
  %v6050 = vadd.f32 %v2480, %v6049
  %v6051 = vpop.f32.mrb[0].mxu0
  %v6052 = vpop.f32.mrb[0].mxu0
  %v6053 = vadd.f32 %v2481, %v6052
  %v6054 = vpop.f32.mrb[0].mxu0
  %6055 = vmatprep.mubr.bf16.mxu0 0
  %6056 = vmatmul.mubr.bf16.gmra.mrb[0].mxu0 %v5951
  %v6057 = vpop.f32.mrb[0].mxu0
  %v6058 = vadd.f32 %v2482, %v6057
  %v6059 = vpop.f32.mrb[0].mxu0
  %v6060 = vpop.f32.mrb[0].mxu0
  %v6061 = vadd.f32 %v2483, %v6060
  %v6062 = vpop.f32.mrb[0].mxu0
  %6063 = vmatprep.mubr.bf16.mxu0 0
  %6064 = vmatmul.mubr.bf16.gmra.mrb[0].mxu0 %v5954
  %v6065 = vpop.f32.mrb[0].mxu0
  %v6066 = vadd.f32 %v2484, %v6065
  %v6067 = vpop.f32.mrb[0].mxu0
  %v6068 = vpop.f32.mrb[0].mxu0
  %v6069 = vadd.f32 %v2485, %v6068
  %v6070 = vpop.f32.mrb[0].mxu0
  %6071 = vmatprep.mubr.bf16.mxu0 0
  %6072 = vmatmul.mubr.bf16.gmra.mrb[0].mxu0 %v5957
  %v6073 = vpop.f32.mrb[0].mxu0
  %v6074 = vadd.f32 %v2486, %v6073
  %v6075 = vpop.f32.mrb[0].mxu0
  %v6076 = vpop.f32.mrb[0].mxu0
  %v6077 = vadd.f32 %v2487, %v6076
  %v6078 = vpop.f32.mrb[0].mxu0
  %6079 = vdwg.mxu0
  %6080 = vmax.xlane.f32.xlu0 %v6018
  %v6081 = vpop.xlane.xlu0 %6080
  %6082 = vmax.xlane.f32.xlu0 %v6021
  %v6083 = vpop.xlane.xlu0 %6082
  %6084 = vmax.xlane.f32.xlu0 %v6026
  %v6085 = vpop.xlane.xlu0 %6084
  %6086 = vmax.xlane.f32.xlu0 %v6029
  %v6087 = vpop.xlane.xlu0 %6086
  %6088 = vmax.xlane.f32.xlu0 %v6034
  %v6089 = vpop.xlane.xlu0 %6088
  %6090 = vmax.xlane.f32.xlu0 %v6037
  %v6091 = vpop.xlane.xlu0 %6090
  %6092 = vmax.xlane.f32.xlu0 %v6042
  %v6093 = vpop.xlane.xlu0 %6092
  %6094 = vmax.xlane.f32.xlu0 %v6045
  %v6095 = vpop.xlane.xlu0 %6094
  %6096 = vmax.xlane.f32.xlu0 %v6050
  %v6097 = vpop.xlane.xlu0 %6096
  %6098 = vmax.xlane.f32.xlu0 %v6053
  %v6099 = vpop.xlane.xlu0 %6098
  %6100 = vmax.xlane.f32.xlu0 %v6058
  %v6101 = vpop.xlane.xlu0 %6100
  %6102 = vmax.xlane.f32.xlu0 %v6061
  %v6103 = vpop.xlane.xlu0 %6102
  %6104 = vmax.xlane.f32.xlu0 %v6066
  %v6105 = vpop.xlane.xlu0 %6104
  %6106 = vmax.xlane.f32.xlu0 %v6069
  %v6107 = vpop.xlane.xlu0 %6106
  %6108 = vmax.xlane.f32.xlu0 %v6074
  %v6109 = vpop.xlane.xlu0 %6108
  %6110 = vmax.xlane.f32.xlu0 %v6077
  %v6111 = vpop.xlane.xlu0 %6110
  %v6112 = vsub.f32 %v6018, %v6081
  %v6113 = vsub.f32 %v6021, %v6083
  %v6114 = vsub.f32 %v6026, %v6085
  %v6115 = vsub.f32 %v6029, %v6087
  %v6116 = vsub.f32 %v6034, %v6089
  %v6117 = vsub.f32 %v6037, %v6091
  %v6118 = vsub.f32 %v6042, %v6093
  %v6119 = vsub.f32 %v6045, %v6095
  %v6120 = vsub.f32 %v6050, %v6097
  %v6121 = vsub.f32 %v6053, %v6099
  %v6122 = vsub.f32 %v6058, %v6101
  %v6123 = vsub.f32 %v6061, %v6103
  %v6124 = vsub.f32 %v6066, %v6105
  %v6125 = vsub.f32 %v6069, %v6107
  %v6126 = vsub.f32 %v6074, %v6109
  %v6127 = vsub.f32 %v6077, %v6111
  %v6128 = vmul.f32 %v6112, 1.442695
  %v6129 = vpow.pop %v6128
  %v6130 = vmul.f32 %v6113, 1.442695
  %v6131 = vpow.pop %v6130
  %v6132 = vmul.f32 %v6114, 1.442695
  %v6133 = vpow.pop %v6132
  %v6134 = vmul.f32 %v6115, 1.442695
  %v6135 = vpow.pop %v6134
  %v6136 = vmul.f32 %v6116, 1.442695
  %v6137 = vpow.pop %v6136
  %v6138 = vmul.f32 %v6117, 1.442695
  %v6139 = vpow.pop %v6138
  %v6140 = vmul.f32 %v6118, 1.442695
  %v6141 = vpow.pop %v6140
  %v6142 = vmul.f32 %v6119, 1.442695
  %v6143 = vpow.pop %v6142
  %v6144 = vmul.f32 %v6120, 1.442695
  %v6145 = vpow.pop %v6144
  %v6146 = vmul.f32 %v6121, 1.442695
  %v6147 = vpow.pop %v6146
  %v6148 = vmul.f32 %v6122, 1.442695
  %v6149 = vpow.pop %v6148
  %v6150 = vmul.f32 %v6123, 1.442695
  %v6151 = vpow.pop %v6150
  %v6152 = vmul.f32 %v6124, 1.442695
  %v6153 = vpow.pop %v6152
  %v6154 = vmul.f32 %v6125, 1.442695
  %v6155 = vpow.pop %v6154
  %v6156 = vmul.f32 %v6126, 1.442695
  %v6157 = vpow.pop %v6156
  %v6158 = vmul.f32 %v6127, 1.442695
  %v6159 = vpow.pop %v6158
  %6160 = vadd.xlane.f32.xlu0 %v6129
  %v6161 = vpop.xlane.xlu0 %6160
  %6162 = vadd.xlane.f32.xlu0 %v6131
  %v6163 = vpop.xlane.xlu0 %6162
  %6164 = vadd.xlane.f32.xlu0 %v6133
  %v6165 = vpop.xlane.xlu0 %6164
  %6166 = vadd.xlane.f32.xlu0 %v6135
  %v6167 = vpop.xlane.xlu0 %6166
  %6168 = vadd.xlane.f32.xlu0 %v6137
  %v6169 = vpop.xlane.xlu0 %6168
  %6170 = vadd.xlane.f32.xlu0 %v6139
  %v6171 = vpop.xlane.xlu0 %6170
  %6172 = vadd.xlane.f32.xlu0 %v6141
  %v6173 = vpop.xlane.xlu0 %6172
  %6174 = vadd.xlane.f32.xlu0 %v6143
  %v6175 = vpop.xlane.xlu0 %6174
  %6176 = vadd.xlane.f32.xlu0 %v6145
  %v6177 = vpop.xlane.xlu0 %6176
  %6178 = vadd.xlane.f32.xlu0 %v6147
  %v6179 = vpop.xlane.xlu0 %6178
  %6180 = vadd.xlane.f32.xlu0 %v6149
  %v6181 = vpop.xlane.xlu0 %6180
  %6182 = vadd.xlane.f32.xlu0 %v6151
  %v6183 = vpop.xlane.xlu0 %6182
  %6184 = vadd.xlane.f32.xlu0 %v6153
  %v6185 = vpop.xlane.xlu0 %6184
  %6186 = vadd.xlane.f32.xlu0 %v6155
  %v6187 = vpop.xlane.xlu0 %6186
  %6188 = vadd.xlane.f32.xlu0 %v6157
  %v6189 = vpop.xlane.xlu0 %6188
  %6190 = vadd.xlane.f32.xlu0 %v6159
  %v6191 = vpop.xlane.xlu0 %6190
  %v6192 = vrcp.pop %v6161
  %v6193 = vrcp.pop %v6163
  %v6194 = vrcp.pop %v6165
  %v6195 = vrcp.pop %v6167
  %v6196 = vrcp.pop %v6169
  %v6197 = vrcp.pop %v6171
  %v6198 = vrcp.pop %v6173
  %v6199 = vrcp.pop %v6175
  %v6200 = vrcp.pop %v6177
  %v6201 = vrcp.pop %v6179
  %v6202 = vrcp.pop %v6181
  %v6203 = vrcp.pop %v6183
  %v6204 = vrcp.pop %v6185
  %v6205 = vrcp.pop %v6187
  %v6206 = vrcp.pop %v6189
  %v6207 = vrcp.pop %v6191
  %v6208 = vmul.f32 %v6129, %v6192
  %v6209 = vmul.f32 %v6131, %v6193
  %v6210 = vmul.f32 %v6133, %v6194
  %v6211 = vmul.f32 %v6135, %v6195
  %v6212 = vmul.f32 %v6137, %v6196
  %v6213 = vmul.f32 %v6139, %v6197
  %v6214 = vmul.f32 %v6141, %v6198
  %v6215 = vmul.f32 %v6143, %v6199
  %v6216 = vmul.f32 %v6145, %v6200
  %v6217 = vmul.f32 %v6147, %v6201
  %v6218 = vmul.f32 %v6149, %v6202
  %v6219 = vmul.f32 %v6151, %v6203
  %v6220 = vmul.f32 %v6153, %v6204
  %v6221 = vmul.f32 %v6155, %v6205
  %v6222 = vmul.f32 %v6157, %v6206
  %v6223 = vmul.f32 %v6159, %v6207
  %v6224 = vpack.c.bf16 %v6209, %v6208
  %v6225 = vpack.c.bf16 %v6211, %v6210
  %v6226 = vpack.c.bf16 %v6213, %v6212
  %v6227 = vpack.c.bf16 %v6215, %v6214
  %v6228 = vpack.c.bf16 %v6217, %v6216
  %v6229 = vpack.c.bf16 %v6219, %v6218
  %v6230 = vpack.c.bf16 %v6221, %v6220
  %v6231 = vpack.c.bf16 %v6223, %v6222
  %6240 = vrot.lane.b32.xlu0 %v5879, 64
  %v6241 = vpop.permute.xlu0 %6240
  %6242 = vrot.lane.b32.xlu0 %v5880, 64
  %v6243 = vpop.permute.xlu0 %6242
  %6244 = vrot.lane.b32.xlu0 %v5881, 64
  %v6245 = vpop.permute.xlu0 %6244
  %6246 = vrot.lane.b32.xlu0 %v5882, 64
  %v6247 = vpop.permute.xlu0 %6246
  %6248 = vrot.lane.b32.xlu0 %v5883, 64
  %v6249 = vpop.permute.xlu0 %6248
  %6250 = vrot.lane.b32.xlu0 %v5884, 64
  %v6251 = vpop.permute.xlu0 %6250
  %6252 = vrot.lane.b32.xlu0 %v5885, 64
  %v6253 = vpop.permute.xlu0 %6252
  %6254 = vrot.lane.b32.xlu0 %v5886, 64
  %v6255 = vpop.permute.xlu0 %6254
  %6264 = vmatprep.subr.bf16.mxu0 0
  %6265 = vmatpush1.bf16.msra.mxu0 %v6241
  %6266 = vmatprep.subr.bf16.mxu0 0
  %6267 = vmatpush1.bf16.msra.mxu0 %v6243
  %6268 = vmatprep.subr.bf16.mxu0 0
  %6269 = vmatpush1.bf16.msra.mxu0 %v6245
  %6270 = vmatprep.subr.bf16.mxu0 0
  %6271 = vmatpush1.bf16.msra.mxu0 %v6247
  %6272 = vmatprep.subr.bf16.mxu0 0
  %6273 = vmatpush1.bf16.msra.mxu0 %v6249
  %6274 = vmatprep.subr.bf16.mxu0 0
  %6275 = vmatpush1.bf16.msra.mxu0 %v6251
  %6276 = vmatprep.subr.bf16.mxu0 0
  %6277 = vmatpush1.bf16.msra.mxu0 %v6253
  %6278 = vmatprep.subr.bf16.mxu0 0
  %6279 = vmatpush1.bf16.msra.mxu0 %v6255
  %6280 = vmatprep.subr.bf16.mxu0 0
  %6281 = vmatpush1.bf16.msra.mxu0 0
  %6282 = vmatprep.subr.bf16.mxu0 0
  %6283 = vmatpush1.bf16.msra.mxu0 0
  %6284 = vmatprep.subr.bf16.mxu0 0
  %6285 = vmatpush1.bf16.msra.mxu0 0
  %6286 = vmatprep.subr.bf16.mxu0 0
  %6287 = vmatpush1.bf16.msra.mxu0 0
  %6288 = vmatprep.subr.bf16.mxu0 0
  %6289 = vmatpush1.bf16.msra.mxu0 0
  %6290 = vmatprep.subr.bf16.mxu0 0
  %6291 = vmatpush1.bf16.msra.mxu0 0
  %6292 = vmatprep.subr.bf16.mxu0 0
  %6293 = vmatpush1.bf16.msra.mxu0 0
  %6294 = vmatprep.subr.bf16.mxu0 0
  %6295 = vmatpush1.bf16.msra.mxu0 0
  %6296 = vmatprep.mubr.bf16.mxu0 0
  %6297 = vmatmul.mubr.bf16.gmra.mrb[0].mxu0 %v6224
  %v6298 = vpop.f32.mrb[0].mxu0
  %v6299 = vadd.f32 0.0, %v6298
  %v6300 = vpop.f32.mrb[0].mxu0
  %v6301 = vpop.f32.mrb[0].mxu0
  %v6302 = vadd.f32 0.0, %v6301
  %v6303 = vpop.f32.mrb[0].mxu0
  %6304 = vmatprep.mubr.bf16.mxu0 0
  %6305 = vmatmul.mubr.bf16.gmra.mrb[0].mxu0 %v6225
  %v6306 = vpop.f32.mrb[0].mxu0
  %v6307 = vadd.f32 0.0, %v6306
  %v6308 = vpop.f32.mrb[0].mxu0
  %v6309 = vpop.f32.mrb[0].mxu0
  %v6310 = vadd.f32 0.0, %v6309
  %v6311 = vpop.f32.mrb[0].mxu0
  %6312 = vmatprep.mubr.bf16.mxu0 0
  %6313 = vmatmul.mubr.bf16.gmra.mrb[0].mxu0 %v6226
  %v6314 = vpop.f32.mrb[0].mxu0
  %v6315 = vadd.f32 0.0, %v6314
  %v6316 = vpop.f32.mrb[0].mxu0
  %v6317 = vpop.f32.mrb[0].mxu0
  %v6318 = vadd.f32 0.0, %v6317
  %v6319 = vpop.f32.mrb[0].mxu0
  %6320 = vmatprep.mubr.bf16.mxu0 0
  %6321 = vmatmul.mubr.bf16.gmra.mrb[0].mxu0 %v6227
  %v6322 = vpop.f32.mrb[0].mxu0
  %v6323 = vadd.f32 0.0, %v6322
  %v6324 = vpop.f32.mrb[0].mxu0
  %v6325 = vpop.f32.mrb[0].mxu0
  %v6326 = vadd.f32 0.0, %v6325
  %v6327 = vpop.f32.mrb[0].mxu0
  %6328 = vmatprep.mubr.bf16.mxu0 0
  %6329 = vmatmul.mubr.bf16.gmra.mrb[0].mxu0 %v6228
  %v6330 = vpop.f32.mrb[0].mxu0
  %v6331 = vadd.f32 0.0, %v6330
  %v6332 = vpop.f32.mrb[0].mxu0
  %v6333 = vpop.f32.mrb[0].mxu0
  %v6334 = vadd.f32 0.0, %v6333
  %v6335 = vpop.f32.mrb[0].mxu0
  %6336 = vmatprep.mubr.bf16.mxu0 0
  %6337 = vmatmul.mubr.bf16.gmra.mrb[0].mxu0 %v6229
  %v6338 = vpop.f32.mrb[0].mxu0
  %v6339 = vadd.f32 0.0, %v6338
  %v6340 = vpop.f32.mrb[0].mxu0
  %v6341 = vpop.f32.mrb[0].mxu0
  %v6342 = vadd.f32 0.0, %v6341
  %v6343 = vpop.f32.mrb[0].mxu0
  %6344 = vmatprep.mubr.bf16.mxu0 0
  %6345 = vmatmul.mubr.bf16.gmra.mrb[0].mxu0 %v6230
  %v6346 = vpop.f32.mrb[0].mxu0
  %v6347 = vadd.f32 0.0, %v6346
  %v6348 = vpop.f32.mrb[0].mxu0
  %v6349 = vpop.f32.mrb[0].mxu0
  %v6350 = vadd.f32 0.0, %v6349
  %v6351 = vpop.f32.mrb[0].mxu0
  %6352 = vmatprep.mubr.bf16.mxu0 0
  %6353 = vmatmul.mubr.bf16.gmra.mrb[0].mxu0 %v6231
  %v6354 = vpop.f32.mrb[0].mxu0
  %v6355 = vadd.f32 0.0, %v6354
  %v6356 = vpop.f32.mrb[0].mxu0
  %v6357 = vpop.f32.mrb[0].mxu0
  %v6358 = vadd.f32 0.0, %v6357
  %v6359 = vpop.f32.mrb[0].mxu0
  %6360 = vdwg.mxu0
  %v6361 = vpack.c.bf16 %v6302, %v6299
  %v6362 = vpack.c.bf16 %v6310, %v6307
  %v6363 = vpack.c.bf16 %v6318, %v6315
  %v6364 = vpack.c.bf16 %v6326, %v6323
  %v6365 = vpack.c.bf16 %v6334, %v6331
  %v6366 = vpack.c.bf16 %v6342, %v6339
  %v6367 = vpack.c.bf16 %v6350, %v6347
  %v6368 = vpack.c.bf16 %v6358, %v6355
  %6377 = vrot.lane.b32.xlu0 %v6361, 64
  %v6378 = vpop.permute.xlu0 %6377
  %6379 = vrot.lane.b32.xlu0 %v6362, 64
  %v6380 = vpop.permute.xlu0 %6379
  %6381 = vrot.lane.b32.xlu0 %v6363, 64
  %v6382 = vpop.permute.xlu0 %6381
  %6383 = vrot.lane.b32.xlu0 %v6364, 64
  %v6384 = vpop.permute.xlu0 %6383
  %6385 = vrot.lane.b32.xlu0 %v6365, 64
  %v6386 = vpop.permute.xlu0 %6385
  %6387 = vrot.lane.b32.xlu0 %v6366, 64
  %v6388 = vpop.permute.xlu0 %6387
  %6389 = vrot.lane.b32.xlu0 %v6367, 64
  %v6390 = vpop.permute.xlu0 %6389
  %6391 = vrot.lane.b32.xlu0 %v6368, 64
  %v6392 = vpop.permute.xlu0 %6391
  %6401 = vst.msk [vmem:[#allocation5 + $0x18] sm:$0xff] %vm3460, %v6378
  %6402 = vst.msk [vmem:[#allocation5 + $0x38] sm:$0xff] %vm3460, %v6380
  %6403 = vst.msk [vmem:[#allocation5 + $0x58] sm:$0xff] %vm3460, %v6382
  %6404 = vst.msk [vmem:[#allocation5 + $0x78] sm:$0xff] %vm3460, %v6384
  %6405 = vst.msk [vmem:[#allocation5 + $0x98] sm:$0xff] %vm3460, %v6386
  %6406 = vst.msk [vmem:[#allocation5 + $0xb8] sm:$0xff] %vm3460, %v6388
  %6407 = vst.msk [vmem:[#allocation5 + $0xd8] sm:$0xff] %vm3460, %v6390
  %6408 = vst.msk [vmem:[#allocation5 + $0xf8] sm:$0xff] %vm3460, %v6392
  %s6409 = scalar_lea.vmem [#allocation2], 256
  %v6410 = vld [vmem:[%s6409] sm:$0xff]
  %v6411 = vld [vmem:[%s6409 + $0x20] sm:$0xff]
  %v6412 = vld [vmem:[%s6409 + $0x40] sm:$0xff]
  %v6413 = vld [vmem:[%s6409 + $0x60] sm:$0xff]
  %v6414 = vld [vmem:[%s6409 + $0x80] sm:$0xff]
  %v6415 = vld [vmem:[%s6409 + $0xa0] sm:$0xff]
  %v6416 = vld [vmem:[%s6409 + $0xc0] sm:$0xff]
  %v6417 = vld [vmem:[%s6409 + $0xe0] sm:$0xff]
  %s6418 = scalar_lea.vmem [#allocation3], 256
  %v6419 = vld [vmem:[%s6418] sm:$0xff]
  %v6420 = vld [vmem:[%s6418 + $0x20] sm:$0xff]
  %v6421 = vld [vmem:[%s6418 + $0x40] sm:$0xff]
  %v6422 = vld [vmem:[%s6418 + $0x60] sm:$0xff]
  %v6423 = vld [vmem:[%s6418 + $0x80] sm:$0xff]
  %v6424 = vld [vmem:[%s6418 + $0xa0] sm:$0xff]
  %v6425 = vld [vmem:[%s6418 + $0xc0] sm:$0xff]
  %v6426 = vld [vmem:[%s6418 + $0xe0] sm:$0xff]
  %s6427 = scalar_lea.vmem [#allocation4], 256
  %v6428 = vld [vmem:[%s6427] sm:$0xff]
  %v6429 = vld [vmem:[%s6427 + $0x20] sm:$0xff]
  %v6430 = vld [vmem:[%s6427 + $0x40] sm:$0xff]
  %v6431 = vld [vmem:[%s6427 + $0x60] sm:$0xff]
  %v6432 = vld [vmem:[%s6427 + $0x80] sm:$0xff]
  %v6433 = vld [vmem:[%s6427 + $0xa0] sm:$0xff]
  %v6434 = vld [vmem:[%s6427 + $0xc0] sm:$0xff]
  %v6435 = vld [vmem:[%s6427 + $0xe0] sm:$0xff]
  %v6437 = vsel %vm305, %v6410, 0
  %v6440 = vsel %vm305, %v6411, 0
  %v6443 = vsel %vm305, %v6412, 0
  %v6446 = vsel %vm305, %v6413, 0
  %v6449 = vsel %vm305, %v6414, 0
  %v6452 = vsel %vm305, %v6415, 0
  %v6455 = vsel %vm305, %v6416, 0
  %v6458 = vsel %vm305, %v6417, 0
  %v6461 = vsel %vm305, %v6419, 0
  %v6464 = vsel %vm305, %v6420, 0
  %v6467 = vsel %vm305, %v6421, 0
  %v6470 = vsel %vm305, %v6422, 0
  %v6473 = vsel %vm305, %v6423, 0
  %v6476 = vsel %vm305, %v6424, 0
  %v6479 = vsel %vm305, %v6425, 0
  %v6482 = vsel %vm305, %v6426, 0
  %6484 = vmatprep.subr.bf16.mxu0 0
  %6485 = vmatpush1.bf16.xpose.msra.mxu0 %v6461
  %6486 = vmatprep.subr.bf16.mxu0 0
  %6487 = vmatpush1.bf16.xpose.msra.mxu0 %v6464
  %6488 = vmatprep.subr.bf16.mxu0 0
  %6489 = vmatpush1.bf16.xpose.msra.mxu0 %v6467
  %6490 = vmatprep.subr.bf16.mxu0 0
  %6491 = vmatpush1.bf16.xpose.msra.mxu0 %v6470
  %6492 = vmatprep.subr.bf16.mxu0 0
  %6493 = vmatpush1.bf16.xpose.msra.mxu0 %v6473
  %6494 = vmatprep.subr.bf16.mxu0 0
  %6495 = vmatpush1.bf16.xpose.msra.mxu0 %v6476
  %6496 = vmatprep.subr.bf16.mxu0 0
  %6497 = vmatpush1.bf16.xpose.msra.mxu0 %v6479
  %6498 = vmatprep.subr.bf16.mxu0 0
  %6499 = vmatpush1.bf16.xpose.msra.mxu0 %v6482
  %6500 = vmatprep.subr.bf16.mxu0 0
  %6501 = vmatpush1.bf16.xpose.msra.mxu0 0
  %6502 = vmatprep.subr.bf16.mxu0 0
  %6503 = vmatpush1.bf16.xpose.msra.mxu0 0
  %6504 = vmatprep.subr.bf16.mxu0 0
  %6505 = vmatpush1.bf16.xpose.msra.mxu0 0
  %6506 = vmatprep.subr.bf16.mxu0 0
  %6507 = vmatpush1.bf16.xpose.msra.mxu0 0
  %6508 = vmatprep.subr.bf16.mxu0 0
  %6509 = vmatpush1.bf16.xpose.msra.mxu0 0
  %6510 = vmatprep.subr.bf16.mxu0 0
  %6511 = vmatpush1.bf16.xpose.msra.mxu0 0
  %6512 = vmatprep.subr.bf16.mxu0 0
  %6513 = vmatpush1.bf16.xpose.msra.mxu0 0
  %6514 = vmatprep.subr.bf16.mxu0 0
  %6515 = vmatpush1.bf16.xpose.msra.mxu0 0
  %6516 = vmatprep.mubr.bf16.mxu0 0
  %6517 = vmatmul.mubr.bf16.gmra.mrb[0].mxu0 %v6437
  %v6518 = vpop.f32.mrb[0].mxu0
  %v6519 = vadd.f32 %v2472, %v6518
  %v6520 = vpop.f32.mrb[0].mxu0
  %v6521 = vpop.f32.mrb[0].mxu0
  %v6522 = vadd.f32 %v2473, %v6521
  %v6523 = vpop.f32.mrb[0].mxu0
  %6524 = vmatprep.mubr.bf16.mxu0 0
  %6525 = vmatmul.mubr.bf16.gmra.mrb[0].mxu0 %v6440
  %v6526 = vpop.f32.mrb[0].mxu0
  %v6527 = vadd.f32 %v2474, %v6526
  %v6528 = vpop.f32.mrb[0].mxu0
  %v6529 = vpop.f32.mrb[0].mxu0
  %v6530 = vadd.f32 %v2475, %v6529
  %v6531 = vpop.f32.mrb[0].mxu0
  %6532 = vmatprep.mubr.bf16.mxu0 0
  %6533 = vmatmul.mubr.bf16.gmra.mrb[0].mxu0 %v6443
  %v6534 = vpop.f32.mrb[0].mxu0
  %v6535 = vadd.f32 %v2476, %v6534
  %v6536 = vpop.f32.mrb[0].mxu0
  %v6537 = vpop.f32.mrb[0].mxu0
  %v6538 = vadd.f32 %v2477, %v6537
  %v6539 = vpop.f32.mrb[0].mxu0
  %6540 = vmatprep.mubr.bf16.mxu0 0
  %6541 = vmatmul.mubr.bf16.gmra.mrb[0].mxu0 %v6446
  %v6542 = vpop.f32.mrb[0].mxu0
  %v6543 = vadd.f32 %v2478, %v6542
  %v6544 = vpop.f32.mrb[0].mxu0
  %v6545 = vpop.f32.mrb[0].mxu0
  %v6546 = vadd.f32 %v2479, %v6545
  %v6547 = vpop.f32.mrb[0].mxu0
  %6548 = vmatprep.mubr.bf16.mxu0 0
  %6549 = vmatmul.mubr.bf16.gmra.mrb[0].mxu0 %v6449
  %v6550 = vpop.f32.mrb[0].mxu0
  %v6551 = vadd.f32 %v2480, %v6550
  %v6552 = vpop.f32.mrb[0].mxu0
  %v6553 = vpop.f32.mrb[0].mxu0
  %v6554 = vadd.f32 %v2481, %v6553
  %v6555 = vpop.f32.mrb[0].mxu0
  %6556 = vmatprep.mubr.bf16.mxu0 0
  %6557 = vmatmul.mubr.bf16.gmra.mrb[0].mxu0 %v6452
  %v6558 = vpop.f32.mrb[0].mxu0
  %v6559 = vadd.f32 %v2482, %v6558
  %v6560 = vpop.f32.mrb[0].mxu0
  %v6561 = vpop.f32.mrb[0].mxu0
  %v6562 = vadd.f32 %v2483, %v6561
  %v6563 = vpop.f32.mrb[0].mxu0
  %6564 = vmatprep.mubr.bf16.mxu0 0
  %6565 = vmatmul.mubr.bf16.gmra.mrb[0].mxu0 %v6455
  %v6566 = vpop.f32.mrb[0].mxu0
  %v6567 = vadd.f32 %v2484, %v6566
  %v6568 = vpop.f32.mrb[0].mxu0
  %v6569 = vpop.f32.mrb[0].mxu0
  %v6570 = vadd.f32 %v2485, %v6569
  %v6571 = vpop.f32.mrb[0].mxu0
  %6572 = vmatprep.mubr.bf16.mxu0 0
  %6573 = vmatmul.mubr.bf16.gmra.mrb[0].mxu0 %v6458
  %v6574 = vpop.f32.mrb[0].mxu0
  %v6575 = vadd.f32 %v2486, %v6574
  %v6576 = vpop.f32.mrb[0].mxu0
  %v6577 = vpop.f32.mrb[0].mxu0
  %v6578 = vadd.f32 %v2487, %v6577
  %v6579 = vpop.f32.mrb[0].mxu0
  %6580 = vdwg.mxu0
  %6581 = vmax.xlane.f32.xlu0 %v6519
  %v6582 = vpop.xlane.xlu0 %6581
  %6583 = vmax.xlane.f32.xlu0 %v6522
  %v6584 = vpop.xlane.xlu0 %6583
  %6585 = vmax.xlane.f32.xlu0 %v6527
  %v6586 = vpop.xlane.xlu0 %6585
  %6587 = vmax.xlane.f32.xlu0 %v6530
  %v6588 = vpop.xlane.xlu0 %6587
  %6589 = vmax.xlane.f32.xlu0 %v6535
  %v6590 = vpop.xlane.xlu0 %6589
  %6591 = vmax.xlane.f32.xlu0 %v6538
  %v6592 = vpop.xlane.xlu0 %6591
  %6593 = vmax.xlane.f32.xlu0 %v6543
  %v6594 = vpop.xlane.xlu0 %6593
  %6595 = vmax.xlane.f32.xlu0 %v6546
  %v6596 = vpop.xlane.xlu0 %6595
  %6597 = vmax.xlane.f32.xlu0 %v6551
  %v6598 = vpop.xlane.xlu0 %6597
  %6599 = vmax.xlane.f32.xlu0 %v6554
  %v6600 = vpop.xlane.xlu0 %6599
  %6601 = vmax.xlane.f32.xlu0 %v6559
  %v6602 = vpop.xlane.xlu0 %6601
  %6603 = vmax.xlane.f32.xlu0 %v6562
  %v6604 = vpop.xlane.xlu0 %6603
  %6605 = vmax.xlane.f32.xlu0 %v6567
  %v6606 = vpop.xlane.xlu0 %6605
  %6607 = vmax.xlane.f32.xlu0 %v6570
  %v6608 = vpop.xlane.xlu0 %6607
  %6609 = vmax.xlane.f32.xlu0 %v6575
  %v6610 = vpop.xlane.xlu0 %6609
  %6611 = vmax.xlane.f32.xlu0 %v6578
  %v6612 = vpop.xlane.xlu0 %6611
  %v6613 = vsub.f32 %v6519, %v6582
  %v6614 = vsub.f32 %v6522, %v6584
  %v6615 = vsub.f32 %v6527, %v6586
  %v6616 = vsub.f32 %v6530, %v6588
  %v6617 = vsub.f32 %v6535, %v6590
  %v6618 = vsub.f32 %v6538, %v6592
  %v6619 = vsub.f32 %v6543, %v6594
  %v6620 = vsub.f32 %v6546, %v6596
  %v6621 = vsub.f32 %v6551, %v6598
  %v6622 = vsub.f32 %v6554, %v6600
  %v6623 = vsub.f32 %v6559, %v6602
  %v6624 = vsub.f32 %v6562, %v6604
  %v6625 = vsub.f32 %v6567, %v6606
  %v6626 = vsub.f32 %v6570, %v6608
  %v6627 = vsub.f32 %v6575, %v6610
  %v6628 = vsub.f32 %v6578, %v6612
  %v6629 = vmul.f32 %v6613, 1.442695
  %v6630 = vpow.pop %v6629
  %v6631 = vmul.f32 %v6614, 1.442695
  %v6632 = vpow.pop %v6631
  %v6633 = vmul.f32 %v6615, 1.442695
  %v6634 = vpow.pop %v6633
  %v6635 = vmul.f32 %v6616, 1.442695
  %v6636 = vpow.pop %v6635
  %v6637 = vmul.f32 %v6617, 1.442695
  %v6638 = vpow.pop %v6637
  %v6639 = vmul.f32 %v6618, 1.442695
  %v6640 = vpow.pop %v6639
  %v6641 = vmul.f32 %v6619, 1.442695
  %v6642 = vpow.pop %v6641
  %v6643 = vmul.f32 %v6620, 1.442695
  %v6644 = vpow.pop %v6643
  %v6645 = vmul.f32 %v6621, 1.442695
  %v6646 = vpow.pop %v6645
  %v6647 = vmul.f32 %v6622, 1.442695
  %v6648 = vpow.pop %v6647
  %v6649 = vmul.f32 %v6623, 1.442695
  %v6650 = vpow.pop %v6649
  %v6651 = vmul.f32 %v6624, 1.442695
  %v6652 = vpow.pop %v6651
  %v6653 = vmul.f32 %v6625, 1.442695
  %v6654 = vpow.pop %v6653
  %v6655 = vmul.f32 %v6626, 1.442695
  %v6656 = vpow.pop %v6655
  %v6657 = vmul.f32 %v6627, 1.442695
  %v6658 = vpow.pop %v6657
  %v6659 = vmul.f32 %v6628, 1.442695
  %v6660 = vpow.pop %v6659
  %6661 = vadd.xlane.f32.xlu0 %v6630
  %v6662 = vpop.xlane.xlu0 %6661
  %6663 = vadd.xlane.f32.xlu0 %v6632
  %v6664 = vpop.xlane.xlu0 %6663
  %6665 = vadd.xlane.f32.xlu0 %v6634
  %v6666 = vpop.xlane.xlu0 %6665
  %6667 = vadd.xlane.f32.xlu0 %v6636
  %v6668 = vpop.xlane.xlu0 %6667
  %6669 = vadd.xlane.f32.xlu0 %v6638
  %v6670 = vpop.xlane.xlu0 %6669
  %6671 = vadd.xlane.f32.xlu0 %v6640
  %v6672 = vpop.xlane.xlu0 %6671
  %6673 = vadd.xlane.f32.xlu0 %v6642
  %v6674 = vpop.xlane.xlu0 %6673
  %6675 = vadd.xlane.f32.xlu0 %v6644
  %v6676 = vpop.xlane.xlu0 %6675
  %6677 = vadd.xlane.f32.xlu0 %v6646
  %v6678 = vpop.xlane.xlu0 %6677
  %6679 = vadd.xlane.f32.xlu0 %v6648
  %v6680 = vpop.xlane.xlu0 %6679
  %6681 = vadd.xlane.f32.xlu0 %v6650
  %v6682 = vpop.xlane.xlu0 %6681
  %6683 = vadd.xlane.f32.xlu0 %v6652
  %v6684 = vpop.xlane.xlu0 %6683
  %6685 = vadd.xlane.f32.xlu0 %v6654
  %v6686 = vpop.xlane.xlu0 %6685
  %6687 = vadd.xlane.f32.xlu0 %v6656
  %v6688 = vpop.xlane.xlu0 %6687
  %6689 = vadd.xlane.f32.xlu0 %v6658
  %v6690 = vpop.xlane.xlu0 %6689
  %6691 = vadd.xlane.f32.xlu0 %v6660
  %v6692 = vpop.xlane.xlu0 %6691
  %v6693 = vrcp.pop %v6662
  %v6694 = vrcp.pop %v6664
  %v6695 = vrcp.pop %v6666
  %v6696 = vrcp.pop %v6668
  %v6697 = vrcp.pop %v6670
  %v6698 = vrcp.pop %v6672
  %v6699 = vrcp.pop %v6674
  %v6700 = vrcp.pop %v6676
  %v6701 = vrcp.pop %v6678
  %v6702 = vrcp.pop %v6680
  %v6703 = vrcp.pop %v6682
  %v6704 = vrcp.pop %v6684
  %v6705 = vrcp.pop %v6686
  %v6706 = vrcp.pop %v6688
  %v6707 = vrcp.pop %v6690
  %v6708 = vrcp.pop %v6692
  %v6709 = vmul.f32 %v6630, %v6693
  %v6710 = vmul.f32 %v6632, %v6694
  %v6711 = vmul.f32 %v6634, %v6695
  %v6712 = vmul.f32 %v6636, %v6696
  %v6713 = vmul.f32 %v6638, %v6697
  %v6714 = vmul.f32 %v6640, %v6698
  %v6715 = vmul.f32 %v6642, %v6699
  %v6716 = vmul.f32 %v6644, %v6700
  %v6717 = vmul.f32 %v6646, %v6701
  %v6718 = vmul.f32 %v6648, %v6702
  %v6719 = vmul.f32 %v6650, %v6703
  %v6720 = vmul.f32 %v6652, %v6704
  %v6721 = vmul.f32 %v6654, %v6705
  %v6722 = vmul.f32 %v6656, %v6706
  %v6723 = vmul.f32 %v6658, %v6707
  %v6724 = vmul.f32 %v6660, %v6708
  %v6725 = vpack.c.bf16 %v6710, %v6709
  %v6726 = vpack.c.bf16 %v6712, %v6711
  %v6727 = vpack.c.bf16 %v6714, %v6713
  %v6728 = vpack.c.bf16 %v6716, %v6715
  %v6729 = vpack.c.bf16 %v6718, %v6717
  %v6730 = vpack.c.bf16 %v6720, %v6719
  %v6731 = vpack.c.bf16 %v6722, %v6721
  %v6732 = vpack.c.bf16 %v6724, %v6723
  %6733 = vmatprep.subr.bf16.mxu0 0
  %6734 = vmatpush1.bf16.msra.mxu0 %v6428
  %6735 = vmatprep.subr.bf16.mxu0 0
  %6736 = vmatpush1.bf16.msra.mxu0 %v6429
  %6737 = vmatprep.subr.bf16.mxu0 0
  %6738 = vmatpush1.bf16.msra.mxu0 %v6430
  %6739 = vmatprep.subr.bf16.mxu0 0
  %6740 = vmatpush1.bf16.msra.mxu0 %v6431
  %6741 = vmatprep.subr.bf16.mxu0 0
  %6742 = vmatpush1.bf16.msra.mxu0 %v6432
  %6743 = vmatprep.subr.bf16.mxu0 0
  %6744 = vmatpush1.bf16.msra.mxu0 %v6433
  %6745 = vmatprep.subr.bf16.mxu0 0
  %6746 = vmatpush1.bf16.msra.mxu0 %v6434
  %6747 = vmatprep.subr.bf16.mxu0 0
  %6748 = vmatpush1.bf16.msra.mxu0 %v6435
  %6749 = vmatprep.subr.bf16.mxu0 0
  %6750 = vmatpush1.bf16.msra.mxu0 0
  %6751 = vmatprep.subr.bf16.mxu0 0
  %6752 = vmatpush1.bf16.msra.mxu0 0
  %6753 = vmatprep.subr.bf16.mxu0 0
  %6754 = vmatpush1.bf16.msra.mxu0 0
  %6755 = vmatprep.subr.bf16.mxu0 0
  %6756 = vmatpush1.bf16.msra.mxu0 0
  %6757 = vmatprep.subr.bf16.mxu0 0
  %6758 = vmatpush1.bf16.msra.mxu0 0
  %6759 = vmatprep.subr.bf16.mxu0 0
  %6760 = vmatpush1.bf16.msra.mxu0 0
  %6761 = vmatprep.subr.bf16.mxu0 0
  %6762 = vmatpush1.bf16.msra.mxu0 0
  %6763 = vmatprep.subr.bf16.mxu0 0
  %6764 = vmatpush1.bf16.msra.mxu0 0
  %6765 = vmatprep.mubr.bf16.mxu0 0
  %6766 = vmatmul.mubr.bf16.gmra.mrb[0].mxu0 %v6725
  %v6767 = vpop.f32.mrb[0].mxu0
  %v6768 = vadd.f32 0.0, %v6767
  %v6769 = vpop.f32.mrb[0].mxu0
  %v6770 = vpop.f32.mrb[0].mxu0
  %v6771 = vadd.f32 0.0, %v6770
  %v6772 = vpop.f32.mrb[0].mxu0
  %6773 = vmatprep.mubr.bf16.mxu0 0
  %6774 = vmatmul.mubr.bf16.gmra.mrb[0].mxu0 %v6726
  %v6775 = vpop.f32.mrb[0].mxu0
  %v6776 = vadd.f32 0.0, %v6775
  %v6777 = vpop.f32.mrb[0].mxu0
  %v6778 = vpop.f32.mrb[0].mxu0
  %v6779 = vadd.f32 0.0, %v6778
  %v6780 = vpop.f32.mrb[0].mxu0
  %6781 = vmatprep.mubr.bf16.mxu0 0
  %6782 = vmatmul.mubr.bf16.gmra.mrb[0].mxu0 %v6727
  %v6783 = vpop.f32.mrb[0].mxu0
  %v6784 = vadd.f32 0.0, %v6783
  %v6785 = vpop.f32.mrb[0].mxu0
  %v6786 = vpop.f32.mrb[0].mxu0
  %v6787 = vadd.f32 0.0, %v6786
  %v6788 = vpop.f32.mrb[0].mxu0
  %6789 = vmatprep.mubr.bf16.mxu0 0
  %6790 = vmatmul.mubr.bf16.gmra.mrb[0].mxu0 %v6728
  %v6791 = vpop.f32.mrb[0].mxu0
  %v6792 = vadd.f32 0.0, %v6791
  %v6793 = vpop.f32.mrb[0].mxu0
  %v6794 = vpop.f32.mrb[0].mxu0
  %v6795 = vadd.f32 0.0, %v6794
  %v6796 = vpop.f32.mrb[0].mxu0
  %6797 = vmatprep.mubr.bf16.mxu0 0
  %6798 = vmatmul.mubr.bf16.gmra.mrb[0].mxu0 %v6729
  %v6799 = vpop.f32.mrb[0].mxu0
  %v6800 = vadd.f32 0.0, %v6799
  %v6801 = vpop.f32.mrb[0].mxu0
  %v6802 = vpop.f32.mrb[0].mxu0
  %v6803 = vadd.f32 0.0, %v6802
  %v6804 = vpop.f32.mrb[0].mxu0
  %6805 = vmatprep.mubr.bf16.mxu0 0
  %6806 = vmatmul.mubr.bf16.gmra.mrb[0].mxu0 %v6730
  %v6807 = vpop.f32.mrb[0].mxu0
  %v6808 = vadd.f32 0.0, %v6807
  %v6809 = vpop.f32.mrb[0].mxu0
  %v6810 = vpop.f32.mrb[0].mxu0
  %v6811 = vadd.f32 0.0, %v6810
  %v6812 = vpop.f32.mrb[0].mxu0
  %6813 = vmatprep.mubr.bf16.mxu0 0
  %6814 = vmatmul.mubr.bf16.gmra.mrb[0].mxu0 %v6731
  %v6815 = vpop.f32.mrb[0].mxu0
  %v6816 = vadd.f32 0.0, %v6815
  %v6817 = vpop.f32.mrb[0].mxu0
  %v6818 = vpop.f32.mrb[0].mxu0
  %v6819 = vadd.f32 0.0, %v6818
  %v6820 = vpop.f32.mrb[0].mxu0
  %6821 = vmatprep.mubr.bf16.mxu0 0
  %6822 = vmatmul.mubr.bf16.gmra.mrb[0].mxu0 %v6732
  %v6823 = vpop.f32.mrb[0].mxu0
  %v6824 = vadd.f32 0.0, %v6823
  %v6825 = vpop.f32.mrb[0].mxu0
  %v6826 = vpop.f32.mrb[0].mxu0
  %v6827 = vadd.f32 0.0, %v6826
  %v6828 = vpop.f32.mrb[0].mxu0
  %6829 = vdwg.mxu0
  %v6830 = vpack.c.bf16 %v6771, %v6768
  %v6831 = vpack.c.bf16 %v6779, %v6776
  %v6832 = vpack.c.bf16 %v6787, %v6784
  %v6833 = vpack.c.bf16 %v6795, %v6792
  %v6834 = vpack.c.bf16 %v6803, %v6800
  %v6835 = vpack.c.bf16 %v6811, %v6808
  %v6836 = vpack.c.bf16 %v6819, %v6816
  %v6837 = vpack.c.bf16 %v6827, %v6824
  %s6838 = scalar_lea.vmem [#allocation5], 256
  %6839 = vst.msk [vmem:[%s6838] sm:$0xff] %vm305, %v6830
  %6840 = vst.msk [vmem:[%s6838 + $0x20] sm:$0xff] %vm305, %v6831
  %6841 = vst.msk [vmem:[%s6838 + $0x40] sm:$0xff] %vm305, %v6832
  %6842 = vst.msk [vmem:[%s6838 + $0x60] sm:$0xff] %vm305, %v6833
  %6843 = vst.msk [vmem:[%s6838 + $0x80] sm:$0xff] %vm305, %v6834
  %6844 = vst.msk [vmem:[%s6838 + $0xa0] sm:$0xff] %vm305, %v6835
  %6845 = vst.msk [vmem:[%s6838 + $0xc0] sm:$0xff] %vm305, %v6836
  %6846 = vst.msk [vmem:[%s6838 + $0xe0] sm:$0xff] %vm305, %v6837
  %v6847 = vld [vmem:[%s6409] sm:$0xff]
  %v6848 = vld [vmem:[%s6409 + $0x20] sm:$0xff]
  %v6849 = vld [vmem:[%s6409 + $0x40] sm:$0xff]
  %v6850 = vld [vmem:[%s6409 + $0x60] sm:$0xff]
  %v6851 = vld [vmem:[%s6409 + $0x80] sm:$0xff]
  %v6852 = vld [vmem:[%s6409 + $0xa0] sm:$0xff]
  %v6853 = vld [vmem:[%s6409 + $0xc0] sm:$0xff]
  %v6854 = vld [vmem:[%s6409 + $0xe0] sm:$0xff]
  %v6855 = vld [vmem:[%s6418] sm:$0xff]
  %v6856 = vld [vmem:[%s6418 + $0x20] sm:$0xff]
  %v6857 = vld [vmem:[%s6418 + $0x40] sm:$0xff]
  %v6858 = vld [vmem:[%s6418 + $0x60] sm:$0xff]
  %v6859 = vld [vmem:[%s6418 + $0x80] sm:$0xff]
  %v6860 = vld [vmem:[%s6418 + $0xa0] sm:$0xff]
  %v6861 = vld [vmem:[%s6418 + $0xc0] sm:$0xff]
  %v6862 = vld [vmem:[%s6418 + $0xe0] sm:$0xff]
  %v6863 = vld [vmem:[%s6427] sm:$0xff]
  %v6864 = vld [vmem:[%s6427 + $0x20] sm:$0xff]
  %v6865 = vld [vmem:[%s6427 + $0x40] sm:$0xff]
  %v6866 = vld [vmem:[%s6427 + $0x60] sm:$0xff]
  %v6867 = vld [vmem:[%s6427 + $0x80] sm:$0xff]
  %v6868 = vld [vmem:[%s6427 + $0xa0] sm:$0xff]
  %v6869 = vld [vmem:[%s6427 + $0xc0] sm:$0xff]
  %v6870 = vld [vmem:[%s6427 + $0xe0] sm:$0xff]
  %6879 = vrot.lane.b32.xlu0 %v6847, 64
  %v6880 = vpop.permute.xlu0 %6879
  %6881 = vrot.lane.b32.xlu0 %v6848, 64
  %v6882 = vpop.permute.xlu0 %6881
  %6883 = vrot.lane.b32.xlu0 %v6849, 64
  %v6884 = vpop.permute.xlu0 %6883
  %6885 = vrot.lane.b32.xlu0 %v6850, 64
  %v6886 = vpop.permute.xlu0 %6885
  %6887 = vrot.lane.b32.xlu0 %v6851, 64
  %v6888 = vpop.permute.xlu0 %6887
  %6889 = vrot.lane.b32.xlu0 %v6852, 64
  %v6890 = vpop.permute.xlu0 %6889
  %6891 = vrot.lane.b32.xlu0 %v6853, 64
  %v6892 = vpop.permute.xlu0 %6891
  %6893 = vrot.lane.b32.xlu0 %v6854, 64
  %v6894 = vpop.permute.xlu0 %6893
  %6903 = vrot.lane.b32.xlu0 %v6855, 64
  %v6904 = vpop.permute.xlu0 %6903
  %6905 = vrot.lane.b32.xlu0 %v6856, 64
  %v6906 = vpop.permute.xlu0 %6905
  %6907 = vrot.lane.b32.xlu0 %v6857, 64
  %v6908 = vpop.permute.xlu0 %6907
  %6909 = vrot.lane.b32.xlu0 %v6858, 64
  %v6910 = vpop.permute.xlu0 %6909
  %6911 = vrot.lane.b32.xlu0 %v6859, 64
  %v6912 = vpop.permute.xlu0 %6911
  %6913 = vrot.lane.b32.xlu0 %v6860, 64
  %v6914 = vpop.permute.xlu0 %6913
  %6915 = vrot.lane.b32.xlu0 %v6861, 64
  %v6916 = vpop.permute.xlu0 %6915
  %6917 = vrot.lane.b32.xlu0 %v6862, 64
  %v6918 = vpop.permute.xlu0 %6917
  %v6920 = vsel %vm305, %v6880, 0
  %v6923 = vsel %vm305, %v6882, 0
  %v6926 = vsel %vm305, %v6884, 0
  %v6929 = vsel %vm305, %v6886, 0
  %v6932 = vsel %vm305, %v6888, 0
  %v6935 = vsel %vm305, %v6890, 0
  %v6938 = vsel %vm305, %v6892, 0
  %v6941 = vsel %vm305, %v6894, 0
  %v6944 = vsel %vm305, %v6904, 0
  %v6947 = vsel %vm305, %v6906, 0
  %v6950 = vsel %vm305, %v6908, 0
  %v6953 = vsel %vm305, %v6910, 0
  %v6956 = vsel %vm305, %v6912, 0
  %v6959 = vsel %vm305, %v6914, 0
  %v6962 = vsel %vm305, %v6916, 0
  %v6965 = vsel %vm305, %v6918, 0
  %6967 = vmatprep.subr.bf16.mxu0 0
  %6968 = vmatpush1.bf16.xpose.msra.mxu0 %v6944
  %6969 = vmatprep.subr.bf16.mxu0 0
  %6970 = vmatpush1.bf16.xpose.msra.mxu0 %v6947
  %6971 = vmatprep.subr.bf16.mxu0 0
  %6972 = vmatpush1.bf16.xpose.msra.mxu0 %v6950
  %6973 = vmatprep.subr.bf16.mxu0 0
  %6974 = vmatpush1.bf16.xpose.msra.mxu0 %v6953
  %6975 = vmatprep.subr.bf16.mxu0 0
  %6976 = vmatpush1.bf16.xpose.msra.mxu0 %v6956
  %6977 = vmatprep.subr.bf16.mxu0 0
  %6978 = vmatpush1.bf16.xpose.msra.mxu0 %v6959
  %6979 = vmatprep.subr.bf16.mxu0 0
  %6980 = vmatpush1.bf16.xpose.msra.mxu0 %v6962
  %6981 = vmatprep.subr.bf16.mxu0 0
  %6982 = vmatpush1.bf16.xpose.msra.mxu0 %v6965
  %6983 = vmatprep.subr.bf16.mxu0 0
  %6984 = vmatpush1.bf16.xpose.msra.mxu0 0
  %6985 = vmatprep.subr.bf16.mxu0 0
  %6986 = vmatpush1.bf16.xpose.msra.mxu0 0
  %6987 = vmatprep.subr.bf16.mxu0 0
  %6988 = vmatpush1.bf16.xpose.msra.mxu0 0
  %6989 = vmatprep.subr.bf16.mxu0 0
  %6990 = vmatpush1.bf16.xpose.msra.mxu0 0
  %6991 = vmatprep.subr.bf16.mxu0 0
  %6992 = vmatpush1.bf16.xpose.msra.mxu0 0
  %6993 = vmatprep.subr.bf16.mxu0 0
  %6994 = vmatpush1.bf16.xpose.msra.mxu0 0
  %6995 = vmatprep.subr.bf16.mxu0 0
  %6996 = vmatpush1.bf16.xpose.msra.mxu0 0
  %6997 = vmatprep.subr.bf16.mxu0 0
  %6998 = vmatpush1.bf16.xpose.msra.mxu0 0
  %6999 = vmatprep.mubr.bf16.mxu0 0
  %7000 = vmatmul.mubr.bf16.gmra.mrb[0].mxu0 %v6920
  %v7001 = vpop.f32.mrb[0].mxu0
  %v7002 = vadd.f32 %v2472, %v7001
  %v7003 = vpop.f32.mrb[0].mxu0
  %v7004 = vpop.f32.mrb[0].mxu0
  %v7005 = vadd.f32 %v2473, %v7004
  %v7006 = vpop.f32.mrb[0].mxu0
  %7007 = vmatprep.mubr.bf16.mxu0 0
  %7008 = vmatmul.mubr.bf16.gmra.mrb[0].mxu0 %v6923
  %v7009 = vpop.f32.mrb[0].mxu0
  %v7010 = vadd.f32 %v2474, %v7009
  %v7011 = vpop.f32.mrb[0].mxu0
  %v7012 = vpop.f32.mrb[0].mxu0
  %v7013 = vadd.f32 %v2475, %v7012
  %v7014 = vpop.f32.mrb[0].mxu0
  %7015 = vmatprep.mubr.bf16.mxu0 0
  %7016 = vmatmul.mubr.bf16.gmra.mrb[0].mxu0 %v6926
  %v7017 = vpop.f32.mrb[0].mxu0
  %v7018 = vadd.f32 %v2476, %v7017
  %v7019 = vpop.f32.mrb[0].mxu0
  %v7020 = vpop.f32.mrb[0].mxu0
  %v7021 = vadd.f32 %v2477, %v7020
  %v7022 = vpop.f32.mrb[0].mxu0
  %7023 = vmatprep.mubr.bf16.mxu0 0
  %7024 = vmatmul.mubr.bf16.gmra.mrb[0].mxu0 %v6929
  %v7025 = vpop.f32.mrb[0].mxu0
  %v7026 = vadd.f32 %v2478, %v7025
  %v7027 = vpop.f32.mrb[0].mxu0
  %v7028 = vpop.f32.mrb[0].mxu0
  %v7029 = vadd.f32 %v2479, %v7028
  %v7030 = vpop.f32.mrb[0].mxu0
  %7031 = vmatprep.mubr.bf16.mxu0 0
  %7032 = vmatmul.mubr.bf16.gmra.mrb[0].mxu0 %v6932
  %v7033 = vpop.f32.mrb[0].mxu0
  %v7034 = vadd.f32 %v2480, %v7033
  %v7035 = vpop.f32.mrb[0].mxu0
  %v7036 = vpop.f32.mrb[0].mxu0
  %v7037 = vadd.f32 %v2481, %v7036
  %v7038 = vpop.f32.mrb[0].mxu0
  %7039 = vmatprep.mubr.bf16.mxu0 0
  %7040 = vmatmul.mubr.bf16.gmra.mrb[0].mxu0 %v6935
  %v7041 = vpop.f32.mrb[0].mxu0
  %v7042 = vadd.f32 %v2482, %v7041
  %v7043 = vpop.f32.mrb[0].mxu0
  %v7044 = vpop.f32.mrb[0].mxu0
  %v7045 = vadd.f32 %v2483, %v7044
  %v7046 = vpop.f32.mrb[0].mxu0
  %7047 = vmatprep.mubr.bf16.mxu0 0
  %7048 = vmatmul.mubr.bf16.gmra.mrb[0].mxu0 %v6938
  %v7049 = vpop.f32.mrb[0].mxu0
  %v7050 = vadd.f32 %v2484, %v7049
  %v7051 = vpop.f32.mrb[0].mxu0
  %v7052 = vpop.f32.mrb[0].mxu0
  %v7053 = vadd.f32 %v2485, %v7052
  %v7054 = vpop.f32.mrb[0].mxu0
  %7055 = vmatprep.mubr.bf16.mxu0 0
  %7056 = vmatmul.mubr.bf16.gmra.mrb[0].mxu0 %v6941
  %v7057 = vpop.f32.mrb[0].mxu0
  %v7058 = vadd.f32 %v2486, %v7057
  %v7059 = vpop.f32.mrb[0].mxu0
  %v7060 = vpop.f32.mrb[0].mxu0
  %v7061 = vadd.f32 %v2487, %v7060
  %v7062 = vpop.f32.mrb[0].mxu0
  %7063 = vdwg.mxu0
  %7064 = vmax.xlane.f32.xlu0 %v7002
  %v7065 = vpop.xlane.xlu0 %7064
  %7066 = vmax.xlane.f32.xlu0 %v7005
  %v7067 = vpop.xlane.xlu0 %7066
  %7068 = vmax.xlane.f32.xlu0 %v7010
  %v7069 = vpop.xlane.xlu0 %7068
  %7070 = vmax.xlane.f32.xlu0 %v7013
  %v7071 = vpop.xlane.xlu0 %7070
  %7072 = vmax.xlane.f32.xlu0 %v7018
  %v7073 = vpop.xlane.xlu0 %7072
  %7074 = vmax.xlane.f32.xlu0 %v7021
  %v7075 = vpop.xlane.xlu0 %7074
  %7076 = vmax.xlane.f32.xlu0 %v7026
  %v7077 = vpop.xlane.xlu0 %7076
  %7078 = vmax.xlane.f32.xlu0 %v7029
  %v7079 = vpop.xlane.xlu0 %7078
  %7080 = vmax.xlane.f32.xlu0 %v7034
  %v7081 = vpop.xlane.xlu0 %7080
  %7082 = vmax.xlane.f32.xlu0 %v7037
  %v7083 = vpop.xlane.xlu0 %7082
  %7084 = vmax.xlane.f32.xlu0 %v7042
  %v7085 = vpop.xlane.xlu0 %7084
  %7086 = vmax.xlane.f32.xlu0 %v7045
  %v7087 = vpop.xlane.xlu0 %7086
  %7088 = vmax.xlane.f32.xlu0 %v7050
  %v7089 = vpop.xlane.xlu0 %7088
  %7090 = vmax.xlane.f32.xlu0 %v7053
  %v7091 = vpop.xlane.xlu0 %7090
  %7092 = vmax.xlane.f32.xlu0 %v7058
  %v7093 = vpop.xlane.xlu0 %7092
  %7094 = vmax.xlane.f32.xlu0 %v7061
  %v7095 = vpop.xlane.xlu0 %7094
  %v7096 = vsub.f32 %v7002, %v7065
  %v7097 = vsub.f32 %v7005, %v7067
  %v7098 = vsub.f32 %v7010, %v7069
  %v7099 = vsub.f32 %v7013, %v7071
  %v7100 = vsub.f32 %v7018, %v7073
  %v7101 = vsub.f32 %v7021, %v7075
  %v7102 = vsub.f32 %v7026, %v7077
  %v7103 = vsub.f32 %v7029, %v7079
  %v7104 = vsub.f32 %v7034, %v7081
  %v7105 = vsub.f32 %v7037, %v7083
  %v7106 = vsub.f32 %v7042, %v7085
  %v7107 = vsub.f32 %v7045, %v7087
  %v7108 = vsub.f32 %v7050, %v7089
  %v7109 = vsub.f32 %v7053, %v7091
  %v7110 = vsub.f32 %v7058, %v7093
  %v7111 = vsub.f32 %v7061, %v7095
  %v7112 = vmul.f32 %v7096, 1.442695
  %v7113 = vpow.pop %v7112
  %v7114 = vmul.f32 %v7097, 1.442695
  %v7115 = vpow.pop %v7114
  %v7116 = vmul.f32 %v7098, 1.442695
  %v7117 = vpow.pop %v7116
  %v7118 = vmul.f32 %v7099, 1.442695
  %v7119 = vpow.pop %v7118
  %v7120 = vmul.f32 %v7100, 1.442695
  %v7121 = vpow.pop %v7120
  %v7122 = vmul.f32 %v7101, 1.442695
  %v7123 = vpow.pop %v7122
  %v7124 = vmul.f32 %v7102, 1.442695
  %v7125 = vpow.pop %v7124
  %v7126 = vmul.f32 %v7103, 1.442695
  %v7127 = vpow.pop %v7126
  %v7128 = vmul.f32 %v7104, 1.442695
  %v7129 = vpow.pop %v7128
  %v7130 = vmul.f32 %v7105, 1.442695
  %v7131 = vpow.pop %v7130
  %v7132 = vmul.f32 %v7106, 1.442695
  %v7133 = vpow.pop %v7132
  %v7134 = vmul.f32 %v7107, 1.442695
  %v7135 = vpow.pop %v7134
  %v7136 = vmul.f32 %v7108, 1.442695
  %v7137 = vpow.pop %v7136
  %v7138 = vmul.f32 %v7109, 1.442695
  %v7139 = vpow.pop %v7138
  %v7140 = vmul.f32 %v7110, 1.442695
  %v7141 = vpow.pop %v7140
  %v7142 = vmul.f32 %v7111, 1.442695
  %v7143 = vpow.pop %v7142
  %7144 = vadd.xlane.f32.xlu0 %v7113
  %v7145 = vpop.xlane.xlu0 %7144
  %7146 = vadd.xlane.f32.xlu0 %v7115
  %v7147 = vpop.xlane.xlu0 %7146
  %7148 = vadd.xlane.f32.xlu0 %v7117
  %v7149 = vpop.xlane.xlu0 %7148
  %7150 = vadd.xlane.f32.xlu0 %v7119
  %v7151 = vpop.xlane.xlu0 %7150
  %7152 = vadd.xlane.f32.xlu0 %v7121
  %v7153 = vpop.xlane.xlu0 %7152
  %7154 = vadd.xlane.f32.xlu0 %v7123
  %v7155 = vpop.xlane.xlu0 %7154
  %7156 = vadd.xlane.f32.xlu0 %v7125
  %v7157 = vpop.xlane.xlu0 %7156
  %7158 = vadd.xlane.f32.xlu0 %v7127
  %v7159 = vpop.xlane.xlu0 %7158
  %7160 = vadd.xlane.f32.xlu0 %v7129
  %v7161 = vpop.xlane.xlu0 %7160
  %7162 = vadd.xlane.f32.xlu0 %v7131
  %v7163 = vpop.xlane.xlu0 %7162
  %7164 = vadd.xlane.f32.xlu0 %v7133
  %v7165 = vpop.xlane.xlu0 %7164
  %7166 = vadd.xlane.f32.xlu0 %v7135
  %v7167 = vpop.xlane.xlu0 %7166
  %7168 = vadd.xlane.f32.xlu0 %v7137
  %v7169 = vpop.xlane.xlu0 %7168
  %7170 = vadd.xlane.f32.xlu0 %v7139
  %v7171 = vpop.xlane.xlu0 %7170
  %7172 = vadd.xlane.f32.xlu0 %v7141
  %v7173 = vpop.xlane.xlu0 %7172
  %7174 = vadd.xlane.f32.xlu0 %v7143
  %v7175 = vpop.xlane.xlu0 %7174
  %v7176 = vrcp.pop %v7145
  %v7177 = vrcp.pop %v7147
  %v7178 = vrcp.pop %v7149
  %v7179 = vrcp.pop %v7151
  %v7180 = vrcp.pop %v7153
  %v7181 = vrcp.pop %v7155
  %v7182 = vrcp.pop %v7157
  %v7183 = vrcp.pop %v7159
  %v7184 = vrcp.pop %v7161
  %v7185 = vrcp.pop %v7163
  %v7186 = vrcp.pop %v7165
  %v7187 = vrcp.pop %v7167
  %v7188 = vrcp.pop %v7169
  %v7189 = vrcp.pop %v7171
  %v7190 = vrcp.pop %v7173
  %v7191 = vrcp.pop %v7175
  %v7192 = vmul.f32 %v7113, %v7176
  %v7193 = vmul.f32 %v7115, %v7177
  %v7194 = vmul.f32 %v7117, %v7178
  %v7195 = vmul.f32 %v7119, %v7179
  %v7196 = vmul.f32 %v7121, %v7180
  %v7197 = vmul.f32 %v7123, %v7181
  %v7198 = vmul.f32 %v7125, %v7182
  %v7199 = vmul.f32 %v7127, %v7183
  %v7200 = vmul.f32 %v7129, %v7184
  %v7201 = vmul.f32 %v7131, %v7185
  %v7202 = vmul.f32 %v7133, %v7186
  %v7203 = vmul.f32 %v7135, %v7187
  %v7204 = vmul.f32 %v7137, %v7188
  %v7205 = vmul.f32 %v7139, %v7189
  %v7206 = vmul.f32 %v7141, %v7190
  %v7207 = vmul.f32 %v7143, %v7191
  %v7208 = vpack.c.bf16 %v7193, %v7192
  %v7209 = vpack.c.bf16 %v7195, %v7194
  %v7210 = vpack.c.bf16 %v7197, %v7196
  %v7211 = vpack.c.bf16 %v7199, %v7198
  %v7212 = vpack.c.bf16 %v7201, %v7200
  %v7213 = vpack.c.bf16 %v7203, %v7202
  %v7214 = vpack.c.bf16 %v7205, %v7204
  %v7215 = vpack.c.bf16 %v7207, %v7206
  %7224 = vrot.lane.b32.xlu0 %v6863, 64
  %v7225 = vpop.permute.xlu0 %7224
  %7226 = vrot.lane.b32.xlu0 %v6864, 64
  %v7227 = vpop.permute.xlu0 %7226
  %7228 = vrot.lane.b32.xlu0 %v6865, 64
  %v7229 = vpop.permute.xlu0 %7228
  %7230 = vrot.lane.b32.xlu0 %v6866, 64
  %v7231 = vpop.permute.xlu0 %7230
  %7232 = vrot.lane.b32.xlu0 %v6867, 64
  %v7233 = vpop.permute.xlu0 %7232
  %7234 = vrot.lane.b32.xlu0 %v6868, 64
  %v7235 = vpop.permute.xlu0 %7234
  %7236 = vrot.lane.b32.xlu0 %v6869, 64
  %v7237 = vpop.permute.xlu0 %7236
  %7238 = vrot.lane.b32.xlu0 %v6870, 64
  %v7239 = vpop.permute.xlu0 %7238
  %7248 = vmatprep.subr.bf16.mxu0 0
  %7249 = vmatpush1.bf16.msra.mxu0 %v7225
  %7250 = vmatprep.subr.bf16.mxu0 0
  %7251 = vmatpush1.bf16.msra.mxu0 %v7227
  %7252 = vmatprep.subr.bf16.mxu0 0
  %7253 = vmatpush1.bf16.msra.mxu0 %v7229
  %7254 = vmatprep.subr.bf16.mxu0 0
  %7255 = vmatpush1.bf16.msra.mxu0 %v7231
  %7256 = vmatprep.subr.bf16.mxu0 0
  %7257 = vmatpush1.bf16.msra.mxu0 %v7233
  %7258 = vmatprep.subr.bf16.mxu0 0
  %7259 = vmatpush1.bf16.msra.mxu0 %v7235
  %7260 = vmatprep.subr.bf16.mxu0 0
  %7261 = vmatpush1.bf16.msra.mxu0 %v7237
  %7262 = vmatprep.subr.bf16.mxu0 0
  %7263 = vmatpush1.bf16.msra.mxu0 %v7239
  %7264 = vmatprep.subr.bf16.mxu0 0
  %7265 = vmatpush1.bf16.msra.mxu0 0
  %7266 = vmatprep.subr.bf16.mxu0 0
  %7267 = vmatpush1.bf16.msra.mxu0 0
  %7268 = vmatprep.subr.bf16.mxu0 0
  %7269 = vmatpush1.bf16.msra.mxu0 0
  %7270 = vmatprep.subr.bf16.mxu0 0
  %7271 = vmatpush1.bf16.msra.mxu0 0
  %7272 = vmatprep.subr.bf16.mxu0 0
  %7273 = vmatpush1.bf16.msra.mxu0 0
  %7274 = vmatprep.subr.bf16.mxu0 0
  %7275 = vmatpush1.bf16.msra.mxu0 0
  %7276 = vmatprep.subr.bf16.mxu0 0
  %7277 = vmatpush1.bf16.msra.mxu0 0
  %7278 = vmatprep.subr.bf16.mxu0 0
  %7279 = vmatpush1.bf16.msra.mxu0 0
  %7280 = vmatprep.mubr.bf16.mxu0 0
  %7281 = vmatmul.mubr.bf16.gmra.mrb[0].mxu0 %v7208
  %v7282 = vpop.f32.mrb[0].mxu0
  %v7283 = vadd.f32 0.0, %v7282
  %v7284 = vpop.f32.mrb[0].mxu0
  %v7285 = vpop.f32.mrb[0].mxu0
  %v7286 = vadd.f32 0.0, %v7285
  %v7287 = vpop.f32.mrb[0].mxu0
  %7288 = vmatprep.mubr.bf16.mxu0 0
  %7289 = vmatmul.mubr.bf16.gmra.mrb[0].mxu0 %v7209
  %v7290 = vpop.f32.mrb[0].mxu0
  %v7291 = vadd.f32 0.0, %v7290
  %v7292 = vpop.f32.mrb[0].mxu0
  %v7293 = vpop.f32.mrb[0].mxu0
  %v7294 = vadd.f32 0.0, %v7293
  %v7295 = vpop.f32.mrb[0].mxu0
  %7296 = vmatprep.mubr.bf16.mxu0 0
  %7297 = vmatmul.mubr.bf16.gmra.mrb[0].mxu0 %v7210
  %v7298 = vpop.f32.mrb[0].mxu0
  %v7299 = vadd.f32 0.0, %v7298
  %v7300 = vpop.f32.mrb[0].mxu0
  %v7301 = vpop.f32.mrb[0].mxu0
  %v7302 = vadd.f32 0.0, %v7301
  %v7303 = vpop.f32.mrb[0].mxu0
  %7304 = vmatprep.mubr.bf16.mxu0 0
  %7305 = vmatmul.mubr.bf16.gmra.mrb[0].mxu0 %v7211
  %v7306 = vpop.f32.mrb[0].mxu0
  %v7307 = vadd.f32 0.0, %v7306
  %v7308 = vpop.f32.mrb[0].mxu0
  %v7309 = vpop.f32.mrb[0].mxu0
  %v7310 = vadd.f32 0.0, %v7309
  %v7311 = vpop.f32.mrb[0].mxu0
  %7312 = vmatprep.mubr.bf16.mxu0 0
  %7313 = vmatmul.mubr.bf16.gmra.mrb[0].mxu0 %v7212
  %v7314 = vpop.f32.mrb[0].mxu0
  %v7315 = vadd.f32 0.0, %v7314
  %v7316 = vpop.f32.mrb[0].mxu0
  %v7317 = vpop.f32.mrb[0].mxu0
  %v7318 = vadd.f32 0.0, %v7317
  %v7319 = vpop.f32.mrb[0].mxu0
  %7320 = vmatprep.mubr.bf16.mxu0 0
  %7321 = vmatmul.mubr.bf16.gmra.mrb[0].mxu0 %v7213
  %v7322 = vpop.f32.mrb[0].mxu0
  %v7323 = vadd.f32 0.0, %v7322
  %v7324 = vpop.f32.mrb[0].mxu0
  %v7325 = vpop.f32.mrb[0].mxu0
  %v7326 = vadd.f32 0.0, %v7325
  %v7327 = vpop.f32.mrb[0].mxu0
  %7328 = vmatprep.mubr.bf16.mxu0 0
  %7329 = vmatmul.mubr.bf16.gmra.mrb[0].mxu0 %v7214
  %v7330 = vpop.f32.mrb[0].mxu0
  %v7331 = vadd.f32 0.0, %v7330
  %v7332 = vpop.f32.mrb[0].mxu0
  %v7333 = vpop.f32.mrb[0].mxu0
  %v7334 = vadd.f32 0.0, %v7333
  %v7335 = vpop.f32.mrb[0].mxu0
  %7336 = vmatprep.mubr.bf16.mxu0 0
  %7337 = vmatmul.mubr.bf16.gmra.mrb[0].mxu0 %v7215
  %v7338 = vpop.f32.mrb[0].mxu0
  %v7339 = vadd.f32 0.0, %v7338
  %v7340 = vpop.f32.mrb[0].mxu0
  %v7341 = vpop.f32.mrb[0].mxu0
  %v7342 = vadd.f32 0.0, %v7341
  %v7343 = vpop.f32.mrb[0].mxu0
  %7344 = vdwg.mxu0
  %v7345 = vpack.c.bf16 %v7286, %v7283
  %v7346 = vpack.c.bf16 %v7294, %v7291
  %v7347 = vpack.c.bf16 %v7302, %v7299
  %v7348 = vpack.c.bf16 %v7310, %v7307
  %v7349 = vpack.c.bf16 %v7318, %v7315
  %v7350 = vpack.c.bf16 %v7326, %v7323
  %v7351 = vpack.c.bf16 %v7334, %v7331
  %v7352 = vpack.c.bf16 %v7342, %v7339
  %7361 = vrot.lane.b32.xlu0 %v7345, 64
  %v7362 = vpop.permute.xlu0 %7361
  %7363 = vrot.lane.b32.xlu0 %v7346, 64
  %v7364 = vpop.permute.xlu0 %7363
  %7365 = vrot.lane.b32.xlu0 %v7347, 64
  %v7366 = vpop.permute.xlu0 %7365
  %7367 = vrot.lane.b32.xlu0 %v7348, 64
  %v7368 = vpop.permute.xlu0 %7367
  %7369 = vrot.lane.b32.xlu0 %v7349, 64
  %v7370 = vpop.permute.xlu0 %7369
  %7371 = vrot.lane.b32.xlu0 %v7350, 64
  %v7372 = vpop.permute.xlu0 %7371
  %7373 = vrot.lane.b32.xlu0 %v7351, 64
  %v7374 = vpop.permute.xlu0 %7373
  %7375 = vrot.lane.b32.xlu0 %v7352, 64
  %v7376 = vpop.permute.xlu0 %7375
  %7385 = vst.msk [vmem:[%s6838] sm:$0xff] %vm3460, %v7362
  %7386 = vst.msk [vmem:[%s6838 + $0x20] sm:$0xff] %vm3460, %v7364
  %7387 = vst.msk [vmem:[%s6838 + $0x40] sm:$0xff] %vm3460, %v7366
  %7388 = vst.msk [vmem:[%s6838 + $0x60] sm:$0xff] %vm3460, %v7368
  %7389 = vst.msk [vmem:[%s6838 + $0x80] sm:$0xff] %vm3460, %v7370
  %7390 = vst.msk [vmem:[%s6838 + $0xa0] sm:$0xff] %vm3460, %v7372
  %7391 = vst.msk [vmem:[%s6838 + $0xc0] sm:$0xff] %vm3460, %v7374
  %7392 = vst.msk [vmem:[%s6838 + $0xe0] sm:$0xff] %vm3460, %v7376
  %v7393 = vld [vmem:[%s6409 + $0x8] sm:$0xff]
  %v7394 = vld [vmem:[%s6409 + $0x28] sm:$0xff]
  %v7395 = vld [vmem:[%s6409 + $0x48] sm:$0xff]
  %v7396 = vld [vmem:[%s6409 + $0x68] sm:$0xff]
  %v7397 = vld [vmem:[%s6409 + $0x88] sm:$0xff]
  %v7398 = vld [vmem:[%s6409 + $0xa8] sm:$0xff]
  %v7399 = vld [vmem:[%s6409 + $0xc8] sm:$0xff]
  %v7400 = vld [vmem:[%s6409 + $0xe8] sm:$0xff]
  %v7401 = vld [vmem:[%s6418 + $0x8] sm:$0xff]
  %v7402 = vld [vmem:[%s6418 + $0x28] sm:$0xff]
  %v7403 = vld [vmem:[%s6418 + $0x48] sm:$0xff]
  %v7404 = vld [vmem:[%s6418 + $0x68] sm:$0xff]
  %v7405 = vld [vmem:[%s6418 + $0x88] sm:$0xff]
  %v7406 = vld [vmem:[%s6418 + $0xa8] sm:$0xff]
  %v7407 = vld [vmem:[%s6418 + $0xc8] sm:$0xff]
  %v7408 = vld [vmem:[%s6418 + $0xe8] sm:$0xff]
  %v7409 = vld [vmem:[%s6427 + $0x8] sm:$0xff]
  %v7410 = vld [vmem:[%s6427 + $0x28] sm:$0xff]
  %v7411 = vld [vmem:[%s6427 + $0x48] sm:$0xff]
  %v7412 = vld [vmem:[%s6427 + $0x68] sm:$0xff]
  %v7413 = vld [vmem:[%s6427 + $0x88] sm:$0xff]
  %v7414 = vld [vmem:[%s6427 + $0xa8] sm:$0xff]
  %v7415 = vld [vmem:[%s6427 + $0xc8] sm:$0xff]
  %v7416 = vld [vmem:[%s6427 + $0xe8] sm:$0xff]
  %v7418 = vsel %vm305, %v7393, 0
  %v7421 = vsel %vm305, %v7394, 0
  %v7424 = vsel %vm305, %v7395, 0
  %v7427 = vsel %vm305, %v7396, 0
  %v7430 = vsel %vm305, %v7397, 0
  %v7433 = vsel %vm305, %v7398, 0
  %v7436 = vsel %vm305, %v7399, 0
  %v7439 = vsel %vm305, %v7400, 0
  %v7442 = vsel %vm305, %v7401, 0
  %v7445 = vsel %vm305, %v7402, 0
  %v7448 = vsel %vm305, %v7403, 0
  %v7451 = vsel %vm305, %v7404, 0
  %v7454 = vsel %vm305, %v7405, 0
  %v7457 = vsel %vm305, %v7406, 0
  %v7460 = vsel %vm305, %v7407, 0
  %v7463 = vsel %vm305, %v7408, 0
  %7465 = vmatprep.subr.bf16.mxu0 0
  %7466 = vmatpush1.bf16.xpose.msra.mxu0 %v7442
  %7467 = vmatprep.subr.bf16.mxu0 0
  %7468 = vmatpush1.bf16.xpose.msra.mxu0 %v7445
  %7469 = vmatprep.subr.bf16.mxu0 0
  %7470 = vmatpush1.bf16.xpose.msra.mxu0 %v7448
  %7471 = vmatprep.subr.bf16.mxu0 0
  %7472 = vmatpush1.bf16.xpose.msra.mxu0 %v7451
  %7473 = vmatprep.subr.bf16.mxu0 0
  %7474 = vmatpush1.bf16.xpose.msra.mxu0 %v7454
  %7475 = vmatprep.subr.bf16.mxu0 0
  %7476 = vmatpush1.bf16.xpose.msra.mxu0 %v7457
  %7477 = vmatprep.subr.bf16.mxu0 0
  %7478 = vmatpush1.bf16.xpose.msra.mxu0 %v7460
  %7479 = vmatprep.subr.bf16.mxu0 0
  %7480 = vmatpush1.bf16.xpose.msra.mxu0 %v7463
  %7481 = vmatprep.subr.bf16.mxu0 0
  %7482 = vmatpush1.bf16.xpose.msra.mxu0 0
  %7483 = vmatprep.subr.bf16.mxu0 0
  %7484 = vmatpush1.bf16.xpose.msra.mxu0 0
  %7485 = vmatprep.subr.bf16.mxu0 0
  %7486 = vmatpush1.bf16.xpose.msra.mxu0 0
  %7487 = vmatprep.subr.bf16.mxu0 0
  %7488 = vmatpush1.bf16.xpose.msra.mxu0 0
  %7489 = vmatprep.subr.bf16.mxu0 0
  %7490 = vmatpush1.bf16.xpose.msra.mxu0 0
  %7491 = vmatprep.subr.bf16.mxu0 0
  %7492 = vmatpush1.bf16.xpose.msra.mxu0 0
  %7493 = vmatprep.subr.bf16.mxu0 0
  %7494 = vmatpush1.bf16.xpose.msra.mxu0 0
  %7495 = vmatprep.subr.bf16.mxu0 0
  %7496 = vmatpush1.bf16.xpose.msra.mxu0 0
  %7497 = vmatprep.mubr.bf16.mxu0 0
  %7498 = vmatmul.mubr.bf16.gmra.mrb[0].mxu0 %v7418
  %v7499 = vpop.f32.mrb[0].mxu0
  %v7500 = vadd.f32 %v2472, %v7499
  %v7501 = vpop.f32.mrb[0].mxu0
  %v7502 = vpop.f32.mrb[0].mxu0
  %v7503 = vadd.f32 %v2473, %v7502
  %v7504 = vpop.f32.mrb[0].mxu0
  %7505 = vmatprep.mubr.bf16.mxu0 0
  %7506 = vmatmul.mubr.bf16.gmra.mrb[0].mxu0 %v7421
  %v7507 = vpop.f32.mrb[0].mxu0
  %v7508 = vadd.f32 %v2474, %v7507
  %v7509 = vpop.f32.mrb[0].mxu0
  %v7510 = vpop.f32.mrb[0].mxu0
  %v7511 = vadd.f32 %v2475, %v7510
  %v7512 = vpop.f32.mrb[0].mxu0
  %7513 = vmatprep.mubr.bf16.mxu0 0
  %7514 = vmatmul.mubr.bf16.gmra.mrb[0].mxu0 %v7424
  %v7515 = vpop.f32.mrb[0].mxu0
  %v7516 = vadd.f32 %v2476, %v7515
  %v7517 = vpop.f32.mrb[0].mxu0
  %v7518 = vpop.f32.mrb[0].mxu0
  %v7519 = vadd.f32 %v2477, %v7518
  %v7520 = vpop.f32.mrb[0].mxu0
  %7521 = vmatprep.mubr.bf16.mxu0 0
  %7522 = vmatmul.mubr.bf16.gmra.mrb[0].mxu0 %v7427
  %v7523 = vpop.f32.mrb[0].mxu0
  %v7524 = vadd.f32 %v2478, %v7523
  %v7525 = vpop.f32.mrb[0].mxu0
  %v7526 = vpop.f32.mrb[0].mxu0
  %v7527 = vadd.f32 %v2479, %v7526
  %v7528 = vpop.f32.mrb[0].mxu0
  %7529 = vmatprep.mubr.bf16.mxu0 0
  %7530 = vmatmul.mubr.bf16.gmra.mrb[0].mxu0 %v7430
  %v7531 = vpop.f32.mrb[0].mxu0
  %v7532 = vadd.f32 %v2480, %v7531
  %v7533 = vpop.f32.mrb[0].mxu0
  %v7534 = vpop.f32.mrb[0].mxu0
  %v7535 = vadd.f32 %v2481, %v7534
  %v7536 = vpop.f32.mrb[0].mxu0
  %7537 = vmatprep.mubr.bf16.mxu0 0
  %7538 = vmatmul.mubr.bf16.gmra.mrb[0].mxu0 %v7433
  %v7539 = vpop.f32.mrb[0].mxu0
  %v7540 = vadd.f32 %v2482, %v7539
  %v7541 = vpop.f32.mrb[0].mxu0
  %v7542 = vpop.f32.mrb[0].mxu0
  %v7543 = vadd.f32 %v2483, %v7542
  %v7544 = vpop.f32.mrb[0].mxu0
  %7545 = vmatprep.mubr.bf16.mxu0 0
  %7546 = vmatmul.mubr.bf16.gmra.mrb[0].mxu0 %v7436
  %v7547 = vpop.f32.mrb[0].mxu0
  %v7548 = vadd.f32 %v2484, %v7547
  %v7549 = vpop.f32.mrb[0].mxu0
  %v7550 = vpop.f32.mrb[0].mxu0
  %v7551 = vadd.f32 %v2485, %v7550
  %v7552 = vpop.f32.mrb[0].mxu0
  %7553 = vmatprep.mubr.bf16.mxu0 0
  %7554 = vmatmul.mubr.bf16.gmra.mrb[0].mxu0 %v7439
  %v7555 = vpop.f32.mrb[0].mxu0
  %v7556 = vadd.f32 %v2486, %v7555
  %v7557 = vpop.f32.mrb[0].mxu0
  %v7558 = vpop.f32.mrb[0].mxu0
  %v7559 = vadd.f32 %v2487, %v7558
  %v7560 = vpop.f32.mrb[0].mxu0
  %7561 = vdwg.mxu0
  %7562 = vmax.xlane.f32.xlu0 %v7500
  %v7563 = vpop.xlane.xlu0 %7562
  %7564 = vmax.xlane.f32.xlu0 %v7503
  %v7565 = vpop.xlane.xlu0 %7564
  %7566 = vmax.xlane.f32.xlu0 %v7508
  %v7567 = vpop.xlane.xlu0 %7566
  %7568 = vmax.xlane.f32.xlu0 %v7511
  %v7569 = vpop.xlane.xlu0 %7568
  %7570 = vmax.xlane.f32.xlu0 %v7516
  %v7571 = vpop.xlane.xlu0 %7570
  %7572 = vmax.xlane.f32.xlu0 %v7519
  %v7573 = vpop.xlane.xlu0 %7572
  %7574 = vmax.xlane.f32.xlu0 %v7524
  %v7575 = vpop.xlane.xlu0 %7574
  %7576 = vmax.xlane.f32.xlu0 %v7527
  %v7577 = vpop.xlane.xlu0 %7576
  %7578 = vmax.xlane.f32.xlu0 %v7532
  %v7579 = vpop.xlane.xlu0 %7578
  %7580 = vmax.xlane.f32.xlu0 %v7535
  %v7581 = vpop.xlane.xlu0 %7580
  %7582 = vmax.xlane.f32.xlu0 %v7540
  %v7583 = vpop.xlane.xlu0 %7582
  %7584 = vmax.xlane.f32.xlu0 %v7543
  %v7585 = vpop.xlane.xlu0 %7584
  %7586 = vmax.xlane.f32.xlu0 %v7548
  %v7587 = vpop.xlane.xlu0 %7586
  %7588 = vmax.xlane.f32.xlu0 %v7551
  %v7589 = vpop.xlane.xlu0 %7588
  %7590 = vmax.xlane.f32.xlu0 %v7556
  %v7591 = vpop.xlane.xlu0 %7590
  %7592 = vmax.xlane.f32.xlu0 %v7559
  %v7593 = vpop.xlane.xlu0 %7592
  %v7594 = vsub.f32 %v7500, %v7563
  %v7595 = vsub.f32 %v7503, %v7565
  %v7596 = vsub.f32 %v7508, %v7567
  %v7597 = vsub.f32 %v7511, %v7569
  %v7598 = vsub.f32 %v7516, %v7571
  %v7599 = vsub.f32 %v7519, %v7573
  %v7600 = vsub.f32 %v7524, %v7575
  %v7601 = vsub.f32 %v7527, %v7577
  %v7602 = vsub.f32 %v7532, %v7579
  %v7603 = vsub.f32 %v7535, %v7581
  %v7604 = vsub.f32 %v7540, %v7583
  %v7605 = vsub.f32 %v7543, %v7585
  %v7606 = vsub.f32 %v7548, %v7587
  %v7607 = vsub.f32 %v7551, %v7589
  %v7608 = vsub.f32 %v7556, %v7591
  %v7609 = vsub.f32 %v7559, %v7593
  %v7610 = vmul.f32 %v7594, 1.442695
  %v7611 = vpow.pop %v7610
  %v7612 = vmul.f32 %v7595, 1.442695
  %v7613 = vpow.pop %v7612
  %v7614 = vmul.f32 %v7596, 1.442695
  %v7615 = vpow.pop %v7614
  %v7616 = vmul.f32 %v7597, 1.442695
  %v7617 = vpow.pop %v7616
  %v7618 = vmul.f32 %v7598, 1.442695
  %v7619 = vpow.pop %v7618
  %v7620 = vmul.f32 %v7599, 1.442695
  %v7621 = vpow.pop %v7620
  %v7622 = vmul.f32 %v7600, 1.442695
  %v7623 = vpow.pop %v7622
  %v7624 = vmul.f32 %v7601, 1.442695
  %v7625 = vpow.pop %v7624
  %v7626 = vmul.f32 %v7602, 1.442695
  %v7627 = vpow.pop %v7626
  %v7628 = vmul.f32 %v7603, 1.442695
  %v7629 = vpow.pop %v7628
  %v7630 = vmul.f32 %v7604, 1.442695
  %v7631 = vpow.pop %v7630
  %v7632 = vmul.f32 %v7605, 1.442695
  %v7633 = vpow.pop %v7632
  %v7634 = vmul.f32 %v7606, 1.442695
  %v7635 = vpow.pop %v7634
  %v7636 = vmul.f32 %v7607, 1.442695
  %v7637 = vpow.pop %v7636
  %v7638 = vmul.f32 %v7608, 1.442695
  %v7639 = vpow.pop %v7638
  %v7640 = vmul.f32 %v7609, 1.442695
  %v7641 = vpow.pop %v7640
  %7642 = vadd.xlane.f32.xlu0 %v7611
  %v7643 = vpop.xlane.xlu0 %7642
  %7644 = vadd.xlane.f32.xlu0 %v7613
  %v7645 = vpop.xlane.xlu0 %7644
  %7646 = vadd.xlane.f32.xlu0 %v7615
  %v7647 = vpop.xlane.xlu0 %7646
  %7648 = vadd.xlane.f32.xlu0 %v7617
  %v7649 = vpop.xlane.xlu0 %7648
  %7650 = vadd.xlane.f32.xlu0 %v7619
  %v7651 = vpop.xlane.xlu0 %7650
  %7652 = vadd.xlane.f32.xlu0 %v7621
  %v7653 = vpop.xlane.xlu0 %7652
  %7654 = vadd.xlane.f32.xlu0 %v7623
  %v7655 = vpop.xlane.xlu0 %7654
  %7656 = vadd.xlane.f32.xlu0 %v7625
  %v7657 = vpop.xlane.xlu0 %7656
  %7658 = vadd.xlane.f32.xlu0 %v7627
  %v7659 = vpop.xlane.xlu0 %7658
  %7660 = vadd.xlane.f32.xlu0 %v7629
  %v7661 = vpop.xlane.xlu0 %7660
  %7662 = vadd.xlane.f32.xlu0 %v7631
  %v7663 = vpop.xlane.xlu0 %7662
  %7664 = vadd.xlane.f32.xlu0 %v7633
  %v7665 = vpop.xlane.xlu0 %7664
  %7666 = vadd.xlane.f32.xlu0 %v7635
  %v7667 = vpop.xlane.xlu0 %7666
  %7668 = vadd.xlane.f32.xlu0 %v7637
  %v7669 = vpop.xlane.xlu0 %7668
  %7670 = vadd.xlane.f32.xlu0 %v7639
  %v7671 = vpop.xlane.xlu0 %7670
  %7672 = vadd.xlane.f32.xlu0 %v7641
  %v7673 = vpop.xlane.xlu0 %7672
  %v7674 = vrcp.pop %v7643
  %v7675 = vrcp.pop %v7645
  %v7676 = vrcp.pop %v7647
  %v7677 = vrcp.pop %v7649
  %v7678 = vrcp.pop %v7651
  %v7679 = vrcp.pop %v7653
  %v7680 = vrcp.pop %v7655
  %v7681 = vrcp.pop %v7657
  %v7682 = vrcp.pop %v7659
  %v7683 = vrcp.pop %v7661
  %v7684 = vrcp.pop %v7663
  %v7685 = vrcp.pop %v7665
  %v7686 = vrcp.pop %v7667
  %v7687 = vrcp.pop %v7669
  %v7688 = vrcp.pop %v7671
  %v7689 = vrcp.pop %v7673
  %v7690 = vmul.f32 %v7611, %v7674
  %v7691 = vmul.f32 %v7613, %v7675
  %v7692 = vmul.f32 %v7615, %v7676
  %v7693 = vmul.f32 %v7617, %v7677
  %v7694 = vmul.f32 %v7619, %v7678
  %v7695 = vmul.f32 %v7621, %v7679
  %v7696 = vmul.f32 %v7623, %v7680
  %v7697 = vmul.f32 %v7625, %v7681
  %v7698 = vmul.f32 %v7627, %v7682
  %v7699 = vmul.f32 %v7629, %v7683
  %v7700 = vmul.f32 %v7631, %v7684
  %v7701 = vmul.f32 %v7633, %v7685
  %v7702 = vmul.f32 %v7635, %v7686
  %v7703 = vmul.f32 %v7637, %v7687
  %v7704 = vmul.f32 %v7639, %v7688
  %v7705 = vmul.f32 %v7641, %v7689
  %v7706 = vpack.c.bf16 %v7691, %v7690
  %v7707 = vpack.c.bf16 %v7693, %v7692
  %v7708 = vpack.c.bf16 %v7695, %v7694
  %v7709 = vpack.c.bf16 %v7697, %v7696
  %v7710 = vpack.c.bf16 %v7699, %v7698
  %v7711 = vpack.c.bf16 %v7701, %v7700
  %v7712 = vpack.c.bf16 %v7703, %v7702
  %v7713 = vpack.c.bf16 %v7705, %v7704
  %7714 = vmatprep.subr.bf16.mxu0 0
  %7715 = vmatpush1.bf16.msra.mxu0 %v7409
  %7716 = vmatprep.subr.bf16.mxu0 0
  %7717 = vmatpush1.bf16.msra.mxu0 %v7410
  %7718 = vmatprep.subr.bf16.mxu0 0
  %7719 = vmatpush1.bf16.msra.mxu0 %v7411
  %7720 = vmatprep.subr.bf16.mxu0 0
  %7721 = vmatpush1.bf16.msra.mxu0 %v7412
  %7722 = vmatprep.subr.bf16.mxu0 0
  %7723 = vmatpush1.bf16.msra.mxu0 %v7413
  %7724 = vmatprep.subr.bf16.mxu0 0
  %7725 = vmatpush1.bf16.msra.mxu0 %v7414
  %7726 = vmatprep.subr.bf16.mxu0 0
  %7727 = vmatpush1.bf16.msra.mxu0 %v7415
  %7728 = vmatprep.subr.bf16.mxu0 0
  %7729 = vmatpush1.bf16.msra.mxu0 %v7416
  %7730 = vmatprep.subr.bf16.mxu0 0
  %7731 = vmatpush1.bf16.msra.mxu0 0
  %7732 = vmatprep.subr.bf16.mxu0 0
  %7733 = vmatpush1.bf16.msra.mxu0 0
  %7734 = vmatprep.subr.bf16.mxu0 0
  %7735 = vmatpush1.bf16.msra.mxu0 0
  %7736 = vmatprep.subr.bf16.mxu0 0
  %7737 = vmatpush1.bf16.msra.mxu0 0
  %7738 = vmatprep.subr.bf16.mxu0 0
  %7739 = vmatpush1.bf16.msra.mxu0 0
  %7740 = vmatprep.subr.bf16.mxu0 0
  %7741 = vmatpush1.bf16.msra.mxu0 0
  %7742 = vmatprep.subr.bf16.mxu0 0
  %7743 = vmatpush1.bf16.msra.mxu0 0
  %7744 = vmatprep.subr.bf16.mxu0 0
  %7745 = vmatpush1.bf16.msra.mxu0 0
  %7746 = vmatprep.mubr.bf16.mxu0 0
  %7747 = vmatmul.mubr.bf16.gmra.mrb[0].mxu0 %v7706
  %v7748 = vpop.f32.mrb[0].mxu0
  %v7749 = vadd.f32 0.0, %v7748
  %v7750 = vpop.f32.mrb[0].mxu0
  %v7751 = vpop.f32.mrb[0].mxu0
  %v7752 = vadd.f32 0.0, %v7751
  %v7753 = vpop.f32.mrb[0].mxu0
  %7754 = vmatprep.mubr.bf16.mxu0 0
  %7755 = vmatmul.mubr.bf16.gmra.mrb[0].mxu0 %v7707
  %v7756 = vpop.f32.mrb[0].mxu0
  %v7757 = vadd.f32 0.0, %v7756
  %v7758 = vpop.f32.mrb[0].mxu0
  %v7759 = vpop.f32.mrb[0].mxu0
  %v7760 = vadd.f32 0.0, %v7759
  %v7761 = vpop.f32.mrb[0].mxu0
  %7762 = vmatprep.mubr.bf16.mxu0 0
  %7763 = vmatmul.mubr.bf16.gmra.mrb[0].mxu0 %v7708
  %v7764 = vpop.f32.mrb[0].mxu0
  %v7765 = vadd.f32 0.0, %v7764
  %v7766 = vpop.f32.mrb[0].mxu0
  %v7767 = vpop.f32.mrb[0].mxu0
  %v7768 = vadd.f32 0.0, %v7767
  %v7769 = vpop.f32.mrb[0].mxu0
  %7770 = vmatprep.mubr.bf16.mxu0 0
  %7771 = vmatmul.mubr.bf16.gmra.mrb[0].mxu0 %v7709
  %v7772 = vpop.f32.mrb[0].mxu0
  %v7773 = vadd.f32 0.0, %v7772
  %v7774 = vpop.f32.mrb[0].mxu0
  %v7775 = vpop.f32.mrb[0].mxu0
  %v7776 = vadd.f32 0.0, %v7775
  %v7777 = vpop.f32.mrb[0].mxu0
  %7778 = vmatprep.mubr.bf16.mxu0 0
  %7779 = vmatmul.mubr.bf16.gmra.mrb[0].mxu0 %v7710
  %v7780 = vpop.f32.mrb[0].mxu0
  %v7781 = vadd.f32 0.0, %v7780
  %v7782 = vpop.f32.mrb[0].mxu0
  %v7783 = vpop.f32.mrb[0].mxu0
  %v7784 = vadd.f32 0.0, %v7783
  %v7785 = vpop.f32.mrb[0].mxu0
  %7786 = vmatprep.mubr.bf16.mxu0 0
  %7787 = vmatmul.mubr.bf16.gmra.mrb[0].mxu0 %v7711
  %v7788 = vpop.f32.mrb[0].mxu0
  %v7789 = vadd.f32 0.0, %v7788
  %v7790 = vpop.f32.mrb[0].mxu0
  %v7791 = vpop.f32.mrb[0].mxu0
  %v7792 = vadd.f32 0.0, %v7791
  %v7793 = vpop.f32.mrb[0].mxu0
  %7794 = vmatprep.mubr.bf16.mxu0 0
  %7795 = vmatmul.mubr.bf16.gmra.mrb[0].mxu0 %v7712
  %v7796 = vpop.f32.mrb[0].mxu0
  %v7797 = vadd.f32 0.0, %v7796
  %v7798 = vpop.f32.mrb[0].mxu0
  %v7799 = vpop.f32.mrb[0].mxu0
  %v7800 = vadd.f32 0.0, %v7799
  %v7801 = vpop.f32.mrb[0].mxu0
  %7802 = vmatprep.mubr.bf16.mxu0 0
  %7803 = vmatmul.mubr.bf16.gmra.mrb[0].mxu0 %v7713
  %v7804 = vpop.f32.mrb[0].mxu0
  %v7805 = vadd.f32 0.0, %v7804
  %v7806 = vpop.f32.mrb[0].mxu0
  %v7807 = vpop.f32.mrb[0].mxu0
  %v7808 = vadd.f32 0.0, %v7807
  %v7809 = vpop.f32.mrb[0].mxu0
  %7810 = vdwg.mxu0
  %v7811 = vpack.c.bf16 %v7752, %v7749
  %v7812 = vpack.c.bf16 %v7760, %v7757
  %v7813 = vpack.c.bf16 %v7768, %v7765
  %v7814 = vpack.c.bf16 %v7776, %v7773
  %v7815 = vpack.c.bf16 %v7784, %v7781
  %v7816 = vpack.c.bf16 %v7792, %v7789
  %v7817 = vpack.c.bf16 %v7800, %v7797
  %v7818 = vpack.c.bf16 %v7808, %v7805
  %7819 = vst.msk [vmem:[%s6838 + $0x8] sm:$0xff] %vm305, %v7811
  %7820 = vst.msk [vmem:[%s6838 + $0x28] sm:$0xff] %vm305, %v7812
  %7821 = vst.msk [vmem:[%s6838 + $0x48] sm:$0xff] %vm305, %v7813
  %7822 = vst.msk [vmem:[%s6838 + $0x68] sm:$0xff] %vm305, %v7814
  %7823 = vst.msk [vmem:[%s6838 + $0x88] sm:$0xff] %vm305, %v7815
  %7824 = vst.msk [vmem:[%s6838 + $0xa8] sm:$0xff] %vm305, %v7816
  %7825 = vst.msk [vmem:[%s6838 + $0xc8] sm:$0xff] %vm305, %v7817
  %7826 = vst.msk [vmem:[%s6838 + $0xe8] sm:$0xff] %vm305, %v7818
  %v7827 = vld [vmem:[%s6409 + $0x8] sm:$0xff]
  %v7828 = vld [vmem:[%s6409 + $0x28] sm:$0xff]
  %v7829 = vld [vmem:[%s6409 + $0x48] sm:$0xff]
  %v7830 = vld [vmem:[%s6409 + $0x68] sm:$0xff]
  %v7831 = vld [vmem:[%s6409 + $0x88] sm:$0xff]
  %v7832 = vld [vmem:[%s6409 + $0xa8] sm:$0xff]
  %v7833 = vld [vmem:[%s6409 + $0xc8] sm:$0xff]
  %v7834 = vld [vmem:[%s6409 + $0xe8] sm:$0xff]
  %v7835 = vld [vmem:[%s6418 + $0x8] sm:$0xff]
  %v7836 = vld [vmem:[%s6418 + $0x28] sm:$0xff]
  %v7837 = vld [vmem:[%s6418 + $0x48] sm:$0xff]
  %v7838 = vld [vmem:[%s6418 + $0x68] sm:$0xff]
  %v7839 = vld [vmem:[%s6418 + $0x88] sm:$0xff]
  %v7840 = vld [vmem:[%s6418 + $0xa8] sm:$0xff]
  %v7841 = vld [vmem:[%s6418 + $0xc8] sm:$0xff]
  %v7842 = vld [vmem:[%s6418 + $0xe8] sm:$0xff]
  %v7843 = vld [vmem:[%s6427 + $0x8] sm:$0xff]
  %v7844 = vld [vmem:[%s6427 + $0x28] sm:$0xff]
  %v7845 = vld [vmem:[%s6427 + $0x48] sm:$0xff]
  %v7846 = vld [vmem:[%s6427 + $0x68] sm:$0xff]
  %v7847 = vld [vmem:[%s6427 + $0x88] sm:$0xff]
  %v7848 = vld [vmem:[%s6427 + $0xa8] sm:$0xff]
  %v7849 = vld [vmem:[%s6427 + $0xc8] sm:$0xff]
  %v7850 = vld [vmem:[%s6427 + $0xe8] sm:$0xff]
  %7859 = vrot.lane.b32.xlu0 %v7827, 64
  %v7860 = vpop.permute.xlu0 %7859
  %7861 = vrot.lane.b32.xlu0 %v7828, 64
  %v7862 = vpop.permute.xlu0 %7861
  %7863 = vrot.lane.b32.xlu0 %v7829, 64
  %v7864 = vpop.permute.xlu0 %7863
  %7865 = vrot.lane.b32.xlu0 %v7830, 64
  %v7866 = vpop.permute.xlu0 %7865
  %7867 = vrot.lane.b32.xlu0 %v7831, 64
  %v7868 = vpop.permute.xlu0 %7867
  %7869 = vrot.lane.b32.xlu0 %v7832, 64
  %v7870 = vpop.permute.xlu0 %7869
  %7871 = vrot.lane.b32.xlu0 %v7833, 64
  %v7872 = vpop.permute.xlu0 %7871
  %7873 = vrot.lane.b32.xlu0 %v7834, 64
  %v7874 = vpop.permute.xlu0 %7873
  %7883 = vrot.lane.b32.xlu0 %v7835, 64
  %v7884 = vpop.permute.xlu0 %7883
  %7885 = vrot.lane.b32.xlu0 %v7836, 64
  %v7886 = vpop.permute.xlu0 %7885
  %7887 = vrot.lane.b32.xlu0 %v7837, 64
  %v7888 = vpop.permute.xlu0 %7887
  %7889 = vrot.lane.b32.xlu0 %v7838, 64
  %v7890 = vpop.permute.xlu0 %7889
  %7891 = vrot.lane.b32.xlu0 %v7839, 64
  %v7892 = vpop.permute.xlu0 %7891
  %7893 = vrot.lane.b32.xlu0 %v7840, 64
  %v7894 = vpop.permute.xlu0 %7893
  %7895 = vrot.lane.b32.xlu0 %v7841, 64
  %v7896 = vpop.permute.xlu0 %7895
  %7897 = vrot.lane.b32.xlu0 %v7842, 64
  %v7898 = vpop.permute.xlu0 %7897
  %v7900 = vsel %vm305, %v7860, 0
  %v7903 = vsel %vm305, %v7862, 0
  %v7906 = vsel %vm305, %v7864, 0
  %v7909 = vsel %vm305, %v7866, 0
  %v7912 = vsel %vm305, %v7868, 0
  %v7915 = vsel %vm305, %v7870, 0
  %v7918 = vsel %vm305, %v7872, 0
  %v7921 = vsel %vm305, %v7874, 0
  %v7924 = vsel %vm305, %v7884, 0
  %v7927 = vsel %vm305, %v7886, 0
  %v7930 = vsel %vm305, %v7888, 0
  %v7933 = vsel %vm305, %v7890, 0
  %v7936 = vsel %vm305, %v7892, 0
  %v7939 = vsel %vm305, %v7894, 0
  %v7942 = vsel %vm305, %v7896, 0
  %v7945 = vsel %vm305, %v7898, 0
  %7947 = vmatprep.subr.bf16.mxu0 0
  %7948 = vmatpush1.bf16.xpose.msra.mxu0 %v7924
  %7949 = vmatprep.subr.bf16.mxu0 0
  %7950 = vmatpush1.bf16.xpose.msra.mxu0 %v7927
  %7951 = vmatprep.subr.bf16.mxu0 0
  %7952 = vmatpush1.bf16.xpose.msra.mxu0 %v7930
  %7953 = vmatprep.subr.bf16.mxu0 0
  %7954 = vmatpush1.bf16.xpose.msra.mxu0 %v7933
  %7955 = vmatprep.subr.bf16.mxu0 0
  %7956 = vmatpush1.bf16.xpose.msra.mxu0 %v7936
  %7957 = vmatprep.subr.bf16.mxu0 0
  %7958 = vmatpush1.bf16.xpose.msra.mxu0 %v7939
  %7959 = vmatprep.subr.bf16.mxu0 0
  %7960 = vmatpush1.bf16.xpose.msra.mxu0 %v7942
  %7961 = vmatprep.subr.bf16.mxu0 0
  %7962 = vmatpush1.bf16.xpose.msra.mxu0 %v7945
  %7963 = vmatprep.subr.bf16.mxu0 0
  %7964 = vmatpush1.bf16.xpose.msra.mxu0 0
  %7965 = vmatprep.subr.bf16.mxu0 0
  %7966 = vmatpush1.bf16.xpose.msra.mxu0 0
  %7967 = vmatprep.subr.bf16.mxu0 0
  %7968 = vmatpush1.bf16.xpose.msra.mxu0 0
  %7969 = vmatprep.subr.bf16.mxu0 0
  %7970 = vmatpush1.bf16.xpose.msra.mxu0 0
  %7971 = vmatprep.subr.bf16.mxu0 0
  %7972 = vmatpush1.bf16.xpose.msra.mxu0 0
  %7973 = vmatprep.subr.bf16.mxu0 0
  %7974 = vmatpush1.bf16.xpose.msra.mxu0 0
  %7975 = vmatprep.subr.bf16.mxu0 0
  %7976 = vmatpush1.bf16.xpose.msra.mxu0 0
  %7977 = vmatprep.subr.bf16.mxu0 0
  %7978 = vmatpush1.bf16.xpose.msra.mxu0 0
  %7979 = vmatprep.mubr.bf16.mxu0 0
  %7980 = vmatmul.mubr.bf16.gmra.mrb[0].mxu0 %v7900
  %v7981 = vpop.f32.mrb[0].mxu0
  %v7982 = vadd.f32 %v2472, %v7981
  %v7983 = vpop.f32.mrb[0].mxu0
  %v7984 = vpop.f32.mrb[0].mxu0
  %v7985 = vadd.f32 %v2473, %v7984
  %v7986 = vpop.f32.mrb[0].mxu0
  %7987 = vmatprep.mubr.bf16.mxu0 0
  %7988 = vmatmul.mubr.bf16.gmra.mrb[0].mxu0 %v7903
  %v7989 = vpop.f32.mrb[0].mxu0
  %v7990 = vadd.f32 %v2474, %v7989
  %v7991 = vpop.f32.mrb[0].mxu0
  %v7992 = vpop.f32.mrb[0].mxu0
  %v7993 = vadd.f32 %v2475, %v7992
  %v7994 = vpop.f32.mrb[0].mxu0
  %7995 = vmatprep.mubr.bf16.mxu0 0
  %7996 = vmatmul.mubr.bf16.gmra.mrb[0].mxu0 %v7906
  %v7997 = vpop.f32.mrb[0].mxu0
  %v7998 = vadd.f32 %v2476, %v7997
  %v7999 = vpop.f32.mrb[0].mxu0
  %v8000 = vpop.f32.mrb[0].mxu0
  %v8001 = vadd.f32 %v2477, %v8000
  %v8002 = vpop.f32.mrb[0].mxu0
  %8003 = vmatprep.mubr.bf16.mxu0 0
  %8004 = vmatmul.mubr.bf16.gmra.mrb[0].mxu0 %v7909
  %v8005 = vpop.f32.mrb[0].mxu0
  %v8006 = vadd.f32 %v2478, %v8005
  %v8007 = vpop.f32.mrb[0].mxu0
  %v8008 = vpop.f32.mrb[0].mxu0
  %v8009 = vadd.f32 %v2479, %v8008
  %v8010 = vpop.f32.mrb[0].mxu0
  %8011 = vmatprep.mubr.bf16.mxu0 0
  %8012 = vmatmul.mubr.bf16.gmra.mrb[0].mxu0 %v7912
  %v8013 = vpop.f32.mrb[0].mxu0
  %v8014 = vadd.f32 %v2480, %v8013
  %v8015 = vpop.f32.mrb[0].mxu0
  %v8016 = vpop.f32.mrb[0].mxu0
  %v8017 = vadd.f32 %v2481, %v8016
  %v8018 = vpop.f32.mrb[0].mxu0
  %8019 = vmatprep.mubr.bf16.mxu0 0
  %8020 = vmatmul.mubr.bf16.gmra.mrb[0].mxu0 %v7915
  %v8021 = vpop.f32.mrb[0].mxu0
  %v8022 = vadd.f32 %v2482, %v8021
  %v8023 = vpop.f32.mrb[0].mxu0
  %v8024 = vpop.f32.mrb[0].mxu0
  %v8025 = vadd.f32 %v2483, %v8024
  %v8026 = vpop.f32.mrb[0].mxu0
  %8027 = vmatprep.mubr.bf16.mxu0 0
  %8028 = vmatmul.mubr.bf16.gmra.mrb[0].mxu0 %v7918
  %v8029 = vpop.f32.mrb[0].mxu0
  %v8030 = vadd.f32 %v2484, %v8029
  %v8031 = vpop.f32.mrb[0].mxu0
  %v8032 = vpop.f32.mrb[0].mxu0
  %v8033 = vadd.f32 %v2485, %v8032
  %v8034 = vpop.f32.mrb[0].mxu0
  %8035 = vmatprep.mubr.bf16.mxu0 0
  %8036 = vmatmul.mubr.bf16.gmra.mrb[0].mxu0 %v7921
  %v8037 = vpop.f32.mrb[0].mxu0
  %v8038 = vadd.f32 %v2486, %v8037
  %v8039 = vpop.f32.mrb[0].mxu0
  %v8040 = vpop.f32.mrb[0].mxu0
  %v8041 = vadd.f32 %v2487, %v8040
  %v8042 = vpop.f32.mrb[0].mxu0
  %8043 = vdwg.mxu0
  %8044 = vmax.xlane.f32.xlu0 %v7982
  %v8045 = vpop.xlane.xlu0 %8044
  %8046 = vmax.xlane.f32.xlu0 %v7985
  %v8047 = vpop.xlane.xlu0 %8046
  %8048 = vmax.xlane.f32.xlu0 %v7990
  %v8049 = vpop.xlane.xlu0 %8048
  %8050 = vmax.xlane.f32.xlu0 %v7993
  %v8051 = vpop.xlane.xlu0 %8050
  %8052 = vmax.xlane.f32.xlu0 %v7998
  %v8053 = vpop.xlane.xlu0 %8052
  %8054 = vmax.xlane.f32.xlu0 %v8001
  %v8055 = vpop.xlane.xlu0 %8054
  %8056 = vmax.xlane.f32.xlu0 %v8006
  %v8057 = vpop.xlane.xlu0 %8056
  %8058 = vmax.xlane.f32.xlu0 %v8009
  %v8059 = vpop.xlane.xlu0 %8058
  %8060 = vmax.xlane.f32.xlu0 %v8014
  %v8061 = vpop.xlane.xlu0 %8060
  %8062 = vmax.xlane.f32.xlu0 %v8017
  %v8063 = vpop.xlane.xlu0 %8062
  %8064 = vmax.xlane.f32.xlu0 %v8022
  %v8065 = vpop.xlane.xlu0 %8064
  %8066 = vmax.xlane.f32.xlu0 %v8025
  %v8067 = vpop.xlane.xlu0 %8066
  %8068 = vmax.xlane.f32.xlu0 %v8030
  %v8069 = vpop.xlane.xlu0 %8068
  %8070 = vmax.xlane.f32.xlu0 %v8033
  %v8071 = vpop.xlane.xlu0 %8070
  %8072 = vmax.xlane.f32.xlu0 %v8038
  %v8073 = vpop.xlane.xlu0 %8072
  %8074 = vmax.xlane.f32.xlu0 %v8041
  %v8075 = vpop.xlane.xlu0 %8074
  %v8076 = vsub.f32 %v7982, %v8045
  %v8077 = vsub.f32 %v7985, %v8047
  %v8078 = vsub.f32 %v7990, %v8049
  %v8079 = vsub.f32 %v7993, %v8051
  %v8080 = vsub.f32 %v7998, %v8053
  %v8081 = vsub.f32 %v8001, %v8055
  %v8082 = vsub.f32 %v8006, %v8057
  %v8083 = vsub.f32 %v8009, %v8059
  %v8084 = vsub.f32 %v8014, %v8061
  %v8085 = vsub.f32 %v8017, %v8063
  %v8086 = vsub.f32 %v8022, %v8065
  %v8087 = vsub.f32 %v8025, %v8067
  %v8088 = vsub.f32 %v8030, %v8069
  %v8089 = vsub.f32 %v8033, %v8071
  %v8090 = vsub.f32 %v8038, %v8073
  %v8091 = vsub.f32 %v8041, %v8075
  %v8092 = vmul.f32 %v8076, 1.442695
  %v8093 = vpow.pop %v8092
  %v8094 = vmul.f32 %v8077, 1.442695
  %v8095 = vpow.pop %v8094
  %v8096 = vmul.f32 %v8078, 1.442695
  %v8097 = vpow.pop %v8096
  %v8098 = vmul.f32 %v8079, 1.442695
  %v8099 = vpow.pop %v8098
  %v8100 = vmul.f32 %v8080, 1.442695
  %v8101 = vpow.pop %v8100
  %v8102 = vmul.f32 %v8081, 1.442695
  %v8103 = vpow.pop %v8102
  %v8104 = vmul.f32 %v8082, 1.442695
  %v8105 = vpow.pop %v8104
  %v8106 = vmul.f32 %v8083, 1.442695
  %v8107 = vpow.pop %v8106
  %v8108 = vmul.f32 %v8084, 1.442695
  %v8109 = vpow.pop %v8108
  %v8110 = vmul.f32 %v8085, 1.442695
  %v8111 = vpow.pop %v8110
  %v8112 = vmul.f32 %v8086, 1.442695
  %v8113 = vpow.pop %v8112
  %v8114 = vmul.f32 %v8087, 1.442695
  %v8115 = vpow.pop %v8114
  %v8116 = vmul.f32 %v8088, 1.442695
  %v8117 = vpow.pop %v8116
  %v8118 = vmul.f32 %v8089, 1.442695
  %v8119 = vpow.pop %v8118
  %v8120 = vmul.f32 %v8090, 1.442695
  %v8121 = vpow.pop %v8120
  %v8122 = vmul.f32 %v8091, 1.442695
  %v8123 = vpow.pop %v8122
  %8124 = vadd.xlane.f32.xlu0 %v8093
  %v8125 = vpop.xlane.xlu0 %8124
  %8126 = vadd.xlane.f32.xlu0 %v8095
  %v8127 = vpop.xlane.xlu0 %8126
  %8128 = vadd.xlane.f32.xlu0 %v8097
  %v8129 = vpop.xlane.xlu0 %8128
  %8130 = vadd.xlane.f32.xlu0 %v8099
  %v8131 = vpop.xlane.xlu0 %8130
  %8132 = vadd.xlane.f32.xlu0 %v8101
  %v8133 = vpop.xlane.xlu0 %8132
  %8134 = vadd.xlane.f32.xlu0 %v8103
  %v8135 = vpop.xlane.xlu0 %8134
  %8136 = vadd.xlane.f32.xlu0 %v8105
  %v8137 = vpop.xlane.xlu0 %8136
  %8138 = vadd.xlane.f32.xlu0 %v8107
  %v8139 = vpop.xlane.xlu0 %8138
  %8140 = vadd.xlane.f32.xlu0 %v8109
  %v8141 = vpop.xlane.xlu0 %8140
  %8142 = vadd.xlane.f32.xlu0 %v8111
  %v8143 = vpop.xlane.xlu0 %8142
  %8144 = vadd.xlane.f32.xlu0 %v8113
  %v8145 = vpop.xlane.xlu0 %8144
  %8146 = vadd.xlane.f32.xlu0 %v8115
  %v8147 = vpop.xlane.xlu0 %8146
  %8148 = vadd.xlane.f32.xlu0 %v8117
  %v8149 = vpop.xlane.xlu0 %8148
  %8150 = vadd.xlane.f32.xlu0 %v8119
  %v8151 = vpop.xlane.xlu0 %8150
  %8152 = vadd.xlane.f32.xlu0 %v8121
  %v8153 = vpop.xlane.xlu0 %8152
  %8154 = vadd.xlane.f32.xlu0 %v8123
  %v8155 = vpop.xlane.xlu0 %8154
  %v8156 = vrcp.pop %v8125
  %v8157 = vrcp.pop %v8127
  %v8158 = vrcp.pop %v8129
  %v8159 = vrcp.pop %v8131
  %v8160 = vrcp.pop %v8133
  %v8161 = vrcp.pop %v8135
  %v8162 = vrcp.pop %v8137
  %v8163 = vrcp.pop %v8139
  %v8164 = vrcp.pop %v8141
  %v8165 = vrcp.pop %v8143
  %v8166 = vrcp.pop %v8145
  %v8167 = vrcp.pop %v8147
  %v8168 = vrcp.pop %v8149
  %v8169 = vrcp.pop %v8151
  %v8170 = vrcp.pop %v8153
  %v8171 = vrcp.pop %v8155
  %v8172 = vmul.f32 %v8093, %v8156
  %v8173 = vmul.f32 %v8095, %v8157
  %v8174 = vmul.f32 %v8097, %v8158
  %v8175 = vmul.f32 %v8099, %v8159
  %v8176 = vmul.f32 %v8101, %v8160
  %v8177 = vmul.f32 %v8103, %v8161
  %v8178 = vmul.f32 %v8105, %v8162
  %v8179 = vmul.f32 %v8107, %v8163
  %v8180 = vmul.f32 %v8109, %v8164
  %v8181 = vmul.f32 %v8111, %v8165
  %v8182 = vmul.f32 %v8113, %v8166
  %v8183 = vmul.f32 %v8115, %v8167
  %v8184 = vmul.f32 %v8117, %v8168
  %v8185 = vmul.f32 %v8119, %v8169
  %v8186 = vmul.f32 %v8121, %v8170
  %v8187 = vmul.f32 %v8123, %v8171
  %v8188 = vpack.c.bf16 %v8173, %v8172
  %v8189 = vpack.c.bf16 %v8175, %v8174
  %v8190 = vpack.c.bf16 %v8177, %v8176
  %v8191 = vpack.c.bf16 %v8179, %v8178
  %v8192 = vpack.c.bf16 %v8181, %v8180
  %v8193 = vpack.c.bf16 %v8183, %v8182
  %v8194 = vpack.c.bf16 %v8185, %v8184
  %v8195 = vpack.c.bf16 %v8187, %v8186
  %8204 = vrot.lane.b32.xlu0 %v7843, 64
  %v8205 = vpop.permute.xlu0 %8204
  %8206 = vrot.lane.b32.xlu0 %v7844, 64
  %v8207 = vpop.permute.xlu0 %8206
  %8208 = vrot.lane.b32.xlu0 %v7845, 64
  %v8209 = vpop.permute.xlu0 %8208
  %8210 = vrot.lane.b32.xlu0 %v7846, 64
  %v8211 = vpop.permute.xlu0 %8210
  %8212 = vrot.lane.b32.xlu0 %v7847, 64
  %v8213 = vpop.permute.xlu0 %8212
  %8214 = vrot.lane.b32.xlu0 %v7848, 64
  %v8215 = vpop.permute.xlu0 %8214
  %8216 = vrot.lane.b32.xlu0 %v7849, 64
  %v8217 = vpop.permute.xlu0 %8216
  %8218 = vrot.lane.b32.xlu0 %v7850, 64
  %v8219 = vpop.permute.xlu0 %8218
  %8228 = vmatprep.subr.bf16.mxu0 0
  %8229 = vmatpush1.bf16.msra.mxu0 %v8205
  %8230 = vmatprep.subr.bf16.mxu0 0
  %8231 = vmatpush1.bf16.msra.mxu0 %v8207
  %8232 = vmatprep.subr.bf16.mxu0 0
  %8233 = vmatpush1.bf16.msra.mxu0 %v8209
  %8234 = vmatprep.subr.bf16.mxu0 0
  %8235 = vmatpush1.bf16.msra.mxu0 %v8211
  %8236 = vmatprep.subr.bf16.mxu0 0
  %8237 = vmatpush1.bf16.msra.mxu0 %v8213
  %8238 = vmatprep.subr.bf16.mxu0 0
  %8239 = vmatpush1.bf16.msra.mxu0 %v8215
  %8240 = vmatprep.subr.bf16.mxu0 0
  %8241 = vmatpush1.bf16.msra.mxu0 %v8217
  %8242 = vmatprep.subr.bf16.mxu0 0
  %8243 = vmatpush1.bf16.msra.mxu0 %v8219
  %8244 = vmatprep.subr.bf16.mxu0 0
  %8245 = vmatpush1.bf16.msra.mxu0 0
  %8246 = vmatprep.subr.bf16.mxu0 0
  %8247 = vmatpush1.bf16.msra.mxu0 0
  %8248 = vmatprep.subr.bf16.mxu0 0
  %8249 = vmatpush1.bf16.msra.mxu0 0
  %8250 = vmatprep.subr.bf16.mxu0 0
  %8251 = vmatpush1.bf16.msra.mxu0 0
  %8252 = vmatprep.subr.bf16.mxu0 0
  %8253 = vmatpush1.bf16.msra.mxu0 0
  %8254 = vmatprep.subr.bf16.mxu0 0
  %8255 = vmatpush1.bf16.msra.mxu0 0
  %8256 = vmatprep.subr.bf16.mxu0 0
  %8257 = vmatpush1.bf16.msra.mxu0 0
  %8258 = vmatprep.subr.bf16.mxu0 0
  %8259 = vmatpush1.bf16.msra.mxu0 0
  %8260 = vmatprep.mubr.bf16.mxu0 0
  %8261 = vmatmul.mubr.bf16.gmra.mrb[0].mxu0 %v8188
  %v8262 = vpop.f32.mrb[0].mxu0
  %v8263 = vadd.f32 0.0, %v8262
  %v8264 = vpop.f32.mrb[0].mxu0
  %v8265 = vpop.f32.mrb[0].mxu0
  %v8266 = vadd.f32 0.0, %v8265
  %v8267 = vpop.f32.mrb[0].mxu0
  %8268 = vmatprep.mubr.bf16.mxu0 0
  %8269 = vmatmul.mubr.bf16.gmra.mrb[0].mxu0 %v8189
  %v8270 = vpop.f32.mrb[0].mxu0
  %v8271 = vadd.f32 0.0, %v8270
  %v8272 = vpop.f32.mrb[0].mxu0
  %v8273 = vpop.f32.mrb[0].mxu0
  %v8274 = vadd.f32 0.0, %v8273
  %v8275 = vpop.f32.mrb[0].mxu0
  %8276 = vmatprep.mubr.bf16.mxu0 0
  %8277 = vmatmul.mubr.bf16.gmra.mrb[0].mxu0 %v8190
  %v8278 = vpop.f32.mrb[0].mxu0
  %v8279 = vadd.f32 0.0, %v8278
  %v8280 = vpop.f32.mrb[0].mxu0
  %v8281 = vpop.f32.mrb[0].mxu0
  %v8282 = vadd.f32 0.0, %v8281
  %v8283 = vpop.f32.mrb[0].mxu0
  %8284 = vmatprep.mubr.bf16.mxu0 0
  %8285 = vmatmul.mubr.bf16.gmra.mrb[0].mxu0 %v8191
  %v8286 = vpop.f32.mrb[0].mxu0
  %v8287 = vadd.f32 0.0, %v8286
  %v8288 = vpop.f32.mrb[0].mxu0
  %v8289 = vpop.f32.mrb[0].mxu0
  %v8290 = vadd.f32 0.0, %v8289
  %v8291 = vpop.f32.mrb[0].mxu0
  %8292 = vmatprep.mubr.bf16.mxu0 0
  %8293 = vmatmul.mubr.bf16.gmra.mrb[0].mxu0 %v8192
  %v8294 = vpop.f32.mrb[0].mxu0
  %v8295 = vadd.f32 0.0, %v8294
  %v8296 = vpop.f32.mrb[0].mxu0
  %v8297 = vpop.f32.mrb[0].mxu0
  %v8298 = vadd.f32 0.0, %v8297
  %v8299 = vpop.f32.mrb[0].mxu0
  %8300 = vmatprep.mubr.bf16.mxu0 0
  %8301 = vmatmul.mubr.bf16.gmra.mrb[0].mxu0 %v8193
  %v8302 = vpop.f32.mrb[0].mxu0
  %v8303 = vadd.f32 0.0, %v8302
  %v8304 = vpop.f32.mrb[0].mxu0
  %v8305 = vpop.f32.mrb[0].mxu0
  %v8306 = vadd.f32 0.0, %v8305
  %v8307 = vpop.f32.mrb[0].mxu0
  %8308 = vmatprep.mubr.bf16.mxu0 0
  %8309 = vmatmul.mubr.bf16.gmra.mrb[0].mxu0 %v8194
  %v8310 = vpop.f32.mrb[0].mxu0
  %v8311 = vadd.f32 0.0, %v8310
  %v8312 = vpop.f32.mrb[0].mxu0
  %v8313 = vpop.f32.mrb[0].mxu0
  %v8314 = vadd.f32 0.0, %v8313
  %v8315 = vpop.f32.mrb[0].mxu0
  %8316 = vmatprep.mubr.bf16.mxu0 0
  %8317 = vmatmul.mubr.bf16.gmra.mrb[0].mxu0 %v8195
  %v8318 = vpop.f32.mrb[0].mxu0
  %v8319 = vadd.f32 0.0, %v8318
  %v8320 = vpop.f32.mrb[0].mxu0
  %v8321 = vpop.f32.mrb[0].mxu0
  %v8322 = vadd.f32 0.0, %v8321
  %v8323 = vpop.f32.mrb[0].mxu0
  %8324 = vdwg.mxu0
  %v8325 = vpack.c.bf16 %v8266, %v8263
  %v8326 = vpack.c.bf16 %v8274, %v8271
  %v8327 = vpack.c.bf16 %v8282, %v8279
  %v8328 = vpack.c.bf16 %v8290, %v8287
  %v8329 = vpack.c.bf16 %v8298, %v8295
  %v8330 = vpack.c.bf16 %v8306, %v8303
  %v8331 = vpack.c.bf16 %v8314, %v8311
  %v8332 = vpack.c.bf16 %v8322, %v8319
  %8341 = vrot.lane.b32.xlu0 %v8325, 64
  %v8342 = vpop.permute.xlu0 %8341
  %8343 = vrot.lane.b32.xlu0 %v8326, 64
  %v8344 = vpop.permute.xlu0 %8343
  %8345 = vrot.lane.b32.xlu0 %v8327, 64
  %v8346 = vpop.permute.xlu0 %8345
  %8347 = vrot.lane.b32.xlu0 %v8328, 64
  %v8348 = vpop.permute.xlu0 %8347
  %8349 = vrot.lane.b32.xlu0 %v8329, 64
  %v8350 = vpop.permute.xlu0 %8349
  %8351 = vrot.lane.b32.xlu0 %v8330, 64
  %v8352 = vpop.permute.xlu0 %8351
  %8353 = vrot.lane.b32.xlu0 %v8331, 64
  %v8354 = vpop.permute.xlu0 %8353
  %8355 = vrot.lane.b32.xlu0 %v8332, 64
  %v8356 = vpop.permute.xlu0 %8355
  %8365 = vst.msk [vmem:[%s6838 + $0x8] sm:$0xff] %vm3460, %v8342
  %8366 = vst.msk [vmem:[%s6838 + $0x28] sm:$0xff] %vm3460, %v8344
  %8367 = vst.msk [vmem:[%s6838 + $0x48] sm:$0xff] %vm3460, %v8346
  %8368 = vst.msk [vmem:[%s6838 + $0x68] sm:$0xff] %vm3460, %v8348
  %8369 = vst.msk [vmem:[%s6838 + $0x88] sm:$0xff] %vm3460, %v8350
  %8370 = vst.msk [vmem:[%s6838 + $0xa8] sm:$0xff] %vm3460, %v8352
  %8371 = vst.msk [vmem:[%s6838 + $0xc8] sm:$0xff] %vm3460, %v8354
  %8372 = vst.msk [vmem:[%s6838 + $0xe8] sm:$0xff] %vm3460, %v8356
  %v8373 = vld [vmem:[%s6409 + $0x10] sm:$0xff]
  %v8374 = vld [vmem:[%s6409 + $0x30] sm:$0xff]
  %v8375 = vld [vmem:[%s6409 + $0x50] sm:$0xff]
  %v8376 = vld [vmem:[%s6409 + $0x70] sm:$0xff]
  %v8377 = vld [vmem:[%s6409 + $0x90] sm:$0xff]
  %v8378 = vld [vmem:[%s6409 + $0xb0] sm:$0xff]
  %v8379 = vld [vmem:[%s6409 + $0xd0] sm:$0xff]
  %v8380 = vld [vmem:[%s6409 + $0xf0] sm:$0xff]
  %v8381 = vld [vmem:[%s6418 + $0x10] sm:$0xff]
  %v8382 = vld [vmem:[%s6418 + $0x30] sm:$0xff]
  %v8383 = vld [vmem:[%s6418 + $0x50] sm:$0xff]
  %v8384 = vld [vmem:[%s6418 + $0x70] sm:$0xff]
  %v8385 = vld [vmem:[%s6418 + $0x90] sm:$0xff]
  %v8386 = vld [vmem:[%s6418 + $0xb0] sm:$0xff]
  %v8387 = vld [vmem:[%s6418 + $0xd0] sm:$0xff]
  %v8388 = vld [vmem:[%s6418 + $0xf0] sm:$0xff]
  %v8389 = vld [vmem:[%s6427 + $0x10] sm:$0xff]
  %v8390 = vld [vmem:[%s6427 + $0x30] sm:$0xff]
  %v8391 = vld [vmem:[%s6427 + $0x50] sm:$0xff]
  %v8392 = vld [vmem:[%s6427 + $0x70] sm:$0xff]
  %v8393 = vld [vmem:[%s6427 + $0x90] sm:$0xff]
  %v8394 = vld [vmem:[%s6427 + $0xb0] sm:$0xff]
  %v8395 = vld [vmem:[%s6427 + $0xd0] sm:$0xff]
  %v8396 = vld [vmem:[%s6427 + $0xf0] sm:$0xff]
  %v8398 = vsel %vm305, %v8373, 0
  %v8401 = vsel %vm305, %v8374, 0
  %v8404 = vsel %vm305, %v8375, 0
  %v8407 = vsel %vm305, %v8376, 0
  %v8410 = vsel %vm305, %v8377, 0
  %v8413 = vsel %vm305, %v8378, 0
  %v8416 = vsel %vm305, %v8379, 0
  %v8419 = vsel %vm305, %v8380, 0
  %v8422 = vsel %vm305, %v8381, 0
  %v8425 = vsel %vm305, %v8382, 0
  %v8428 = vsel %vm305, %v8383, 0
  %v8431 = vsel %vm305, %v8384, 0
  %v8434 = vsel %vm305, %v8385, 0
  %v8437 = vsel %vm305, %v8386, 0
  %v8440 = vsel %vm305, %v8387, 0
  %v8443 = vsel %vm305, %v8388, 0
  %8445 = vmatprep.subr.bf16.mxu0 0
  %8446 = vmatpush1.bf16.xpose.msra.mxu0 %v8422
  %8447 = vmatprep.subr.bf16.mxu0 0
  %8448 = vmatpush1.bf16.xpose.msra.mxu0 %v8425
  %8449 = vmatprep.subr.bf16.mxu0 0
  %8450 = vmatpush1.bf16.xpose.msra.mxu0 %v8428
  %8451 = vmatprep.subr.bf16.mxu0 0
  %8452 = vmatpush1.bf16.xpose.msra.mxu0 %v8431
  %8453 = vmatprep.subr.bf16.mxu0 0
  %8454 = vmatpush1.bf16.xpose.msra.mxu0 %v8434
  %8455 = vmatprep.subr.bf16.mxu0 0
  %8456 = vmatpush1.bf16.xpose.msra.mxu0 %v8437
  %8457 = vmatprep.subr.bf16.mxu0 0
  %8458 = vmatpush1.bf16.xpose.msra.mxu0 %v8440
  %8459 = vmatprep.subr.bf16.mxu0 0
  %8460 = vmatpush1.bf16.xpose.msra.mxu0 %v8443
  %8461 = vmatprep.subr.bf16.mxu0 0
  %8462 = vmatpush1.bf16.xpose.msra.mxu0 0
  %8463 = vmatprep.subr.bf16.mxu0 0
  %8464 = vmatpush1.bf16.xpose.msra.mxu0 0
  %8465 = vmatprep.subr.bf16.mxu0 0
  %8466 = vmatpush1.bf16.xpose.msra.mxu0 0
  %8467 = vmatprep.subr.bf16.mxu0 0
  %8468 = vmatpush1.bf16.xpose.msra.mxu0 0
  %8469 = vmatprep.subr.bf16.mxu0 0
  %8470 = vmatpush1.bf16.xpose.msra.mxu0 0
  %8471 = vmatprep.subr.bf16.mxu0 0
  %8472 = vmatpush1.bf16.xpose.msra.mxu0 0
  %8473 = vmatprep.subr.bf16.mxu0 0
  %8474 = vmatpush1.bf16.xpose.msra.mxu0 0
  %8475 = vmatprep.subr.bf16.mxu0 0
  %8476 = vmatpush1.bf16.xpose.msra.mxu0 0
  %8477 = vmatprep.mubr.bf16.mxu0 0
  %8478 = vmatmul.mubr.bf16.gmra.mrb[0].mxu0 %v8398
  %v8479 = vpop.f32.mrb[0].mxu0
  %v8480 = vadd.f32 %v2472, %v8479
  %v8481 = vpop.f32.mrb[0].mxu0
  %v8482 = vpop.f32.mrb[0].mxu0
  %v8483 = vadd.f32 %v2473, %v8482
  %v8484 = vpop.f32.mrb[0].mxu0
  %8485 = vmatprep.mubr.bf16.mxu0 0
  %8486 = vmatmul.mubr.bf16.gmra.mrb[0].mxu0 %v8401
  %v8487 = vpop.f32.mrb[0].mxu0
  %v8488 = vadd.f32 %v2474, %v8487
  %v8489 = vpop.f32.mrb[0].mxu0
  %v8490 = vpop.f32.mrb[0].mxu0
  %v8491 = vadd.f32 %v2475, %v8490
  %v8492 = vpop.f32.mrb[0].mxu0
  %8493 = vmatprep.mubr.bf16.mxu0 0
  %8494 = vmatmul.mubr.bf16.gmra.mrb[0].mxu0 %v8404
  %v8495 = vpop.f32.mrb[0].mxu0
  %v8496 = vadd.f32 %v2476, %v8495
  %v8497 = vpop.f32.mrb[0].mxu0
  %v8498 = vpop.f32.mrb[0].mxu0
  %v8499 = vadd.f32 %v2477, %v8498
  %v8500 = vpop.f32.mrb[0].mxu0
  %8501 = vmatprep.mubr.bf16.mxu0 0
  %8502 = vmatmul.mubr.bf16.gmra.mrb[0].mxu0 %v8407
  %v8503 = vpop.f32.mrb[0].mxu0
  %v8504 = vadd.f32 %v2478, %v8503
  %v8505 = vpop.f32.mrb[0].mxu0
  %v8506 = vpop.f32.mrb[0].mxu0
  %v8507 = vadd.f32 %v2479, %v8506
  %v8508 = vpop.f32.mrb[0].mxu0
  %8509 = vmatprep.mubr.bf16.mxu0 0
  %8510 = vmatmul.mubr.bf16.gmra.mrb[0].mxu0 %v8410
  %v8511 = vpop.f32.mrb[0].mxu0
  %v8512 = vadd.f32 %v2480, %v8511
  %v8513 = vpop.f32.mrb[0].mxu0
  %v8514 = vpop.f32.mrb[0].mxu0
  %v8515 = vadd.f32 %v2481, %v8514
  %v8516 = vpop.f32.mrb[0].mxu0
  %8517 = vmatprep.mubr.bf16.mxu0 0
  %8518 = vmatmul.mubr.bf16.gmra.mrb[0].mxu0 %v8413
  %v8519 = vpop.f32.mrb[0].mxu0
  %v8520 = vadd.f32 %v2482, %v8519
  %v8521 = vpop.f32.mrb[0].mxu0
  %v8522 = vpop.f32.mrb[0].mxu0
  %v8523 = vadd.f32 %v2483, %v8522
  %v8524 = vpop.f32.mrb[0].mxu0
  %8525 = vmatprep.mubr.bf16.mxu0 0
  %8526 = vmatmul.mubr.bf16.gmra.mrb[0].mxu0 %v8416
  %v8527 = vpop.f32.mrb[0].mxu0
  %v8528 = vadd.f32 %v2484, %v8527
  %v8529 = vpop.f32.mrb[0].mxu0
  %v8530 = vpop.f32.mrb[0].mxu0
  %v8531 = vadd.f32 %v2485, %v8530
  %v8532 = vpop.f32.mrb[0].mxu0
  %8533 = vmatprep.mubr.bf16.mxu0 0
  %8534 = vmatmul.mubr.bf16.gmra.mrb[0].mxu0 %v8419
  %v8535 = vpop.f32.mrb[0].mxu0
  %v8536 = vadd.f32 %v2486, %v8535
  %v8537 = vpop.f32.mrb[0].mxu0
  %v8538 = vpop.f32.mrb[0].mxu0
  %v8539 = vadd.f32 %v2487, %v8538
  %v8540 = vpop.f32.mrb[0].mxu0
  %8541 = vdwg.mxu0
  %8542 = vmax.xlane.f32.xlu0 %v8480
  %v8543 = vpop.xlane.xlu0 %8542
  %8544 = vmax.xlane.f32.xlu0 %v8483
  %v8545 = vpop.xlane.xlu0 %8544
  %8546 = vmax.xlane.f32.xlu0 %v8488
  %v8547 = vpop.xlane.xlu0 %8546
  %8548 = vmax.xlane.f32.xlu0 %v8491
  %v8549 = vpop.xlane.xlu0 %8548
  %8550 = vmax.xlane.f32.xlu0 %v8496
  %v8551 = vpop.xlane.xlu0 %8550
  %8552 = vmax.xlane.f32.xlu0 %v8499
  %v8553 = vpop.xlane.xlu0 %8552
  %8554 = vmax.xlane.f32.xlu0 %v8504
  %v8555 = vpop.xlane.xlu0 %8554
  %8556 = vmax.xlane.f32.xlu0 %v8507
  %v8557 = vpop.xlane.xlu0 %8556
  %8558 = vmax.xlane.f32.xlu0 %v8512
  %v8559 = vpop.xlane.xlu0 %8558
  %8560 = vmax.xlane.f32.xlu0 %v8515
  %v8561 = vpop.xlane.xlu0 %8560
  %8562 = vmax.xlane.f32.xlu0 %v8520
  %v8563 = vpop.xlane.xlu0 %8562
  %8564 = vmax.xlane.f32.xlu0 %v8523
  %v8565 = vpop.xlane.xlu0 %8564
  %8566 = vmax.xlane.f32.xlu0 %v8528
  %v8567 = vpop.xlane.xlu0 %8566
  %8568 = vmax.xlane.f32.xlu0 %v8531
  %v8569 = vpop.xlane.xlu0 %8568
  %8570 = vmax.xlane.f32.xlu0 %v8536
  %v8571 = vpop.xlane.xlu0 %8570
  %8572 = vmax.xlane.f32.xlu0 %v8539
  %v8573 = vpop.xlane.xlu0 %8572
  %v8574 = vsub.f32 %v8480, %v8543
  %v8575 = vsub.f32 %v8483, %v8545
  %v8576 = vsub.f32 %v8488, %v8547
  %v8577 = vsub.f32 %v8491, %v8549
  %v8578 = vsub.f32 %v8496, %v8551
  %v8579 = vsub.f32 %v8499, %v8553
  %v8580 = vsub.f32 %v8504, %v8555
  %v8581 = vsub.f32 %v8507, %v8557
  %v8582 = vsub.f32 %v8512, %v8559
  %v8583 = vsub.f32 %v8515, %v8561
  %v8584 = vsub.f32 %v8520, %v8563
  %v8585 = vsub.f32 %v8523, %v8565
  %v8586 = vsub.f32 %v8528, %v8567
  %v8587 = vsub.f32 %v8531, %v8569
  %v8588 = vsub.f32 %v8536, %v8571
  %v8589 = vsub.f32 %v8539, %v8573
  %v8590 = vmul.f32 %v8574, 1.442695
  %v8591 = vpow.pop %v8590
  %v8592 = vmul.f32 %v8575, 1.442695
  %v8593 = vpow.pop %v8592
  %v8594 = vmul.f32 %v8576, 1.442695
  %v8595 = vpow.pop %v8594
  %v8596 = vmul.f32 %v8577, 1.442695
  %v8597 = vpow.pop %v8596
  %v8598 = vmul.f32 %v8578, 1.442695
  %v8599 = vpow.pop %v8598
  %v8600 = vmul.f32 %v8579, 1.442695
  %v8601 = vpow.pop %v8600
  %v8602 = vmul.f32 %v8580, 1.442695
  %v8603 = vpow.pop %v8602
  %v8604 = vmul.f32 %v8581, 1.442695
  %v8605 = vpow.pop %v8604
  %v8606 = vmul.f32 %v8582, 1.442695
  %v8607 = vpow.pop %v8606
  %v8608 = vmul.f32 %v8583, 1.442695
  %v8609 = vpow.pop %v8608
  %v8610 = vmul.f32 %v8584, 1.442695
  %v8611 = vpow.pop %v8610
  %v8612 = vmul.f32 %v8585, 1.442695
  %v8613 = vpow.pop %v8612
  %v8614 = vmul.f32 %v8586, 1.442695
  %v8615 = vpow.pop %v8614
  %v8616 = vmul.f32 %v8587, 1.442695
  %v8617 = vpow.pop %v8616
  %v8618 = vmul.f32 %v8588, 1.442695
  %v8619 = vpow.pop %v8618
  %v8620 = vmul.f32 %v8589, 1.442695
  %v8621 = vpow.pop %v8620
  %8622 = vadd.xlane.f32.xlu0 %v8591
  %v8623 = vpop.xlane.xlu0 %8622
  %8624 = vadd.xlane.f32.xlu0 %v8593
  %v8625 = vpop.xlane.xlu0 %8624
  %8626 = vadd.xlane.f32.xlu0 %v8595
  %v8627 = vpop.xlane.xlu0 %8626
  %8628 = vadd.xlane.f32.xlu0 %v8597
  %v8629 = vpop.xlane.xlu0 %8628
  %8630 = vadd.xlane.f32.xlu0 %v8599
  %v8631 = vpop.xlane.xlu0 %8630
  %8632 = vadd.xlane.f32.xlu0 %v8601
  %v8633 = vpop.xlane.xlu0 %8632
  %8634 = vadd.xlane.f32.xlu0 %v8603
  %v8635 = vpop.xlane.xlu0 %8634
  %8636 = vadd.xlane.f32.xlu0 %v8605
  %v8637 = vpop.xlane.xlu0 %8636
  %8638 = vadd.xlane.f32.xlu0 %v8607
  %v8639 = vpop.xlane.xlu0 %8638
  %8640 = vadd.xlane.f32.xlu0 %v8609
  %v8641 = vpop.xlane.xlu0 %8640
  %8642 = vadd.xlane.f32.xlu0 %v8611
  %v8643 = vpop.xlane.xlu0 %8642
  %8644 = vadd.xlane.f32.xlu0 %v8613
  %v8645 = vpop.xlane.xlu0 %8644
  %8646 = vadd.xlane.f32.xlu0 %v8615
  %v8647 = vpop.xlane.xlu0 %8646
  %8648 = vadd.xlane.f32.xlu0 %v8617
  %v8649 = vpop.xlane.xlu0 %8648
  %8650 = vadd.xlane.f32.xlu0 %v8619
  %v8651 = vpop.xlane.xlu0 %8650
  %8652 = vadd.xlane.f32.xlu0 %v8621
  %v8653 = vpop.xlane.xlu0 %8652
  %v8654 = vrcp.pop %v8623
  %v8655 = vrcp.pop %v8625
  %v8656 = vrcp.pop %v8627
  %v8657 = vrcp.pop %v8629
  %v8658 = vrcp.pop %v8631
  %v8659 = vrcp.pop %v8633
  %v8660 = vrcp.pop %v8635
  %v8661 = vrcp.pop %v8637
  %v8662 = vrcp.pop %v8639
  %v8663 = vrcp.pop %v8641
  %v8664 = vrcp.pop %v8643
  %v8665 = vrcp.pop %v8645
  %v8666 = vrcp.pop %v8647
  %v8667 = vrcp.pop %v8649
  %v8668 = vrcp.pop %v8651
  %v8669 = vrcp.pop %v8653
  %v8670 = vmul.f32 %v8591, %v8654
  %v8671 = vmul.f32 %v8593, %v8655
  %v8672 = vmul.f32 %v8595, %v8656
  %v8673 = vmul.f32 %v8597, %v8657
  %v8674 = vmul.f32 %v8599, %v8658
  %v8675 = vmul.f32 %v8601, %v8659
  %v8676 = vmul.f32 %v8603, %v8660
  %v8677 = vmul.f32 %v8605, %v8661
  %v8678 = vmul.f32 %v8607, %v8662
  %v8679 = vmul.f32 %v8609, %v8663
  %v8680 = vmul.f32 %v8611, %v8664
  %v8681 = vmul.f32 %v8613, %v8665
  %v8682 = vmul.f32 %v8615, %v8666
  %v8683 = vmul.f32 %v8617, %v8667
  %v8684 = vmul.f32 %v8619, %v8668
  %v8685 = vmul.f32 %v8621, %v8669
  %v8686 = vpack.c.bf16 %v8671, %v8670
  %v8687 = vpack.c.bf16 %v8673, %v8672
  %v8688 = vpack.c.bf16 %v8675, %v8674
  %v8689 = vpack.c.bf16 %v8677, %v8676
  %v8690 = vpack.c.bf16 %v8679, %v8678
  %v8691 = vpack.c.bf16 %v8681, %v8680
  %v8692 = vpack.c.bf16 %v8683, %v8682
  %v8693 = vpack.c.bf16 %v8685, %v8684
  %8694 = vmatprep.subr.bf16.mxu0 0
  %8695 = vmatpush1.bf16.msra.mxu0 %v8389
  %8696 = vmatprep.subr.bf16.mxu0 0
  %8697 = vmatpush1.bf16.msra.mxu0 %v8390
  %8698 = vmatprep.subr.bf16.mxu0 0
  %8699 = vmatpush1.bf16.msra.mxu0 %v8391
  %8700 = vmatprep.subr.bf16.mxu0 0
  %8701 = vmatpush1.bf16.msra.mxu0 %v8392
  %8702 = vmatprep.subr.bf16.mxu0 0
  %8703 = vmatpush1.bf16.msra.mxu0 %v8393
  %8704 = vmatprep.subr.bf16.mxu0 0
  %8705 = vmatpush1.bf16.msra.mxu0 %v8394
  %8706 = vmatprep.subr.bf16.mxu0 0
  %8707 = vmatpush1.bf16.msra.mxu0 %v8395
  %8708 = vmatprep.subr.bf16.mxu0 0
  %8709 = vmatpush1.bf16.msra.mxu0 %v8396
  %8710 = vmatprep.subr.bf16.mxu0 0
  %8711 = vmatpush1.bf16.msra.mxu0 0
  %8712 = vmatprep.subr.bf16.mxu0 0
  %8713 = vmatpush1.bf16.msra.mxu0 0
  %8714 = vmatprep.subr.bf16.mxu0 0
  %8715 = vmatpush1.bf16.msra.mxu0 0
  %8716 = vmatprep.subr.bf16.mxu0 0
  %8717 = vmatpush1.bf16.msra.mxu0 0
  %8718 = vmatprep.subr.bf16.mxu0 0
  %8719 = vmatpush1.bf16.msra.mxu0 0
  %8720 = vmatprep.subr.bf16.mxu0 0
  %8721 = vmatpush1.bf16.msra.mxu0 0
  %8722 = vmatprep.subr.bf16.mxu0 0
  %8723 = vmatpush1.bf16.msra.mxu0 0
  %8724 = vmatprep.subr.bf16.mxu0 0
  %8725 = vmatpush1.bf16.msra.mxu0 0
  %8726 = vmatprep.mubr.bf16.mxu0 0
  %8727 = vmatmul.mubr.bf16.gmra.mrb[0].mxu0 %v8686
  %v8728 = vpop.f32.mrb[0].mxu0
  %v8729 = vadd.f32 0.0, %v8728
  %v8730 = vpop.f32.mrb[0].mxu0
  %v8731 = vpop.f32.mrb[0].mxu0
  %v8732 = vadd.f32 0.0, %v8731
  %v8733 = vpop.f32.mrb[0].mxu0
  %8734 = vmatprep.mubr.bf16.mxu0 0
  %8735 = vmatmul.mubr.bf16.gmra.mrb[0].mxu0 %v8687
  %v8736 = vpop.f32.mrb[0].mxu0
  %v8737 = vadd.f32 0.0, %v8736
  %v8738 = vpop.f32.mrb[0].mxu0
  %v8739 = vpop.f32.mrb[0].mxu0
  %v8740 = vadd.f32 0.0, %v8739
  %v8741 = vpop.f32.mrb[0].mxu0
  %8742 = vmatprep.mubr.bf16.mxu0 0
  %8743 = vmatmul.mubr.bf16.gmra.mrb[0].mxu0 %v8688
  %v8744 = vpop.f32.mrb[0].mxu0
  %v8745 = vadd.f32 0.0, %v8744
  %v8746 = vpop.f32.mrb[0].mxu0
  %v8747 = vpop.f32.mrb[0].mxu0
  %v8748 = vadd.f32 0.0, %v8747
  %v8749 = vpop.f32.mrb[0].mxu0
  %8750 = vmatprep.mubr.bf16.mxu0 0
  %8751 = vmatmul.mubr.bf16.gmra.mrb[0].mxu0 %v8689
  %v8752 = vpop.f32.mrb[0].mxu0
  %v8753 = vadd.f32 0.0, %v8752
  %v8754 = vpop.f32.mrb[0].mxu0
  %v8755 = vpop.f32.mrb[0].mxu0
  %v8756 = vadd.f32 0.0, %v8755
  %v8757 = vpop.f32.mrb[0].mxu0
  %8758 = vmatprep.mubr.bf16.mxu0 0
  %8759 = vmatmul.mubr.bf16.gmra.mrb[0].mxu0 %v8690
  %v8760 = vpop.f32.mrb[0].mxu0
  %v8761 = vadd.f32 0.0, %v8760
  %v8762 = vpop.f32.mrb[0].mxu0
  %v8763 = vpop.f32.mrb[0].mxu0
  %v8764 = vadd.f32 0.0, %v8763
  %v8765 = vpop.f32.mrb[0].mxu0
  %8766 = vmatprep.mubr.bf16.mxu0 0
  %8767 = vmatmul.mubr.bf16.gmra.mrb[0].mxu0 %v8691
  %v8768 = vpop.f32.mrb[0].mxu0
  %v8769 = vadd.f32 0.0, %v8768
  %v8770 = vpop.f32.mrb[0].mxu0
  %v8771 = vpop.f32.mrb[0].mxu0
  %v8772 = vadd.f32 0.0, %v8771
  %v8773 = vpop.f32.mrb[0].mxu0
  %8774 = vmatprep.mubr.bf16.mxu0 0
  %8775 = vmatmul.mubr.bf16.gmra.mrb[0].mxu0 %v8692
  %v8776 = vpop.f32.mrb[0].mxu0
  %v8777 = vadd.f32 0.0, %v8776
  %v8778 = vpop.f32.mrb[0].mxu0
  %v8779 = vpop.f32.mrb[0].mxu0
  %v8780 = vadd.f32 0.0, %v8779
  %v8781 = vpop.f32.mrb[0].mxu0
  %8782 = vmatprep.mubr.bf16.mxu0 0
  %8783 = vmatmul.mubr.bf16.gmra.mrb[0].mxu0 %v8693
  %v8784 = vpop.f32.mrb[0].mxu0
  %v8785 = vadd.f32 0.0, %v8784
  %v8786 = vpop.f32.mrb[0].mxu0
  %v8787 = vpop.f32.mrb[0].mxu0
  %v8788 = vadd.f32 0.0, %v8787
  %v8789 = vpop.f32.mrb[0].mxu0
  %8790 = vdwg.mxu0
  %v8791 = vpack.c.bf16 %v8732, %v8729
  %v8792 = vpack.c.bf16 %v8740, %v8737
  %v8793 = vpack.c.bf16 %v8748, %v8745
  %v8794 = vpack.c.bf16 %v8756, %v8753
  %v8795 = vpack.c.bf16 %v8764, %v8761
  %v8796 = vpack.c.bf16 %v8772, %v8769
  %v8797 = vpack.c.bf16 %v8780, %v8777
  %v8798 = vpack.c.bf16 %v8788, %v8785
  %8799 = vst.msk [vmem:[%s6838 + $0x10] sm:$0xff] %vm305, %v8791
  %8800 = vst.msk [vmem:[%s6838 + $0x30] sm:$0xff] %vm305, %v8792
  %8801 = vst.msk [vmem:[%s6838 + $0x50] sm:$0xff] %vm305, %v8793
  %8802 = vst.msk [vmem:[%s6838 + $0x70] sm:$0xff] %vm305, %v8794
  %8803 = vst.msk [vmem:[%s6838 + $0x90] sm:$0xff] %vm305, %v8795
  %8804 = vst.msk [vmem:[%s6838 + $0xb0] sm:$0xff] %vm305, %v8796
  %8805 = vst.msk [vmem:[%s6838 + $0xd0] sm:$0xff] %vm305, %v8797
  %8806 = vst.msk [vmem:[%s6838 + $0xf0] sm:$0xff] %vm305, %v8798
  %v8807 = vld [vmem:[%s6409 + $0x10] sm:$0xff]
  %v8808 = vld [vmem:[%s6409 + $0x30] sm:$0xff]
  %v8809 = vld [vmem:[%s6409 + $0x50] sm:$0xff]
  %v8810 = vld [vmem:[%s6409 + $0x70] sm:$0xff]
  %v8811 = vld [vmem:[%s6409 + $0x90] sm:$0xff]
  %v8812 = vld [vmem:[%s6409 + $0xb0] sm:$0xff]
  %v8813 = vld [vmem:[%s6409 + $0xd0] sm:$0xff]
  %v8814 = vld [vmem:[%s6409 + $0xf0] sm:$0xff]
  %v8815 = vld [vmem:[%s6418 + $0x10] sm:$0xff]
  %v8816 = vld [vmem:[%s6418 + $0x30] sm:$0xff]
  %v8817 = vld [vmem:[%s6418 + $0x50] sm:$0xff]
  %v8818 = vld [vmem:[%s6418 + $0x70] sm:$0xff]
  %v8819 = vld [vmem:[%s6418 + $0x90] sm:$0xff]
  %v8820 = vld [vmem:[%s6418 + $0xb0] sm:$0xff]
  %v8821 = vld [vmem:[%s6418 + $0xd0] sm:$0xff]
  %v8822 = vld [vmem:[%s6418 + $0xf0] sm:$0xff]
  %v8823 = vld [vmem:[%s6427 + $0x10] sm:$0xff]
  %v8824 = vld [vmem:[%s6427 + $0x30] sm:$0xff]
  %v8825 = vld [vmem:[%s6427 + $0x50] sm:$0xff]
  %v8826 = vld [vmem:[%s6427 + $0x70] sm:$0xff]
  %v8827 = vld [vmem:[%s6427 + $0x90] sm:$0xff]
  %v8828 = vld [vmem:[%s6427 + $0xb0] sm:$0xff]
  %v8829 = vld [vmem:[%s6427 + $0xd0] sm:$0xff]
  %v8830 = vld [vmem:[%s6427 + $0xf0] sm:$0xff]
  %8839 = vrot.lane.b32.xlu0 %v8807, 64
  %v8840 = vpop.permute.xlu0 %8839
  %8841 = vrot.lane.b32.xlu0 %v8808, 64
  %v8842 = vpop.permute.xlu0 %8841
  %8843 = vrot.lane.b32.xlu0 %v8809, 64
  %v8844 = vpop.permute.xlu0 %8843
  %8845 = vrot.lane.b32.xlu0 %v8810, 64
  %v8846 = vpop.permute.xlu0 %8845
  %8847 = vrot.lane.b32.xlu0 %v8811, 64
  %v8848 = vpop.permute.xlu0 %8847
  %8849 = vrot.lane.b32.xlu0 %v8812, 64
  %v8850 = vpop.permute.xlu0 %8849
  %8851 = vrot.lane.b32.xlu0 %v8813, 64
  %v8852 = vpop.permute.xlu0 %8851
  %8853 = vrot.lane.b32.xlu0 %v8814, 64
  %v8854 = vpop.permute.xlu0 %8853
  %8863 = vrot.lane.b32.xlu0 %v8815, 64
  %v8864 = vpop.permute.xlu0 %8863
  %8865 = vrot.lane.b32.xlu0 %v8816, 64
  %v8866 = vpop.permute.xlu0 %8865
  %8867 = vrot.lane.b32.xlu0 %v8817, 64
  %v8868 = vpop.permute.xlu0 %8867
  %8869 = vrot.lane.b32.xlu0 %v8818, 64
  %v8870 = vpop.permute.xlu0 %8869
  %8871 = vrot.lane.b32.xlu0 %v8819, 64
  %v8872 = vpop.permute.xlu0 %8871
  %8873 = vrot.lane.b32.xlu0 %v8820, 64
  %v8874 = vpop.permute.xlu0 %8873
  %8875 = vrot.lane.b32.xlu0 %v8821, 64
  %v8876 = vpop.permute.xlu0 %8875
  %8877 = vrot.lane.b32.xlu0 %v8822, 64
  %v8878 = vpop.permute.xlu0 %8877
  %v8880 = vsel %vm305, %v8840, 0
  %v8883 = vsel %vm305, %v8842, 0
  %v8886 = vsel %vm305, %v8844, 0
  %v8889 = vsel %vm305, %v8846, 0
  %v8892 = vsel %vm305, %v8848, 0
  %v8895 = vsel %vm305, %v8850, 0
  %v8898 = vsel %vm305, %v8852, 0
  %v8901 = vsel %vm305, %v8854, 0
  %v8904 = vsel %vm305, %v8864, 0
  %v8907 = vsel %vm305, %v8866, 0
  %v8910 = vsel %vm305, %v8868, 0
  %v8913 = vsel %vm305, %v8870, 0
  %v8916 = vsel %vm305, %v8872, 0
  %v8919 = vsel %vm305, %v8874, 0
  %v8922 = vsel %vm305, %v8876, 0
  %v8925 = vsel %vm305, %v8878, 0
  %8927 = vmatprep.subr.bf16.mxu0 0
  %8928 = vmatpush1.bf16.xpose.msra.mxu0 %v8904
  %8929 = vmatprep.subr.bf16.mxu0 0
  %8930 = vmatpush1.bf16.xpose.msra.mxu0 %v8907
  %8931 = vmatprep.subr.bf16.mxu0 0
  %8932 = vmatpush1.bf16.xpose.msra.mxu0 %v8910
  %8933 = vmatprep.subr.bf16.mxu0 0
  %8934 = vmatpush1.bf16.xpose.msra.mxu0 %v8913
  %8935 = vmatprep.subr.bf16.mxu0 0
  %8936 = vmatpush1.bf16.xpose.msra.mxu0 %v8916
  %8937 = vmatprep.subr.bf16.mxu0 0
  %8938 = vmatpush1.bf16.xpose.msra.mxu0 %v8919
  %8939 = vmatprep.subr.bf16.mxu0 0
  %8940 = vmatpush1.bf16.xpose.msra.mxu0 %v8922
  %8941 = vmatprep.subr.bf16.mxu0 0
  %8942 = vmatpush1.bf16.xpose.msra.mxu0 %v8925
  %8943 = vmatprep.subr.bf16.mxu0 0
  %8944 = vmatpush1.bf16.xpose.msra.mxu0 0
  %8945 = vmatprep.subr.bf16.mxu0 0
  %8946 = vmatpush1.bf16.xpose.msra.mxu0 0
  %8947 = vmatprep.subr.bf16.mxu0 0
  %8948 = vmatpush1.bf16.xpose.msra.mxu0 0
  %8949 = vmatprep.subr.bf16.mxu0 0
  %8950 = vmatpush1.bf16.xpose.msra.mxu0 0
  %8951 = vmatprep.subr.bf16.mxu0 0
  %8952 = vmatpush1.bf16.xpose.msra.mxu0 0
  %8953 = vmatprep.subr.bf16.mxu0 0
  %8954 = vmatpush1.bf16.xpose.msra.mxu0 0
  %8955 = vmatprep.subr.bf16.mxu0 0
  %8956 = vmatpush1.bf16.xpose.msra.mxu0 0
  %8957 = vmatprep.subr.bf16.mxu0 0
  %8958 = vmatpush1.bf16.xpose.msra.mxu0 0
  %8959 = vmatprep.mubr.bf16.mxu0 0
  %8960 = vmatmul.mubr.bf16.gmra.mrb[0].mxu0 %v8880
  %v8961 = vpop.f32.mrb[0].mxu0
  %v8962 = vadd.f32 %v2472, %v8961
  %v8963 = vpop.f32.mrb[0].mxu0
  %v8964 = vpop.f32.mrb[0].mxu0
  %v8965 = vadd.f32 %v2473, %v8964
  %v8966 = vpop.f32.mrb[0].mxu0
  %8967 = vmatprep.mubr.bf16.mxu0 0
  %8968 = vmatmul.mubr.bf16.gmra.mrb[0].mxu0 %v8883
  %v8969 = vpop.f32.mrb[0].mxu0
  %v8970 = vadd.f32 %v2474, %v8969
  %v8971 = vpop.f32.mrb[0].mxu0
  %v8972 = vpop.f32.mrb[0].mxu0
  %v8973 = vadd.f32 %v2475, %v8972
  %v8974 = vpop.f32.mrb[0].mxu0
  %8975 = vmatprep.mubr.bf16.mxu0 0
  %8976 = vmatmul.mubr.bf16.gmra.mrb[0].mxu0 %v8886
  %v8977 = vpop.f32.mrb[0].mxu0
  %v8978 = vadd.f32 %v2476, %v8977
  %v8979 = vpop.f32.mrb[0].mxu0
  %v8980 = vpop.f32.mrb[0].mxu0
  %v8981 = vadd.f32 %v2477, %v8980
  %v8982 = vpop.f32.mrb[0].mxu0
  %8983 = vmatprep.mubr.bf16.mxu0 0
  %8984 = vmatmul.mubr.bf16.gmra.mrb[0].mxu0 %v8889
  %v8985 = vpop.f32.mrb[0].mxu0
  %v8986 = vadd.f32 %v2478, %v8985
  %v8987 = vpop.f32.mrb[0].mxu0
  %v8988 = vpop.f32.mrb[0].mxu0
  %v8989 = vadd.f32 %v2479, %v8988
  %v8990 = vpop.f32.mrb[0].mxu0
  %8991 = vmatprep.mubr.bf16.mxu0 0
  %8992 = vmatmul.mubr.bf16.gmra.mrb[0].mxu0 %v8892
  %v8993 = vpop.f32.mrb[0].mxu0
  %v8994 = vadd.f32 %v2480, %v8993
  %v8995 = vpop.f32.mrb[0].mxu0
  %v8996 = vpop.f32.mrb[0].mxu0
  %v8997 = vadd.f32 %v2481, %v8996
  %v8998 = vpop.f32.mrb[0].mxu0
  %8999 = vmatprep.mubr.bf16.mxu0 0
  %9000 = vmatmul.mubr.bf16.gmra.mrb[0].mxu0 %v8895
  %v9001 = vpop.f32.mrb[0].mxu0
  %v9002 = vadd.f32 %v2482, %v9001
  %v9003 = vpop.f32.mrb[0].mxu0
  %v9004 = vpop.f32.mrb[0].mxu0
  %v9005 = vadd.f32 %v2483, %v9004
  %v9006 = vpop.f32.mrb[0].mxu0
  %9007 = vmatprep.mubr.bf16.mxu0 0
  %9008 = vmatmul.mubr.bf16.gmra.mrb[0].mxu0 %v8898
  %v9009 = vpop.f32.mrb[0].mxu0
  %v9010 = vadd.f32 %v2484, %v9009
  %v9011 = vpop.f32.mrb[0].mxu0
  %v9012 = vpop.f32.mrb[0].mxu0
  %v9013 = vadd.f32 %v2485, %v9012
  %v9014 = vpop.f32.mrb[0].mxu0
  %9015 = vmatprep.mubr.bf16.mxu0 0
  %9016 = vmatmul.mubr.bf16.gmra.mrb[0].mxu0 %v8901
  %v9017 = vpop.f32.mrb[0].mxu0
  %v9018 = vadd.f32 %v2486, %v9017
  %v9019 = vpop.f32.mrb[0].mxu0
  %v9020 = vpop.f32.mrb[0].mxu0
  %v9021 = vadd.f32 %v2487, %v9020
  %v9022 = vpop.f32.mrb[0].mxu0
  %9023 = vdwg.mxu0
  %9024 = vmax.xlane.f32.xlu0 %v8962
  %v9025 = vpop.xlane.xlu0 %9024
  %9026 = vmax.xlane.f32.xlu0 %v8965
  %v9027 = vpop.xlane.xlu0 %9026
  %9028 = vmax.xlane.f32.xlu0 %v8970
  %v9029 = vpop.xlane.xlu0 %9028
  %9030 = vmax.xlane.f32.xlu0 %v8973
  %v9031 = vpop.xlane.xlu0 %9030
  %9032 = vmax.xlane.f32.xlu0 %v8978
  %v9033 = vpop.xlane.xlu0 %9032
  %9034 = vmax.xlane.f32.xlu0 %v8981
  %v9035 = vpop.xlane.xlu0 %9034
  %9036 = vmax.xlane.f32.xlu0 %v8986
  %v9037 = vpop.xlane.xlu0 %9036
  %9038 = vmax.xlane.f32.xlu0 %v8989
  %v9039 = vpop.xlane.xlu0 %9038
  %9040 = vmax.xlane.f32.xlu0 %v8994
  %v9041 = vpop.xlane.xlu0 %9040
  %9042 = vmax.xlane.f32.xlu0 %v8997
  %v9043 = vpop.xlane.xlu0 %9042
  %9044 = vmax.xlane.f32.xlu0 %v9002
  %v9045 = vpop.xlane.xlu0 %9044
  %9046 = vmax.xlane.f32.xlu0 %v9005
  %v9047 = vpop.xlane.xlu0 %9046
  %9048 = vmax.xlane.f32.xlu0 %v9010
  %v9049 = vpop.xlane.xlu0 %9048
  %9050 = vmax.xlane.f32.xlu0 %v9013
  %v9051 = vpop.xlane.xlu0 %9050
  %9052 = vmax.xlane.f32.xlu0 %v9018
  %v9053 = vpop.xlane.xlu0 %9052
  %9054 = vmax.xlane.f32.xlu0 %v9021
  %v9055 = vpop.xlane.xlu0 %9054
  %v9056 = vsub.f32 %v8962, %v9025
  %v9057 = vsub.f32 %v8965, %v9027
  %v9058 = vsub.f32 %v8970, %v9029
  %v9059 = vsub.f32 %v8973, %v9031
  %v9060 = vsub.f32 %v8978, %v9033
  %v9061 = vsub.f32 %v8981, %v9035
  %v9062 = vsub.f32 %v8986, %v9037
  %v9063 = vsub.f32 %v8989, %v9039
  %v9064 = vsub.f32 %v8994, %v9041
  %v9065 = vsub.f32 %v8997, %v9043
  %v9066 = vsub.f32 %v9002, %v9045
  %v9067 = vsub.f32 %v9005, %v9047
  %v9068 = vsub.f32 %v9010, %v9049
  %v9069 = vsub.f32 %v9013, %v9051
  %v9070 = vsub.f32 %v9018, %v9053
  %v9071 = vsub.f32 %v9021, %v9055
  %v9072 = vmul.f32 %v9056, 1.442695
  %v9073 = vpow.pop %v9072
  %v9074 = vmul.f32 %v9057, 1.442695
  %v9075 = vpow.pop %v9074
  %v9076 = vmul.f32 %v9058, 1.442695
  %v9077 = vpow.pop %v9076
  %v9078 = vmul.f32 %v9059, 1.442695
  %v9079 = vpow.pop %v9078
  %v9080 = vmul.f32 %v9060, 1.442695
  %v9081 = vpow.pop %v9080
  %v9082 = vmul.f32 %v9061, 1.442695
  %v9083 = vpow.pop %v9082
  %v9084 = vmul.f32 %v9062, 1.442695
  %v9085 = vpow.pop %v9084
  %v9086 = vmul.f32 %v9063, 1.442695
  %v9087 = vpow.pop %v9086
  %v9088 = vmul.f32 %v9064, 1.442695
  %v9089 = vpow.pop %v9088
  %v9090 = vmul.f32 %v9065, 1.442695
  %v9091 = vpow.pop %v9090
  %v9092 = vmul.f32 %v9066, 1.442695
  %v9093 = vpow.pop %v9092
  %v9094 = vmul.f32 %v9067, 1.442695
  %v9095 = vpow.pop %v9094
  %v9096 = vmul.f32 %v9068, 1.442695
  %v9097 = vpow.pop %v9096
  %v9098 = vmul.f32 %v9069, 1.442695
  %v9099 = vpow.pop %v9098
  %v9100 = vmul.f32 %v9070, 1.442695
  %v9101 = vpow.pop %v9100
  %v9102 = vmul.f32 %v9071, 1.442695
  %v9103 = vpow.pop %v9102
  %9104 = vadd.xlane.f32.xlu0 %v9073
  %v9105 = vpop.xlane.xlu0 %9104
  %9106 = vadd.xlane.f32.xlu0 %v9075
  %v9107 = vpop.xlane.xlu0 %9106
  %9108 = vadd.xlane.f32.xlu0 %v9077
  %v9109 = vpop.xlane.xlu0 %9108
  %9110 = vadd.xlane.f32.xlu0 %v9079
  %v9111 = vpop.xlane.xlu0 %9110
  %9112 = vadd.xlane.f32.xlu0 %v9081
  %v9113 = vpop.xlane.xlu0 %9112
  %9114 = vadd.xlane.f32.xlu0 %v9083
  %v9115 = vpop.xlane.xlu0 %9114
  %9116 = vadd.xlane.f32.xlu0 %v9085
  %v9117 = vpop.xlane.xlu0 %9116
  %9118 = vadd.xlane.f32.xlu0 %v9087
  %v9119 = vpop.xlane.xlu0 %9118
  %9120 = vadd.xlane.f32.xlu0 %v9089
  %v9121 = vpop.xlane.xlu0 %9120
  %9122 = vadd.xlane.f32.xlu0 %v9091
  %v9123 = vpop.xlane.xlu0 %9122
  %9124 = vadd.xlane.f32.xlu0 %v9093
  %v9125 = vpop.xlane.xlu0 %9124
  %9126 = vadd.xlane.f32.xlu0 %v9095
  %v9127 = vpop.xlane.xlu0 %9126
  %9128 = vadd.xlane.f32.xlu0 %v9097
  %v9129 = vpop.xlane.xlu0 %9128
  %9130 = vadd.xlane.f32.xlu0 %v9099
  %v9131 = vpop.xlane.xlu0 %9130
  %9132 = vadd.xlane.f32.xlu0 %v9101
  %v9133 = vpop.xlane.xlu0 %9132
  %9134 = vadd.xlane.f32.xlu0 %v9103
  %v9135 = vpop.xlane.xlu0 %9134
  %v9136 = vrcp.pop %v9105
  %v9137 = vrcp.pop %v9107
  %v9138 = vrcp.pop %v9109
  %v9139 = vrcp.pop %v9111
  %v9140 = vrcp.pop %v9113
  %v9141 = vrcp.pop %v9115
  %v9142 = vrcp.pop %v9117
  %v9143 = vrcp.pop %v9119
  %v9144 = vrcp.pop %v9121
  %v9145 = vrcp.pop %v9123
  %v9146 = vrcp.pop %v9125
  %v9147 = vrcp.pop %v9127
  %v9148 = vrcp.pop %v9129
  %v9149 = vrcp.pop %v9131
  %v9150 = vrcp.pop %v9133
  %v9151 = vrcp.pop %v9135
  %v9152 = vmul.f32 %v9073, %v9136
  %v9153 = vmul.f32 %v9075, %v9137
  %v9154 = vmul.f32 %v9077, %v9138
  %v9155 = vmul.f32 %v9079, %v9139
  %v9156 = vmul.f32 %v9081, %v9140
  %v9157 = vmul.f32 %v9083, %v9141
  %v9158 = vmul.f32 %v9085, %v9142
  %v9159 = vmul.f32 %v9087, %v9143
  %v9160 = vmul.f32 %v9089, %v9144
  %v9161 = vmul.f32 %v9091, %v9145
  %v9162 = vmul.f32 %v9093, %v9146
  %v9163 = vmul.f32 %v9095, %v9147
  %v9164 = vmul.f32 %v9097, %v9148
  %v9165 = vmul.f32 %v9099, %v9149
  %v9166 = vmul.f32 %v9101, %v9150
  %v9167 = vmul.f32 %v9103, %v9151
  %v9168 = vpack.c.bf16 %v9153, %v9152
  %v9169 = vpack.c.bf16 %v9155, %v9154
  %v9170 = vpack.c.bf16 %v9157, %v9156
  %v9171 = vpack.c.bf16 %v9159, %v9158
  %v9172 = vpack.c.bf16 %v9161, %v9160
  %v9173 = vpack.c.bf16 %v9163, %v9162
  %v9174 = vpack.c.bf16 %v9165, %v9164
  %v9175 = vpack.c.bf16 %v9167, %v9166
  %9184 = vrot.lane.b32.xlu0 %v8823, 64
  %v9185 = vpop.permute.xlu0 %9184
  %9186 = vrot.lane.b32.xlu0 %v8824, 64
  %v9187 = vpop.permute.xlu0 %9186
  %9188 = vrot.lane.b32.xlu0 %v8825, 64
  %v9189 = vpop.permute.xlu0 %9188
  %9190 = vrot.lane.b32.xlu0 %v8826, 64
  %v9191 = vpop.permute.xlu0 %9190
  %9192 = vrot.lane.b32.xlu0 %v8827, 64
  %v9193 = vpop.permute.xlu0 %9192
  %9194 = vrot.lane.b32.xlu0 %v8828, 64
  %v9195 = vpop.permute.xlu0 %9194
  %9196 = vrot.lane.b32.xlu0 %v8829, 64
  %v9197 = vpop.permute.xlu0 %9196
  %9198 = vrot.lane.b32.xlu0 %v8830, 64
  %v9199 = vpop.permute.xlu0 %9198
  %9208 = vmatprep.subr.bf16.mxu0 0
  %9209 = vmatpush1.bf16.msra.mxu0 %v9185
  %9210 = vmatprep.subr.bf16.mxu0 0
  %9211 = vmatpush1.bf16.msra.mxu0 %v9187
  %9212 = vmatprep.subr.bf16.mxu0 0
  %9213 = vmatpush1.bf16.msra.mxu0 %v9189
  %9214 = vmatprep.subr.bf16.mxu0 0
  %9215 = vmatpush1.bf16.msra.mxu0 %v9191
  %9216 = vmatprep.subr.bf16.mxu0 0
  %9217 = vmatpush1.bf16.msra.mxu0 %v9193
  %9218 = vmatprep.subr.bf16.mxu0 0
  %9219 = vmatpush1.bf16.msra.mxu0 %v9195
  %9220 = vmatprep.subr.bf16.mxu0 0
  %9221 = vmatpush1.bf16.msra.mxu0 %v9197
  %9222 = vmatprep.subr.bf16.mxu0 0
  %9223 = vmatpush1.bf16.msra.mxu0 %v9199
  %9224 = vmatprep.subr.bf16.mxu0 0
  %9225 = vmatpush1.bf16.msra.mxu0 0
  %9226 = vmatprep.subr.bf16.mxu0 0
  %9227 = vmatpush1.bf16.msra.mxu0 0
  %9228 = vmatprep.subr.bf16.mxu0 0
  %9229 = vmatpush1.bf16.msra.mxu0 0
  %9230 = vmatprep.subr.bf16.mxu0 0
  %9231 = vmatpush1.bf16.msra.mxu0 0
  %9232 = vmatprep.subr.bf16.mxu0 0
  %9233 = vmatpush1.bf16.msra.mxu0 0
  %9234 = vmatprep.subr.bf16.mxu0 0
  %9235 = vmatpush1.bf16.msra.mxu0 0
  %9236 = vmatprep.subr.bf16.mxu0 0
  %9237 = vmatpush1.bf16.msra.mxu0 0
  %9238 = vmatprep.subr.bf16.mxu0 0
  %9239 = vmatpush1.bf16.msra.mxu0 0
  %9240 = vmatprep.mubr.bf16.mxu0 0
  %9241 = vmatmul.mubr.bf16.gmra.mrb[0].mxu0 %v9168
  %v9242 = vpop.f32.mrb[0].mxu0
  %v9243 = vadd.f32 0.0, %v9242
  %v9244 = vpop.f32.mrb[0].mxu0
  %v9245 = vpop.f32.mrb[0].mxu0
  %v9246 = vadd.f32 0.0, %v9245
  %v9247 = vpop.f32.mrb[0].mxu0
  %9248 = vmatprep.mubr.bf16.mxu0 0
  %9249 = vmatmul.mubr.bf16.gmra.mrb[0].mxu0 %v9169
  %v9250 = vpop.f32.mrb[0].mxu0
  %v9251 = vadd.f32 0.0, %v9250
  %v9252 = vpop.f32.mrb[0].mxu0
  %v9253 = vpop.f32.mrb[0].mxu0
  %v9254 = vadd.f32 0.0, %v9253
  %v9255 = vpop.f32.mrb[0].mxu0
  %9256 = vmatprep.mubr.bf16.mxu0 0
  %9257 = vmatmul.mubr.bf16.gmra.mrb[0].mxu0 %v9170
  %v9258 = vpop.f32.mrb[0].mxu0
  %v9259 = vadd.f32 0.0, %v9258
  %v9260 = vpop.f32.mrb[0].mxu0
  %v9261 = vpop.f32.mrb[0].mxu0
  %v9262 = vadd.f32 0.0, %v9261
  %v9263 = vpop.f32.mrb[0].mxu0
  %9264 = vmatprep.mubr.bf16.mxu0 0
  %9265 = vmatmul.mubr.bf16.gmra.mrb[0].mxu0 %v9171
  %v9266 = vpop.f32.mrb[0].mxu0
  %v9267 = vadd.f32 0.0, %v9266
  %v9268 = vpop.f32.mrb[0].mxu0
  %v9269 = vpop.f32.mrb[0].mxu0
  %v9270 = vadd.f32 0.0, %v9269
  %v9271 = vpop.f32.mrb[0].mxu0
  %9272 = vmatprep.mubr.bf16.mxu0 0
  %9273 = vmatmul.mubr.bf16.gmra.mrb[0].mxu0 %v9172
  %v9274 = vpop.f32.mrb[0].mxu0
  %v9275 = vadd.f32 0.0, %v9274
  %v9276 = vpop.f32.mrb[0].mxu0
  %v9277 = vpop.f32.mrb[0].mxu0
  %v9278 = vadd.f32 0.0, %v9277
  %v9279 = vpop.f32.mrb[0].mxu0
  %9280 = vmatprep.mubr.bf16.mxu0 0
  %9281 = vmatmul.mubr.bf16.gmra.mrb[0].mxu0 %v9173
  %v9282 = vpop.f32.mrb[0].mxu0
  %v9283 = vadd.f32 0.0, %v9282
  %v9284 = vpop.f32.mrb[0].mxu0
  %v9285 = vpop.f32.mrb[0].mxu0
  %v9286 = vadd.f32 0.0, %v9285
  %v9287 = vpop.f32.mrb[0].mxu0
  %9288 = vmatprep.mubr.bf16.mxu0 0
  %9289 = vmatmul.mubr.bf16.gmra.mrb[0].mxu0 %v9174
  %v9290 = vpop.f32.mrb[0].mxu0
  %v9291 = vadd.f32 0.0, %v9290
  %v9292 = vpop.f32.mrb[0].mxu0
  %v9293 = vpop.f32.mrb[0].mxu0
  %v9294 = vadd.f32 0.0, %v9293
  %v9295 = vpop.f32.mrb[0].mxu0
  %9296 = vmatprep.mubr.bf16.mxu0 0
  %9297 = vmatmul.mubr.bf16.gmra.mrb[0].mxu0 %v9175
  %v9298 = vpop.f32.mrb[0].mxu0
  %v9299 = vadd.f32 0.0, %v9298
  %v9300 = vpop.f32.mrb[0].mxu0
  %v9301 = vpop.f32.mrb[0].mxu0
  %v9302 = vadd.f32 0.0, %v9301
  %v9303 = vpop.f32.mrb[0].mxu0
  %9304 = vdwg.mxu0
  %v9305 = vpack.c.bf16 %v9246, %v9243
  %v9306 = vpack.c.bf16 %v9254, %v9251
  %v9307 = vpack.c.bf16 %v9262, %v9259
  %v9308 = vpack.c.bf16 %v9270, %v9267
  %v9309 = vpack.c.bf16 %v9278, %v9275
  %v9310 = vpack.c.bf16 %v9286, %v9283
  %v9311 = vpack.c.bf16 %v9294, %v9291
  %v9312 = vpack.c.bf16 %v9302, %v9299
  %9321 = vrot.lane.b32.xlu0 %v9305, 64
  %v9322 = vpop.permute.xlu0 %9321
  %9323 = vrot.lane.b32.xlu0 %v9306, 64
  %v9324 = vpop.permute.xlu0 %9323
  %9325 = vrot.lane.b32.xlu0 %v9307, 64
  %v9326 = vpop.permute.xlu0 %9325
  %9327 = vrot.lane.b32.xlu0 %v9308, 64
  %v9328 = vpop.permute.xlu0 %9327
  %9329 = vrot.lane.b32.xlu0 %v9309, 64
  %v9330 = vpop.permute.xlu0 %9329
  %9331 = vrot.lane.b32.xlu0 %v9310, 64
  %v9332 = vpop.permute.xlu0 %9331
  %9333 = vrot.lane.b32.xlu0 %v9311, 64
  %v9334 = vpop.permute.xlu0 %9333
  %9335 = vrot.lane.b32.xlu0 %v9312, 64
  %v9336 = vpop.permute.xlu0 %9335
  %9345 = vst.msk [vmem:[%s6838 + $0x10] sm:$0xff] %vm3460, %v9322
  %9346 = vst.msk [vmem:[%s6838 + $0x30] sm:$0xff] %vm3460, %v9324
  %9347 = vst.msk [vmem:[%s6838 + $0x50] sm:$0xff] %vm3460, %v9326
  %9348 = vst.msk [vmem:[%s6838 + $0x70] sm:$0xff] %vm3460, %v9328
  %9349 = vst.msk [vmem:[%s6838 + $0x90] sm:$0xff] %vm3460, %v9330
  %9350 = vst.msk [vmem:[%s6838 + $0xb0] sm:$0xff] %vm3460, %v9332
  %9351 = vst.msk [vmem:[%s6838 + $0xd0] sm:$0xff] %vm3460, %v9334
  %9352 = vst.msk [vmem:[%s6838 + $0xf0] sm:$0xff] %vm3460, %v9336
  %v9353 = vld [vmem:[%s6409 + $0x18] sm:$0xff]
  %v9354 = vld [vmem:[%s6409 + $0x38] sm:$0xff]
  %v9355 = vld [vmem:[%s6409 + $0x58] sm:$0xff]
  %v9356 = vld [vmem:[%s6409 + $0x78] sm:$0xff]
  %v9357 = vld [vmem:[%s6409 + $0x98] sm:$0xff]
  %v9358 = vld [vmem:[%s6409 + $0xb8] sm:$0xff]
  %v9359 = vld [vmem:[%s6409 + $0xd8] sm:$0xff]
  %v9360 = vld [vmem:[%s6409 + $0xf8] sm:$0xff]
  %v9361 = vld [vmem:[%s6418 + $0x18] sm:$0xff]
  %v9362 = vld [vmem:[%s6418 + $0x38] sm:$0xff]
  %v9363 = vld [vmem:[%s6418 + $0x58] sm:$0xff]
  %v9364 = vld [vmem:[%s6418 + $0x78] sm:$0xff]
  %v9365 = vld [vmem:[%s6418 + $0x98] sm:$0xff]
  %v9366 = vld [vmem:[%s6418 + $0xb8] sm:$0xff]
  %v9367 = vld [vmem:[%s6418 + $0xd8] sm:$0xff]
  %v9368 = vld [vmem:[%s6418 + $0xf8] sm:$0xff]
  %v9369 = vld [vmem:[%s6427 + $0x18] sm:$0xff]
  %v9370 = vld [vmem:[%s6427 + $0x38] sm:$0xff]
  %v9371 = vld [vmem:[%s6427 + $0x58] sm:$0xff]
  %v9372 = vld [vmem:[%s6427 + $0x78] sm:$0xff]
  %v9373 = vld [vmem:[%s6427 + $0x98] sm:$0xff]
  %v9374 = vld [vmem:[%s6427 + $0xb8] sm:$0xff]
  %v9375 = vld [vmem:[%s6427 + $0xd8] sm:$0xff]
  %v9376 = vld [vmem:[%s6427 + $0xf8] sm:$0xff]
  %v9378 = vsel %vm305, %v9353, 0
  %v9381 = vsel %vm305, %v9354, 0
  %v9384 = vsel %vm305, %v9355, 0
  %v9387 = vsel %vm305, %v9356, 0
  %v9390 = vsel %vm305, %v9357, 0
  %v9393 = vsel %vm305, %v9358, 0
  %v9396 = vsel %vm305, %v9359, 0
  %v9399 = vsel %vm305, %v9360, 0
  %v9402 = vsel %vm305, %v9361, 0
  %v9405 = vsel %vm305, %v9362, 0
  %v9408 = vsel %vm305, %v9363, 0
  %v9411 = vsel %vm305, %v9364, 0
  %v9414 = vsel %vm305, %v9365, 0
  %v9417 = vsel %vm305, %v9366, 0
  %v9420 = vsel %vm305, %v9367, 0
  %v9423 = vsel %vm305, %v9368, 0
  %9425 = vmatprep.subr.bf16.mxu0 0
  %9426 = vmatpush1.bf16.xpose.msra.mxu0 %v9402
  %9427 = vmatprep.subr.bf16.mxu0 0
  %9428 = vmatpush1.bf16.xpose.msra.mxu0 %v9405
  %9429 = vmatprep.subr.bf16.mxu0 0
  %9430 = vmatpush1.bf16.xpose.msra.mxu0 %v9408
  %9431 = vmatprep.subr.bf16.mxu0 0
  %9432 = vmatpush1.bf16.xpose.msra.mxu0 %v9411
  %9433 = vmatprep.subr.bf16.mxu0 0
  %9434 = vmatpush1.bf16.xpose.msra.mxu0 %v9414
  %9435 = vmatprep.subr.bf16.mxu0 0
  %9436 = vmatpush1.bf16.xpose.msra.mxu0 %v9417
  %9437 = vmatprep.subr.bf16.mxu0 0
  %9438 = vmatpush1.bf16.xpose.msra.mxu0 %v9420
  %9439 = vmatprep.subr.bf16.mxu0 0
  %9440 = vmatpush1.bf16.xpose.msra.mxu0 %v9423
  %9441 = vmatprep.subr.bf16.mxu0 0
  %9442 = vmatpush1.bf16.xpose.msra.mxu0 0
  %9443 = vmatprep.subr.bf16.mxu0 0
  %9444 = vmatpush1.bf16.xpose.msra.mxu0 0
  %9445 = vmatprep.subr.bf16.mxu0 0
  %9446 = vmatpush1.bf16.xpose.msra.mxu0 0
  %9447 = vmatprep.subr.bf16.mxu0 0
  %9448 = vmatpush1.bf16.xpose.msra.mxu0 0
  %9449 = vmatprep.subr.bf16.mxu0 0
  %9450 = vmatpush1.bf16.xpose.msra.mxu0 0
  %9451 = vmatprep.subr.bf16.mxu0 0
  %9452 = vmatpush1.bf16.xpose.msra.mxu0 0
  %9453 = vmatprep.subr.bf16.mxu0 0
  %9454 = vmatpush1.bf16.xpose.msra.mxu0 0
  %9455 = vmatprep.subr.bf16.mxu0 0
  %9456 = vmatpush1.bf16.xpose.msra.mxu0 0
  %9457 = vmatprep.mubr.bf16.mxu0 0
  %9458 = vmatmul.mubr.bf16.gmra.mrb[0].mxu0 %v9378
  %v9459 = vpop.f32.mrb[0].mxu0
  %v9460 = vadd.f32 %v2472, %v9459
  %v9461 = vpop.f32.mrb[0].mxu0
  %v9462 = vpop.f32.mrb[0].mxu0
  %v9463 = vadd.f32 %v2473, %v9462
  %v9464 = vpop.f32.mrb[0].mxu0
  %9465 = vmatprep.mubr.bf16.mxu0 0
  %9466 = vmatmul.mubr.bf16.gmra.mrb[0].mxu0 %v9381
  %v9467 = vpop.f32.mrb[0].mxu0
  %v9468 = vadd.f32 %v2474, %v9467
  %v9469 = vpop.f32.mrb[0].mxu0
  %v9470 = vpop.f32.mrb[0].mxu0
  %v9471 = vadd.f32 %v2475, %v9470
  %v9472 = vpop.f32.mrb[0].mxu0
  %9473 = vmatprep.mubr.bf16.mxu0 0
  %9474 = vmatmul.mubr.bf16.gmra.mrb[0].mxu0 %v9384
  %v9475 = vpop.f32.mrb[0].mxu0
  %v9476 = vadd.f32 %v2476, %v9475
  %v9477 = vpop.f32.mrb[0].mxu0
  %v9478 = vpop.f32.mrb[0].mxu0
  %v9479 = vadd.f32 %v2477, %v9478
  %v9480 = vpop.f32.mrb[0].mxu0
  %9481 = vmatprep.mubr.bf16.mxu0 0
  %9482 = vmatmul.mubr.bf16.gmra.mrb[0].mxu0 %v9387
  %v9483 = vpop.f32.mrb[0].mxu0
  %v9484 = vadd.f32 %v2478, %v9483
  %v9485 = vpop.f32.mrb[0].mxu0
  %v9486 = vpop.f32.mrb[0].mxu0
  %v9487 = vadd.f32 %v2479, %v9486
  %v9488 = vpop.f32.mrb[0].mxu0
  %9489 = vmatprep.mubr.bf16.mxu0 0
  %9490 = vmatmul.mubr.bf16.gmra.mrb[0].mxu0 %v9390
  %v9491 = vpop.f32.mrb[0].mxu0
  %v9492 = vadd.f32 %v2480, %v9491
  %v9493 = vpop.f32.mrb[0].mxu0
  %v9494 = vpop.f32.mrb[0].mxu0
  %v9495 = vadd.f32 %v2481, %v9494
  %v9496 = vpop.f32.mrb[0].mxu0
  %9497 = vmatprep.mubr.bf16.mxu0 0
  %9498 = vmatmul.mubr.bf16.gmra.mrb[0].mxu0 %v9393
  %v9499 = vpop.f32.mrb[0].mxu0
  %v9500 = vadd.f32 %v2482, %v9499
  %v9501 = vpop.f32.mrb[0].mxu0
  %v9502 = vpop.f32.mrb[0].mxu0
  %v9503 = vadd.f32 %v2483, %v9502
  %v9504 = vpop.f32.mrb[0].mxu0
  %9505 = vmatprep.mubr.bf16.mxu0 0
  %9506 = vmatmul.mubr.bf16.gmra.mrb[0].mxu0 %v9396
  %v9507 = vpop.f32.mrb[0].mxu0
  %v9508 = vadd.f32 %v2484, %v9507
  %v9509 = vpop.f32.mrb[0].mxu0
  %v9510 = vpop.f32.mrb[0].mxu0
  %v9511 = vadd.f32 %v2485, %v9510
  %v9512 = vpop.f32.mrb[0].mxu0
  %9513 = vmatprep.mubr.bf16.mxu0 0
  %9514 = vmatmul.mubr.bf16.gmra.mrb[0].mxu0 %v9399
  %v9515 = vpop.f32.mrb[0].mxu0
  %v9516 = vadd.f32 %v2486, %v9515
  %v9517 = vpop.f32.mrb[0].mxu0
  %v9518 = vpop.f32.mrb[0].mxu0
  %v9519 = vadd.f32 %v2487, %v9518
  %v9520 = vpop.f32.mrb[0].mxu0
  %9521 = vdwg.mxu0
  %9522 = vmax.xlane.f32.xlu0 %v9460
  %v9523 = vpop.xlane.xlu0 %9522
  %9524 = vmax.xlane.f32.xlu0 %v9463
  %v9525 = vpop.xlane.xlu0 %9524
  %9526 = vmax.xlane.f32.xlu0 %v9468
  %v9527 = vpop.xlane.xlu0 %9526
  %9528 = vmax.xlane.f32.xlu0 %v9471
  %v9529 = vpop.xlane.xlu0 %9528
  %9530 = vmax.xlane.f32.xlu0 %v9476
  %v9531 = vpop.xlane.xlu0 %9530
  %9532 = vmax.xlane.f32.xlu0 %v9479
  %v9533 = vpop.xlane.xlu0 %9532
  %9534 = vmax.xlane.f32.xlu0 %v9484
  %v9535 = vpop.xlane.xlu0 %9534
  %9536 = vmax.xlane.f32.xlu0 %v9487
  %v9537 = vpop.xlane.xlu0 %9536
  %9538 = vmax.xlane.f32.xlu0 %v9492
  %v9539 = vpop.xlane.xlu0 %9538
  %9540 = vmax.xlane.f32.xlu0 %v9495
  %v9541 = vpop.xlane.xlu0 %9540
  %9542 = vmax.xlane.f32.xlu0 %v9500
  %v9543 = vpop.xlane.xlu0 %9542
  %9544 = vmax.xlane.f32.xlu0 %v9503
  %v9545 = vpop.xlane.xlu0 %9544
  %9546 = vmax.xlane.f32.xlu0 %v9508
  %v9547 = vpop.xlane.xlu0 %9546
  %9548 = vmax.xlane.f32.xlu0 %v9511
  %v9549 = vpop.xlane.xlu0 %9548
  %9550 = vmax.xlane.f32.xlu0 %v9516
  %v9551 = vpop.xlane.xlu0 %9550
  %9552 = vmax.xlane.f32.xlu0 %v9519
  %v9553 = vpop.xlane.xlu0 %9552
  %v9554 = vsub.f32 %v9460, %v9523
  %v9555 = vsub.f32 %v9463, %v9525
  %v9556 = vsub.f32 %v9468, %v9527
  %v9557 = vsub.f32 %v9471, %v9529
  %v9558 = vsub.f32 %v9476, %v9531
  %v9559 = vsub.f32 %v9479, %v9533
  %v9560 = vsub.f32 %v9484, %v9535
  %v9561 = vsub.f32 %v9487, %v9537
  %v9562 = vsub.f32 %v9492, %v9539
  %v9563 = vsub.f32 %v9495, %v9541
  %v9564 = vsub.f32 %v9500, %v9543
  %v9565 = vsub.f32 %v9503, %v9545
  %v9566 = vsub.f32 %v9508, %v9547
  %v9567 = vsub.f32 %v9511, %v9549
  %v9568 = vsub.f32 %v9516, %v9551
  %v9569 = vsub.f32 %v9519, %v9553
  %v9570 = vmul.f32 %v9554, 1.442695
  %v9571 = vpow.pop %v9570
  %v9572 = vmul.f32 %v9555, 1.442695
  %v9573 = vpow.pop %v9572
  %v9574 = vmul.f32 %v9556, 1.442695
  %v9575 = vpow.pop %v9574
  %v9576 = vmul.f32 %v9557, 1.442695
  %v9577 = vpow.pop %v9576
  %v9578 = vmul.f32 %v9558, 1.442695
  %v9579 = vpow.pop %v9578
  %v9580 = vmul.f32 %v9559, 1.442695
  %v9581 = vpow.pop %v9580
  %v9582 = vmul.f32 %v9560, 1.442695
  %v9583 = vpow.pop %v9582
  %v9584 = vmul.f32 %v9561, 1.442695
  %v9585 = vpow.pop %v9584
  %v9586 = vmul.f32 %v9562, 1.442695
  %v9587 = vpow.pop %v9586
  %v9588 = vmul.f32 %v9563, 1.442695
  %v9589 = vpow.pop %v9588
  %v9590 = vmul.f32 %v9564, 1.442695
  %v9591 = vpow.pop %v9590
  %v9592 = vmul.f32 %v9565, 1.442695
  %v9593 = vpow.pop %v9592
  %v9594 = vmul.f32 %v9566, 1.442695
  %v9595 = vpow.pop %v9594
  %v9596 = vmul.f32 %v9567, 1.442695
  %v9597 = vpow.pop %v9596
  %v9598 = vmul.f32 %v9568, 1.442695
  %v9599 = vpow.pop %v9598
  %v9600 = vmul.f32 %v9569, 1.442695
  %v9601 = vpow.pop %v9600
  %9602 = vadd.xlane.f32.xlu0 %v9571
  %v9603 = vpop.xlane.xlu0 %9602
  %9604 = vadd.xlane.f32.xlu0 %v9573
  %v9605 = vpop.xlane.xlu0 %9604
  %9606 = vadd.xlane.f32.xlu0 %v9575
  %v9607 = vpop.xlane.xlu0 %9606
  %9608 = vadd.xlane.f32.xlu0 %v9577
  %v9609 = vpop.xlane.xlu0 %9608
  %9610 = vadd.xlane.f32.xlu0 %v9579
  %v9611 = vpop.xlane.xlu0 %9610
  %9612 = vadd.xlane.f32.xlu0 %v9581
  %v9613 = vpop.xlane.xlu0 %9612
  %9614 = vadd.xlane.f32.xlu0 %v9583
  %v9615 = vpop.xlane.xlu0 %9614
  %9616 = vadd.xlane.f32.xlu0 %v9585
  %v9617 = vpop.xlane.xlu0 %9616
  %9618 = vadd.xlane.f32.xlu0 %v9587
  %v9619 = vpop.xlane.xlu0 %9618
  %9620 = vadd.xlane.f32.xlu0 %v9589
  %v9621 = vpop.xlane.xlu0 %9620
  %9622 = vadd.xlane.f32.xlu0 %v9591
  %v9623 = vpop.xlane.xlu0 %9622
  %9624 = vadd.xlane.f32.xlu0 %v9593
  %v9625 = vpop.xlane.xlu0 %9624
  %9626 = vadd.xlane.f32.xlu0 %v9595
  %v9627 = vpop.xlane.xlu0 %9626
  %9628 = vadd.xlane.f32.xlu0 %v9597
  %v9629 = vpop.xlane.xlu0 %9628
  %9630 = vadd.xlane.f32.xlu0 %v9599
  %v9631 = vpop.xlane.xlu0 %9630
  %9632 = vadd.xlane.f32.xlu0 %v9601
  %v9633 = vpop.xlane.xlu0 %9632
  %v9634 = vrcp.pop %v9603
  %v9635 = vrcp.pop %v9605
  %v9636 = vrcp.pop %v9607
  %v9637 = vrcp.pop %v9609
  %v9638 = vrcp.pop %v9611
  %v9639 = vrcp.pop %v9613
  %v9640 = vrcp.pop %v9615
  %v9641 = vrcp.pop %v9617
  %v9642 = vrcp.pop %v9619
  %v9643 = vrcp.pop %v9621
  %v9644 = vrcp.pop %v9623
  %v9645 = vrcp.pop %v9625
  %v9646 = vrcp.pop %v9627
  %v9647 = vrcp.pop %v9629
  %v9648 = vrcp.pop %v9631
  %v9649 = vrcp.pop %v9633
  %v9650 = vmul.f32 %v9571, %v9634
  %v9651 = vmul.f32 %v9573, %v9635
  %v9652 = vmul.f32 %v9575, %v9636
  %v9653 = vmul.f32 %v9577, %v9637
  %v9654 = vmul.f32 %v9579, %v9638
  %v9655 = vmul.f32 %v9581, %v9639
  %v9656 = vmul.f32 %v9583, %v9640
  %v9657 = vmul.f32 %v9585, %v9641
  %v9658 = vmul.f32 %v9587, %v9642
  %v9659 = vmul.f32 %v9589, %v9643
  %v9660 = vmul.f32 %v9591, %v9644
  %v9661 = vmul.f32 %v9593, %v9645
  %v9662 = vmul.f32 %v9595, %v9646
  %v9663 = vmul.f32 %v9597, %v9647
  %v9664 = vmul.f32 %v9599, %v9648
  %v9665 = vmul.f32 %v9601, %v9649
  %v9666 = vpack.c.bf16 %v9651, %v9650
  %v9667 = vpack.c.bf16 %v9653, %v9652
  %v9668 = vpack.c.bf16 %v9655, %v9654
  %v9669 = vpack.c.bf16 %v9657, %v9656
  %v9670 = vpack.c.bf16 %v9659, %v9658
  %v9671 = vpack.c.bf16 %v9661, %v9660
  %v9672 = vpack.c.bf16 %v9663, %v9662
  %v9673 = vpack.c.bf16 %v9665, %v9664
  %9674 = vmatprep.subr.bf16.mxu0 0
  %9675 = vmatpush1.bf16.msra.mxu0 %v9369
  %9676 = vmatprep.subr.bf16.mxu0 0
  %9677 = vmatpush1.bf16.msra.mxu0 %v9370
  %9678 = vmatprep.subr.bf16.mxu0 0
  %9679 = vmatpush1.bf16.msra.mxu0 %v9371
  %9680 = vmatprep.subr.bf16.mxu0 0
  %9681 = vmatpush1.bf16.msra.mxu0 %v9372
  %9682 = vmatprep.subr.bf16.mxu0 0
  %9683 = vmatpush1.bf16.msra.mxu0 %v9373
  %9684 = vmatprep.subr.bf16.mxu0 0
  %9685 = vmatpush1.bf16.msra.mxu0 %v9374
  %9686 = vmatprep.subr.bf16.mxu0 0
  %9687 = vmatpush1.bf16.msra.mxu0 %v9375
  %9688 = vmatprep.subr.bf16.mxu0 0
  %9689 = vmatpush1.bf16.msra.mxu0 %v9376
  %9690 = vmatprep.subr.bf16.mxu0 0
  %9691 = vmatpush1.bf16.msra.mxu0 0
  %9692 = vmatprep.subr.bf16.mxu0 0
  %9693 = vmatpush1.bf16.msra.mxu0 0
  %9694 = vmatprep.subr.bf16.mxu0 0
  %9695 = vmatpush1.bf16.msra.mxu0 0
  %9696 = vmatprep.subr.bf16.mxu0 0
  %9697 = vmatpush1.bf16.msra.mxu0 0
  %9698 = vmatprep.subr.bf16.mxu0 0
  %9699 = vmatpush1.bf16.msra.mxu0 0
  %9700 = vmatprep.subr.bf16.mxu0 0
  %9701 = vmatpush1.bf16.msra.mxu0 0
  %9702 = vmatprep.subr.bf16.mxu0 0
  %9703 = vmatpush1.bf16.msra.mxu0 0
  %9704 = vmatprep.subr.bf16.mxu0 0
  %9705 = vmatpush1.bf16.msra.mxu0 0
  %9706 = vmatprep.mubr.bf16.mxu0 0
  %9707 = vmatmul.mubr.bf16.gmra.mrb[0].mxu0 %v9666
  %v9708 = vpop.f32.mrb[0].mxu0
  %v9709 = vadd.f32 0.0, %v9708
  %v9710 = vpop.f32.mrb[0].mxu0
  %v9711 = vpop.f32.mrb[0].mxu0
  %v9712 = vadd.f32 0.0, %v9711
  %v9713 = vpop.f32.mrb[0].mxu0
  %9714 = vmatprep.mubr.bf16.mxu0 0
  %9715 = vmatmul.mubr.bf16.gmra.mrb[0].mxu0 %v9667
  %v9716 = vpop.f32.mrb[0].mxu0
  %v9717 = vadd.f32 0.0, %v9716
  %v9718 = vpop.f32.mrb[0].mxu0
  %v9719 = vpop.f32.mrb[0].mxu0
  %v9720 = vadd.f32 0.0, %v9719
  %v9721 = vpop.f32.mrb[0].mxu0
  %9722 = vmatprep.mubr.bf16.mxu0 0
  %9723 = vmatmul.mubr.bf16.gmra.mrb[0].mxu0 %v9668
  %v9724 = vpop.f32.mrb[0].mxu0
  %v9725 = vadd.f32 0.0, %v9724
  %v9726 = vpop.f32.mrb[0].mxu0
  %v9727 = vpop.f32.mrb[0].mxu0
  %v9728 = vadd.f32 0.0, %v9727
  %v9729 = vpop.f32.mrb[0].mxu0
  %9730 = vmatprep.mubr.bf16.mxu0 0
  %9731 = vmatmul.mubr.bf16.gmra.mrb[0].mxu0 %v9669
  %v9732 = vpop.f32.mrb[0].mxu0
  %v9733 = vadd.f32 0.0, %v9732
  %v9734 = vpop.f32.mrb[0].mxu0
  %v9735 = vpop.f32.mrb[0].mxu0
  %v9736 = vadd.f32 0.0, %v9735
  %v9737 = vpop.f32.mrb[0].mxu0
  %9738 = vmatprep.mubr.bf16.mxu0 0
  %9739 = vmatmul.mubr.bf16.gmra.mrb[0].mxu0 %v9670
  %v9740 = vpop.f32.mrb[0].mxu0
  %v9741 = vadd.f32 0.0, %v9740
  %v9742 = vpop.f32.mrb[0].mxu0
  %v9743 = vpop.f32.mrb[0].mxu0
  %v9744 = vadd.f32 0.0, %v9743
  %v9745 = vpop.f32.mrb[0].mxu0
  %9746 = vmatprep.mubr.bf16.mxu0 0
  %9747 = vmatmul.mubr.bf16.gmra.mrb[0].mxu0 %v9671
  %v9748 = vpop.f32.mrb[0].mxu0
  %v9749 = vadd.f32 0.0, %v9748
  %v9750 = vpop.f32.mrb[0].mxu0
  %v9751 = vpop.f32.mrb[0].mxu0
  %v9752 = vadd.f32 0.0, %v9751
  %v9753 = vpop.f32.mrb[0].mxu0
  %9754 = vmatprep.mubr.bf16.mxu0 0
  %9755 = vmatmul.mubr.bf16.gmra.mrb[0].mxu0 %v9672
  %v9756 = vpop.f32.mrb[0].mxu0
  %v9757 = vadd.f32 0.0, %v9756
  %v9758 = vpop.f32.mrb[0].mxu0
  %v9759 = vpop.f32.mrb[0].mxu0
  %v9760 = vadd.f32 0.0, %v9759
  %v9761 = vpop.f32.mrb[0].mxu0
  %9762 = vmatprep.mubr.bf16.mxu0 0
  %9763 = vmatmul.mubr.bf16.gmra.mrb[0].mxu0 %v9673
  %v9764 = vpop.f32.mrb[0].mxu0
  %v9765 = vadd.f32 0.0, %v9764
  %v9766 = vpop.f32.mrb[0].mxu0
  %v9767 = vpop.f32.mrb[0].mxu0
  %v9768 = vadd.f32 0.0, %v9767
  %v9769 = vpop.f32.mrb[0].mxu0
  %9770 = vdwg.mxu0
  %v9771 = vpack.c.bf16 %v9712, %v9709
  %v9772 = vpack.c.bf16 %v9720, %v9717
  %v9773 = vpack.c.bf16 %v9728, %v9725
  %v9774 = vpack.c.bf16 %v9736, %v9733
  %v9775 = vpack.c.bf16 %v9744, %v9741
  %v9776 = vpack.c.bf16 %v9752, %v9749
  %v9777 = vpack.c.bf16 %v9760, %v9757
  %v9778 = vpack.c.bf16 %v9768, %v9765
  %9779 = vst.msk [vmem:[%s6838 + $0x18] sm:$0xff] %vm305, %v9771
  %9780 = vst.msk [vmem:[%s6838 + $0x38] sm:$0xff] %vm305, %v9772
  %9781 = vst.msk [vmem:[%s6838 + $0x58] sm:$0xff] %vm305, %v9773
  %9782 = vst.msk [vmem:[%s6838 + $0x78] sm:$0xff] %vm305, %v9774
  %9783 = vst.msk [vmem:[%s6838 + $0x98] sm:$0xff] %vm305, %v9775
  %9784 = vst.msk [vmem:[%s6838 + $0xb8] sm:$0xff] %vm305, %v9776
  %9785 = vst.msk [vmem:[%s6838 + $0xd8] sm:$0xff] %vm305, %v9777
  %9786 = vst.msk [vmem:[%s6838 + $0xf8] sm:$0xff] %vm305, %v9778
  %v9787 = vld [vmem:[%s6409 + $0x18] sm:$0xff]
  %v9788 = vld [vmem:[%s6409 + $0x38] sm:$0xff]
  %v9789 = vld [vmem:[%s6409 + $0x58] sm:$0xff]
  %v9790 = vld [vmem:[%s6409 + $0x78] sm:$0xff]
  %v9791 = vld [vmem:[%s6409 + $0x98] sm:$0xff]
  %v9792 = vld [vmem:[%s6409 + $0xb8] sm:$0xff]
  %v9793 = vld [vmem:[%s6409 + $0xd8] sm:$0xff]
  %v9794 = vld [vmem:[%s6409 + $0xf8] sm:$0xff]
  %v9795 = vld [vmem:[%s6418 + $0x18] sm:$0xff]
  %v9796 = vld [vmem:[%s6418 + $0x38] sm:$0xff]
  %v9797 = vld [vmem:[%s6418 + $0x58] sm:$0xff]
  %v9798 = vld [vmem:[%s6418 + $0x78] sm:$0xff]
  %v9799 = vld [vmem:[%s6418 + $0x98] sm:$0xff]
  %v9800 = vld [vmem:[%s6418 + $0xb8] sm:$0xff]
  %v9801 = vld [vmem:[%s6418 + $0xd8] sm:$0xff]
  %v9802 = vld [vmem:[%s6418 + $0xf8] sm:$0xff]
  %v9803 = vld [vmem:[%s6427 + $0x18] sm:$0xff]
  %v9804 = vld [vmem:[%s6427 + $0x38] sm:$0xff]
  %v9805 = vld [vmem:[%s6427 + $0x58] sm:$0xff]
  %v9806 = vld [vmem:[%s6427 + $0x78] sm:$0xff]
  %v9807 = vld [vmem:[%s6427 + $0x98] sm:$0xff]
  %v9808 = vld [vmem:[%s6427 + $0xb8] sm:$0xff]
  %v9809 = vld [vmem:[%s6427 + $0xd8] sm:$0xff]
  %v9810 = vld [vmem:[%s6427 + $0xf8] sm:$0xff]
  %9819 = vrot.lane.b32.xlu0 %v9787, 64
  %v9820 = vpop.permute.xlu0 %9819
  %9821 = vrot.lane.b32.xlu0 %v9788, 64
  %v9822 = vpop.permute.xlu0 %9821
  %9823 = vrot.lane.b32.xlu0 %v9789, 64
  %v9824 = vpop.permute.xlu0 %9823
  %9825 = vrot.lane.b32.xlu0 %v9790, 64
  %v9826 = vpop.permute.xlu0 %9825
  %9827 = vrot.lane.b32.xlu0 %v9791, 64
  %v9828 = vpop.permute.xlu0 %9827
  %9829 = vrot.lane.b32.xlu0 %v9792, 64
  %v9830 = vpop.permute.xlu0 %9829
  %9831 = vrot.lane.b32.xlu0 %v9793, 64
  %v9832 = vpop.permute.xlu0 %9831
  %9833 = vrot.lane.b32.xlu0 %v9794, 64
  %v9834 = vpop.permute.xlu0 %9833
  %9843 = vrot.lane.b32.xlu0 %v9795, 64
  %v9844 = vpop.permute.xlu0 %9843
  %9845 = vrot.lane.b32.xlu0 %v9796, 64
  %v9846 = vpop.permute.xlu0 %9845
  %9847 = vrot.lane.b32.xlu0 %v9797, 64
  %v9848 = vpop.permute.xlu0 %9847
  %9849 = vrot.lane.b32.xlu0 %v9798, 64
  %v9850 = vpop.permute.xlu0 %9849
  %9851 = vrot.lane.b32.xlu0 %v9799, 64
  %v9852 = vpop.permute.xlu0 %9851
  %9853 = vrot.lane.b32.xlu0 %v9800, 64
  %v9854 = vpop.permute.xlu0 %9853
  %9855 = vrot.lane.b32.xlu0 %v9801, 64
  %v9856 = vpop.permute.xlu0 %9855
  %9857 = vrot.lane.b32.xlu0 %v9802, 64
  %v9858 = vpop.permute.xlu0 %9857
  %v9860 = vsel %vm305, %v9820, 0
  %v9863 = vsel %vm305, %v9822, 0
  %v9866 = vsel %vm305, %v9824, 0
  %v9869 = vsel %vm305, %v9826, 0
  %v9872 = vsel %vm305, %v9828, 0
  %v9875 = vsel %vm305, %v9830, 0
  %v9878 = vsel %vm305, %v9832, 0
  %v9881 = vsel %vm305, %v9834, 0
  %v9884 = vsel %vm305, %v9844, 0
  %v9887 = vsel %vm305, %v9846, 0
  %v9890 = vsel %vm305, %v9848, 0
  %v9893 = vsel %vm305, %v9850, 0
  %v9896 = vsel %vm305, %v9852, 0
  %v9899 = vsel %vm305, %v9854, 0
  %v9902 = vsel %vm305, %v9856, 0
  %v9905 = vsel %vm305, %v9858, 0
  %9907 = vmatprep.subr.bf16.mxu0 0
  %9908 = vmatpush1.bf16.xpose.msra.mxu0 %v9884
  %9909 = vmatprep.subr.bf16.mxu0 0
  %9910 = vmatpush1.bf16.xpose.msra.mxu0 %v9887
  %9911 = vmatprep.subr.bf16.mxu0 0
  %9912 = vmatpush1.bf16.xpose.msra.mxu0 %v9890
  %9913 = vmatprep.subr.bf16.mxu0 0
  %9914 = vmatpush1.bf16.xpose.msra.mxu0 %v9893
  %9915 = vmatprep.subr.bf16.mxu0 0
  %9916 = vmatpush1.bf16.xpose.msra.mxu0 %v9896
  %9917 = vmatprep.subr.bf16.mxu0 0
  %9918 = vmatpush1.bf16.xpose.msra.mxu0 %v9899
  %9919 = vmatprep.subr.bf16.mxu0 0
  %9920 = vmatpush1.bf16.xpose.msra.mxu0 %v9902
  %9921 = vmatprep.subr.bf16.mxu0 0
  %9922 = vmatpush1.bf16.xpose.msra.mxu0 %v9905
  %9923 = vmatprep.subr.bf16.mxu0 0
  %9924 = vmatpush1.bf16.xpose.msra.mxu0 0
  %9925 = vmatprep.subr.bf16.mxu0 0
  %9926 = vmatpush1.bf16.xpose.msra.mxu0 0
  %9927 = vmatprep.subr.bf16.mxu0 0
  %9928 = vmatpush1.bf16.xpose.msra.mxu0 0
  %9929 = vmatprep.subr.bf16.mxu0 0
  %9930 = vmatpush1.bf16.xpose.msra.mxu0 0
  %9931 = vmatprep.subr.bf16.mxu0 0
  %9932 = vmatpush1.bf16.xpose.msra.mxu0 0
  %9933 = vmatprep.subr.bf16.mxu0 0
  %9934 = vmatpush1.bf16.xpose.msra.mxu0 0
  %9935 = vmatprep.subr.bf16.mxu0 0
  %9936 = vmatpush1.bf16.xpose.msra.mxu0 0
  %9937 = vmatprep.subr.bf16.mxu0 0
  %9938 = vmatpush1.bf16.xpose.msra.mxu0 0
  %9939 = vmatprep.mubr.bf16.mxu0 0
  %9940 = vmatmul.mubr.bf16.gmra.mrb[0].mxu0 %v9860
  %v9941 = vpop.f32.mrb[0].mxu0
  %v9942 = vadd.f32 %v2472, %v9941
  %v9943 = vpop.f32.mrb[0].mxu0
  %v9944 = vpop.f32.mrb[0].mxu0
  %v9945 = vadd.f32 %v2473, %v9944
  %v9946 = vpop.f32.mrb[0].mxu0
  %9947 = vmatprep.mubr.bf16.mxu0 0
  %9948 = vmatmul.mubr.bf16.gmra.mrb[0].mxu0 %v9863
  %v9949 = vpop.f32.mrb[0].mxu0
  %v9950 = vadd.f32 %v2474, %v9949
  %v9951 = vpop.f32.mrb[0].mxu0
  %v9952 = vpop.f32.mrb[0].mxu0
  %v9953 = vadd.f32 %v2475, %v9952
  %v9954 = vpop.f32.mrb[0].mxu0
  %9955 = vmatprep.mubr.bf16.mxu0 0
  %9956 = vmatmul.mubr.bf16.gmra.mrb[0].mxu0 %v9866
  %v9957 = vpop.f32.mrb[0].mxu0
  %v9958 = vadd.f32 %v2476, %v9957
  %v9959 = vpop.f32.mrb[0].mxu0
  %v9960 = vpop.f32.mrb[0].mxu0
  %v9961 = vadd.f32 %v2477, %v9960
  %v9962 = vpop.f32.mrb[0].mxu0
  %9963 = vmatprep.mubr.bf16.mxu0 0
  %9964 = vmatmul.mubr.bf16.gmra.mrb[0].mxu0 %v9869
  %v9965 = vpop.f32.mrb[0].mxu0
  %v9966 = vadd.f32 %v2478, %v9965
  %v9967 = vpop.f32.mrb[0].mxu0
  %v9968 = vpop.f32.mrb[0].mxu0
  %v9969 = vadd.f32 %v2479, %v9968
  %v9970 = vpop.f32.mrb[0].mxu0
  %9971 = vmatprep.mubr.bf16.mxu0 0
  %9972 = vmatmul.mubr.bf16.gmra.mrb[0].mxu0 %v9872
  %v9973 = vpop.f32.mrb[0].mxu0
  %v9974 = vadd.f32 %v2480, %v9973
  %v9975 = vpop.f32.mrb[0].mxu0
  %v9976 = vpop.f32.mrb[0].mxu0
  %v9977 = vadd.f32 %v2481, %v9976
  %v9978 = vpop.f32.mrb[0].mxu0
  %9979 = vmatprep.mubr.bf16.mxu0 0
  %9980 = vmatmul.mubr.bf16.gmra.mrb[0].mxu0 %v9875
  %v9981 = vpop.f32.mrb[0].mxu0
  %v9982 = vadd.f32 %v2482, %v9981
  %v9983 = vpop.f32.mrb[0].mxu0
  %v9984 = vpop.f32.mrb[0].mxu0
  %v9985 = vadd.f32 %v2483, %v9984
  %v9986 = vpop.f32.mrb[0].mxu0
  %9987 = vmatprep.mubr.bf16.mxu0 0
  %9988 = vmatmul.mubr.bf16.gmra.mrb[0].mxu0 %v9878
  %v9989 = vpop.f32.mrb[0].mxu0
  %v9990 = vadd.f32 %v2484, %v9989
  %v9991 = vpop.f32.mrb[0].mxu0
  %v9992 = vpop.f32.mrb[0].mxu0
  %v9993 = vadd.f32 %v2485, %v9992
  %v9994 = vpop.f32.mrb[0].mxu0
  %9995 = vmatprep.mubr.bf16.mxu0 0
  %9996 = vmatmul.mubr.bf16.gmra.mrb[0].mxu0 %v9881
  %v9997 = vpop.f32.mrb[0].mxu0
  %v9998 = vadd.f32 %v2486, %v9997
  %v9999 = vpop.f32.mrb[0].mxu0
  %v10000 = vpop.f32.mrb[0].mxu0
  %v10001 = vadd.f32 %v2487, %v10000
  %v10002 = vpop.f32.mrb[0].mxu0
  %10003 = vdwg.mxu0
  %10004 = vmax.xlane.f32.xlu0 %v9942
  %v10005 = vpop.xlane.xlu0 %10004
  %10006 = vmax.xlane.f32.xlu0 %v9945
  %v10007 = vpop.xlane.xlu0 %10006
  %10008 = vmax.xlane.f32.xlu0 %v9950
  %v10009 = vpop.xlane.xlu0 %10008
  %10010 = vmax.xlane.f32.xlu0 %v9953
  %v10011 = vpop.xlane.xlu0 %10010
  %10012 = vmax.xlane.f32.xlu0 %v9958
  %v10013 = vpop.xlane.xlu0 %10012
  %10014 = vmax.xlane.f32.xlu0 %v9961
  %v10015 = vpop.xlane.xlu0 %10014
  %10016 = vmax.xlane.f32.xlu0 %v9966
  %v10017 = vpop.xlane.xlu0 %10016
  %10018 = vmax.xlane.f32.xlu0 %v9969
  %v10019 = vpop.xlane.xlu0 %10018
  %10020 = vmax.xlane.f32.xlu0 %v9974
  %v10021 = vpop.xlane.xlu0 %10020
  %10022 = vmax.xlane.f32.xlu0 %v9977
  %v10023 = vpop.xlane.xlu0 %10022
  %10024 = vmax.xlane.f32.xlu0 %v9982
  %v10025 = vpop.xlane.xlu0 %10024
  %10026 = vmax.xlane.f32.xlu0 %v9985
  %v10027 = vpop.xlane.xlu0 %10026
  %10028 = vmax.xlane.f32.xlu0 %v9990
  %v10029 = vpop.xlane.xlu0 %10028
  %10030 = vmax.xlane.f32.xlu0 %v9993
  %v10031 = vpop.xlane.xlu0 %10030
  %10032 = vmax.xlane.f32.xlu0 %v9998
  %v10033 = vpop.xlane.xlu0 %10032
  %10034 = vmax.xlane.f32.xlu0 %v10001
  %v10035 = vpop.xlane.xlu0 %10034
  %v10036 = vsub.f32 %v9942, %v10005
  %v10037 = vsub.f32 %v9945, %v10007
  %v10038 = vsub.f32 %v9950, %v10009
  %v10039 = vsub.f32 %v9953, %v10011
  %v10040 = vsub.f32 %v9958, %v10013
  %v10041 = vsub.f32 %v9961, %v10015
  %v10042 = vsub.f32 %v9966, %v10017
  %v10043 = vsub.f32 %v9969, %v10019
  %v10044 = vsub.f32 %v9974, %v10021
  %v10045 = vsub.f32 %v9977, %v10023
  %v10046 = vsub.f32 %v9982, %v10025
  %v10047 = vsub.f32 %v9985, %v10027
  %v10048 = vsub.f32 %v9990, %v10029
  %v10049 = vsub.f32 %v9993, %v10031
  %v10050 = vsub.f32 %v9998, %v10033
  %v10051 = vsub.f32 %v10001, %v10035
  %v10052 = vmul.f32 %v10036, 1.442695
  %v10053 = vpow.pop %v10052
  %v10054 = vmul.f32 %v10037, 1.442695
  %v10055 = vpow.pop %v10054
  %v10056 = vmul.f32 %v10038, 1.442695
  %v10057 = vpow.pop %v10056
  %v10058 = vmul.f32 %v10039, 1.442695
  %v10059 = vpow.pop %v10058
  %v10060 = vmul.f32 %v10040, 1.442695
  %v10061 = vpow.pop %v10060
  %v10062 = vmul.f32 %v10041, 1.442695
  %v10063 = vpow.pop %v10062
  %v10064 = vmul.f32 %v10042, 1.442695
  %v10065 = vpow.pop %v10064
  %v10066 = vmul.f32 %v10043, 1.442695
  %v10067 = vpow.pop %v10066
  %v10068 = vmul.f32 %v10044, 1.442695
  %v10069 = vpow.pop %v10068
  %v10070 = vmul.f32 %v10045, 1.442695
  %v10071 = vpow.pop %v10070
  %v10072 = vmul.f32 %v10046, 1.442695
  %v10073 = vpow.pop %v10072
  %v10074 = vmul.f32 %v10047, 1.442695
  %v10075 = vpow.pop %v10074
  %v10076 = vmul.f32 %v10048, 1.442695
  %v10077 = vpow.pop %v10076
  %v10078 = vmul.f32 %v10049, 1.442695
  %v10079 = vpow.pop %v10078
  %v10080 = vmul.f32 %v10050, 1.442695
  %v10081 = vpow.pop %v10080
  %v10082 = vmul.f32 %v10051, 1.442695
  %v10083 = vpow.pop %v10082
  %10084 = vadd.xlane.f32.xlu0 %v10053
  %v10085 = vpop.xlane.xlu0 %10084
  %10086 = vadd.xlane.f32.xlu0 %v10055
  %v10087 = vpop.xlane.xlu0 %10086
  %10088 = vadd.xlane.f32.xlu0 %v10057
  %v10089 = vpop.xlane.xlu0 %10088
  %10090 = vadd.xlane.f32.xlu0 %v10059
  %v10091 = vpop.xlane.xlu0 %10090
  %10092 = vadd.xlane.f32.xlu0 %v10061
  %v10093 = vpop.xlane.xlu0 %10092
  %10094 = vadd.xlane.f32.xlu0 %v10063
  %v10095 = vpop.xlane.xlu0 %10094
  %10096 = vadd.xlane.f32.xlu0 %v10065
  %v10097 = vpop.xlane.xlu0 %10096
  %10098 = vadd.xlane.f32.xlu0 %v10067
  %v10099 = vpop.xlane.xlu0 %10098
  %10100 = vadd.xlane.f32.xlu0 %v10069
  %v10101 = vpop.xlane.xlu0 %10100
  %10102 = vadd.xlane.f32.xlu0 %v10071
  %v10103 = vpop.xlane.xlu0 %10102
  %10104 = vadd.xlane.f32.xlu0 %v10073
  %v10105 = vpop.xlane.xlu0 %10104
  %10106 = vadd.xlane.f32.xlu0 %v10075
  %v10107 = vpop.xlane.xlu0 %10106
  %10108 = vadd.xlane.f32.xlu0 %v10077
  %v10109 = vpop.xlane.xlu0 %10108
  %10110 = vadd.xlane.f32.xlu0 %v10079
  %v10111 = vpop.xlane.xlu0 %10110
  %10112 = vadd.xlane.f32.xlu0 %v10081
  %v10113 = vpop.xlane.xlu0 %10112
  %10114 = vadd.xlane.f32.xlu0 %v10083
  %v10115 = vpop.xlane.xlu0 %10114
  %v10116 = vrcp.pop %v10085
  %v10117 = vrcp.pop %v10087
  %v10118 = vrcp.pop %v10089
  %v10119 = vrcp.pop %v10091
  %v10120 = vrcp.pop %v10093
  %v10121 = vrcp.pop %v10095
  %v10122 = vrcp.pop %v10097
  %v10123 = vrcp.pop %v10099
  %v10124 = vrcp.pop %v10101
  %v10125 = vrcp.pop %v10103
  %v10126 = vrcp.pop %v10105
  %v10127 = vrcp.pop %v10107
  %v10128 = vrcp.pop %v10109
  %v10129 = vrcp.pop %v10111
  %v10130 = vrcp.pop %v10113
  %v10131 = vrcp.pop %v10115
  %v10132 = vmul.f32 %v10053, %v10116
  %v10133 = vmul.f32 %v10055, %v10117
  %v10134 = vmul.f32 %v10057, %v10118
  %v10135 = vmul.f32 %v10059, %v10119
  %v10136 = vmul.f32 %v10061, %v10120
  %v10137 = vmul.f32 %v10063, %v10121
  %v10138 = vmul.f32 %v10065, %v10122
  %v10139 = vmul.f32 %v10067, %v10123
  %v10140 = vmul.f32 %v10069, %v10124
  %v10141 = vmul.f32 %v10071, %v10125
  %v10142 = vmul.f32 %v10073, %v10126
  %v10143 = vmul.f32 %v10075, %v10127
  %v10144 = vmul.f32 %v10077, %v10128
  %v10145 = vmul.f32 %v10079, %v10129
  %v10146 = vmul.f32 %v10081, %v10130
  %v10147 = vmul.f32 %v10083, %v10131
  %v10148 = vpack.c.bf16 %v10133, %v10132
  %v10149 = vpack.c.bf16 %v10135, %v10134
  %v10150 = vpack.c.bf16 %v10137, %v10136
  %v10151 = vpack.c.bf16 %v10139, %v10138
  %v10152 = vpack.c.bf16 %v10141, %v10140
  %v10153 = vpack.c.bf16 %v10143, %v10142
  %v10154 = vpack.c.bf16 %v10145, %v10144
  %v10155 = vpack.c.bf16 %v10147, %v10146
  %10164 = vrot.lane.b32.xlu0 %v9803, 64
  %v10165 = vpop.permute.xlu0 %10164
  %10166 = vrot.lane.b32.xlu0 %v9804, 64
  %v10167 = vpop.permute.xlu0 %10166
  %10168 = vrot.lane.b32.xlu0 %v9805, 64
  %v10169 = vpop.permute.xlu0 %10168
  %10170 = vrot.lane.b32.xlu0 %v9806, 64
  %v10171 = vpop.permute.xlu0 %10170
  %10172 = vrot.lane.b32.xlu0 %v9807, 64
  %v10173 = vpop.permute.xlu0 %10172
  %10174 = vrot.lane.b32.xlu0 %v9808, 64
  %v10175 = vpop.permute.xlu0 %10174
  %10176 = vrot.lane.b32.xlu0 %v9809, 64
  %v10177 = vpop.permute.xlu0 %10176
  %10178 = vrot.lane.b32.xlu0 %v9810, 64
  %v10179 = vpop.permute.xlu0 %10178
  %10188 = vmatprep.subr.bf16.mxu0 0
  %10189 = vmatpush1.bf16.msra.mxu0 %v10165
  %10190 = vmatprep.subr.bf16.mxu0 0
  %10191 = vmatpush1.bf16.msra.mxu0 %v10167
  %10192 = vmatprep.subr.bf16.mxu0 0
  %10193 = vmatpush1.bf16.msra.mxu0 %v10169
  %10194 = vmatprep.subr.bf16.mxu0 0
  %10195 = vmatpush1.bf16.msra.mxu0 %v10171
  %10196 = vmatprep.subr.bf16.mxu0 0
  %10197 = vmatpush1.bf16.msra.mxu0 %v10173
  %10198 = vmatprep.subr.bf16.mxu0 0
  %10199 = vmatpush1.bf16.msra.mxu0 %v10175
  %10200 = vmatprep.subr.bf16.mxu0 0
  %10201 = vmatpush1.bf16.msra.mxu0 %v10177
  %10202 = vmatprep.subr.bf16.mxu0 0
  %10203 = vmatpush1.bf16.msra.mxu0 %v10179
  %10204 = vmatprep.subr.bf16.mxu0 0
  %10205 = vmatpush1.bf16.msra.mxu0 0
  %10206 = vmatprep.subr.bf16.mxu0 0
  %10207 = vmatpush1.bf16.msra.mxu0 0
  %10208 = vmatprep.subr.bf16.mxu0 0
  %10209 = vmatpush1.bf16.msra.mxu0 0
  %10210 = vmatprep.subr.bf16.mxu0 0
  %10211 = vmatpush1.bf16.msra.mxu0 0
  %10212 = vmatprep.subr.bf16.mxu0 0
  %10213 = vmatpush1.bf16.msra.mxu0 0
  %10214 = vmatprep.subr.bf16.mxu0 0
  %10215 = vmatpush1.bf16.msra.mxu0 0
  %10216 = vmatprep.subr.bf16.mxu0 0
  %10217 = vmatpush1.bf16.msra.mxu0 0
  %10218 = vmatprep.subr.bf16.mxu0 0
  %10219 = vmatpush1.bf16.msra.mxu0 0
  %10220 = vmatprep.mubr.bf16.mxu0 0
  %10221 = vmatmul.mubr.bf16.gmra.mrb[0].mxu0 %v10148
  %v10222 = vpop.f32.mrb[0].mxu0
  %v10223 = vadd.f32 0.0, %v10222
  %v10224 = vpop.f32.mrb[0].mxu0
  %v10225 = vpop.f32.mrb[0].mxu0
  %v10226 = vadd.f32 0.0, %v10225
  %v10227 = vpop.f32.mrb[0].mxu0
  %10228 = vmatprep.mubr.bf16.mxu0 0
  %10229 = vmatmul.mubr.bf16.gmra.mrb[0].mxu0 %v10149
  %v10230 = vpop.f32.mrb[0].mxu0
  %v10231 = vadd.f32 0.0, %v10230
  %v10232 = vpop.f32.mrb[0].mxu0
  %v10233 = vpop.f32.mrb[0].mxu0
  %v10234 = vadd.f32 0.0, %v10233
  %v10235 = vpop.f32.mrb[0].mxu0
  %10236 = vmatprep.mubr.bf16.mxu0 0
  %10237 = vmatmul.mubr.bf16.gmra.mrb[0].mxu0 %v10150
  %v10238 = vpop.f32.mrb[0].mxu0
  %v10239 = vadd.f32 0.0, %v10238
  %v10240 = vpop.f32.mrb[0].mxu0
  %v10241 = vpop.f32.mrb[0].mxu0
  %v10242 = vadd.f32 0.0, %v10241
  %v10243 = vpop.f32.mrb[0].mxu0
  %10244 = vmatprep.mubr.bf16.mxu0 0
  %10245 = vmatmul.mubr.bf16.gmra.mrb[0].mxu0 %v10151
  %v10246 = vpop.f32.mrb[0].mxu0
  %v10247 = vadd.f32 0.0, %v10246
  %v10248 = vpop.f32.mrb[0].mxu0
  %v10249 = vpop.f32.mrb[0].mxu0
  %v10250 = vadd.f32 0.0, %v10249
  %v10251 = vpop.f32.mrb[0].mxu0
  %10252 = vmatprep.mubr.bf16.mxu0 0
  %10253 = vmatmul.mubr.bf16.gmra.mrb[0].mxu0 %v10152
  %v10254 = vpop.f32.mrb[0].mxu0
  %v10255 = vadd.f32 0.0, %v10254
  %v10256 = vpop.f32.mrb[0].mxu0
  %v10257 = vpop.f32.mrb[0].mxu0
  %v10258 = vadd.f32 0.0, %v10257
  %v10259 = vpop.f32.mrb[0].mxu0
  %10260 = vmatprep.mubr.bf16.mxu0 0
  %10261 = vmatmul.mubr.bf16.gmra.mrb[0].mxu0 %v10153
  %v10262 = vpop.f32.mrb[0].mxu0
  %v10263 = vadd.f32 0.0, %v10262
  %v10264 = vpop.f32.mrb[0].mxu0
  %v10265 = vpop.f32.mrb[0].mxu0
  %v10266 = vadd.f32 0.0, %v10265
  %v10267 = vpop.f32.mrb[0].mxu0
  %10268 = vmatprep.mubr.bf16.mxu0 0
  %10269 = vmatmul.mubr.bf16.gmra.mrb[0].mxu0 %v10154
  %v10270 = vpop.f32.mrb[0].mxu0
  %v10271 = vadd.f32 0.0, %v10270
  %v10272 = vpop.f32.mrb[0].mxu0
  %v10273 = vpop.f32.mrb[0].mxu0
  %v10274 = vadd.f32 0.0, %v10273
  %v10275 = vpop.f32.mrb[0].mxu0
  %10276 = vmatprep.mubr.bf16.mxu0 0
  %10277 = vmatmul.mubr.bf16.gmra.mrb[0].mxu0 %v10155
  %v10278 = vpop.f32.mrb[0].mxu0
  %v10279 = vadd.f32 0.0, %v10278
  %v10280 = vpop.f32.mrb[0].mxu0
  %v10281 = vpop.f32.mrb[0].mxu0
  %v10282 = vadd.f32 0.0, %v10281
  %v10283 = vpop.f32.mrb[0].mxu0
  %10284 = vdwg.mxu0
  %v10285 = vpack.c.bf16 %v10226, %v10223
  %v10286 = vpack.c.bf16 %v10234, %v10231
  %v10287 = vpack.c.bf16 %v10242, %v10239
  %v10288 = vpack.c.bf16 %v10250, %v10247
  %v10289 = vpack.c.bf16 %v10258, %v10255
  %v10290 = vpack.c.bf16 %v10266, %v10263
  %v10291 = vpack.c.bf16 %v10274, %v10271
  %v10292 = vpack.c.bf16 %v10282, %v10279
  %10301 = vrot.lane.b32.xlu0 %v10285, 64
  %v10302 = vpop.permute.xlu0 %10301
  %10303 = vrot.lane.b32.xlu0 %v10286, 64
  %v10304 = vpop.permute.xlu0 %10303
  %10305 = vrot.lane.b32.xlu0 %v10287, 64
  %v10306 = vpop.permute.xlu0 %10305
  %10307 = vrot.lane.b32.xlu0 %v10288, 64
  %v10308 = vpop.permute.xlu0 %10307
  %10309 = vrot.lane.b32.xlu0 %v10289, 64
  %v10310 = vpop.permute.xlu0 %10309
  %10311 = vrot.lane.b32.xlu0 %v10290, 64
  %v10312 = vpop.permute.xlu0 %10311
  %10313 = vrot.lane.b32.xlu0 %v10291, 64
  %v10314 = vpop.permute.xlu0 %10313
  %10315 = vrot.lane.b32.xlu0 %v10292, 64
  %v10316 = vpop.permute.xlu0 %10315
  %10325 = vst.msk [vmem:[%s6838 + $0x18] sm:$0xff] %vm3460, %v10302
  %10326 = vst.msk [vmem:[%s6838 + $0x38] sm:$0xff] %vm3460, %v10304
  %10327 = vst.msk [vmem:[%s6838 + $0x58] sm:$0xff] %vm3460, %v10306
  %10328 = vst.msk [vmem:[%s6838 + $0x78] sm:$0xff] %vm3460, %v10308
  %10329 = vst.msk [vmem:[%s6838 + $0x98] sm:$0xff] %vm3460, %v10310
  %10330 = vst.msk [vmem:[%s6838 + $0xb8] sm:$0xff] %vm3460, %v10312
  %10331 = vst.msk [vmem:[%s6838 + $0xd8] sm:$0xff] %vm3460, %v10314
  %10332 = vst.msk [vmem:[%s6838 + $0xf8] sm:$0xff] %vm3460, %v10316
  %v10333 = vld [vmem:[#allocation5] sm:$0xff]
  %v10334 = vld [vmem:[#allocation5 + $0x8] sm:$0xff]
  %v10335 = vld [vmem:[#allocation5 + $0x10] sm:$0xff]
  %v10336 = vld [vmem:[#allocation5 + $0x18] sm:$0xff]
  %v10337 = vld [vmem:[#allocation5 + $0x20] sm:$0xff]
  %v10338 = vld [vmem:[#allocation5 + $0x28] sm:$0xff]
  %v10339 = vld [vmem:[#allocation5 + $0x30] sm:$0xff]
  %v10340 = vld [vmem:[#allocation5 + $0x38] sm:$0xff]
  %v10341 = vld [vmem:[#allocation5 + $0x40] sm:$0xff]
  %v10342 = vld [vmem:[#allocation5 + $0x48] sm:$0xff]
  %v10343 = vld [vmem:[#allocation5 + $0x50] sm:$0xff]
  %v10344 = vld [vmem:[#allocation5 + $0x58] sm:$0xff]
  %v10345 = vld [vmem:[#allocation5 + $0x60] sm:$0xff]
  %v10346 = vld [vmem:[#allocation5 + $0x68] sm:$0xff]
  %v10347 = vld [vmem:[#allocation5 + $0x70] sm:$0xff]
  %v10348 = vld [vmem:[#allocation5 + $0x78] sm:$0xff]
  %v10349 = vld [vmem:[#allocation5 + $0x80] sm:$0xff]
  %v10350 = vld [vmem:[#allocation5 + $0x88] sm:$0xff]
  %v10351 = vld [vmem:[#allocation5 + $0x90] sm:$0xff]
  %v10352 = vld [vmem:[#allocation5 + $0x98] sm:$0xff]
  %v10353 = vld [vmem:[#allocation5 + $0xa0] sm:$0xff]
  %v10354 = vld [vmem:[#allocation5 + $0xa8] sm:$0xff]
  %v10355 = vld [vmem:[#allocation5 + $0xb0] sm:$0xff]
  %v10356 = vld [vmem:[#allocation5 + $0xb8] sm:$0xff]
  %v10357 = vld [vmem:[#allocation5 + $0xc0] sm:$0xff]
  %v10358 = vld [vmem:[#allocation5 + $0xc8] sm:$0xff]
  %v10359 = vld [vmem:[#allocation5 + $0xd0] sm:$0xff]
  %v10360 = vld [vmem:[#allocation5 + $0xd8] sm:$0xff]
  %v10361 = vld [vmem:[#allocation5 + $0xe0] sm:$0xff]
  %v10362 = vld [vmem:[#allocation5 + $0xe8] sm:$0xff]
  %v10363 = vld [vmem:[#allocation5 + $0xf0] sm:$0xff]
  %v10364 = vld [vmem:[#allocation5 + $0xf8] sm:$0xff]
  %v10365 = vld [vmem:[#allocation5 + $0x100] sm:$0xff]
  %v10366 = vld [vmem:[#allocation5 + $0x108] sm:$0xff]
  %v10367 = vld [vmem:[#allocation5 + $0x110] sm:$0xff]
  %v10368 = vld [vmem:[#allocation5 + $0x118] sm:$0xff]
  %v10369 = vld [vmem:[#allocation5 + $0x120] sm:$0xff]
  %v10370 = vld [vmem:[#allocation5 + $0x128] sm:$0xff]
  %v10371 = vld [vmem:[#allocation5 + $0x130] sm:$0xff]
  %v10372 = vld [vmem:[#allocation5 + $0x138] sm:$0xff]
  %v10373 = vld [vmem:[#allocation5 + $0x140] sm:$0xff]
  %v10374 = vld [vmem:[#allocation5 + $0x148] sm:$0xff]
  %v10375 = vld [vmem:[#allocation5 + $0x150] sm:$0xff]
  %v10376 = vld [vmem:[#allocation5 + $0x158] sm:$0xff]
  %v10377 = vld [vmem:[#allocation5 + $0x160] sm:$0xff]
  %v10378 = vld [vmem:[#allocation5 + $0x168] sm:$0xff]
  %v10379 = vld [vmem:[#allocation5 + $0x170] sm:$0xff]
  %v10380 = vld [vmem:[#allocation5 + $0x178] sm:$0xff]
  %v10381 = vld [vmem:[#allocation5 + $0x180] sm:$0xff]
  %v10382 = vld [vmem:[#allocation5 + $0x188] sm:$0xff]
  %v10383 = vld [vmem:[#allocation5 + $0x190] sm:$0xff]
  %v10384 = vld [vmem:[#allocation5 + $0x198] sm:$0xff]
  %v10385 = vld [vmem:[#allocation5 + $0x1a0] sm:$0xff]
  %v10386 = vld [vmem:[#allocation5 + $0x1a8] sm:$0xff]
  %v10387 = vld [vmem:[#allocation5 + $0x1b0] sm:$0xff]
  %v10388 = vld [vmem:[#allocation5 + $0x1b8] sm:$0xff]
  %v10389 = vld [vmem:[#allocation5 + $0x1c0] sm:$0xff]
  %v10390 = vld [vmem:[#allocation5 + $0x1c8] sm:$0xff]
  %v10391 = vld [vmem:[#allocation5 + $0x1d0] sm:$0xff]
  %v10392 = vld [vmem:[#allocation5 + $0x1d8] sm:$0xff]
  %v10393 = vld [vmem:[#allocation5 + $0x1e0] sm:$0xff]
  %v10394 = vld [vmem:[#allocation5 + $0x1e8] sm:$0xff]
  %v10395 = vld [vmem:[#allocation5 + $0x1f0] sm:$0xff]
  %v10396 = vld [vmem:[#allocation5 + $0x1f8] sm:$0xff]
  %v10397 = vld [vmem:[%s7] sm:$0xf]
  %v10398 = vld [vmem:[%s7 + $0x4] sm:$0xf]
  %v10399 = vld [vmem:[%s7 + $0x8] sm:$0xf]
  %v10400 = vld [vmem:[%s7 + $0xc] sm:$0xf]
  %v10401 = vld [vmem:[%s7 + $0x10] sm:$0xf]
  %v10402 = vld [vmem:[%s7 + $0x14] sm:$0xf]
  %v10403 = vld [vmem:[%s7 + $0x18] sm:$0xf]
  %v10404 = vld [vmem:[%s7 + $0x1c] sm:$0xf]
  %v10405 = vld [vmem:[%s7 + $0x20] sm:$0xf]
  %v10406 = vld [vmem:[%s7 + $0x24] sm:$0xf]
  %v10407 = vld [vmem:[%s7 + $0x28] sm:$0xf]
  %v10408 = vld [vmem:[%s7 + $0x2c] sm:$0xf]
  %v10409 = vld [vmem:[%s7 + $0x30] sm:$0xf]
  %v10410 = vld [vmem:[%s7 + $0x34] sm:$0xf]
  %v10411 = vld [vmem:[%s7 + $0x38] sm:$0xf]
  %v10412 = vld [vmem:[%s7 + $0x3c] sm:$0xf]
  %v10413 = vld [vmem:[%s7 + $0x40] sm:$0xf]
  %v10414 = vld [vmem:[%s7 + $0x44] sm:$0xf]
  %v10415 = vld [vmem:[%s7 + $0x48] sm:$0xf]
  %v10416 = vld [vmem:[%s7 + $0x4c] sm:$0xf]
  %v10417 = vld [vmem:[%s7 + $0x50] sm:$0xf]
  %v10418 = vld [vmem:[%s7 + $0x54] sm:$0xf]
  %v10419 = vld [vmem:[%s7 + $0x58] sm:$0xf]
  %v10420 = vld [vmem:[%s7 + $0x5c] sm:$0xf]
  %v10421 = vld [vmem:[%s7 + $0x60] sm:$0xf]
  %v10422 = vld [vmem:[%s7 + $0x64] sm:$0xf]
  %v10423 = vld [vmem:[%s7 + $0x68] sm:$0xf]
  %v10424 = vld [vmem:[%s7 + $0x6c] sm:$0xf]
  %v10425 = vld [vmem:[%s7 + $0x70] sm:$0xf]
  %v10426 = vld [vmem:[%s7 + $0x74] sm:$0xf]
  %v10427 = vld [vmem:[%s7 + $0x78] sm:$0xf]
  %v10428 = vld [vmem:[%s7 + $0x7c] sm:$0xf]
  %v10429 = vld [vmem:[%s7 + $0x80] sm:$0xf]
  %v10430 = vld [vmem:[%s7 + $0x84] sm:$0xf]
  %v10431 = vld [vmem:[%s7 + $0x88] sm:$0xf]
  %v10432 = vld [vmem:[%s7 + $0x8c] sm:$0xf]
  %v10433 = vld [vmem:[%s7 + $0x90] sm:$0xf]
  %v10434 = vld [vmem:[%s7 + $0x94] sm:$0xf]
  %v10435 = vld [vmem:[%s7 + $0x98] sm:$0xf]
  %v10436 = vld [vmem:[%s7 + $0x9c] sm:$0xf]
  %v10437 = vld [vmem:[%s7 + $0xa0] sm:$0xf]
  %v10438 = vld [vmem:[%s7 + $0xa4] sm:$0xf]
  %v10439 = vld [vmem:[%s7 + $0xa8] sm:$0xf]
  %v10440 = vld [vmem:[%s7 + $0xac] sm:$0xf]
  %v10441 = vld [vmem:[%s7 + $0xb0] sm:$0xf]
  %v10442 = vld [vmem:[%s7 + $0xb4] sm:$0xf]
  %v10443 = vld [vmem:[%s7 + $0xb8] sm:$0xf]
  %v10444 = vld [vmem:[%s7 + $0xbc] sm:$0xf]
  %v10445 = vld [vmem:[%s7 + $0xc0] sm:$0xf]
  %v10446 = vld [vmem:[%s7 + $0xc4] sm:$0xf]
  %v10447 = vld [vmem:[%s7 + $0xc8] sm:$0xf]
  %v10448 = vld [vmem:[%s7 + $0xcc] sm:$0xf]
  %v10449 = vld [vmem:[%s7 + $0xd0] sm:$0xf]
  %v10450 = vld [vmem:[%s7 + $0xd4] sm:$0xf]
  %v10451 = vld [vmem:[%s7 + $0xd8] sm:$0xf]
  %v10452 = vld [vmem:[%s7 + $0xdc] sm:$0xf]
  %v10453 = vld [vmem:[%s7 + $0xe0] sm:$0xf]
  %v10454 = vld [vmem:[%s7 + $0xe4] sm:$0xf]
  %v10455 = vld [vmem:[%s7 + $0xe8] sm:$0xf]
  %v10456 = vld [vmem:[%s7 + $0xec] sm:$0xf]
  %v10457 = vld [vmem:[%s7 + $0xf0] sm:$0xf]
  %v10458 = vld [vmem:[%s7 + $0xf4] sm:$0xf]
  %v10459 = vld [vmem:[%s7 + $0xf8] sm:$0xf]
  %v10460 = vld [vmem:[%s7 + $0xfc] sm:$0xf]
  %v10461 = vld [vmem:[%s8] sm:$0x1]
  %v10463 = vlaneseq
  %v10464 = vshrl.u32 %v10463, 7
  %v10465 = vsub.s32 0, %v10464
  %v10466 = vrot.slane %v10461, %v10465
  %v10532 = vunpack.c.l.b16 %v10397
  %v10533 = vunpack.c.l.b16 %v10398
  %v10534 = vunpack.c.l.b16 %v10399
  %v10535 = vunpack.c.l.b16 %v10400
  %v10536 = vunpack.c.l.b16 %v10401
  %v10537 = vunpack.c.l.b16 %v10402
  %v10538 = vunpack.c.l.b16 %v10403
  %v10539 = vunpack.c.l.b16 %v10404
  %v10540 = vunpack.c.l.b16 %v10405
  %v10541 = vunpack.c.l.b16 %v10406
  %v10542 = vunpack.c.l.b16 %v10407
  %v10543 = vunpack.c.l.b16 %v10408
  %v10544 = vunpack.c.l.b16 %v10409
  %v10545 = vunpack.c.l.b16 %v10410
  %v10546 = vunpack.c.l.b16 %v10411
  %v10547 = vunpack.c.l.b16 %v10412
  %v10548 = vunpack.c.l.b16 %v10413
  %v10549 = vunpack.c.l.b16 %v10414
  %v10550 = vunpack.c.l.b16 %v10415
  %v10551 = vunpack.c.l.b16 %v10416
  %v10552 = vunpack.c.l.b16 %v10417
  %v10553 = vunpack.c.l.b16 %v10418
  %v10554 = vunpack.c.l.b16 %v10419
  %v10555 = vunpack.c.l.b16 %v10420
  %v10556 = vunpack.c.l.b16 %v10421
  %v10557 = vunpack.c.l.b16 %v10422
  %v10558 = vunpack.c.l.b16 %v10423
  %v10559 = vunpack.c.l.b16 %v10424
  %v10560 = vunpack.c.l.b16 %v10425
  %v10561 = vunpack.c.l.b16 %v10426
  %v10562 = vunpack.c.l.b16 %v10427
  %v10563 = vunpack.c.l.b16 %v10428
  %v10564 = vunpack.c.l.b16 %v10429
  %v10565 = vunpack.c.l.b16 %v10430
  %v10566 = vunpack.c.l.b16 %v10431
  %v10567 = vunpack.c.l.b16 %v10432
  %v10568 = vunpack.c.l.b16 %v10433
  %v10569 = vunpack.c.l.b16 %v10434
  %v10570 = vunpack.c.l.b16 %v10435
  %v10571 = vunpack.c.l.b16 %v10436
  %v10572 = vunpack.c.l.b16 %v10437
  %v10573 = vunpack.c.l.b16 %v10438
  %v10574 = vunpack.c.l.b16 %v10439
  %v10575 = vunpack.c.l.b16 %v10440
  %v10576 = vunpack.c.l.b16 %v10441
  %v10577 = vunpack.c.l.b16 %v10442
  %v10578 = vunpack.c.l.b16 %v10443
  %v10579 = vunpack.c.l.b16 %v10444
  %v10580 = vunpack.c.l.b16 %v10445
  %v10581 = vunpack.c.l.b16 %v10446
  %v10582 = vunpack.c.l.b16 %v10447
  %v10583 = vunpack.c.l.b16 %v10448
  %v10584 = vunpack.c.l.b16 %v10449
  %v10585 = vunpack.c.l.b16 %v10450
  %v10586 = vunpack.c.l.b16 %v10451
  %v10587 = vunpack.c.l.b16 %v10452
  %v10588 = vunpack.c.l.b16 %v10453
  %v10589 = vunpack.c.l.b16 %v10454
  %v10590 = vunpack.c.l.b16 %v10455
  %v10591 = vunpack.c.l.b16 %v10456
  %v10592 = vunpack.c.l.b16 %v10457
  %v10593 = vunpack.c.l.b16 %v10458
  %v10594 = vunpack.c.l.b16 %v10459
  %v10595 = vunpack.c.l.b16 %v10460
  %v10596 = vpack.c.b16 %v10533, %v10532
  %v10597 = vpack.c.b16 %v10535, %v10534
  %v10598 = vpack.c.b16 %v10537, %v10536
  %v10599 = vpack.c.b16 %v10539, %v10538
  %v10600 = vpack.c.b16 %v10541, %v10540
  %v10601 = vpack.c.b16 %v10543, %v10542
  %v10602 = vpack.c.b16 %v10545, %v10544
  %v10603 = vpack.c.b16 %v10547, %v10546
  %v10604 = vpack.c.b16 %v10549, %v10548
  %v10605 = vpack.c.b16 %v10551, %v10550
  %v10606 = vpack.c.b16 %v10553, %v10552
  %v10607 = vpack.c.b16 %v10555, %v10554
  %v10608 = vpack.c.b16 %v10557, %v10556
  %v10609 = vpack.c.b16 %v10559, %v10558
  %v10610 = vpack.c.b16 %v10561, %v10560
  %v10611 = vpack.c.b16 %v10563, %v10562
  %v10612 = vpack.c.b16 %v10565, %v10564
  %v10613 = vpack.c.b16 %v10567, %v10566
  %v10614 = vpack.c.b16 %v10569, %v10568
  %v10615 = vpack.c.b16 %v10571, %v10570
  %v10616 = vpack.c.b16 %v10573, %v10572
  %v10617 = vpack.c.b16 %v10575, %v10574
  %v10618 = vpack.c.b16 %v10577, %v10576
  %v10619 = vpack.c.b16 %v10579, %v10578
  %v10620 = vpack.c.b16 %v10581, %v10580
  %v10621 = vpack.c.b16 %v10583, %v10582
  %v10622 = vpack.c.b16 %v10585, %v10584
  %v10623 = vpack.c.b16 %v10587, %v10586
  %v10624 = vpack.c.b16 %v10589, %v10588
  %v10625 = vpack.c.b16 %v10591, %v10590
  %v10626 = vpack.c.b16 %v10593, %v10592
  %v10627 = vpack.c.b16 %v10595, %v10594
  %10660 = vmatprep.subr.bf16.mxu0 0
  %10661 = vmatpush1.bf16.msra.mxu0 %v10596
  %10662 = vmatprep.subr.bf16.mxu0 0
  %10663 = vmatpush1.bf16.msra.mxu0 %v10597
  %10664 = vmatprep.subr.bf16.mxu0 0
  %10665 = vmatpush1.bf16.msra.mxu0 %v10598
  %10666 = vmatprep.subr.bf16.mxu0 0
  %10667 = vmatpush1.bf16.msra.mxu0 %v10599
  %10668 = vmatprep.subr.bf16.mxu0 0
  %10669 = vmatpush1.bf16.msra.mxu0 %v10600
  %10670 = vmatprep.subr.bf16.mxu0 0
  %10671 = vmatpush1.bf16.msra.mxu0 %v10601
  %10672 = vmatprep.subr.bf16.mxu0 0
  %10673 = vmatpush1.bf16.msra.mxu0 %v10602
  %10674 = vmatprep.subr.bf16.mxu0 0
  %10675 = vmatpush1.bf16.msra.mxu0 %v10603
  %10676 = vmatprep.subr.bf16.mxu0 0
  %10677 = vmatpush1.bf16.msra.mxu0 %v10604
  %10678 = vmatprep.subr.bf16.mxu0 0
  %10679 = vmatpush1.bf16.msra.mxu0 %v10605
  %10680 = vmatprep.subr.bf16.mxu0 0
  %10681 = vmatpush1.bf16.msra.mxu0 %v10606
  %10682 = vmatprep.subr.bf16.mxu0 0
  %10683 = vmatpush1.bf16.msra.mxu0 %v10607
  %10684 = vmatprep.subr.bf16.mxu0 0
  %10685 = vmatpush1.bf16.msra.mxu0 %v10608
  %10686 = vmatprep.subr.bf16.mxu0 0
  %10687 = vmatpush1.bf16.msra.mxu0 %v10609
  %10688 = vmatprep.subr.bf16.mxu0 0
  %10689 = vmatpush1.bf16.msra.mxu0 %v10610
  %10690 = vmatprep.subr.bf16.mxu0 0
  %10691 = vmatpush1.bf16.msra.mxu0 %v10611
  %10692 = vmatprep.mubr.bf16.mxu0 %v10334
  %10693 = vmatmul.mubr.bf16.gmra.mrb[0].mxu0 %v10333
  %v10694 = vpop.f32.mrb[0].mxu0
  %v10695 = vadd.f32 %v10466, %v10694
  %v10696 = vpop.f32.mrb[0].mxu0
  %v10697 = vpop.f32.mrb[0].mxu0
  %v10698 = vadd.f32 %v10466, %v10697
  %v10699 = vpop.f32.mrb[0].mxu0
  %10700 = vmatprep.mubr.bf16.mxu0 %v10338
  %10701 = vmatmul.mubr.bf16.gmra.mrb[0].mxu0 %v10337
  %v10702 = vpop.f32.mrb[0].mxu0
  %v10703 = vadd.f32 %v10466, %v10702
  %v10704 = vpop.f32.mrb[0].mxu0
  %v10705 = vpop.f32.mrb[0].mxu0
  %v10706 = vadd.f32 %v10466, %v10705
  %v10707 = vpop.f32.mrb[0].mxu0
  %10708 = vmatprep.mubr.bf16.mxu0 %v10342
  %10709 = vmatmul.mubr.bf16.gmra.mrb[0].mxu0 %v10341
  %v10710 = vpop.f32.mrb[0].mxu0
  %v10711 = vadd.f32 %v10466, %v10710
  %v10712 = vpop.f32.mrb[0].mxu0
  %v10713 = vpop.f32.mrb[0].mxu0
  %v10714 = vadd.f32 %v10466, %v10713
  %v10715 = vpop.f32.mrb[0].mxu0
  %10716 = vmatprep.mubr.bf16.mxu0 %v10346
  %10717 = vmatmul.mubr.bf16.gmra.mrb[0].mxu0 %v10345
  %v10718 = vpop.f32.mrb[0].mxu0
  %v10719 = vadd.f32 %v10466, %v10718
  %v10720 = vpop.f32.mrb[0].mxu0
  %v10721 = vpop.f32.mrb[0].mxu0
  %v10722 = vadd.f32 %v10466, %v10721
  %v10723 = vpop.f32.mrb[0].mxu0
  %10724 = vmatprep.mubr.bf16.mxu0 %v10350
  %10725 = vmatmul.mubr.bf16.gmra.mrb[0].mxu0 %v10349
  %v10726 = vpop.f32.mrb[0].mxu0
  %v10727 = vadd.f32 %v10466, %v10726
  %v10728 = vpop.f32.mrb[0].mxu0
  %v10729 = vpop.f32.mrb[0].mxu0
  %v10730 = vadd.f32 %v10466, %v10729
  %v10731 = vpop.f32.mrb[0].mxu0
  %10732 = vmatprep.mubr.bf16.mxu0 %v10354
  %10733 = vmatmul.mubr.bf16.gmra.mrb[0].mxu0 %v10353
  %v10734 = vpop.f32.mrb[0].mxu0
  %v10735 = vadd.f32 %v10466, %v10734
  %v10736 = vpop.f32.mrb[0].mxu0
  %v10737 = vpop.f32.mrb[0].mxu0
  %v10738 = vadd.f32 %v10466, %v10737
  %v10739 = vpop.f32.mrb[0].mxu0
  %10740 = vmatprep.mubr.bf16.mxu0 %v10358
  %10741 = vmatmul.mubr.bf16.gmra.mrb[0].mxu0 %v10357
  %v10742 = vpop.f32.mrb[0].mxu0
  %v10743 = vadd.f32 %v10466, %v10742
  %v10744 = vpop.f32.mrb[0].mxu0
  %v10745 = vpop.f32.mrb[0].mxu0
  %v10746 = vadd.f32 %v10466, %v10745
  %v10747 = vpop.f32.mrb[0].mxu0
  %10748 = vmatprep.mubr.bf16.mxu0 %v10362
  %10749 = vmatmul.mubr.bf16.gmra.mrb[0].mxu0 %v10361
  %v10750 = vpop.f32.mrb[0].mxu0
  %v10751 = vadd.f32 %v10466, %v10750
  %v10752 = vpop.f32.mrb[0].mxu0
  %v10753 = vpop.f32.mrb[0].mxu0
  %v10754 = vadd.f32 %v10466, %v10753
  %v10755 = vpop.f32.mrb[0].mxu0
  %10756 = vmatprep.mubr.bf16.mxu0 %v10366
  %10757 = vmatmul.mubr.bf16.gmra.mrb[0].mxu0 %v10365
  %v10758 = vpop.f32.mrb[0].mxu0
  %v10759 = vadd.f32 %v10466, %v10758
  %v10760 = vpop.f32.mrb[0].mxu0
  %v10761 = vpop.f32.mrb[0].mxu0
  %v10762 = vadd.f32 %v10466, %v10761
  %v10763 = vpop.f32.mrb[0].mxu0
  %10764 = vmatprep.mubr.bf16.mxu0 %v10370
  %10765 = vmatmul.mubr.bf16.gmra.mrb[0].mxu0 %v10369
  %v10766 = vpop.f32.mrb[0].mxu0
  %v10767 = vadd.f32 %v10466, %v10766
  %v10768 = vpop.f32.mrb[0].mxu0
  %v10769 = vpop.f32.mrb[0].mxu0
  %v10770 = vadd.f32 %v10466, %v10769
  %v10771 = vpop.f32.mrb[0].mxu0
  %10772 = vmatprep.mubr.bf16.mxu0 %v10374
  %10773 = vmatmul.mubr.bf16.gmra.mrb[0].mxu0 %v10373
  %v10774 = vpop.f32.mrb[0].mxu0
  %v10775 = vadd.f32 %v10466, %v10774
  %v10776 = vpop.f32.mrb[0].mxu0
  %v10777 = vpop.f32.mrb[0].mxu0
  %v10778 = vadd.f32 %v10466, %v10777
  %v10779 = vpop.f32.mrb[0].mxu0
  %10780 = vmatprep.mubr.bf16.mxu0 %v10378
  %10781 = vmatmul.mubr.bf16.gmra.mrb[0].mxu0 %v10377
  %v10782 = vpop.f32.mrb[0].mxu0
  %v10783 = vadd.f32 %v10466, %v10782
  %v10784 = vpop.f32.mrb[0].mxu0
  %v10785 = vpop.f32.mrb[0].mxu0
  %v10786 = vadd.f32 %v10466, %v10785
  %v10787 = vpop.f32.mrb[0].mxu0
  %10788 = vmatprep.mubr.bf16.mxu0 %v10382
  %10789 = vmatmul.mubr.bf16.gmra.mrb[0].mxu0 %v10381
  %v10790 = vpop.f32.mrb[0].mxu0
  %v10791 = vadd.f32 %v10466, %v10790
  %v10792 = vpop.f32.mrb[0].mxu0
  %v10793 = vpop.f32.mrb[0].mxu0
  %v10794 = vadd.f32 %v10466, %v10793
  %v10795 = vpop.f32.mrb[0].mxu0
  %10796 = vmatprep.mubr.bf16.mxu0 %v10386
  %10797 = vmatmul.mubr.bf16.gmra.mrb[0].mxu0 %v10385
  %v10798 = vpop.f32.mrb[0].mxu0
  %v10799 = vadd.f32 %v10466, %v10798
  %v10800 = vpop.f32.mrb[0].mxu0
  %v10801 = vpop.f32.mrb[0].mxu0
  %v10802 = vadd.f32 %v10466, %v10801
  %v10803 = vpop.f32.mrb[0].mxu0
  %10804 = vmatprep.mubr.bf16.mxu0 %v10390
  %10805 = vmatmul.mubr.bf16.gmra.mrb[0].mxu0 %v10389
  %v10806 = vpop.f32.mrb[0].mxu0
  %v10807 = vadd.f32 %v10466, %v10806
  %v10808 = vpop.f32.mrb[0].mxu0
  %v10809 = vpop.f32.mrb[0].mxu0
  %v10810 = vadd.f32 %v10466, %v10809
  %v10811 = vpop.f32.mrb[0].mxu0
  %10812 = vmatprep.mubr.bf16.mxu0 %v10394
  %10813 = vmatmul.mubr.bf16.gmra.mrb[0].mxu0 %v10393
  %v10814 = vpop.f32.mrb[0].mxu0
  %v10815 = vadd.f32 %v10466, %v10814
  %v10816 = vpop.f32.mrb[0].mxu0
  %v10817 = vpop.f32.mrb[0].mxu0
  %v10818 = vadd.f32 %v10466, %v10817
  %v10819 = vpop.f32.mrb[0].mxu0
  %10820 = vdwg.mxu0
  %10821 = vmatprep.subr.bf16.mxu0 0
  %10822 = vmatpush1.bf16.msra.mxu0 %v10612
  %10823 = vmatprep.subr.bf16.mxu0 0
  %10824 = vmatpush1.bf16.msra.mxu0 %v10613
  %10825 = vmatprep.subr.bf16.mxu0 0
  %10826 = vmatpush1.bf16.msra.mxu0 %v10614
  %10827 = vmatprep.subr.bf16.mxu0 0
  %10828 = vmatpush1.bf16.msra.mxu0 %v10615
  %10829 = vmatprep.subr.bf16.mxu0 0
  %10830 = vmatpush1.bf16.msra.mxu0 %v10616
  %10831 = vmatprep.subr.bf16.mxu0 0
  %10832 = vmatpush1.bf16.msra.mxu0 %v10617
  %10833 = vmatprep.subr.bf16.mxu0 0
  %10834 = vmatpush1.bf16.msra.mxu0 %v10618
  %10835 = vmatprep.subr.bf16.mxu0 0
  %10836 = vmatpush1.bf16.msra.mxu0 %v10619
  %10837 = vmatprep.subr.bf16.mxu0 0
  %10838 = vmatpush1.bf16.msra.mxu0 %v10620
  %10839 = vmatprep.subr.bf16.mxu0 0
  %10840 = vmatpush1.bf16.msra.mxu0 %v10621
  %10841 = vmatprep.subr.bf16.mxu0 0
  %10842 = vmatpush1.bf16.msra.mxu0 %v10622
  %10843 = vmatprep.subr.bf16.mxu0 0
  %10844 = vmatpush1.bf16.msra.mxu0 %v10623
  %10845 = vmatprep.subr.bf16.mxu0 0
  %10846 = vmatpush1.bf16.msra.mxu0 %v10624
  %10847 = vmatprep.subr.bf16.mxu0 0
  %10848 = vmatpush1.bf16.msra.mxu0 %v10625
  %10849 = vmatprep.subr.bf16.mxu0 0
  %10850 = vmatpush1.bf16.msra.mxu0 %v10626
  %10851 = vmatprep.subr.bf16.mxu0 0
  %10852 = vmatpush1.bf16.msra.mxu0 %v10627
  %10853 = vmatprep.mubr.bf16.mxu0 %v10336
  %10854 = vmatmul.mubr.bf16.gmra.mrb[0].mxu0 %v10335
  %v10855 = vpop.f32.mrb[0].mxu0
  %v10856 = vadd.f32 %v10695, %v10855
  %v10857 = vpop.f32.mrb[0].mxu0
  %v10858 = vpop.f32.mrb[0].mxu0
  %v10859 = vadd.f32 %v10698, %v10858
  %v10860 = vpop.f32.mrb[0].mxu0
  %10861 = vmatprep.mubr.bf16.mxu0 %v10340
  %10862 = vmatmul.mubr.bf16.gmra.mrb[0].mxu0 %v10339
  %v10863 = vpop.f32.mrb[0].mxu0
  %v10864 = vadd.f32 %v10703, %v10863
  %v10865 = vpop.f32.mrb[0].mxu0
  %v10866 = vpop.f32.mrb[0].mxu0
  %v10867 = vadd.f32 %v10706, %v10866
  %v10868 = vpop.f32.mrb[0].mxu0
  %10869 = vmatprep.mubr.bf16.mxu0 %v10344
  %10870 = vmatmul.mubr.bf16.gmra.mrb[0].mxu0 %v10343
  %v10871 = vpop.f32.mrb[0].mxu0
  %v10872 = vadd.f32 %v10711, %v10871
  %v10873 = vpop.f32.mrb[0].mxu0
  %v10874 = vpop.f32.mrb[0].mxu0
  %v10875 = vadd.f32 %v10714, %v10874
  %v10876 = vpop.f32.mrb[0].mxu0
  %10877 = vmatprep.mubr.bf16.mxu0 %v10348
  %10878 = vmatmul.mubr.bf16.gmra.mrb[0].mxu0 %v10347
  %v10879 = vpop.f32.mrb[0].mxu0
  %v10880 = vadd.f32 %v10719, %v10879
  %v10881 = vpop.f32.mrb[0].mxu0
  %v10882 = vpop.f32.mrb[0].mxu0
  %v10883 = vadd.f32 %v10722, %v10882
  %v10884 = vpop.f32.mrb[0].mxu0
  %10885 = vmatprep.mubr.bf16.mxu0 %v10352
  %10886 = vmatmul.mubr.bf16.gmra.mrb[0].mxu0 %v10351
  %v10887 = vpop.f32.mrb[0].mxu0
  %v10888 = vadd.f32 %v10727, %v10887
  %v10889 = vpop.f32.mrb[0].mxu0
  %v10890 = vpop.f32.mrb[0].mxu0
  %v10891 = vadd.f32 %v10730, %v10890
  %v10892 = vpop.f32.mrb[0].mxu0
  %10893 = vmatprep.mubr.bf16.mxu0 %v10356
  %10894 = vmatmul.mubr.bf16.gmra.mrb[0].mxu0 %v10355
  %v10895 = vpop.f32.mrb[0].mxu0
  %v10896 = vadd.f32 %v10735, %v10895
  %v10897 = vpop.f32.mrb[0].mxu0
  %v10898 = vpop.f32.mrb[0].mxu0
  %v10899 = vadd.f32 %v10738, %v10898
  %v10900 = vpop.f32.mrb[0].mxu0
  %10901 = vmatprep.mubr.bf16.mxu0 %v10360
  %10902 = vmatmul.mubr.bf16.gmra.mrb[0].mxu0 %v10359
  %v10903 = vpop.f32.mrb[0].mxu0
  %v10904 = vadd.f32 %v10743, %v10903
  %v10905 = vpop.f32.mrb[0].mxu0
  %v10906 = vpop.f32.mrb[0].mxu0
  %v10907 = vadd.f32 %v10746, %v10906
  %v10908 = vpop.f32.mrb[0].mxu0
  %10909 = vmatprep.mubr.bf16.mxu0 %v10364
  %10910 = vmatmul.mubr.bf16.gmra.mrb[0].mxu0 %v10363
  %v10911 = vpop.f32.mrb[0].mxu0
  %v10912 = vadd.f32 %v10751, %v10911
  %v10913 = vpop.f32.mrb[0].mxu0
  %v10914 = vpop.f32.mrb[0].mxu0
  %v10915 = vadd.f32 %v10754, %v10914
  %v10916 = vpop.f32.mrb[0].mxu0
  %10917 = vmatprep.mubr.bf16.mxu0 %v10368
  %10918 = vmatmul.mubr.bf16.gmra.mrb[0].mxu0 %v10367
  %v10919 = vpop.f32.mrb[0].mxu0
  %v10920 = vadd.f32 %v10759, %v10919
  %v10921 = vpop.f32.mrb[0].mxu0
  %v10922 = vpop.f32.mrb[0].mxu0
  %v10923 = vadd.f32 %v10762, %v10922
  %v10924 = vpop.f32.mrb[0].mxu0
  %10925 = vmatprep.mubr.bf16.mxu0 %v10372
  %10926 = vmatmul.mubr.bf16.gmra.mrb[0].mxu0 %v10371
  %v10927 = vpop.f32.mrb[0].mxu0
  %v10928 = vadd.f32 %v10767, %v10927
  %v10929 = vpop.f32.mrb[0].mxu0
  %v10930 = vpop.f32.mrb[0].mxu0
  %v10931 = vadd.f32 %v10770, %v10930
  %v10932 = vpop.f32.mrb[0].mxu0
  %10933 = vmatprep.mubr.bf16.mxu0 %v10376
  %10934 = vmatmul.mubr.bf16.gmra.mrb[0].mxu0 %v10375
  %v10935 = vpop.f32.mrb[0].mxu0
  %v10936 = vadd.f32 %v10775, %v10935
  %v10937 = vpop.f32.mrb[0].mxu0
  %v10938 = vpop.f32.mrb[0].mxu0
  %v10939 = vadd.f32 %v10778, %v10938
  %v10940 = vpop.f32.mrb[0].mxu0
  %10941 = vmatprep.mubr.bf16.mxu0 %v10380
  %10942 = vmatmul.mubr.bf16.gmra.mrb[0].mxu0 %v10379
  %v10943 = vpop.f32.mrb[0].mxu0
  %v10944 = vadd.f32 %v10783, %v10943
  %v10945 = vpop.f32.mrb[0].mxu0
  %v10946 = vpop.f32.mrb[0].mxu0
  %v10947 = vadd.f32 %v10786, %v10946
  %v10948 = vpop.f32.mrb[0].mxu0
  %10949 = vmatprep.mubr.bf16.mxu0 %v10384
  %10950 = vmatmul.mubr.bf16.gmra.mrb[0].mxu0 %v10383
  %v10951 = vpop.f32.mrb[0].mxu0
  %v10952 = vadd.f32 %v10791, %v10951
  %v10953 = vpop.f32.mrb[0].mxu0
  %v10954 = vpop.f32.mrb[0].mxu0
  %v10955 = vadd.f32 %v10794, %v10954
  %v10956 = vpop.f32.mrb[0].mxu0
  %10957 = vmatprep.mubr.bf16.mxu0 %v10388
  %10958 = vmatmul.mubr.bf16.gmra.mrb[0].mxu0 %v10387
  %v10959 = vpop.f32.mrb[0].mxu0
  %v10960 = vadd.f32 %v10799, %v10959
  %v10961 = vpop.f32.mrb[0].mxu0
  %v10962 = vpop.f32.mrb[0].mxu0
  %v10963 = vadd.f32 %v10802, %v10962
  %v10964 = vpop.f32.mrb[0].mxu0
  %10965 = vmatprep.mubr.bf16.mxu0 %v10392
  %10966 = vmatmul.mubr.bf16.gmra.mrb[0].mxu0 %v10391
  %v10967 = vpop.f32.mrb[0].mxu0
  %v10968 = vadd.f32 %v10807, %v10967
  %v10969 = vpop.f32.mrb[0].mxu0
  %v10970 = vpop.f32.mrb[0].mxu0
  %v10971 = vadd.f32 %v10810, %v10970
  %v10972 = vpop.f32.mrb[0].mxu0
  %10973 = vmatprep.mubr.bf16.mxu0 %v10396
  %10974 = vmatmul.mubr.bf16.gmra.mrb[0].mxu0 %v10395
  %v10975 = vpop.f32.mrb[0].mxu0
  %v10976 = vadd.f32 %v10815, %v10975
  %v10977 = vpop.f32.mrb[0].mxu0
  %v10978 = vpop.f32.mrb[0].mxu0
  %v10979 = vadd.f32 %v10818, %v10978
  %v10980 = vpop.f32.mrb[0].mxu0
  %10981 = vdwg.mxu0
  %10982 = vst.msk [vmem:[%s9] sm:$0xff] %vm305, %v10856
  %10983 = vst.msk [vmem:[%s9 + $0x8] sm:$0xff] %vm305, %v10859
  %10984 = vst.msk [vmem:[%s9 + $0x10] sm:$0xff] %vm305, %v10864
  %10985 = vst.msk [vmem:[%s9 + $0x18] sm:$0xff] %vm305, %v10867
  %10986 = vst.msk [vmem:[%s9 + $0x20] sm:$0xff] %vm305, %v10872
  %10987 = vst.msk [vmem:[%s9 + $0x28] sm:$0xff] %vm305, %v10875
  %10988 = vst.msk [vmem:[%s9 + $0x30] sm:$0xff] %vm305, %v10880
  %10989 = vst.msk [vmem:[%s9 + $0x38] sm:$0xff] %vm305, %v10883
  %10990 = vst.msk [vmem:[%s9 + $0x40] sm:$0xff] %vm305, %v10888
  %10991 = vst.msk [vmem:[%s9 + $0x48] sm:$0xff] %vm305, %v10891
  %10992 = vst.msk [vmem:[%s9 + $0x50] sm:$0xff] %vm305, %v10896
  %10993 = vst.msk [vmem:[%s9 + $0x58] sm:$0xff] %vm305, %v10899
  %10994 = vst.msk [vmem:[%s9 + $0x60] sm:$0xff] %vm305, %v10904
  %10995 = vst.msk [vmem:[%s9 + $0x68] sm:$0xff] %vm305, %v10907
  %10996 = vst.msk [vmem:[%s9 + $0x70] sm:$0xff] %vm305, %v10912
  %10997 = vst.msk [vmem:[%s9 + $0x78] sm:$0xff] %vm305, %v10915
  %10998 = vst.msk [vmem:[%s9 + $0x80] sm:$0xff] %vm305, %v10920
  %10999 = vst.msk [vmem:[%s9 + $0x88] sm:$0xff] %vm305, %v10923
  %11000 = vst.msk [vmem:[%s9 + $0x90] sm:$0xff] %vm305, %v10928
  %11001 = vst.msk [vmem:[%s9 + $0x98] sm:$0xff] %vm305, %v10931
  %11002 = vst.msk [vmem:[%s9 + $0xa0] sm:$0xff] %vm305, %v10936
  %11003 = vst.msk [vmem:[%s9 + $0xa8] sm:$0xff] %vm305, %v10939
  %11004 = vst.msk [vmem:[%s9 + $0xb0] sm:$0xff] %vm305, %v10944
  %11005 = vst.msk [vmem:[%s9 + $0xb8] sm:$0xff] %vm305, %v10947
  %11006 = vst.msk [vmem:[%s9 + $0xc0] sm:$0xff] %vm305, %v10952
  %11007 = vst.msk [vmem:[%s9 + $0xc8] sm:$0xff] %vm305, %v10955
  %11008 = vst.msk [vmem:[%s9 + $0xd0] sm:$0xff] %vm305, %v10960
  %11009 = vst.msk [vmem:[%s9 + $0xd8] sm:$0xff] %vm305, %v10963
  %11010 = vst.msk [vmem:[%s9 + $0xe0] sm:$0xff] %vm305, %v10968
  %11011 = vst.msk [vmem:[%s9 + $0xe8] sm:$0xff] %vm305, %v10971
  %11012 = vst.msk [vmem:[%s9 + $0xf0] sm:$0xff] %vm305, %v10976
  %11013 = vst.msk [vmem:[%s9 + $0xf8] sm:$0xff] %vm305, %v10979
  // Predicated region
  $region38: #{tpu_custom_call.1} parent=0 // pred_check
    _
  $region39: #{tpu_custom_call.1} parent=0 // pred_check_branch
    %11015 = sbr.rel (0) target = $region41
  $region40: #{tpu_custom_call.1} parent=0 // pred_region
    _
  $region41: #{tpu_custom_call.1} parent=0 // pred_fallthru
    _
  // Predicated region
  $region42: #{tpu_custom_call.1} parent=0 // pred_check
    _
  $region43: #{tpu_custom_call.1} parent=0 // pred_check_branch
    %11017 = sbr.rel (0) target = $region45
  $region44: #{tpu_custom_call.1} parent=0 // pred_region
    _
  $region45: #{tpu_custom_call.1} parent=0 // pred_fallthru
    _

</llo_original>
